<compile_context>
chip_gen: v7x
topology: tpu7x:2x2x1
jax: 0.10.0
libtpu: 0.0.40
codegen_flags: <defaults>
</compile_context>

<pallas_src>
import jax
import jax.numpy as jnp
from jax import lax
from jax.experimental import pallas as pl
from jax.experimental.pallas import tpu as pltpu

M = 2                 # number of selective-kernel branches
LEAKY_SLOPE = 0.2
K5 = 5                # fused tap-grid size (kernel-5 branch; kernel-3 embedded)
PMAX = 2              # padding of the 5x5 branch
BN_EPS = 1e-5


def skconv_kernel(x_ref, w_ref, b_ref, fcw_ref, fcb_ref, fcsw_ref, fcsb_ref,
                  out_ref, xpad_ref):
    _, H, W, C = out_ref.shape

    # ---- halo: zero-padded copy of the input tile in VMEM (no XLA pad op) ----
    xpad_ref[...] = jnp.zeros(xpad_ref.shape, xpad_ref.dtype)
    xpad_ref[pl.ds(PMAX, H), pl.ds(PMAX, W), :] = x_ref[0]
    xp = xpad_ref[...]                                   # (Hp, Wp, C) f32

    # ---- fused dual-branch conv: 25 taps, one (H*W, C) x (C, 2C) matmul each ----
    # 3x3 branch weights are zero-padded into the 5x5 tap grid; conv bias + eval-mode
    # BN are folded into w_ref / b_ref by the wrapper. bf16 operands, f32 accumulation.
    acc = jnp.zeros((H * W, 2 * C), jnp.float32)
    for kh in range(K5):
        for kw in range(K5):
            patch = xp[kh:kh + H, kw:kw + W, :].reshape(H * W, C)
            acc = acc + jnp.dot(patch.astype(jnp.bfloat16), w_ref[kh, kw],
                                preferred_element_type=jnp.float32)
    acc = acc + b_ref[...]                               # folded conv bias + BN shift
    acc = jnp.where(acc >= 0, acc, LEAKY_SLOPE * acc)    # LeakyReLU(0.2), f32

    fea3 = acc[:, :C]                                    # branch 0 (3x3)
    fea5 = acc[:, C:]                                    # branch 1 (5x5)

    # ---- fuse: sum over branches, global spatial max per channel ----
    fea_U = fea3 + fea5                                  # (H*W, C)
    fea_s = jnp.max(fea_U, axis=0, keepdims=True)        # (1, C)

    # ---- squeeze / excite MLPs (tiny, f32) ----
    fea_z = jnp.dot(fea_s, fcw_ref[...],
                    preferred_element_type=jnp.float32) + fcb_ref[...]       # (1, d)
    v3 = jnp.dot(fea_z, fcsw_ref[0],
                 preferred_element_type=jnp.float32) + fcsb_ref[0:1, :]      # (1, C)
    v5 = jnp.dot(fea_z, fcsw_ref[1],
                 preferred_element_type=jnp.float32) + fcsb_ref[1:2, :]      # (1, C)

    # ---- softmax over the branch axis ----
    vmax = jnp.maximum(v3, v5)
    e3 = jnp.exp(v3 - vmax)
    e5 = jnp.exp(v5 - vmax)
    inv = pl.reciprocal(e3 + e5, approx=True)            # EUP slot
    att3 = e3 * inv
    att5 = e5 * inv

    # ---- attention-weighted sum of branch features ----
    fea_v = fea3 * att3 + fea5 * att5                    # (H*W, C)
    out_ref[0] = fea_v.reshape(H, W, C).astype(out_ref.dtype)


def init_params(key, features, r=2, L=8):
    C = features
    d = max(C // r, L)
    ks = jax.random.split(key, 5)

    def kaiming(k, shape, fan_in):
        return jax.random.normal(k, shape, jnp.float32) * jnp.sqrt(2.0 / fan_in)

    # conv weights stored as (K, K, Cin, Cout); biases zero-initialized
    w3 = kaiming(ks[0], (3, 3, C, C), C * 3 * 3)
    w5 = kaiming(ks[1], (5, 5, C, C), C * 5 * 5)
    cb3 = jnp.zeros((C,), jnp.float32)
    cb5 = jnp.zeros((C,), jnp.float32)

    # BatchNorm (eval): gamma=1, beta=0, running_mean=0, running_var=1
    bn_scale = jnp.full((M, C), 1.0 / jnp.sqrt(1.0 + BN_EPS), jnp.float32)
    bn_shift = jnp.zeros((M, C), jnp.float32)

    # fc: Linear(C, d); fcs[i]: Linear(d, C)  -- stored input-major (in, out)
    fc_w = kaiming(ks[2], (C, d), C)
    fc_b = jnp.zeros((1, d), jnp.float32)
    fcs_w = jnp.stack([kaiming(ks[3], (d, C), d),
                       kaiming(ks[4], (d, C), d)])       # (M, d, C)
    fcs_b = jnp.zeros((M, C), jnp.float32)

    return dict(w3=w3, cb3=cb3, w5=w5, cb5=cb5,
                bn_scale=bn_scale, bn_shift=bn_shift,
                fc_w=fc_w, fc_b=fc_b, fcs_w=fcs_w, fcs_b=fcs_b)


def fold_params(p):
    """Fold conv bias + eval-mode BN into one fused (5,5,C,2C) bf16 weight and a
    (1, 2C) f32 bias. The 3x3 branch is zero-padded to the central 5x5 taps."""
    C = p['w3'].shape[2]
    w3_as5 = jnp.zeros((K5, K5, C, C), jnp.float32).at[1:4, 1:4].set(p['w3'])
    w_full = jnp.concatenate([w3_as5, p['w5']], axis=3)                  # (5,5,C,2C)
    scale = jnp.concatenate([p['bn_scale'][0], p['bn_scale'][1]])        # (2C,)
    shift = jnp.concatenate([p['bn_shift'][0], p['bn_shift'][1]])        # (2C,)
    cbias = jnp.concatenate([p['cb3'], p['cb5']])                        # (2C,)
    w_fused = (w_full * scale[None, None, None, :]).astype(jnp.bfloat16)
    b_fused = (cbias * scale + shift)[None, :].astype(jnp.float32)       # (1, 2C)
    return w_fused, b_fused


def sk_conv_max(x_nchw, p):
    B, C, H, W = x_nchw.shape
    d = p['fc_w'].shape[1]
    Hp, Wp = H + 2 * PMAX, W + 2 * PMAX
    w_fused, b_fused = fold_params(p)
    x = jnp.transpose(x_nchw, (0, 2, 3, 1)).astype(jnp.float32)          # NHWC, unpadded

    out = pl.pallas_call(
        skconv_kernel,
        out_shape=jax.ShapeDtypeStruct((B, H, W, C), jnp.float32),
        grid_spec=pltpu.PrefetchScalarGridSpec(
            num_scalar_prefetch=0,
            grid=(B,),
            in_specs=[
                pl.BlockSpec((1, H, W, C), lambda b: (b, 0, 0, 0)),      # input tile
                pl.BlockSpec((K5, K5, C, 2 * C), lambda b: (0, 0, 0, 0)),  # fused conv w
                pl.BlockSpec((1, 2 * C), lambda b: (0, 0)),              # fused bias
                pl.BlockSpec((C, d), lambda b: (0, 0)),                  # fc weight
                pl.BlockSpec((1, d), lambda b: (0, 0)),                  # fc bias
                pl.BlockSpec((M, d, C), lambda b: (0, 0, 0)),            # fcs weights
                pl.BlockSpec((M, C), lambda b: (0, 0)),                  # fcs biases
            ],
            out_specs=pl.BlockSpec((1, H, W, C), lambda b: (b, 0, 0, 0)),
            scratch_shapes=[pltpu.VMEM((Hp, Wp, C), jnp.float32)],       # padded input
        ),
        compiler_params=pltpu.CompilerParams(
            dimension_semantics=("parallel",),
            vmem_limit_bytes=48 << 20,
        ),
    )(x, w_fused, b_fused, p['fc_w'], p['fc_b'], p['fcs_w'], p['fcs_b'])

    return jnp.transpose(out, (0, 3, 1, 2))                              # back to NCHW


def ref_forward(x_nchw, p):
    """Pure-JAX f32 reference of the PyTorch forward (eval-mode BN, unfused)."""
    feas = []
    for m, (w, cb, pad) in enumerate([(p['w3'], p['cb3'], 1),
                                      (p['w5'], p['cb5'], 2)]):
        w_oihw = jnp.transpose(w, (3, 2, 0, 1))
        y = lax.conv_general_dilated(x_nchw, w_oihw, (1, 1),
                                     [(pad, pad), (pad, pad)],
                                     dimension_numbers=('NCHW', 'OIHW', 'NCHW'))
        y = y + cb[None, :, None, None]
        y = y * p['bn_scale'][m][None, :, None, None] + p['bn_shift'][m][None, :, None, None]
        y = jnp.where(y >= 0, y, LEAKY_SLOPE * y)
        feas.append(y)
    feas = jnp.stack(feas, axis=1)                    # (B, M, C, H, W)
    fea_U = feas.sum(axis=1)
    fea_s = fea_U.max(-1).max(-1)                     # (B, C)
    fea_z = fea_s @ p['fc_w'] + p['fc_b'][0]          # (B, d)
    vecs = jnp.stack([fea_z @ p['fcs_w'][m] + p['fcs_b'][m] for m in range(M)],
                     axis=1)                          # (B, M, C)
    att = jax.nn.softmax(vecs, axis=1)
    return (feas * att[..., None, None]).sum(axis=1)  # (B, C, H, W)


if __name__ == "__main__":
    key = jax.random.PRNGKey(0)
    kx, kp = jax.random.split(key)
    B, C, H, W = 2, 4, 16, 16                         # features=4 -> d = max(4//2, 8) = 8
    x = jax.random.normal(kx, (B, C, H, W), jnp.float32)
    params = init_params(kp, C)

    out = sk_conv_max(x, params)
    out = jax.block_until_ready(out)

    ref = ref_forward(x, params)
    assert out.shape == (B, C, H, W)
    # bf16 MXU operands + approximate reciprocal -> slightly looser tolerance than f32.
    assert jnp.allclose(out, ref, rtol=2e-2, atol=2e-2), \
        float(jnp.max(jnp.abs(out - ref)))
    print("KERNEL_OK")
</pallas_src>

<mosaic_0001>
module attributes {stable_mosaic.version = 11 : i64} {
  func.func @skconv_kernel(%arg0: i32, %arg1: memref<1x16x16x4xf32, #tpu.memory_space<vmem>>, %arg2: memref<5x5x4x8xbf16, #tpu.memory_space<vmem>>, %arg3: memref<1x8xf32, #tpu.memory_space<vmem>>, %arg4: memref<4x8xf32, #tpu.memory_space<vmem>>, %arg5: memref<1x8xf32, #tpu.memory_space<vmem>>, %arg6: memref<2x8x4xf32, #tpu.memory_space<vmem>>, %arg7: memref<2x4xf32, #tpu.memory_space<vmem>>, %arg8: memref<1x16x16x4xf32, #tpu.memory_space<vmem>>, %arg9: memref<20x20x4xf32, #tpu.memory_space<vmem>>) attributes {dimension_semantics = [#tpu.dimension_semantics<parallel>], iteration_bounds = array<i64: 2>, scalar_prefetch = 0 : i64, scratch_operands = 1 : i64, tpu.core_type = #tpu.core_type<tc>, window_params = [{transform_indices = @transform_0, window_bounds = array<i64: 1, 16, 16, 4>}, {pipeline_mode = #tpu.pipeline_mode<synchronous>, transform_indices = @transform_1, window_bounds = array<i64: 5, 5, 4, 8>}, {pipeline_mode = #tpu.pipeline_mode<synchronous>, transform_indices = @transform_2, window_bounds = array<i64: 1, 8>}, {pipeline_mode = #tpu.pipeline_mode<synchronous>, transform_indices = @transform_3, window_bounds = array<i64: 4, 8>}, {pipeline_mode = #tpu.pipeline_mode<synchronous>, transform_indices = @transform_4, window_bounds = array<i64: 1, 8>}, {pipeline_mode = #tpu.pipeline_mode<synchronous>, transform_indices = @transform_5, window_bounds = array<i64: 2, 8, 4>}, {pipeline_mode = #tpu.pipeline_mode<synchronous>, transform_indices = @transform_6, window_bounds = array<i64: 2, 4>}, {transform_indices = @transform_7, window_bounds = array<i64: 1, 16, 16, 4>}]} {
    %cst = arith.constant 0.000000e+00 : f32
    %0 = vector.broadcast %cst : f32 to vector<20x20x4xf32>
    %c0 = arith.constant 0 : index
    %c0_0 = arith.constant 0 : index
    %c0_1 = arith.constant 0 : index
    %1 = vector.load %arg9[%c0, %c0_0, %c0_1] : memref<20x20x4xf32, #tpu.memory_space<vmem>>, vector<20x20x4xf32>
    tpu.vector_store %arg9[%c0, %c0_0, %c0_1], %0 {strides = array<i32>} : memref<20x20x4xf32, #tpu.memory_space<vmem>>, vector<20x20x4xf32>,
    %c0_2 = arith.constant 0 : index
    %c0_3 = arith.constant 0 : index
    %c0_4 = arith.constant 0 : index
    %c0_5 = arith.constant 0 : index
    %2 = vector.load %arg1[%c0_2, %c0_3, %c0_4, %c0_5] : memref<1x16x16x4xf32, #tpu.memory_space<vmem>>, vector<1x16x16x4xf32>
    %3 = vector.shape_cast %2 : vector<1x16x16x4xf32> to vector<16x16x4xf32>
    %c2 = arith.constant 2 : index
    %c2_6 = arith.constant 2 : index
    %c0_7 = arith.constant 0 : index
    %4 = vector.load %arg9[%c2, %c2_6, %c0_7] : memref<20x20x4xf32, #tpu.memory_space<vmem>>, vector<16x16x4xf32>
    tpu.vector_store %arg9[%c2, %c2_6, %c0_7], %3 {strides = array<i32>} : memref<20x20x4xf32, #tpu.memory_space<vmem>>, vector<16x16x4xf32>,
    %c0_8 = arith.constant 0 : index
    %c0_9 = arith.constant 0 : index
    %c0_10 = arith.constant 0 : index
    %5 = vector.load %arg9[%c0_8, %c0_9, %c0_10] : memref<20x20x4xf32, #tpu.memory_space<vmem>>, vector<20x20x4xf32>
    %cst_11 = arith.constant 0.000000e+00 : f32
    %6 = vector.broadcast %cst_11 : f32 to vector<256x8xf32>
    %7 = vector.extract_strided_slice %5 {offsets = [0, 0, 0], sizes = [16, 16, 4], strides = [1, 1, 1]} : vector<20x20x4xf32> to vector<16x16x4xf32>
    %8 = vector.shape_cast %7 : vector<16x16x4xf32> to vector<256x4xf32>
    %9 = arith.truncf %8 : vector<256x4xf32> to vector<256x4xbf16>
    %c0_12 = arith.constant 0 : index
    %c0_13 = arith.constant 0 : index
    %c0_14 = arith.constant 0 : index
    %c0_15 = arith.constant 0 : index
    %10 = vector.load %arg2[%c0_12, %c0_13, %c0_14, %c0_15] : memref<5x5x4x8xbf16, #tpu.memory_space<vmem>>, vector<1x1x4x8xbf16>
    %11 = vector.shape_cast %10 : vector<1x1x4x8xbf16> to vector<4x8xbf16>
    %cst_16 = arith.constant dense<0.000000e+00> : vector<256x8xf32>
    %12 = tpu.matmul %9, %11, %cst_16 {dimension_numbers = #tpu.dot_dimension_numbers<[1], [0], [0], [1], [0, 0, 1, 1], [], []>} : vector<256x4xbf16>, vector<4x8xbf16>, vector<256x8xf32> -> vector<256x8xf32>
    %13 = arith.addf %6, %12 : vector<256x8xf32>
    %14 = vector.extract_strided_slice %5 {offsets = [0, 1, 0], sizes = [16, 16, 4], strides = [1, 1, 1]} : vector<20x20x4xf32> to vector<16x16x4xf32>
    %15 = vector.shape_cast %14 : vector<16x16x4xf32> to vector<256x4xf32>
    %16 = arith.truncf %15 : vector<256x4xf32> to vector<256x4xbf16>
    %c0_17 = arith.constant 0 : index
    %c1 = arith.constant 1 : index
    %c0_18 = arith.constant 0 : index
    %c0_19 = arith.constant 0 : index
    %17 = vector.load %arg2[%c0_17, %c1, %c0_18, %c0_19] : memref<5x5x4x8xbf16, #tpu.memory_space<vmem>>, vector<1x1x4x8xbf16>
    %18 = vector.shape_cast %17 : vector<1x1x4x8xbf16> to vector<4x8xbf16>
    %cst_20 = arith.constant dense<0.000000e+00> : vector<256x8xf32>
    %19 = tpu.matmul %16, %18, %cst_20 {dimension_numbers = #tpu.dot_dimension_numbers<[1], [0], [0], [1], [0, 0, 1, 1], [], []>} : vector<256x4xbf16>, vector<4x8xbf16>, vector<256x8xf32> -> vector<256x8xf32>
    %20 = arith.addf %13, %19 : vector<256x8xf32>
    %21 = vector.extract_strided_slice %5 {offsets = [0, 2, 0], sizes = [16, 16, 4], strides = [1, 1, 1]} : vector<20x20x4xf32> to vector<16x16x4xf32>
    %22 = vector.shape_cast %21 : vector<16x16x4xf32> to vector<256x4xf32>
    %23 = arith.truncf %22 : vector<256x4xf32> to vector<256x4xbf16>
    %c0_21 = arith.constant 0 : index
    %c2_22 = arith.constant 2 : index
    %c0_23 = arith.constant 0 : index
    %c0_24 = arith.constant 0 : index
    %24 = vector.load %arg2[%c0_21, %c2_22, %c0_23, %c0_24] : memref<5x5x4x8xbf16, #tpu.memory_space<vmem>>, vector<1x1x4x8xbf16>
    %25 = vector.shape_cast %24 : vector<1x1x4x8xbf16> to vector<4x8xbf16>
    %cst_25 = arith.constant dense<0.000000e+00> : vector<256x8xf32>
    %26 = tpu.matmul %23, %25, %cst_25 {dimension_numbers = #tpu.dot_dimension_numbers<[1], [0], [0], [1], [0, 0, 1, 1], [], []>} : vector<256x4xbf16>, vector<4x8xbf16>, vector<256x8xf32> -> vector<256x8xf32>
    %27 = arith.addf %20, %26 : vector<256x8xf32>
    %28 = vector.extract_strided_slice %5 {offsets = [0, 3, 0], sizes = [16, 16, 4], strides = [1, 1, 1]} : vector<20x20x4xf32> to vector<16x16x4xf32>
    %29 = vector.shape_cast %28 : vector<16x16x4xf32> to vector<256x4xf32>
    %30 = arith.truncf %29 : vector<256x4xf32> to vector<256x4xbf16>
    %c0_26 = arith.constant 0 : index
    %c3 = arith.constant 3 : index
    %c0_27 = arith.constant 0 : index
    %c0_28 = arith.constant 0 : index
    %31 = vector.load %arg2[%c0_26, %c3, %c0_27, %c0_28] : memref<5x5x4x8xbf16, #tpu.memory_space<vmem>>, vector<1x1x4x8xbf16>
    %32 = vector.shape_cast %31 : vector<1x1x4x8xbf16> to vector<4x8xbf16>
    %cst_29 = arith.constant dense<0.000000e+00> : vector<256x8xf32>
    %33 = tpu.matmul %30, %32, %cst_29 {dimension_numbers = #tpu.dot_dimension_numbers<[1], [0], [0], [1], [0, 0, 1, 1], [], []>} : vector<256x4xbf16>, vector<4x8xbf16>, vector<256x8xf32> -> vector<256x8xf32>
    %34 = arith.addf %27, %33 : vector<256x8xf32>
    %35 = vector.extract_strided_slice %5 {offsets = [0, 4, 0], sizes = [16, 16, 4], strides = [1, 1, 1]} : vector<20x20x4xf32> to vector<16x16x4xf32>
    %36 = vector.shape_cast %35 : vector<16x16x4xf32> to vector<256x4xf32>
    %37 = arith.truncf %36 : vector<256x4xf32> to vector<256x4xbf16>
    %c0_30 = arith.constant 0 : index
    %c4 = arith.constant 4 : index
    %c0_31 = arith.constant 0 : index
    %c0_32 = arith.constant 0 : index
    %38 = vector.load %arg2[%c0_30, %c4, %c0_31, %c0_32] : memref<5x5x4x8xbf16, #tpu.memory_space<vmem>>, vector<1x1x4x8xbf16>
    %39 = vector.shape_cast %38 : vector<1x1x4x8xbf16> to vector<4x8xbf16>
    %cst_33 = arith.constant dense<0.000000e+00> : vector<256x8xf32>
    %40 = tpu.matmul %37, %39, %cst_33 {dimension_numbers = #tpu.dot_dimension_numbers<[1], [0], [0], [1], [0, 0, 1, 1], [], []>} : vector<256x4xbf16>, vector<4x8xbf16>, vector<256x8xf32> -> vector<256x8xf32>
    %41 = arith.addf %34, %40 : vector<256x8xf32>
    %42 = vector.extract_strided_slice %5 {offsets = [1, 0, 0], sizes = [16, 16, 4], strides = [1, 1, 1]} : vector<20x20x4xf32> to vector<16x16x4xf32>
    %43 = vector.shape_cast %42 : vector<16x16x4xf32> to vector<256x4xf32>
    %44 = arith.truncf %43 : vector<256x4xf32> to vector<256x4xbf16>
    %c1_34 = arith.constant 1 : index
    %c0_35 = arith.constant 0 : index
    %c0_36 = arith.constant 0 : index
    %c0_37 = arith.constant 0 : index
    %45 = vector.load %arg2[%c1_34, %c0_35, %c0_36, %c0_37] : memref<5x5x4x8xbf16, #tpu.memory_space<vmem>>, vector<1x1x4x8xbf16>
    %46 = vector.shape_cast %45 : vector<1x1x4x8xbf16> to vector<4x8xbf16>
    %cst_38 = arith.constant dense<0.000000e+00> : vector<256x8xf32>
    %47 = tpu.matmul %44, %46, %cst_38 {dimension_numbers = #tpu.dot_dimension_numbers<[1], [0], [0], [1], [0, 0, 1, 1], [], []>} : vector<256x4xbf16>, vector<4x8xbf16>, vector<256x8xf32> -> vector<256x8xf32>
    %48 = arith.addf %41, %47 : vector<256x8xf32>
    %49 = vector.extract_strided_slice %5 {offsets = [1, 1, 0], sizes = [16, 16, 4], strides = [1, 1, 1]} : vector<20x20x4xf32> to vector<16x16x4xf32>
    %50 = vector.shape_cast %49 : vector<16x16x4xf32> to vector<256x4xf32>
    %51 = arith.truncf %50 : vector<256x4xf32> to vector<256x4xbf16>
    %c1_39 = arith.constant 1 : index
    %c1_40 = arith.constant 1 : index
    %c0_41 = arith.constant 0 : index
    %c0_42 = arith.constant 0 : index
    %52 = vector.load %arg2[%c1_39, %c1_40, %c0_41, %c0_42] : memref<5x5x4x8xbf16, #tpu.memory_space<vmem>>, vector<1x1x4x8xbf16>
    %53 = vector.shape_cast %52 : vector<1x1x4x8xbf16> to vector<4x8xbf16>
    %cst_43 = arith.constant dense<0.000000e+00> : vector<256x8xf32>
    %54 = tpu.matmul %51, %53, %cst_43 {dimension_numbers = #tpu.dot_dimension_numbers<[1], [0], [0], [1], [0, 0, 1, 1], [], []>} : vector<256x4xbf16>, vector<4x8xbf16>, vector<256x8xf32> -> vector<256x8xf32>
    %55 = arith.addf %48, %54 : vector<256x8xf32>
    %56 = vector.extract_strided_slice %5 {offsets = [1, 2, 0], sizes = [16, 16, 4], strides = [1, 1, 1]} : vector<20x20x4xf32> to vector<16x16x4xf32>
    %57 = vector.shape_cast %56 : vector<16x16x4xf32> to vector<256x4xf32>
    %58 = arith.truncf %57 : vector<256x4xf32> to vector<256x4xbf16>
    %c1_44 = arith.constant 1 : index
    %c2_45 = arith.constant 2 : index
    %c0_46 = arith.constant 0 : index
    %c0_47 = arith.constant 0 : index
    %59 = vector.load %arg2[%c1_44, %c2_45, %c0_46, %c0_47] : memref<5x5x4x8xbf16, #tpu.memory_space<vmem>>, vector<1x1x4x8xbf16>
    %60 = vector.shape_cast %59 : vector<1x1x4x8xbf16> to vector<4x8xbf16>
    %cst_48 = arith.constant dense<0.000000e+00> : vector<256x8xf32>
    %61 = tpu.matmul %58, %60, %cst_48 {dimension_numbers = #tpu.dot_dimension_numbers<[1], [0], [0], [1], [0, 0, 1, 1], [], []>} : vector<256x4xbf16>, vector<4x8xbf16>, vector<256x8xf32> -> vector<256x8xf32>
    %62 = arith.addf %55, %61 : vector<256x8xf32>
    %63 = vector.extract_strided_slice %5 {offsets = [1, 3, 0], sizes = [16, 16, 4], strides = [1, 1, 1]} : vector<20x20x4xf32> to vector<16x16x4xf32>
    %64 = vector.shape_cast %63 : vector<16x16x4xf32> to vector<256x4xf32>
    %65 = arith.truncf %64 : vector<256x4xf32> to vector<256x4xbf16>
    %c1_49 = arith.constant 1 : index
    %c3_50 = arith.constant 3 : index
    %c0_51 = arith.constant 0 : index
    %c0_52 = arith.constant 0 : index
    %66 = vector.load %arg2[%c1_49, %c3_50, %c0_51, %c0_52] : memref<5x5x4x8xbf16, #tpu.memory_space<vmem>>, vector<1x1x4x8xbf16>
    %67 = vector.shape_cast %66 : vector<1x1x4x8xbf16> to vector<4x8xbf16>
    %cst_53 = arith.constant dense<0.000000e+00> : vector<256x8xf32>
    %68 = tpu.matmul %65, %67, %cst_53 {dimension_numbers = #tpu.dot_dimension_numbers<[1], [0], [0], [1], [0, 0, 1, 1], [], []>} : vector<256x4xbf16>, vector<4x8xbf16>, vector<256x8xf32> -> vector<256x8xf32>
    %69 = arith.addf %62, %68 : vector<256x8xf32>
    %70 = vector.extract_strided_slice %5 {offsets = [1, 4, 0], sizes = [16, 16, 4], strides = [1, 1, 1]} : vector<20x20x4xf32> to vector<16x16x4xf32>
    %71 = vector.shape_cast %70 : vector<16x16x4xf32> to vector<256x4xf32>
    %72 = arith.truncf %71 : vector<256x4xf32> to vector<256x4xbf16>
    %c1_54 = arith.constant 1 : index
    %c4_55 = arith.constant 4 : index
    %c0_56 = arith.constant 0 : index
    %c0_57 = arith.constant 0 : index
    %73 = vector.load %arg2[%c1_54, %c4_55, %c0_56, %c0_57] : memref<5x5x4x8xbf16, #tpu.memory_space<vmem>>, vector<1x1x4x8xbf16>
    %74 = vector.shape_cast %73 : vector<1x1x4x8xbf16> to vector<4x8xbf16>
    %cst_58 = arith.constant dense<0.000000e+00> : vector<256x8xf32>
    %75 = tpu.matmul %72, %74, %cst_58 {dimension_numbers = #tpu.dot_dimension_numbers<[1], [0], [0], [1], [0, 0, 1, 1], [], []>} : vector<256x4xbf16>, vector<4x8xbf16>, vector<256x8xf32> -> vector<256x8xf32>
    %76 = arith.addf %69, %75 : vector<256x8xf32>
    %77 = vector.extract_strided_slice %5 {offsets = [2, 0, 0], sizes = [16, 16, 4], strides = [1, 1, 1]} : vector<20x20x4xf32> to vector<16x16x4xf32>
    %78 = vector.shape_cast %77 : vector<16x16x4xf32> to vector<256x4xf32>
    %79 = arith.truncf %78 : vector<256x4xf32> to vector<256x4xbf16>
    %c2_59 = arith.constant 2 : index
    %c0_60 = arith.constant 0 : index
    %c0_61 = arith.constant 0 : index
    %c0_62 = arith.constant 0 : index
    %80 = vector.load %arg2[%c2_59, %c0_60, %c0_61, %c0_62] : memref<5x5x4x8xbf16, #tpu.memory_space<vmem>>, vector<1x1x4x8xbf16>
    %81 = vector.shape_cast %80 : vector<1x1x4x8xbf16> to vector<4x8xbf16>
    %cst_63 = arith.constant dense<0.000000e+00> : vector<256x8xf32>
    %82 = tpu.matmul %79, %81, %cst_63 {dimension_numbers = #tpu.dot_dimension_numbers<[1], [0], [0], [1], [0, 0, 1, 1], [], []>} : vector<256x4xbf16>, vector<4x8xbf16>, vector<256x8xf32> -> vector<256x8xf32>
    %83 = arith.addf %76, %82 : vector<256x8xf32>
    %84 = vector.extract_strided_slice %5 {offsets = [2, 1, 0], sizes = [16, 16, 4], strides = [1, 1, 1]} : vector<20x20x4xf32> to vector<16x16x4xf32>
    %85 = vector.shape_cast %84 : vector<16x16x4xf32> to vector<256x4xf32>
    %86 = arith.truncf %85 : vector<256x4xf32> to vector<256x4xbf16>
    %c2_64 = arith.constant 2 : index
    %c1_65 = arith.constant 1 : index
    %c0_66 = arith.constant 0 : index
    %c0_67 = arith.constant 0 : index
    %87 = vector.load %arg2[%c2_64, %c1_65, %c0_66, %c0_67] : memref<5x5x4x8xbf16, #tpu.memory_space<vmem>>, vector<1x1x4x8xbf16>
    %88 = vector.shape_cast %87 : vector<1x1x4x8xbf16> to vector<4x8xbf16>
    %cst_68 = arith.constant dense<0.000000e+00> : vector<256x8xf32>
    %89 = tpu.matmul %86, %88, %cst_68 {dimension_numbers = #tpu.dot_dimension_numbers<[1], [0], [0], [1], [0, 0, 1, 1], [], []>} : vector<256x4xbf16>, vector<4x8xbf16>, vector<256x8xf32> -> vector<256x8xf32>
    %90 = arith.addf %83, %89 : vector<256x8xf32>
    %91 = vector.extract_strided_slice %5 {offsets = [2, 2, 0], sizes = [16, 16, 4], strides = [1, 1, 1]} : vector<20x20x4xf32> to vector<16x16x4xf32>
    %92 = vector.shape_cast %91 : vector<16x16x4xf32> to vector<256x4xf32>
    %93 = arith.truncf %92 : vector<256x4xf32> to vector<256x4xbf16>
    %c2_69 = arith.constant 2 : index
    %c2_70 = arith.constant 2 : index
    %c0_71 = arith.constant 0 : index
    %c0_72 = arith.constant 0 : index
    %94 = vector.load %arg2[%c2_69, %c2_70, %c0_71, %c0_72] : memref<5x5x4x8xbf16, #tpu.memory_space<vmem>>, vector<1x1x4x8xbf16>
    %95 = vector.shape_cast %94 : vector<1x1x4x8xbf16> to vector<4x8xbf16>
    %cst_73 = arith.constant dense<0.000000e+00> : vector<256x8xf32>
    %96 = tpu.matmul %93, %95, %cst_73 {dimension_numbers = #tpu.dot_dimension_numbers<[1], [0], [0], [1], [0, 0, 1, 1], [], []>} : vector<256x4xbf16>, vector<4x8xbf16>, vector<256x8xf32> -> vector<256x8xf32>
    %97 = arith.addf %90, %96 : vector<256x8xf32>
    %98 = vector.extract_strided_slice %5 {offsets = [2, 3, 0], sizes = [16, 16, 4], strides = [1, 1, 1]} : vector<20x20x4xf32> to vector<16x16x4xf32>
    %99 = vector.shape_cast %98 : vector<16x16x4xf32> to vector<256x4xf32>
    %100 = arith.truncf %99 : vector<256x4xf32> to vector<256x4xbf16>
    %c2_74 = arith.constant 2 : index
    %c3_75 = arith.constant 3 : index
    %c0_76 = arith.constant 0 : index
    %c0_77 = arith.constant 0 : index
    %101 = vector.load %arg2[%c2_74, %c3_75, %c0_76, %c0_77] : memref<5x5x4x8xbf16, #tpu.memory_space<vmem>>, vector<1x1x4x8xbf16>
    %102 = vector.shape_cast %101 : vector<1x1x4x8xbf16> to vector<4x8xbf16>
    %cst_78 = arith.constant dense<0.000000e+00> : vector<256x8xf32>
    %103 = tpu.matmul %100, %102, %cst_78 {dimension_numbers = #tpu.dot_dimension_numbers<[1], [0], [0], [1], [0, 0, 1, 1], [], []>} : vector<256x4xbf16>, vector<4x8xbf16>, vector<256x8xf32> -> vector<256x8xf32>
    %104 = arith.addf %97, %103 : vector<256x8xf32>
    %105 = vector.extract_strided_slice %5 {offsets = [2, 4, 0], sizes = [16, 16, 4], strides = [1, 1, 1]} : vector<20x20x4xf32> to vector<16x16x4xf32>
    %106 = vector.shape_cast %105 : vector<16x16x4xf32> to vector<256x4xf32>
    %107 = arith.truncf %106 : vector<256x4xf32> to vector<256x4xbf16>
    %c2_79 = arith.constant 2 : index
    %c4_80 = arith.constant 4 : index
    %c0_81 = arith.constant 0 : index
    %c0_82 = arith.constant 0 : index
    %108 = vector.load %arg2[%c2_79, %c4_80, %c0_81, %c0_82] : memref<5x5x4x8xbf16, #tpu.memory_space<vmem>>, vector<1x1x4x8xbf16>
    %109 = vector.shape_cast %108 : vector<1x1x4x8xbf16> to vector<4x8xbf16>
    %cst_83 = arith.constant dense<0.000000e+00> : vector<256x8xf32>
    %110 = tpu.matmul %107, %109, %cst_83 {dimension_numbers = #tpu.dot_dimension_numbers<[1], [0], [0], [1], [0, 0, 1, 1], [], []>} : vector<256x4xbf16>, vector<4x8xbf16>, vector<256x8xf32> -> vector<256x8xf32>
    %111 = arith.addf %104, %110 : vector<256x8xf32>
    %112 = vector.extract_strided_slice %5 {offsets = [3, 0, 0], sizes = [16, 16, 4], strides = [1, 1, 1]} : vector<20x20x4xf32> to vector<16x16x4xf32>
    %113 = vector.shape_cast %112 : vector<16x16x4xf32> to vector<256x4xf32>
    %114 = arith.truncf %113 : vector<256x4xf32> to vector<256x4xbf16>
    %c3_84 = arith.constant 3 : index
    %c0_85 = arith.constant 0 : index
    %c0_86 = arith.constant 0 : index
    %c0_87 = arith.constant 0 : index
    %115 = vector.load %arg2[%c3_84, %c0_85, %c0_86, %c0_87] : memref<5x5x4x8xbf16, #tpu.memory_space<vmem>>, vector<1x1x4x8xbf16>
    %116 = vector.shape_cast %115 : vector<1x1x4x8xbf16> to vector<4x8xbf16>
    %cst_88 = arith.constant dense<0.000000e+00> : vector<256x8xf32>
    %117 = tpu.matmul %114, %116, %cst_88 {dimension_numbers = #tpu.dot_dimension_numbers<[1], [0], [0], [1], [0, 0, 1, 1], [], []>} : vector<256x4xbf16>, vector<4x8xbf16>, vector<256x8xf32> -> vector<256x8xf32>
    %118 = arith.addf %111, %117 : vector<256x8xf32>
    %119 = vector.extract_strided_slice %5 {offsets = [3, 1, 0], sizes = [16, 16, 4], strides = [1, 1, 1]} : vector<20x20x4xf32> to vector<16x16x4xf32>
    %120 = vector.shape_cast %119 : vector<16x16x4xf32> to vector<256x4xf32>
    %121 = arith.truncf %120 : vector<256x4xf32> to vector<256x4xbf16>
    %c3_89 = arith.constant 3 : index
    %c1_90 = arith.constant 1 : index
    %c0_91 = arith.constant 0 : index
    %c0_92 = arith.constant 0 : index
    %122 = vector.load %arg2[%c3_89, %c1_90, %c0_91, %c0_92] : memref<5x5x4x8xbf16, #tpu.memory_space<vmem>>, vector<1x1x4x8xbf16>
    %123 = vector.shape_cast %122 : vector<1x1x4x8xbf16> to vector<4x8xbf16>
    %cst_93 = arith.constant dense<0.000000e+00> : vector<256x8xf32>
    %124 = tpu.matmul %121, %123, %cst_93 {dimension_numbers = #tpu.dot_dimension_numbers<[1], [0], [0], [1], [0, 0, 1, 1], [], []>} : vector<256x4xbf16>, vector<4x8xbf16>, vector<256x8xf32> -> vector<256x8xf32>
    %125 = arith.addf %118, %124 : vector<256x8xf32>
    %126 = vector.extract_strided_slice %5 {offsets = [3, 2, 0], sizes = [16, 16, 4], strides = [1, 1, 1]} : vector<20x20x4xf32> to vector<16x16x4xf32>
    %127 = vector.shape_cast %126 : vector<16x16x4xf32> to vector<256x4xf32>
    %128 = arith.truncf %127 : vector<256x4xf32> to vector<256x4xbf16>
    %c3_94 = arith.constant 3 : index
    %c2_95 = arith.constant 2 : index
    %c0_96 = arith.constant 0 : index
    %c0_97 = arith.constant 0 : index
    %129 = vector.load %arg2[%c3_94, %c2_95, %c0_96, %c0_97] : memref<5x5x4x8xbf16, #tpu.memory_space<vmem>>, vector<1x1x4x8xbf16>
    %130 = vector.shape_cast %129 : vector<1x1x4x8xbf16> to vector<4x8xbf16>
    %cst_98 = arith.constant dense<0.000000e+00> : vector<256x8xf32>
    %131 = tpu.matmul %128, %130, %cst_98 {dimension_numbers = #tpu.dot_dimension_numbers<[1], [0], [0], [1], [0, 0, 1, 1], [], []>} : vector<256x4xbf16>, vector<4x8xbf16>, vector<256x8xf32> -> vector<256x8xf32>
    %132 = arith.addf %125, %131 : vector<256x8xf32>
    %133 = vector.extract_strided_slice %5 {offsets = [3, 3, 0], sizes = [16, 16, 4], strides = [1, 1, 1]} : vector<20x20x4xf32> to vector<16x16x4xf32>
    %134 = vector.shape_cast %133 : vector<16x16x4xf32> to vector<256x4xf32>
    %135 = arith.truncf %134 : vector<256x4xf32> to vector<256x4xbf16>
    %c3_99 = arith.constant 3 : index
    %c3_100 = arith.constant 3 : index
    %c0_101 = arith.constant 0 : index
    %c0_102 = arith.constant 0 : index
    %136 = vector.load %arg2[%c3_99, %c3_100, %c0_101, %c0_102] : memref<5x5x4x8xbf16, #tpu.memory_space<vmem>>, vector<1x1x4x8xbf16>
    %137 = vector.shape_cast %136 : vector<1x1x4x8xbf16> to vector<4x8xbf16>
    %cst_103 = arith.constant dense<0.000000e+00> : vector<256x8xf32>
    %138 = tpu.matmul %135, %137, %cst_103 {dimension_numbers = #tpu.dot_dimension_numbers<[1], [0], [0], [1], [0, 0, 1, 1], [], []>} : vector<256x4xbf16>, vector<4x8xbf16>, vector<256x8xf32> -> vector<256x8xf32>
    %139 = arith.addf %132, %138 : vector<256x8xf32>
    %140 = vector.extract_strided_slice %5 {offsets = [3, 4, 0], sizes = [16, 16, 4], strides = [1, 1, 1]} : vector<20x20x4xf32> to vector<16x16x4xf32>
    %141 = vector.shape_cast %140 : vector<16x16x4xf32> to vector<256x4xf32>
    %142 = arith.truncf %141 : vector<256x4xf32> to vector<256x4xbf16>
    %c3_104 = arith.constant 3 : index
    %c4_105 = arith.constant 4 : index
    %c0_106 = arith.constant 0 : index
    %c0_107 = arith.constant 0 : index
    %143 = vector.load %arg2[%c3_104, %c4_105, %c0_106, %c0_107] : memref<5x5x4x8xbf16, #tpu.memory_space<vmem>>, vector<1x1x4x8xbf16>
    %144 = vector.shape_cast %143 : vector<1x1x4x8xbf16> to vector<4x8xbf16>
    %cst_108 = arith.constant dense<0.000000e+00> : vector<256x8xf32>
    %145 = tpu.matmul %142, %144, %cst_108 {dimension_numbers = #tpu.dot_dimension_numbers<[1], [0], [0], [1], [0, 0, 1, 1], [], []>} : vector<256x4xbf16>, vector<4x8xbf16>, vector<256x8xf32> -> vector<256x8xf32>
    %146 = arith.addf %139, %145 : vector<256x8xf32>
    %147 = vector.extract_strided_slice %5 {offsets = [4, 0, 0], sizes = [16, 16, 4], strides = [1, 1, 1]} : vector<20x20x4xf32> to vector<16x16x4xf32>
    %148 = vector.shape_cast %147 : vector<16x16x4xf32> to vector<256x4xf32>
    %149 = arith.truncf %148 : vector<256x4xf32> to vector<256x4xbf16>
    %c4_109 = arith.constant 4 : index
    %c0_110 = arith.constant 0 : index
    %c0_111 = arith.constant 0 : index
    %c0_112 = arith.constant 0 : index
    %150 = vector.load %arg2[%c4_109, %c0_110, %c0_111, %c0_112] : memref<5x5x4x8xbf16, #tpu.memory_space<vmem>>, vector<1x1x4x8xbf16>
    %151 = vector.shape_cast %150 : vector<1x1x4x8xbf16> to vector<4x8xbf16>
    %cst_113 = arith.constant dense<0.000000e+00> : vector<256x8xf32>
    %152 = tpu.matmul %149, %151, %cst_113 {dimension_numbers = #tpu.dot_dimension_numbers<[1], [0], [0], [1], [0, 0, 1, 1], [], []>} : vector<256x4xbf16>, vector<4x8xbf16>, vector<256x8xf32> -> vector<256x8xf32>
    %153 = arith.addf %146, %152 : vector<256x8xf32>
    %154 = vector.extract_strided_slice %5 {offsets = [4, 1, 0], sizes = [16, 16, 4], strides = [1, 1, 1]} : vector<20x20x4xf32> to vector<16x16x4xf32>
    %155 = vector.shape_cast %154 : vector<16x16x4xf32> to vector<256x4xf32>
    %156 = arith.truncf %155 : vector<256x4xf32> to vector<256x4xbf16>
    %c4_114 = arith.constant 4 : index
    %c1_115 = arith.constant 1 : index
    %c0_116 = arith.constant 0 : index
    %c0_117 = arith.constant 0 : index
    %157 = vector.load %arg2[%c4_114, %c1_115, %c0_116, %c0_117] : memref<5x5x4x8xbf16, #tpu.memory_space<vmem>>, vector<1x1x4x8xbf16>
    %158 = vector.shape_cast %157 : vector<1x1x4x8xbf16> to vector<4x8xbf16>
    %cst_118 = arith.constant dense<0.000000e+00> : vector<256x8xf32>
    %159 = tpu.matmul %156, %158, %cst_118 {dimension_numbers = #tpu.dot_dimension_numbers<[1], [0], [0], [1], [0, 0, 1, 1], [], []>} : vector<256x4xbf16>, vector<4x8xbf16>, vector<256x8xf32> -> vector<256x8xf32>
    %160 = arith.addf %153, %159 : vector<256x8xf32>
    %161 = vector.extract_strided_slice %5 {offsets = [4, 2, 0], sizes = [16, 16, 4], strides = [1, 1, 1]} : vector<20x20x4xf32> to vector<16x16x4xf32>
    %162 = vector.shape_cast %161 : vector<16x16x4xf32> to vector<256x4xf32>
    %163 = arith.truncf %162 : vector<256x4xf32> to vector<256x4xbf16>
    %c4_119 = arith.constant 4 : index
    %c2_120 = arith.constant 2 : index
    %c0_121 = arith.constant 0 : index
    %c0_122 = arith.constant 0 : index
    %164 = vector.load %arg2[%c4_119, %c2_120, %c0_121, %c0_122] : memref<5x5x4x8xbf16, #tpu.memory_space<vmem>>, vector<1x1x4x8xbf16>
    %165 = vector.shape_cast %164 : vector<1x1x4x8xbf16> to vector<4x8xbf16>
    %cst_123 = arith.constant dense<0.000000e+00> : vector<256x8xf32>
    %166 = tpu.matmul %163, %165, %cst_123 {dimension_numbers = #tpu.dot_dimension_numbers<[1], [0], [0], [1], [0, 0, 1, 1], [], []>} : vector<256x4xbf16>, vector<4x8xbf16>, vector<256x8xf32> -> vector<256x8xf32>
    %167 = arith.addf %160, %166 : vector<256x8xf32>
    %168 = vector.extract_strided_slice %5 {offsets = [4, 3, 0], sizes = [16, 16, 4], strides = [1, 1, 1]} : vector<20x20x4xf32> to vector<16x16x4xf32>
    %169 = vector.shape_cast %168 : vector<16x16x4xf32> to vector<256x4xf32>
    %170 = arith.truncf %169 : vector<256x4xf32> to vector<256x4xbf16>
    %c4_124 = arith.constant 4 : index
    %c3_125 = arith.constant 3 : index
    %c0_126 = arith.constant 0 : index
    %c0_127 = arith.constant 0 : index
    %171 = vector.load %arg2[%c4_124, %c3_125, %c0_126, %c0_127] : memref<5x5x4x8xbf16, #tpu.memory_space<vmem>>, vector<1x1x4x8xbf16>
    %172 = vector.shape_cast %171 : vector<1x1x4x8xbf16> to vector<4x8xbf16>
    %cst_128 = arith.constant dense<0.000000e+00> : vector<256x8xf32>
    %173 = tpu.matmul %170, %172, %cst_128 {dimension_numbers = #tpu.dot_dimension_numbers<[1], [0], [0], [1], [0, 0, 1, 1], [], []>} : vector<256x4xbf16>, vector<4x8xbf16>, vector<256x8xf32> -> vector<256x8xf32>
    %174 = arith.addf %167, %173 : vector<256x8xf32>
    %175 = vector.extract_strided_slice %5 {offsets = [4, 4, 0], sizes = [16, 16, 4], strides = [1, 1, 1]} : vector<20x20x4xf32> to vector<16x16x4xf32>
    %176 = vector.shape_cast %175 : vector<16x16x4xf32> to vector<256x4xf32>
    %177 = arith.truncf %176 : vector<256x4xf32> to vector<256x4xbf16>
    %c4_129 = arith.constant 4 : index
    %c4_130 = arith.constant 4 : index
    %c0_131 = arith.constant 0 : index
    %c0_132 = arith.constant 0 : index
    %178 = vector.load %arg2[%c4_129, %c4_130, %c0_131, %c0_132] : memref<5x5x4x8xbf16, #tpu.memory_space<vmem>>, vector<1x1x4x8xbf16>
    %179 = vector.shape_cast %178 : vector<1x1x4x8xbf16> to vector<4x8xbf16>
    %cst_133 = arith.constant dense<0.000000e+00> : vector<256x8xf32>
    %180 = tpu.matmul %177, %179, %cst_133 {dimension_numbers = #tpu.dot_dimension_numbers<[1], [0], [0], [1], [0, 0, 1, 1], [], []>} : vector<256x4xbf16>, vector<4x8xbf16>, vector<256x8xf32> -> vector<256x8xf32>
    %181 = arith.addf %174, %180 : vector<256x8xf32>
    %c0_134 = arith.constant 0 : index
    %c0_135 = arith.constant 0 : index
    %182 = vector.load %arg3[%c0_134, %c0_135] : memref<1x8xf32, #tpu.memory_space<vmem>>, vector<1x8xf32>
    %183 = vector.broadcast %182 : vector<1x8xf32> to vector<256x8xf32>
    %184 = arith.addf %181, %183 : vector<256x8xf32>
    %cst_136 = arith.constant 0.000000e+00 : f32
    %185 = vector.broadcast %cst_136 : f32 to vector<256x8xf32>
    %186 = arith.cmpf oge, %184, %185 : vector<256x8xf32>
    %cst_137 = arith.constant 2.000000e-01 : f32
    %187 = vector.broadcast %cst_137 : f32 to vector<256x8xf32>
    %188 = arith.mulf %187, %184 : vector<256x8xf32>
    %189 = arith.select %186, %184, %188 : vector<256x8xi1>, vector<256x8xf32>
    %190 = vector.extract_strided_slice %189 {offsets = [0, 0], sizes = [256, 4], strides = [1, 1]} : vector<256x8xf32> to vector<256x4xf32>
    %191 = vector.extract_strided_slice %189 {offsets = [0, 4], sizes = [256, 4], strides = [1, 1]} : vector<256x8xf32> to vector<256x4xf32>
    %192 = arith.addf %190, %191 : vector<256x4xf32>
    %cst_138 = arith.constant dense<0xFF800000> : vector<4xf32>
    %193 = vector.multi_reduction <maximumf>, %192, %cst_138 [0] : vector<256x4xf32> to vector<4xf32>
    %194 = vector.shape_cast %193 : vector<4xf32> to vector<1x4xf32>
    %c0_139 = arith.constant 0 : index
    %c0_140 = arith.constant 0 : index
    %195 = vector.load %arg4[%c0_139, %c0_140] : memref<4x8xf32, #tpu.memory_space<vmem>>, vector<4x8xf32>
    %cst_141 = arith.constant dense<0.000000e+00> : vector<1x8xf32>
    %196 = tpu.matmul %194, %195, %cst_141 {dimension_numbers = #tpu.dot_dimension_numbers<[1], [0], [0], [1], [0, 0, 1, 1], [], []>} : vector<1x4xf32>, vector<4x8xf32>, vector<1x8xf32> -> vector<1x8xf32>
    %c0_142 = arith.constant 0 : index
    %c0_143 = arith.constant 0 : index
    %197 = vector.load %arg5[%c0_142, %c0_143] : memref<1x8xf32, #tpu.memory_space<vmem>>, vector<1x8xf32>
    %198 = arith.addf %196, %197 : vector<1x8xf32>
    %c0_144 = arith.constant 0 : index
    %c0_145 = arith.constant 0 : index
    %c0_146 = arith.constant 0 : index
    %199 = vector.load %arg6[%c0_144, %c0_145, %c0_146] : memref<2x8x4xf32, #tpu.memory_space<vmem>>, vector<1x8x4xf32>
    %200 = vector.shape_cast %199 : vector<1x8x4xf32> to vector<8x4xf32>
    %cst_147 = arith.constant dense<0.000000e+00> : vector<1x4xf32>
    %201 = tpu.matmul %198, %200, %cst_147 {dimension_numbers = #tpu.dot_dimension_numbers<[1], [0], [0], [1], [0, 0, 1, 1], [], []>} : vector<1x8xf32>, vector<8x4xf32>, vector<1x4xf32> -> vector<1x4xf32>
    %c0_148 = arith.constant 0 : index
    %c0_149 = arith.constant 0 : index
    %202 = vector.load %arg7[%c0_148, %c0_149] : memref<2x4xf32, #tpu.memory_space<vmem>>, vector<1x4xf32>
    %203 = arith.addf %201, %202 : vector<1x4xf32>
    %c1_150 = arith.constant 1 : index
    %c0_151 = arith.constant 0 : index
    %c0_152 = arith.constant 0 : index
    %204 = vector.load %arg6[%c1_150, %c0_151, %c0_152] : memref<2x8x4xf32, #tpu.memory_space<vmem>>, vector<1x8x4xf32>
    %205 = vector.shape_cast %204 : vector<1x8x4xf32> to vector<8x4xf32>
    %cst_153 = arith.constant dense<0.000000e+00> : vector<1x4xf32>
    %206 = tpu.matmul %198, %205, %cst_153 {dimension_numbers = #tpu.dot_dimension_numbers<[1], [0], [0], [1], [0, 0, 1, 1], [], []>} : vector<1x8xf32>, vector<8x4xf32>, vector<1x4xf32> -> vector<1x4xf32>
    %c1_154 = arith.constant 1 : index
    %c0_155 = arith.constant 0 : index
    %207 = vector.load %arg7[%c1_154, %c0_155] : memref<2x4xf32, #tpu.memory_space<vmem>>, vector<1x4xf32>
    %208 = arith.addf %206, %207 : vector<1x4xf32>
    %209 = arith.maximumf %203, %208 : vector<1x4xf32>
    %210 = arith.subf %203, %209 : vector<1x4xf32>
    %211 = math.exp %210 : vector<1x4xf32>
    %212 = arith.subf %208, %209 : vector<1x4xf32>
    %213 = math.exp %212 : vector<1x4xf32>
    %214 = arith.addf %211, %213 : vector<1x4xf32>
    %215 = tpu.reciprocal %214 {approx = true} : vector<1x4xf32> -> vector<1x4xf32>
    %216 = arith.mulf %211, %215 : vector<1x4xf32>
    %217 = arith.mulf %213, %215 : vector<1x4xf32>
    %218 = vector.broadcast %216 : vector<1x4xf32> to vector<256x4xf32>
    %219 = arith.mulf %190, %218 : vector<256x4xf32>
    %220 = vector.broadcast %217 : vector<1x4xf32> to vector<256x4xf32>
    %221 = arith.mulf %191, %220 : vector<256x4xf32>
    %222 = arith.addf %219, %221 : vector<256x4xf32>
    %223 = vector.shape_cast %222 : vector<256x4xf32> to vector<16x16x4xf32>
    %c0_156 = arith.constant 0 : index
    %c0_157 = arith.constant 0 : index
    %c0_158 = arith.constant 0 : index
    %c0_159 = arith.constant 0 : index
    %224 = vector.load %arg8[%c0_156, %c0_157, %c0_158, %c0_159] : memref<1x16x16x4xf32, #tpu.memory_space<vmem>>, vector<1x16x16x4xf32>
    %225 = vector.shape_cast %224 : vector<1x16x16x4xf32> to vector<16x16x4xf32>
    %226 = vector.shape_cast %223 : vector<16x16x4xf32> to vector<1x16x16x4xf32>
    tpu.vector_store %arg8[%c0_156, %c0_157, %c0_158, %c0_159], %226 {strides = array<i32>} : memref<1x16x16x4xf32, #tpu.memory_space<vmem>>, vector<1x16x16x4xf32>,
    return
  }
  func.func @transform_0(%arg0: i32) -> (i32, i32, i32, i32) {
    %c0_i32 = arith.constant 0 : i32
    %c0_i32_0 = arith.constant 0 : i32
    %c0_i32_1 = arith.constant 0 : i32
    %c0_i32_2 = arith.constant 0 : i32
    return %arg0, %c0_i32, %c0_i32_0, %c0_i32_1 : i32, i32, i32, i32
  }
  func.func @transform_1(%arg0: i32) -> (i32, i32, i32, i32) {
    %c0_i32 = arith.constant 0 : i32
    %c0_i32_0 = arith.constant 0 : i32
    %c0_i32_1 = arith.constant 0 : i32
    %c0_i32_2 = arith.constant 0 : i32
    %c0_i32_3 = arith.constant 0 : i32
    return %c0_i32, %c0_i32_0, %c0_i32_1, %c0_i32_2 : i32, i32, i32, i32
  }
  func.func @transform_2(%arg0: i32) -> (i32, i32) {
    %c0_i32 = arith.constant 0 : i32
    %c0_i32_0 = arith.constant 0 : i32
    %c0_i32_1 = arith.constant 0 : i32
    return %c0_i32, %c0_i32_0 : i32, i32
  }
  func.func @transform_3(%arg0: i32) -> (i32, i32) {
    %c0_i32 = arith.constant 0 : i32
    %c0_i32_0 = arith.constant 0 : i32
    %c0_i32_1 = arith.constant 0 : i32
    return %c0_i32, %c0_i32_0 : i32, i32
  }
  func.func @transform_4(%arg0: i32) -> (i32, i32) {
    %c0_i32 = arith.constant 0 : i32
    %c0_i32_0 = arith.constant 0 : i32
    %c0_i32_1 = arith.constant 0 : i32
    return %c0_i32, %c0_i32_0 : i32, i32
  }
  func.func @transform_5(%arg0: i32) -> (i32, i32, i32) {
    %c0_i32 = arith.constant 0 : i32
    %c0_i32_0 = arith.constant 0 : i32
    %c0_i32_1 = arith.constant 0 : i32
    %c0_i32_2 = arith.constant 0 : i32
    return %c0_i32, %c0_i32_0, %c0_i32_1 : i32, i32, i32
  }
  func.func @transform_6(%arg0: i32) -> (i32, i32) {
    %c0_i32 = arith.constant 0 : i32
    %c0_i32_0 = arith.constant 0 : i32
    %c0_i32_1 = arith.constant 0 : i32
    return %c0_i32, %c0_i32_0 : i32, i32
  }
  func.func @transform_7(%arg0: i32) -> (i32, i32, i32, i32) {
    %c0_i32 = arith.constant 0 : i32
    %c0_i32_0 = arith.constant 0 : i32
    %c0_i32_1 = arith.constant 0 : i32
    %c0_i32_2 = arith.constant 0 : i32
    return %arg0, %c0_i32, %c0_i32_0, %c0_i32_1 : i32, i32, i32, i32
  }
}

</mosaic_0001>

<llo_original>
// kernel: tpu_custom_call.1
$region0: #{tpu_custom_call.1}
  #allocation0 [shape = 'u32[]', space=smem, size = 0x4, offset = 0x4, fixed_abs, tag = 'smem constant byte address 0x4 - core index']
  #allocation1 [shape = 'u32[144,128]{1,0:T(1,128)}', space=vmem, size = 0x12000, scoped, tag = 'internal scratch']
  #allocation2 [shape = 'f32[20,20,4]{2,1,0:T(8,128)}', space=vmem, size = 0x3c000, scoped, tag = 'scratch operand']
  %s0 = inlined_call_operand.vmem [shape: f32[2,16,16,4], index: 0, kind: input, shape index: {}]
  %s1 = inlined_call_operand.vmem [shape: bf16[5,5,4,8], index: 1, kind: input, shape index: {}]
  %s2 = inlined_call_operand.vmem [shape: f32[1,8], index: 2, kind: input, shape index: {}]
  %s3 = inlined_call_operand.vmem [shape: f32[4,8], index: 3, kind: input, shape index: {}]
  %s4 = inlined_call_operand.vmem [shape: f32[1,8], index: 4, kind: input, shape index: {}]
  %s5 = inlined_call_operand.vmem [shape: f32[2,8,4], index: 5, kind: input, shape index: {}]
  %s6 = inlined_call_operand.vmem [shape: f32[2,4], index: 6, kind: input, shape index: {}]
  %s7 = inlined_call_operand.vmem [shape: f32[2,16,16,4], index: 7, kind: output, shape index: {}]
  %s8 = sld [smem:[#allocation0]]
  $region61: #{tpu_custom_call.1} parent=0
    _
  %s10 = ssub.s32 1, %s8
  %s11 = scalar_select 0, %s10, %s8
  loop: start=0, step=1, limit=4
  $region2: #{tpu_custom_call.1} parent=0 // loop_pre_header
    _
  $region3: #{tpu_custom_call.1} parent=0 // loop_header
    %s13 = sphi 0, %s17
    %p14 = scmp.ge.s32.totalorder %s13, 4
    %s23 = sphi 0, %s25
    %s26 = sphi 0, %s23
    %s27 = sphi 0, %s26
    %s43 = sphi 0, %s27
    %s47 = sphi 0, %s47
    %s49 = sphi 0, %s47
    %s50 = sphi 0, %s49
    %s64 = sphi 0, %s50
    %s68 = sphi 0, %s68
    %s70 = sphi 0, %s68
    %s71 = sphi 0, %s70
    %s85 = sphi 0, %s71
    %s89 = sphi 0, %s89
    %s91 = sphi 0, %s89
    %s92 = sphi 0, %s91
    %s106 = sphi 0, %s92
    %s110 = sphi 0, %s110
    %s112 = sphi 0, %s110
    %s113 = sphi 0, %s112
    %s127 = sphi 0, %s113
    %s131 = sphi 0, %s131
    %s133 = sphi 0, %s131
    %s134 = sphi 0, %s133
    %s148 = sphi 0, %s134
    %s152 = sphi 0, %s152
    %s154 = sphi 0, %s152
    %s155 = sphi 0, %s154
    %s169 = sphi 0, %s155
    %s175 = sphi 0, %s177
    %s178 = sphi 0, %s175
    %s179 = sphi 0, %s178
    %s195 = sphi 0, %s179
  $region4: #{tpu_custom_call.1} parent=0 // loop_header_branch
    %16 = sbr.rel (%p14) target = $region8
  $region5: #{tpu_custom_call.1} parent=0 // loop_body
    %s18 = ssub.s32 %s13, 1
    %s19 = ssub.s32 %s13, 2
    %s20 = sadd.s32 %s13, 1
    %s21 = ssub.s32 %s13, %s20
    %p22 = scmp.eq.s32.totalorder %s21, 0
    %s24 = sadd.s32 %s23, 1
    %s25 = scalar_select %p22, %s23, %s24
    %p28 = pneg %p22
    %p29 = scmp.eq.s32.totalorder %s13, 1
    %p30 = por %p28, %p29
    %p31 = scmp.ne.s32.totalorder %s23, %s26
    %p32 = scmp.eq.s32.totalorder %s13, 0
    %p33 = por %p31, %p32
    %p34 = scmp.ne.s32.totalorder %s23, %s26
    %p35 = scmp.eq.s32.totalorder %s18, 1
    %p36 = por %p34, %p35
    %p37 = scmp.ne.s32.totalorder %s26, %s27
    %p38 = scmp.eq.s32.totalorder %s18, 0
    %p39 = por %p37, %p38
    %p40 = scmp.ne.s32.totalorder %s26, %s27
    %p41 = scmp.eq.s32.totalorder %s19, 1
    %p42 = por %p40, %p41
    %p44 = scmp.ne.s32.totalorder %s27, %s43
    %p45 = scmp.eq.s32.totalorder %s19, 0
    %p46 = por %p44, %p45
    %s48 = sadd.s32 %s47, 1
    %p51 = scmp.eq.s32.totalorder %s13, 1
    %p52 = scmp.ne.s32.totalorder %s47, %s49
    %p53 = scmp.eq.s32.totalorder %s13, 0
    %p54 = por %p52, %p53
    %p55 = scmp.ne.s32.totalorder %s47, %s49
    %p56 = scmp.eq.s32.totalorder %s18, 1
    %p57 = por %p55, %p56
    %p58 = scmp.ne.s32.totalorder %s49, %s50
    %p59 = scmp.eq.s32.totalorder %s18, 0
    %p60 = por %p58, %p59
    %p61 = scmp.ne.s32.totalorder %s49, %s50
    %p62 = scmp.eq.s32.totalorder %s19, 1
    %p63 = por %p61, %p62
    %p65 = scmp.ne.s32.totalorder %s50, %s64
    %p66 = scmp.eq.s32.totalorder %s19, 0
    %p67 = por %p65, %p66
    %s69 = sadd.s32 %s68, 1
    %p72 = scmp.eq.s32.totalorder %s13, 1
    %p73 = scmp.ne.s32.totalorder %s68, %s70
    %p74 = scmp.eq.s32.totalorder %s13, 0
    %p75 = por %p73, %p74
    %p76 = scmp.ne.s32.totalorder %s68, %s70
    %p77 = scmp.eq.s32.totalorder %s18, 1
    %p78 = por %p76, %p77
    %p79 = scmp.ne.s32.totalorder %s70, %s71
    %p80 = scmp.eq.s32.totalorder %s18, 0
    %p81 = por %p79, %p80
    %p82 = scmp.ne.s32.totalorder %s70, %s71
    %p83 = scmp.eq.s32.totalorder %s19, 1
    %p84 = por %p82, %p83
    %p86 = scmp.ne.s32.totalorder %s71, %s85
    %p87 = scmp.eq.s32.totalorder %s19, 0
    %p88 = por %p86, %p87
    %s90 = sadd.s32 %s89, 1
    %p93 = scmp.eq.s32.totalorder %s13, 1
    %p94 = scmp.ne.s32.totalorder %s89, %s91
    %p95 = scmp.eq.s32.totalorder %s13, 0
    %p96 = por %p94, %p95
    %p97 = scmp.ne.s32.totalorder %s89, %s91
    %p98 = scmp.eq.s32.totalorder %s18, 1
    %p99 = por %p97, %p98
    %p100 = scmp.ne.s32.totalorder %s91, %s92
    %p101 = scmp.eq.s32.totalorder %s18, 0
    %p102 = por %p100, %p101
    %p103 = scmp.ne.s32.totalorder %s91, %s92
    %p104 = scmp.eq.s32.totalorder %s19, 1
    %p105 = por %p103, %p104
    %p107 = scmp.ne.s32.totalorder %s92, %s106
    %p108 = scmp.eq.s32.totalorder %s19, 0
    %p109 = por %p107, %p108
    %s111 = sadd.s32 %s110, 1
    %p114 = scmp.eq.s32.totalorder %s13, 1
    %p115 = scmp.ne.s32.totalorder %s110, %s112
    %p116 = scmp.eq.s32.totalorder %s13, 0
    %p117 = por %p115, %p116
    %p118 = scmp.ne.s32.totalorder %s110, %s112
    %p119 = scmp.eq.s32.totalorder %s18, 1
    %p120 = por %p118, %p119
    %p121 = scmp.ne.s32.totalorder %s112, %s113
    %p122 = scmp.eq.s32.totalorder %s18, 0
    %p123 = por %p121, %p122
    %p124 = scmp.ne.s32.totalorder %s112, %s113
    %p125 = scmp.eq.s32.totalorder %s19, 1
    %p126 = por %p124, %p125
    %p128 = scmp.ne.s32.totalorder %s113, %s127
    %p129 = scmp.eq.s32.totalorder %s19, 0
    %p130 = por %p128, %p129
    %s132 = sadd.s32 %s131, 1
    %p135 = scmp.eq.s32.totalorder %s13, 1
    %p136 = scmp.ne.s32.totalorder %s131, %s133
    %p137 = scmp.eq.s32.totalorder %s13, 0
    %p138 = por %p136, %p137
    %p139 = scmp.ne.s32.totalorder %s131, %s133
    %p140 = scmp.eq.s32.totalorder %s18, 1
    %p141 = por %p139, %p140
    %p142 = scmp.ne.s32.totalorder %s133, %s134
    %p143 = scmp.eq.s32.totalorder %s18, 0
    %p144 = por %p142, %p143
    %p145 = scmp.ne.s32.totalorder %s133, %s134
    %p146 = scmp.eq.s32.totalorder %s19, 1
    %p147 = por %p145, %p146
    %p149 = scmp.ne.s32.totalorder %s134, %s148
    %p150 = scmp.eq.s32.totalorder %s19, 0
    %p151 = por %p149, %p150
    %s153 = sadd.s32 %s152, 1
    %p156 = scmp.eq.s32.totalorder %s13, 1
    %p157 = scmp.ne.s32.totalorder %s152, %s154
    %p158 = scmp.eq.s32.totalorder %s13, 0
    %p159 = por %p157, %p158
    %p160 = scmp.ne.s32.totalorder %s152, %s154
    %p161 = scmp.eq.s32.totalorder %s18, 1
    %p162 = por %p160, %p161
    %p163 = scmp.ne.s32.totalorder %s154, %s155
    %p164 = scmp.eq.s32.totalorder %s18, 0
    %p165 = por %p163, %p164
    %p166 = scmp.ne.s32.totalorder %s154, %s155
    %p167 = scmp.eq.s32.totalorder %s19, 1
    %p168 = por %p166, %p167
    %p170 = scmp.ne.s32.totalorder %s155, %s169
    %p171 = scmp.eq.s32.totalorder %s19, 0
    %p172 = por %p170, %p171
    %s173 = ssub.s32 %s13, %s20
    %p174 = scmp.eq.s32.totalorder %s173, 0
    %s176 = sadd.s32 %s175, 1
    %s177 = scalar_select %p174, %s175, %s176
    %p180 = pneg %p174
    %p181 = scmp.eq.s32.totalorder %s13, 1
    %p182 = por %p180, %p181
    %p183 = scmp.ne.s32.totalorder %s175, %s178
    %p184 = scmp.eq.s32.totalorder %s13, 0
    %p185 = por %p183, %p184
    %p186 = scmp.ne.s32.totalorder %s175, %s178
    %p187 = scmp.eq.s32.totalorder %s18, 1
    %p188 = por %p186, %p187
    %p189 = scmp.ne.s32.totalorder %s178, %s179
    %p190 = scmp.eq.s32.totalorder %s18, 0
    %p191 = por %p189, %p190
    %p192 = scmp.ne.s32.totalorder %s178, %s179
    %p193 = scmp.eq.s32.totalorder %s19, 1
    %p194 = por %p192, %p193
    %p196 = scmp.ne.s32.totalorder %s179, %s195
    %p197 = scmp.eq.s32.totalorder %s19, 0
    %p198 = por %p196, %p197
    %p199 = scmp.le.s32.totalorder 1, %s13
    %p200 = scmp.lt.s32.totalorder %s13, 3
    %p201 = pnand %p199, %p200
    %p202 = pneg %p201
    // Predicated region
    $region9: #{tpu_custom_call.1} parent=5 // pred_check
      _
    $region10: #{tpu_custom_call.1} parent=5 // pred_check_branch
      %204 = sbr.rel (%p201) target = $region12
    $region11: #{tpu_custom_call.1} parent=5 // pred_region
      %s205 = ssub.s32 %s13, 1
      // Predicated region
      $region13: #{tpu_custom_call.1} parent=11 // pred_check
        %p206 = pneg %p60
      $region14: #{tpu_custom_call.1} parent=11 // pred_check_branch
        %208 = sbr.rel (%p206) target = $region16
      $region15: #{tpu_custom_call.1} parent=11 // pred_region
        _
      $region16: #{tpu_custom_call.1} parent=11 // pred_fallthru
        _
      // Predicated region
      $region17: #{tpu_custom_call.1} parent=11 // pred_check
        %p209 = pneg %p81
      $region18: #{tpu_custom_call.1} parent=11 // pred_check_branch
        %211 = sbr.rel (%p209) target = $region20
      $region19: #{tpu_custom_call.1} parent=11 // pred_region
        _
      $region20: #{tpu_custom_call.1} parent=11 // pred_fallthru
        _
      // Predicated region
      $region21: #{tpu_custom_call.1} parent=11 // pred_check
        %p212 = pneg %p102
      $region22: #{tpu_custom_call.1} parent=11 // pred_check_branch
        %214 = sbr.rel (%p212) target = $region24
      $region23: #{tpu_custom_call.1} parent=11 // pred_region
        _
      $region24: #{tpu_custom_call.1} parent=11 // pred_fallthru
        _
      // Predicated region
      $region25: #{tpu_custom_call.1} parent=11 // pred_check
        %p215 = pneg %p123
      $region26: #{tpu_custom_call.1} parent=11 // pred_check_branch
        %217 = sbr.rel (%p215) target = $region28
      $region27: #{tpu_custom_call.1} parent=11 // pred_region
        _
      $region28: #{tpu_custom_call.1} parent=11 // pred_fallthru
        _
      // Predicated region
      $region29: #{tpu_custom_call.1} parent=11 // pred_check
        %p218 = pneg %p144
      $region30: #{tpu_custom_call.1} parent=11 // pred_check_branch
        %220 = sbr.rel (%p218) target = $region32
      $region31: #{tpu_custom_call.1} parent=11 // pred_region
        _
      $region32: #{tpu_custom_call.1} parent=11 // pred_fallthru
        _
      // Predicated region
      $region33: #{tpu_custom_call.1} parent=11 // pred_check
        %p221 = pneg %p165
      $region34: #{tpu_custom_call.1} parent=11 // pred_check_branch
        %223 = sbr.rel (%p221) target = $region36
      $region35: #{tpu_custom_call.1} parent=11 // pred_region
        _
      $region36: #{tpu_custom_call.1} parent=11 // pred_fallthru
        _
    $region12: #{tpu_custom_call.1} parent=5 // pred_fallthru
      _
    %p224 = scmp.lt.s32.totalorder %s13, 2
    // Predicated region
    $region37: #{tpu_custom_call.1} parent=5 // pred_check
      %p225 = pneg %p224
    $region38: #{tpu_custom_call.1} parent=5 // pred_check_branch
      %227 = sbr.rel (%p225) target = $region40
    $region39: #{tpu_custom_call.1} parent=5 // pred_region
      // Predicated region
      $region41: #{tpu_custom_call.1} parent=39 // pred_check
        %p228 = pneg %p33
      $region42: #{tpu_custom_call.1} parent=39 // pred_check_branch
        %230 = sbr.rel (%p228) target = $region44
      $region43: #{tpu_custom_call.1} parent=39 // pred_region
        %p231 = scmp.lt.s32.totalorder %s13, 1
        %s232 = scalar_select %p231, %s13, 1
        %s233 = smul.addr %s232, 32
        %s234 = smul.addr %s233, 8
        %s235 = scalar_lea.vmem %s0, %s234
      $region44: #{tpu_custom_call.1} parent=39 // pred_fallthru
        _
    $region40: #{tpu_custom_call.1} parent=5 // pred_fallthru
      _
    %p236 = scmp.le.s32.totalorder 1, %s13
    %p237 = scmp.lt.s32.totalorder %s13, 3
    %p238 = pnand %p236, %p237
    %p239 = pneg %p238
    // Predicated region
    $region45: #{tpu_custom_call.1} parent=5 // pred_check
      _
    $region46: #{tpu_custom_call.1} parent=5 // pred_check_branch
      %241 = sbr.rel (%p238) target = $region48
    $region47: #{tpu_custom_call.1} parent=5 // pred_region
      %s242 = ssub.s32 %s13, 1
      %p243 = scmp.lt.s32.totalorder %s18, 1
      %s244 = scalar_select %p243, %s18, 1
      %s245 = smul.addr %s244, 32
      %s246 = smul.addr %s245, 8
      %s247 = scalar_lea.vmem %s0, %s246
      %p248 = pneg %p39
      %p249 = pneg %p36
      %p250 = pneg %p60
      %p251 = pneg %p57
      %p252 = pneg %p81
      %p253 = pneg %p78
      %p254 = pneg %p102
      %p255 = pneg %p99
      %p256 = pneg %p123
      %p257 = pneg %p120
      %p258 = pneg %p144
      %p259 = pneg %p141
      %p260 = pneg %p165
      %p261 = pneg %p162
      %p262 = pneg %p191
      %p263 = pneg %p188
      %p264 = scmp.lt.s32.totalorder %s18, 1
      %s265 = scalar_select %p264, %s18, 1
      %s266 = smul.addr %s265, 32
      %s267 = smul.addr %s266, 8
      %s268 = scalar_lea.vmem %s7, %s267
      %p269 = scmp.lt.s32.totalorder %s18, 1
      %s270 = scalar_select %p269, %s18, 1
      %s271 = smul.addr %s270, 32
      %s272 = smul.addr %s271, 8
      %s273 = scalar_lea.vmem %s0, %s272
      %p274 = scmp.lt.s32.totalorder %s18, 1
      %s275 = scalar_select %p274, %s18, 1
      %s276 = smul.addr %s275, 32
      %s277 = smul.addr %s276, 8
      %s278 = scalar_lea.vmem %s7, %s277
      %vm280 = vcmask 31744
      %281 = vst.msk [vmem:[#allocation2] sm:$0xff] %vm280, 0.0
      %282 = vst.msk [vmem:[#allocation2 + $0x8] sm:$0xff] %vm280, 0.0
      %vm283 = vcmask 27648
      %284 = vst.msk [vmem:[#allocation2 + $0x10] sm:$0xf] %vm283, 0.0
      %285 = vst.msk [vmem:[#allocation2 + $0x18] sm:$0xff] %vm280, 0.0
      %286 = vst.msk [vmem:[#allocation2 + $0x20] sm:$0xff] %vm280, 0.0
      %287 = vst.msk [vmem:[#allocation2 + $0x28] sm:$0xf] %vm283, 0.0
      %288 = vst.msk [vmem:[#allocation2 + $0x30] sm:$0xff] %vm280, 0.0
      %289 = vst.msk [vmem:[#allocation2 + $0x38] sm:$0xff] %vm280, 0.0
      %290 = vst.msk [vmem:[#allocation2 + $0x40] sm:$0xf] %vm283, 0.0
      %291 = vst.msk [vmem:[#allocation2 + $0x48] sm:$0xff] %vm280, 0.0
      %292 = vst.msk [vmem:[#allocation2 + $0x50] sm:$0xff] %vm280, 0.0
      %293 = vst.msk [vmem:[#allocation2 + $0x58] sm:$0xf] %vm283, 0.0
      %294 = vst.msk [vmem:[#allocation2 + $0x60] sm:$0xff] %vm280, 0.0
      %295 = vst.msk [vmem:[#allocation2 + $0x68] sm:$0xff] %vm280, 0.0
      %296 = vst.msk [vmem:[#allocation2 + $0x70] sm:$0xf] %vm283, 0.0
      %297 = vst.msk [vmem:[#allocation2 + $0x78] sm:$0xff] %vm280, 0.0
      %298 = vst.msk [vmem:[#allocation2 + $0x80] sm:$0xff] %vm280, 0.0
      %299 = vst.msk [vmem:[#allocation2 + $0x88] sm:$0xf] %vm283, 0.0
      %300 = vst.msk [vmem:[#allocation2 + $0x90] sm:$0xff] %vm280, 0.0
      %301 = vst.msk [vmem:[#allocation2 + $0x98] sm:$0xff] %vm280, 0.0
      %302 = vst.msk [vmem:[#allocation2 + $0xa0] sm:$0xf] %vm283, 0.0
      %303 = vst.msk [vmem:[#allocation2 + $0xa8] sm:$0xff] %vm280, 0.0
      %304 = vst.msk [vmem:[#allocation2 + $0xb0] sm:$0xff] %vm280, 0.0
      %305 = vst.msk [vmem:[#allocation2 + $0xb8] sm:$0xf] %vm283, 0.0
      %306 = vst.msk [vmem:[#allocation2 + $0xc0] sm:$0xff] %vm280, 0.0
      %307 = vst.msk [vmem:[#allocation2 + $0xc8] sm:$0xff] %vm280, 0.0
      %308 = vst.msk [vmem:[#allocation2 + $0xd0] sm:$0xf] %vm283, 0.0
      %309 = vst.msk [vmem:[#allocation2 + $0xd8] sm:$0xff] %vm280, 0.0
      %310 = vst.msk [vmem:[#allocation2 + $0xe0] sm:$0xff] %vm280, 0.0
      %311 = vst.msk [vmem:[#allocation2 + $0xe8] sm:$0xf] %vm283, 0.0
      %312 = vst.msk [vmem:[#allocation2 + $0xf0] sm:$0xff] %vm280, 0.0
      %313 = vst.msk [vmem:[#allocation2 + $0xf8] sm:$0xff] %vm280, 0.0
      %314 = vst.msk [vmem:[#allocation2 + $0x100] sm:$0xf] %vm283, 0.0
      %315 = vst.msk [vmem:[#allocation2 + $0x108] sm:$0xff] %vm280, 0.0
      %316 = vst.msk [vmem:[#allocation2 + $0x110] sm:$0xff] %vm280, 0.0
      %317 = vst.msk [vmem:[#allocation2 + $0x118] sm:$0xf] %vm283, 0.0
      %318 = vst.msk [vmem:[#allocation2 + $0x120] sm:$0xff] %vm280, 0.0
      %319 = vst.msk [vmem:[#allocation2 + $0x128] sm:$0xff] %vm280, 0.0
      %320 = vst.msk [vmem:[#allocation2 + $0x130] sm:$0xf] %vm283, 0.0
      %321 = vst.msk [vmem:[#allocation2 + $0x138] sm:$0xff] %vm280, 0.0
      %322 = vst.msk [vmem:[#allocation2 + $0x140] sm:$0xff] %vm280, 0.0
      %323 = vst.msk [vmem:[#allocation2 + $0x148] sm:$0xf] %vm283, 0.0
      %324 = vst.msk [vmem:[#allocation2 + $0x150] sm:$0xff] %vm280, 0.0
      %325 = vst.msk [vmem:[#allocation2 + $0x158] sm:$0xff] %vm280, 0.0
      %326 = vst.msk [vmem:[#allocation2 + $0x160] sm:$0xf] %vm283, 0.0
      %327 = vst.msk [vmem:[#allocation2 + $0x168] sm:$0xff] %vm280, 0.0
      %328 = vst.msk [vmem:[#allocation2 + $0x170] sm:$0xff] %vm280, 0.0
      %329 = vst.msk [vmem:[#allocation2 + $0x178] sm:$0xf] %vm283, 0.0
      %330 = vst.msk [vmem:[#allocation2 + $0x180] sm:$0xff] %vm280, 0.0
      %331 = vst.msk [vmem:[#allocation2 + $0x188] sm:$0xff] %vm280, 0.0
      %332 = vst.msk [vmem:[#allocation2 + $0x190] sm:$0xf] %vm283, 0.0
      %333 = vst.msk [vmem:[#allocation2 + $0x198] sm:$0xff] %vm280, 0.0
      %334 = vst.msk [vmem:[#allocation2 + $0x1a0] sm:$0xff] %vm280, 0.0
      %335 = vst.msk [vmem:[#allocation2 + $0x1a8] sm:$0xf] %vm283, 0.0
      %336 = vst.msk [vmem:[#allocation2 + $0x1b0] sm:$0xff] %vm280, 0.0
      %337 = vst.msk [vmem:[#allocation2 + $0x1b8] sm:$0xff] %vm280, 0.0
      %338 = vst.msk [vmem:[#allocation2 + $0x1c0] sm:$0xf] %vm283, 0.0
      %339 = vst.msk [vmem:[#allocation2 + $0x1c8] sm:$0xff] %vm280, 0.0
      %340 = vst.msk [vmem:[#allocation2 + $0x1d0] sm:$0xff] %vm280, 0.0
      %341 = vst.msk [vmem:[#allocation2 + $0x1d8] sm:$0xf] %vm283, 0.0
      %v342 = vld [vmem:[%s273] sm:$0xff]
      %v343 = vld [vmem:[%s273 + $0x8] sm:$0xff]
      %v344 = vld [vmem:[%s273 + $0x10] sm:$0xff]
      %v345 = vld [vmem:[%s273 + $0x18] sm:$0xff]
      %v346 = vld [vmem:[%s273 + $0x20] sm:$0xff]
      %v347 = vld [vmem:[%s273 + $0x28] sm:$0xff]
      %v348 = vld [vmem:[%s273 + $0x30] sm:$0xff]
      %v349 = vld [vmem:[%s273 + $0x38] sm:$0xff]
      %v350 = vld [vmem:[%s273 + $0x40] sm:$0xff]
      %v351 = vld [vmem:[%s273 + $0x48] sm:$0xff]
      %v352 = vld [vmem:[%s273 + $0x50] sm:$0xff]
      %v353 = vld [vmem:[%s273 + $0x58] sm:$0xff]
      %v354 = vld [vmem:[%s273 + $0x60] sm:$0xff]
      %v355 = vld [vmem:[%s273 + $0x68] sm:$0xff]
      %v356 = vld [vmem:[%s273 + $0x70] sm:$0xff]
      %v357 = vld [vmem:[%s273 + $0x78] sm:$0xff]
      %v358 = vld [vmem:[%s273 + $0x80] sm:$0xff]
      %v359 = vld [vmem:[%s273 + $0x88] sm:$0xff]
      %v360 = vld [vmem:[%s273 + $0x90] sm:$0xff]
      %v361 = vld [vmem:[%s273 + $0x98] sm:$0xff]
      %v362 = vld [vmem:[%s273 + $0xa0] sm:$0xff]
      %v363 = vld [vmem:[%s273 + $0xa8] sm:$0xff]
      %v364 = vld [vmem:[%s273 + $0xb0] sm:$0xff]
      %v365 = vld [vmem:[%s273 + $0xb8] sm:$0xff]
      %v366 = vld [vmem:[%s273 + $0xc0] sm:$0xff]
      %v367 = vld [vmem:[%s273 + $0xc8] sm:$0xff]
      %v368 = vld [vmem:[%s273 + $0xd0] sm:$0xff]
      %v369 = vld [vmem:[%s273 + $0xd8] sm:$0xff]
      %v370 = vld [vmem:[%s273 + $0xe0] sm:$0xff]
      %v371 = vld [vmem:[%s273 + $0xe8] sm:$0xff]
      %v372 = vld [vmem:[%s273 + $0xf0] sm:$0xff]
      %v373 = vld [vmem:[%s273 + $0xf8] sm:$0xff]
      %s374 = scalar_lea.vmem [#allocation2], 48
      %375 = vst.msk [vmem:[%s374 + $0x2] sm:$0xff] %vm280, %v342
      %376 = vst.msk [vmem:[%s374 + $0xa] sm:$0xff] %vm280, %v343
      %377 = vst.msk [vmem:[%s374 + $0x1a] sm:$0xff] %vm280, %v344
      %378 = vst.msk [vmem:[%s374 + $0x22] sm:$0xff] %vm280, %v345
      %379 = vst.msk [vmem:[%s374 + $0x32] sm:$0xff] %vm280, %v346
      %380 = vst.msk [vmem:[%s374 + $0x3a] sm:$0xff] %vm280, %v347
      %381 = vst.msk [vmem:[%s374 + $0x4a] sm:$0xff] %vm280, %v348
      %382 = vst.msk [vmem:[%s374 + $0x52] sm:$0xff] %vm280, %v349
      %383 = vst.msk [vmem:[%s374 + $0x62] sm:$0xff] %vm280, %v350
      %384 = vst.msk [vmem:[%s374 + $0x6a] sm:$0xff] %vm280, %v351
      %385 = vst.msk [vmem:[%s374 + $0x7a] sm:$0xff] %vm280, %v352
      %386 = vst.msk [vmem:[%s374 + $0x82] sm:$0xff] %vm280, %v353
      %387 = vst.msk [vmem:[%s374 + $0x92] sm:$0xff] %vm280, %v354
      %388 = vst.msk [vmem:[%s374 + $0x9a] sm:$0xff] %vm280, %v355
      %389 = vst.msk [vmem:[%s374 + $0xaa] sm:$0xff] %vm280, %v356
      %390 = vst.msk [vmem:[%s374 + $0xb2] sm:$0xff] %vm280, %v357
      %391 = vst.msk [vmem:[%s374 + $0xc2] sm:$0xff] %vm280, %v358
      %392 = vst.msk [vmem:[%s374 + $0xca] sm:$0xff] %vm280, %v359
      %393 = vst.msk [vmem:[%s374 + $0xda] sm:$0xff] %vm280, %v360
      %394 = vst.msk [vmem:[%s374 + $0xe2] sm:$0xff] %vm280, %v361
      %395 = vst.msk [vmem:[%s374 + $0xf2] sm:$0xff] %vm280, %v362
      %396 = vst.msk [vmem:[%s374 + $0xfa] sm:$0xff] %vm280, %v363
      %397 = vst.msk [vmem:[%s374 + $0x10a] sm:$0xff] %vm280, %v364
      %398 = vst.msk [vmem:[%s374 + $0x112] sm:$0xff] %vm280, %v365
      %399 = vst.msk [vmem:[%s374 + $0x122] sm:$0xff] %vm280, %v366
      %400 = vst.msk [vmem:[%s374 + $0x12a] sm:$0xff] %vm280, %v367
      %401 = vst.msk [vmem:[%s374 + $0x13a] sm:$0xff] %vm280, %v368
      %402 = vst.msk [vmem:[%s374 + $0x142] sm:$0xff] %vm280, %v369
      %403 = vst.msk [vmem:[%s374 + $0x152] sm:$0xff] %vm280, %v370
      %404 = vst.msk [vmem:[%s374 + $0x15a] sm:$0xff] %vm280, %v371
      %405 = vst.msk [vmem:[%s374 + $0x16a] sm:$0xff] %vm280, %v372
      %406 = vst.msk [vmem:[%s374 + $0x172] sm:$0xff] %vm280, %v373
      %v407 = vld [vmem:[#allocation2] sm:$0xff]
      %v408 = vld [vmem:[#allocation2 + $0x8] sm:$0xff]
      %v409 = vld [vmem:[#allocation2 + $0x10] sm:$0xf]
      %v410 = vld [vmem:[#allocation2 + $0x18] sm:$0xff]
      %v411 = vld [vmem:[#allocation2 + $0x20] sm:$0xff]
      %v412 = vld [vmem:[#allocation2 + $0x28] sm:$0xf]
      %v413 = vld [vmem:[#allocation2 + $0x30] sm:$0xff]
      %v414 = vld [vmem:[#allocation2 + $0x38] sm:$0xff]
      %v415 = vld [vmem:[#allocation2 + $0x40] sm:$0xf]
      %v416 = vld [vmem:[#allocation2 + $0x48] sm:$0xff]
      %v417 = vld [vmem:[#allocation2 + $0x50] sm:$0xff]
      %v418 = vld [vmem:[#allocation2 + $0x58] sm:$0xf]
      %v419 = vld [vmem:[#allocation2 + $0x60] sm:$0xff]
      %v420 = vld [vmem:[#allocation2 + $0x68] sm:$0xff]
      %v421 = vld [vmem:[#allocation2 + $0x70] sm:$0xf]
      %v422 = vld [vmem:[#allocation2 + $0x78] sm:$0xff]
      %v423 = vld [vmem:[#allocation2 + $0x80] sm:$0xff]
      %v424 = vld [vmem:[#allocation2 + $0x88] sm:$0xf]
      %v425 = vld [vmem:[#allocation2 + $0x90] sm:$0xff]
      %v426 = vld [vmem:[#allocation2 + $0x98] sm:$0xff]
      %v427 = vld [vmem:[#allocation2 + $0xa0] sm:$0xf]
      %v428 = vld [vmem:[#allocation2 + $0xa8] sm:$0xff]
      %v429 = vld [vmem:[#allocation2 + $0xb0] sm:$0xff]
      %v430 = vld [vmem:[#allocation2 + $0xb8] sm:$0xf]
      %v431 = vld [vmem:[#allocation2 + $0xc0] sm:$0xff]
      %v432 = vld [vmem:[#allocation2 + $0xc8] sm:$0xff]
      %v433 = vld [vmem:[#allocation2 + $0xd0] sm:$0xf]
      %v434 = vld [vmem:[#allocation2 + $0xd8] sm:$0xff]
      %v435 = vld [vmem:[#allocation2 + $0xe0] sm:$0xff]
      %v436 = vld [vmem:[#allocation2 + $0xe8] sm:$0xf]
      %v437 = vld [vmem:[#allocation2 + $0xf0] sm:$0xff]
      %v438 = vld [vmem:[#allocation2 + $0xf8] sm:$0xff]
      %v439 = vld [vmem:[#allocation2 + $0x100] sm:$0xf]
      %v440 = vld [vmem:[#allocation2 + $0x108] sm:$0xff]
      %v441 = vld [vmem:[#allocation2 + $0x110] sm:$0xff]
      %v442 = vld [vmem:[#allocation2 + $0x118] sm:$0xf]
      %v443 = vld [vmem:[#allocation2 + $0x120] sm:$0xff]
      %v444 = vld [vmem:[#allocation2 + $0x128] sm:$0xff]
      %v445 = vld [vmem:[#allocation2 + $0x130] sm:$0xf]
      %v446 = vld [vmem:[#allocation2 + $0x138] sm:$0xff]
      %v447 = vld [vmem:[#allocation2 + $0x140] sm:$0xff]
      %v448 = vld [vmem:[#allocation2 + $0x148] sm:$0xf]
      %v449 = vld [vmem:[#allocation2 + $0x150] sm:$0xff]
      %v450 = vld [vmem:[#allocation2 + $0x158] sm:$0xff]
      %v451 = vld [vmem:[#allocation2 + $0x160] sm:$0xf]
      %v452 = vld [vmem:[#allocation2 + $0x168] sm:$0xff]
      %v453 = vld [vmem:[#allocation2 + $0x170] sm:$0xff]
      %v454 = vld [vmem:[#allocation2 + $0x178] sm:$0xf]
      %v455 = vld [vmem:[#allocation2 + $0x180] sm:$0xff]
      %v456 = vld [vmem:[#allocation2 + $0x188] sm:$0xff]
      %v457 = vld [vmem:[#allocation2 + $0x190] sm:$0xf]
      %v458 = vld [vmem:[#allocation2 + $0x198] sm:$0xff]
      %v459 = vld [vmem:[#allocation2 + $0x1a0] sm:$0xff]
      %v460 = vld [vmem:[#allocation2 + $0x1a8] sm:$0xf]
      %v461 = vld [vmem:[#allocation2 + $0x1b0] sm:$0xff]
      %v462 = vld [vmem:[#allocation2 + $0x1b8] sm:$0xff]
      %v463 = vld [vmem:[#allocation2 + $0x1c0] sm:$0xf]
      %v464 = vld [vmem:[#allocation2 + $0x1c8] sm:$0xff]
      %v465 = vld [vmem:[#allocation2 + $0x1d0] sm:$0xff]
      %v466 = vld [vmem:[#allocation2 + $0x1d8] sm:$0xf]
      %v467 = vpack.c.bf16 %v408, %v407
      %v468 = vpack.c.bf16 %v411, %v410
      %v469 = vpack.c.bf16 %v414, %v413
      %v470 = vpack.c.bf16 %v417, %v416
      %v471 = vpack.c.bf16 %v420, %v419
      %v472 = vpack.c.bf16 %v423, %v422
      %v473 = vpack.c.bf16 %v426, %v425
      %v474 = vpack.c.bf16 %v429, %v428
      %v475 = vpack.c.bf16 %v432, %v431
      %v476 = vpack.c.bf16 %v435, %v434
      %v477 = vpack.c.bf16 %v438, %v437
      %v478 = vpack.c.bf16 %v441, %v440
      %v479 = vpack.c.bf16 %v444, %v443
      %v480 = vpack.c.bf16 %v447, %v446
      %v481 = vpack.c.bf16 %v450, %v449
      %v482 = vpack.c.bf16 %v453, %v452
      %v483 = vld [vmem:[%s1] sm:$0x3]
      %vm532 = vcmask 1046528
      %v533 = vrot.slane %v407, 1
      %v534 = vrot.slane %v408, 1
      %v535 = vsel %vm532, %v533, %v534
      %v536 = vrot.slane %v409, 1
      %v537 = vsel %vm532, %v534, %v536
      %v538 = vrot.slane %v410, 1
      %v539 = vrot.slane %v411, 1
      %v540 = vsel %vm532, %v538, %v539
      %v541 = vrot.slane %v412, 1
      %v542 = vsel %vm532, %v539, %v541
      %v543 = vrot.slane %v413, 1
      %v544 = vrot.slane %v414, 1
      %v545 = vsel %vm532, %v543, %v544
      %v546 = vrot.slane %v415, 1
      %v547 = vsel %vm532, %v544, %v546
      %v548 = vrot.slane %v416, 1
      %v549 = vrot.slane %v417, 1
      %v550 = vsel %vm532, %v548, %v549
      %v551 = vrot.slane %v418, 1
      %v552 = vsel %vm532, %v549, %v551
      %v553 = vrot.slane %v419, 1
      %v554 = vrot.slane %v420, 1
      %v555 = vsel %vm532, %v553, %v554
      %v556 = vrot.slane %v421, 1
      %v557 = vsel %vm532, %v554, %v556
      %v558 = vrot.slane %v422, 1
      %v559 = vrot.slane %v423, 1
      %v560 = vsel %vm532, %v558, %v559
      %v561 = vrot.slane %v424, 1
      %v562 = vsel %vm532, %v559, %v561
      %v563 = vrot.slane %v425, 1
      %v564 = vrot.slane %v426, 1
      %v565 = vsel %vm532, %v563, %v564
      %v566 = vrot.slane %v427, 1
      %v567 = vsel %vm532, %v564, %v566
      %v568 = vrot.slane %v428, 1
      %v569 = vrot.slane %v429, 1
      %v570 = vsel %vm532, %v568, %v569
      %v571 = vrot.slane %v430, 1
      %v572 = vsel %vm532, %v569, %v571
      %v573 = vrot.slane %v431, 1
      %v574 = vrot.slane %v432, 1
      %v575 = vsel %vm532, %v573, %v574
      %v576 = vrot.slane %v433, 1
      %v577 = vsel %vm532, %v574, %v576
      %v578 = vrot.slane %v434, 1
      %v579 = vrot.slane %v435, 1
      %v580 = vsel %vm532, %v578, %v579
      %v581 = vrot.slane %v436, 1
      %v582 = vsel %vm532, %v579, %v581
      %v583 = vrot.slane %v437, 1
      %v584 = vrot.slane %v438, 1
      %v585 = vsel %vm532, %v583, %v584
      %v586 = vrot.slane %v439, 1
      %v587 = vsel %vm532, %v584, %v586
      %v588 = vrot.slane %v440, 1
      %v589 = vrot.slane %v441, 1
      %v590 = vsel %vm532, %v588, %v589
      %v591 = vrot.slane %v442, 1
      %v592 = vsel %vm532, %v589, %v591
      %v593 = vrot.slane %v443, 1
      %v594 = vrot.slane %v444, 1
      %v595 = vsel %vm532, %v593, %v594
      %v596 = vrot.slane %v445, 1
      %v597 = vsel %vm532, %v594, %v596
      %v598 = vrot.slane %v446, 1
      %v599 = vrot.slane %v447, 1
      %v600 = vsel %vm532, %v598, %v599
      %v601 = vrot.slane %v448, 1
      %v602 = vsel %vm532, %v599, %v601
      %v603 = vrot.slane %v449, 1
      %v604 = vrot.slane %v450, 1
      %v605 = vsel %vm532, %v603, %v604
      %v606 = vrot.slane %v451, 1
      %v607 = vsel %vm532, %v604, %v606
      %v608 = vrot.slane %v452, 1
      %v609 = vrot.slane %v453, 1
      %v610 = vsel %vm532, %v608, %v609
      %v611 = vrot.slane %v454, 1
      %v612 = vsel %vm532, %v609, %v611
      %v645 = vpack.c.bf16 %v537, %v535
      %v646 = vpack.c.bf16 %v542, %v540
      %v647 = vpack.c.bf16 %v547, %v545
      %v648 = vpack.c.bf16 %v552, %v550
      %v649 = vpack.c.bf16 %v557, %v555
      %v650 = vpack.c.bf16 %v562, %v560
      %v651 = vpack.c.bf16 %v567, %v565
      %v652 = vpack.c.bf16 %v572, %v570
      %v653 = vpack.c.bf16 %v577, %v575
      %v654 = vpack.c.bf16 %v582, %v580
      %v655 = vpack.c.bf16 %v587, %v585
      %v656 = vpack.c.bf16 %v592, %v590
      %v657 = vpack.c.bf16 %v597, %v595
      %v658 = vpack.c.bf16 %v602, %v600
      %v659 = vpack.c.bf16 %v607, %v605
      %v660 = vpack.c.bf16 %v612, %v610
      %s661 = scalar_lea.vmem %s1, 2
      %v662 = vld [vmem:[%s661] sm:$0x3]
      %v664 = vsel %vm280, %v645, 0
      %v667 = vsel %vm280, %v646, 0
      %v670 = vsel %vm280, %v647, 0
      %v673 = vsel %vm280, %v648, 0
      %v676 = vsel %vm280, %v649, 0
      %v679 = vsel %vm280, %v650, 0
      %v682 = vsel %vm280, %v651, 0
      %v685 = vsel %vm280, %v652, 0
      %v688 = vsel %vm280, %v653, 0
      %v691 = vsel %vm280, %v654, 0
      %v694 = vsel %vm280, %v655, 0
      %v697 = vsel %vm280, %v656, 0
      %v700 = vsel %vm280, %v657, 0
      %v703 = vsel %vm280, %v658, 0
      %v706 = vsel %vm280, %v659, 0
      %v709 = vsel %vm280, %v660, 0
      %vm711 = vcmask 1041408
      %v713 = vsel %vm711, %v662, 0
      %715 = vmatprep.subr.bf16.mxu0 0
      %716 = vmatpush1.bf16.msra.mxu0 %v713
      %717 = vmatprep.subr.bf16.mxu0 0
      %718 = vmatpush1.bf16.msra.mxu0 0
      %719 = vmatprep.subr.bf16.mxu0 0
      %720 = vmatpush1.bf16.msra.mxu0 0
      %721 = vmatprep.subr.bf16.mxu0 0
      %722 = vmatpush1.bf16.msra.mxu0 0
      %723 = vmatprep.subr.bf16.mxu0 0
      %724 = vmatpush1.bf16.msra.mxu0 0
      %725 = vmatprep.subr.bf16.mxu0 0
      %726 = vmatpush1.bf16.msra.mxu0 0
      %727 = vmatprep.subr.bf16.mxu0 0
      %728 = vmatpush1.bf16.msra.mxu0 0
      %729 = vmatprep.subr.bf16.mxu0 0
      %730 = vmatpush1.bf16.msra.mxu0 0
      %731 = vmatprep.subr.bf16.mxu0 0
      %732 = vmatpush1.bf16.msra.mxu0 0
      %733 = vmatprep.subr.bf16.mxu0 0
      %734 = vmatpush1.bf16.msra.mxu0 0
      %735 = vmatprep.subr.bf16.mxu0 0
      %736 = vmatpush1.bf16.msra.mxu0 0
      %737 = vmatprep.subr.bf16.mxu0 0
      %738 = vmatpush1.bf16.msra.mxu0 0
      %739 = vmatprep.subr.bf16.mxu0 0
      %740 = vmatpush1.bf16.msra.mxu0 0
      %741 = vmatprep.subr.bf16.mxu0 0
      %742 = vmatpush1.bf16.msra.mxu0 0
      %743 = vmatprep.subr.bf16.mxu0 0
      %744 = vmatpush1.bf16.msra.mxu0 0
      %745 = vmatprep.subr.bf16.mxu0 0
      %746 = vmatpush1.bf16.msra.mxu0 0
      %747 = vmatprep.mubr.bf16.mxu0 0
      %748 = vmatmul.mubr.bf16.gmra.mrb[0].mxu0 %v664
      %v749 = vpop.f32.mrb[0].mxu0
      %v750 = vadd.f32 0.0, %v749
      %v751 = vpop.f32.mrb[0].mxu0
      %v752 = vpop.f32.mrb[0].mxu0
      %v753 = vadd.f32 0.0, %v752
      %v754 = vpop.f32.mrb[0].mxu0
      %755 = vmatprep.mubr.bf16.mxu0 0
      %756 = vmatmul.mubr.bf16.gmra.mrb[0].mxu0 %v667
      %v757 = vpop.f32.mrb[0].mxu0
      %v758 = vadd.f32 0.0, %v757
      %v759 = vpop.f32.mrb[0].mxu0
      %v760 = vpop.f32.mrb[0].mxu0
      %v761 = vadd.f32 0.0, %v760
      %v762 = vpop.f32.mrb[0].mxu0
      %763 = vmatprep.mubr.bf16.mxu0 0
      %764 = vmatmul.mubr.bf16.gmra.mrb[0].mxu0 %v670
      %v765 = vpop.f32.mrb[0].mxu0
      %v766 = vadd.f32 0.0, %v765
      %v767 = vpop.f32.mrb[0].mxu0
      %v768 = vpop.f32.mrb[0].mxu0
      %v769 = vadd.f32 0.0, %v768
      %v770 = vpop.f32.mrb[0].mxu0
      %771 = vmatprep.mubr.bf16.mxu0 0
      %772 = vmatmul.mubr.bf16.gmra.mrb[0].mxu0 %v673
      %v773 = vpop.f32.mrb[0].mxu0
      %v774 = vadd.f32 0.0, %v773
      %v775 = vpop.f32.mrb[0].mxu0
      %v776 = vpop.f32.mrb[0].mxu0
      %v777 = vadd.f32 0.0, %v776
      %v778 = vpop.f32.mrb[0].mxu0
      %779 = vmatprep.mubr.bf16.mxu0 0
      %780 = vmatmul.mubr.bf16.gmra.mrb[0].mxu0 %v676
      %v781 = vpop.f32.mrb[0].mxu0
      %v782 = vadd.f32 0.0, %v781
      %v783 = vpop.f32.mrb[0].mxu0
      %v784 = vpop.f32.mrb[0].mxu0
      %v785 = vadd.f32 0.0, %v784
      %v786 = vpop.f32.mrb[0].mxu0
      %787 = vmatprep.mubr.bf16.mxu0 0
      %788 = vmatmul.mubr.bf16.gmra.mrb[0].mxu0 %v679
      %v789 = vpop.f32.mrb[0].mxu0
      %v790 = vadd.f32 0.0, %v789
      %v791 = vpop.f32.mrb[0].mxu0
      %v792 = vpop.f32.mrb[0].mxu0
      %v793 = vadd.f32 0.0, %v792
      %v794 = vpop.f32.mrb[0].mxu0
      %795 = vmatprep.mubr.bf16.mxu0 0
      %796 = vmatmul.mubr.bf16.gmra.mrb[0].mxu0 %v682
      %v797 = vpop.f32.mrb[0].mxu0
      %v798 = vadd.f32 0.0, %v797
      %v799 = vpop.f32.mrb[0].mxu0
      %v800 = vpop.f32.mrb[0].mxu0
      %v801 = vadd.f32 0.0, %v800
      %v802 = vpop.f32.mrb[0].mxu0
      %803 = vmatprep.mubr.bf16.mxu0 0
      %804 = vmatmul.mubr.bf16.gmra.mrb[0].mxu0 %v685
      %v805 = vpop.f32.mrb[0].mxu0
      %v806 = vadd.f32 0.0, %v805
      %v807 = vpop.f32.mrb[0].mxu0
      %v808 = vpop.f32.mrb[0].mxu0
      %v809 = vadd.f32 0.0, %v808
      %v810 = vpop.f32.mrb[0].mxu0
      %811 = vmatprep.mubr.bf16.mxu0 0
      %812 = vmatmul.mubr.bf16.gmra.mrb[0].mxu0 %v688
      %v813 = vpop.f32.mrb[0].mxu0
      %v814 = vadd.f32 0.0, %v813
      %v815 = vpop.f32.mrb[0].mxu0
      %v816 = vpop.f32.mrb[0].mxu0
      %v817 = vadd.f32 0.0, %v816
      %v818 = vpop.f32.mrb[0].mxu0
      %819 = vmatprep.mubr.bf16.mxu0 0
      %820 = vmatmul.mubr.bf16.gmra.mrb[0].mxu0 %v691
      %v821 = vpop.f32.mrb[0].mxu0
      %v822 = vadd.f32 0.0, %v821
      %v823 = vpop.f32.mrb[0].mxu0
      %v824 = vpop.f32.mrb[0].mxu0
      %v825 = vadd.f32 0.0, %v824
      %v826 = vpop.f32.mrb[0].mxu0
      %827 = vmatprep.mubr.bf16.mxu0 0
      %828 = vmatmul.mubr.bf16.gmra.mrb[0].mxu0 %v694
      %v829 = vpop.f32.mrb[0].mxu0
      %v830 = vadd.f32 0.0, %v829
      %v831 = vpop.f32.mrb[0].mxu0
      %v832 = vpop.f32.mrb[0].mxu0
      %v833 = vadd.f32 0.0, %v832
      %v834 = vpop.f32.mrb[0].mxu0
      %835 = vmatprep.mubr.bf16.mxu0 0
      %836 = vmatmul.mubr.bf16.gmra.mrb[0].mxu0 %v697
      %v837 = vpop.f32.mrb[0].mxu0
      %v838 = vadd.f32 0.0, %v837
      %v839 = vpop.f32.mrb[0].mxu0
      %v840 = vpop.f32.mrb[0].mxu0
      %v841 = vadd.f32 0.0, %v840
      %v842 = vpop.f32.mrb[0].mxu0
      %843 = vmatprep.mubr.bf16.mxu0 0
      %844 = vmatmul.mubr.bf16.gmra.mrb[0].mxu0 %v700
      %v845 = vpop.f32.mrb[0].mxu0
      %v846 = vadd.f32 0.0, %v845
      %v847 = vpop.f32.mrb[0].mxu0
      %v848 = vpop.f32.mrb[0].mxu0
      %v849 = vadd.f32 0.0, %v848
      %v850 = vpop.f32.mrb[0].mxu0
      %851 = vmatprep.mubr.bf16.mxu0 0
      %852 = vmatmul.mubr.bf16.gmra.mrb[0].mxu0 %v703
      %v853 = vpop.f32.mrb[0].mxu0
      %v854 = vadd.f32 0.0, %v853
      %v855 = vpop.f32.mrb[0].mxu0
      %v856 = vpop.f32.mrb[0].mxu0
      %v857 = vadd.f32 0.0, %v856
      %v858 = vpop.f32.mrb[0].mxu0
      %859 = vmatprep.mubr.bf16.mxu0 0
      %860 = vmatmul.mubr.bf16.gmra.mrb[0].mxu0 %v706
      %v861 = vpop.f32.mrb[0].mxu0
      %v862 = vadd.f32 0.0, %v861
      %v863 = vpop.f32.mrb[0].mxu0
      %v864 = vpop.f32.mrb[0].mxu0
      %v865 = vadd.f32 0.0, %v864
      %v866 = vpop.f32.mrb[0].mxu0
      %867 = vmatprep.mubr.bf16.mxu0 0
      %868 = vmatmul.mubr.bf16.gmra.mrb[0].mxu0 %v709
      %v869 = vpop.f32.mrb[0].mxu0
      %v870 = vadd.f32 0.0, %v869
      %v871 = vpop.f32.mrb[0].mxu0
      %v872 = vpop.f32.mrb[0].mxu0
      %v873 = vadd.f32 0.0, %v872
      %v874 = vpop.f32.mrb[0].mxu0
      %875 = vdwg.mxu0
      %v877 = vsel %vm280, %v467, 0
      %v880 = vsel %vm280, %v468, 0
      %v883 = vsel %vm280, %v469, 0
      %v886 = vsel %vm280, %v470, 0
      %v889 = vsel %vm280, %v471, 0
      %v892 = vsel %vm280, %v472, 0
      %v895 = vsel %vm280, %v473, 0
      %v898 = vsel %vm280, %v474, 0
      %v901 = vsel %vm280, %v475, 0
      %v904 = vsel %vm280, %v476, 0
      %v907 = vsel %vm280, %v477, 0
      %v910 = vsel %vm280, %v478, 0
      %v913 = vsel %vm280, %v479, 0
      %v916 = vsel %vm280, %v480, 0
      %v919 = vsel %vm280, %v481, 0
      %v922 = vsel %vm280, %v482, 0
      %v925 = vsel %vm711, %v483, 0
      %927 = vmatprep.subr.bf16.mxu0 0
      %928 = vmatpush1.bf16.msra.mxu0 %v925
      %929 = vmatprep.subr.bf16.mxu0 0
      %930 = vmatpush1.bf16.msra.mxu0 0
      %931 = vmatprep.subr.bf16.mxu0 0
      %932 = vmatpush1.bf16.msra.mxu0 0
      %933 = vmatprep.subr.bf16.mxu0 0
      %934 = vmatpush1.bf16.msra.mxu0 0
      %935 = vmatprep.subr.bf16.mxu0 0
      %936 = vmatpush1.bf16.msra.mxu0 0
      %937 = vmatprep.subr.bf16.mxu0 0
      %938 = vmatpush1.bf16.msra.mxu0 0
      %939 = vmatprep.subr.bf16.mxu0 0
      %940 = vmatpush1.bf16.msra.mxu0 0
      %941 = vmatprep.subr.bf16.mxu0 0
      %942 = vmatpush1.bf16.msra.mxu0 0
      %943 = vmatprep.subr.bf16.mxu0 0
      %944 = vmatpush1.bf16.msra.mxu0 0
      %945 = vmatprep.subr.bf16.mxu0 0
      %946 = vmatpush1.bf16.msra.mxu0 0
      %947 = vmatprep.subr.bf16.mxu0 0
      %948 = vmatpush1.bf16.msra.mxu0 0
      %949 = vmatprep.subr.bf16.mxu0 0
      %950 = vmatpush1.bf16.msra.mxu0 0
      %951 = vmatprep.subr.bf16.mxu0 0
      %952 = vmatpush1.bf16.msra.mxu0 0
      %953 = vmatprep.subr.bf16.mxu0 0
      %954 = vmatpush1.bf16.msra.mxu0 0
      %955 = vmatprep.subr.bf16.mxu0 0
      %956 = vmatpush1.bf16.msra.mxu0 0
      %957 = vmatprep.subr.bf16.mxu0 0
      %958 = vmatpush1.bf16.msra.mxu0 0
      %959 = vmatprep.mubr.bf16.mxu0 0
      %960 = vmatmul.mubr.bf16.gmra.mrb[0].mxu0 %v877
      %v961 = vpop.f32.mrb[0].mxu0
      %v962 = vadd.f32 %v750, %v961
      %v963 = vpop.f32.mrb[0].mxu0
      %v964 = vpop.f32.mrb[0].mxu0
      %v965 = vadd.f32 %v753, %v964
      %v966 = vpop.f32.mrb[0].mxu0
      %967 = vmatprep.mubr.bf16.mxu0 0
      %968 = vmatmul.mubr.bf16.gmra.mrb[0].mxu0 %v880
      %v969 = vpop.f32.mrb[0].mxu0
      %v970 = vadd.f32 %v758, %v969
      %v971 = vpop.f32.mrb[0].mxu0
      %v972 = vpop.f32.mrb[0].mxu0
      %v973 = vadd.f32 %v761, %v972
      %v974 = vpop.f32.mrb[0].mxu0
      %975 = vmatprep.mubr.bf16.mxu0 0
      %976 = vmatmul.mubr.bf16.gmra.mrb[0].mxu0 %v883
      %v977 = vpop.f32.mrb[0].mxu0
      %v978 = vadd.f32 %v766, %v977
      %v979 = vpop.f32.mrb[0].mxu0
      %v980 = vpop.f32.mrb[0].mxu0
      %v981 = vadd.f32 %v769, %v980
      %v982 = vpop.f32.mrb[0].mxu0
      %983 = vmatprep.mubr.bf16.mxu0 0
      %984 = vmatmul.mubr.bf16.gmra.mrb[0].mxu0 %v886
      %v985 = vpop.f32.mrb[0].mxu0
      %v986 = vadd.f32 %v774, %v985
      %v987 = vpop.f32.mrb[0].mxu0
      %v988 = vpop.f32.mrb[0].mxu0
      %v989 = vadd.f32 %v777, %v988
      %v990 = vpop.f32.mrb[0].mxu0
      %991 = vmatprep.mubr.bf16.mxu0 0
      %992 = vmatmul.mubr.bf16.gmra.mrb[0].mxu0 %v889
      %v993 = vpop.f32.mrb[0].mxu0
      %v994 = vadd.f32 %v782, %v993
      %v995 = vpop.f32.mrb[0].mxu0
      %v996 = vpop.f32.mrb[0].mxu0
      %v997 = vadd.f32 %v785, %v996
      %v998 = vpop.f32.mrb[0].mxu0
      %999 = vmatprep.mubr.bf16.mxu0 0
      %1000 = vmatmul.mubr.bf16.gmra.mrb[0].mxu0 %v892
      %v1001 = vpop.f32.mrb[0].mxu0
      %v1002 = vadd.f32 %v790, %v1001
      %v1003 = vpop.f32.mrb[0].mxu0
      %v1004 = vpop.f32.mrb[0].mxu0
      %v1005 = vadd.f32 %v793, %v1004
      %v1006 = vpop.f32.mrb[0].mxu0
      %1007 = vmatprep.mubr.bf16.mxu0 0
      %1008 = vmatmul.mubr.bf16.gmra.mrb[0].mxu0 %v895
      %v1009 = vpop.f32.mrb[0].mxu0
      %v1010 = vadd.f32 %v798, %v1009
      %v1011 = vpop.f32.mrb[0].mxu0
      %v1012 = vpop.f32.mrb[0].mxu0
      %v1013 = vadd.f32 %v801, %v1012
      %v1014 = vpop.f32.mrb[0].mxu0
      %1015 = vmatprep.mubr.bf16.mxu0 0
      %1016 = vmatmul.mubr.bf16.gmra.mrb[0].mxu0 %v898
      %v1017 = vpop.f32.mrb[0].mxu0
      %v1018 = vadd.f32 %v806, %v1017
      %v1019 = vpop.f32.mrb[0].mxu0
      %v1020 = vpop.f32.mrb[0].mxu0
      %v1021 = vadd.f32 %v809, %v1020
      %v1022 = vpop.f32.mrb[0].mxu0
      %1023 = vmatprep.mubr.bf16.mxu0 0
      %1024 = vmatmul.mubr.bf16.gmra.mrb[0].mxu0 %v901
      %v1025 = vpop.f32.mrb[0].mxu0
      %v1026 = vadd.f32 %v814, %v1025
      %v1027 = vpop.f32.mrb[0].mxu0
      %v1028 = vpop.f32.mrb[0].mxu0
      %v1029 = vadd.f32 %v817, %v1028
      %v1030 = vpop.f32.mrb[0].mxu0
      %1031 = vmatprep.mubr.bf16.mxu0 0
      %1032 = vmatmul.mubr.bf16.gmra.mrb[0].mxu0 %v904
      %v1033 = vpop.f32.mrb[0].mxu0
      %v1034 = vadd.f32 %v822, %v1033
      %v1035 = vpop.f32.mrb[0].mxu0
      %v1036 = vpop.f32.mrb[0].mxu0
      %v1037 = vadd.f32 %v825, %v1036
      %v1038 = vpop.f32.mrb[0].mxu0
      %1039 = vmatprep.mubr.bf16.mxu0 0
      %1040 = vmatmul.mubr.bf16.gmra.mrb[0].mxu0 %v907
      %v1041 = vpop.f32.mrb[0].mxu0
      %v1042 = vadd.f32 %v830, %v1041
      %v1043 = vpop.f32.mrb[0].mxu0
      %v1044 = vpop.f32.mrb[0].mxu0
      %v1045 = vadd.f32 %v833, %v1044
      %v1046 = vpop.f32.mrb[0].mxu0
      %1047 = vmatprep.mubr.bf16.mxu0 0
      %1048 = vmatmul.mubr.bf16.gmra.mrb[0].mxu0 %v910
      %v1049 = vpop.f32.mrb[0].mxu0
      %v1050 = vadd.f32 %v838, %v1049
      %v1051 = vpop.f32.mrb[0].mxu0
      %v1052 = vpop.f32.mrb[0].mxu0
      %v1053 = vadd.f32 %v841, %v1052
      %v1054 = vpop.f32.mrb[0].mxu0
      %1055 = vmatprep.mubr.bf16.mxu0 0
      %1056 = vmatmul.mubr.bf16.gmra.mrb[0].mxu0 %v913
      %v1057 = vpop.f32.mrb[0].mxu0
      %v1058 = vadd.f32 %v846, %v1057
      %v1059 = vpop.f32.mrb[0].mxu0
      %v1060 = vpop.f32.mrb[0].mxu0
      %v1061 = vadd.f32 %v849, %v1060
      %v1062 = vpop.f32.mrb[0].mxu0
      %1063 = vmatprep.mubr.bf16.mxu0 0
      %1064 = vmatmul.mubr.bf16.gmra.mrb[0].mxu0 %v916
      %v1065 = vpop.f32.mrb[0].mxu0
      %v1066 = vadd.f32 %v854, %v1065
      %v1067 = vpop.f32.mrb[0].mxu0
      %v1068 = vpop.f32.mrb[0].mxu0
      %v1069 = vadd.f32 %v857, %v1068
      %v1070 = vpop.f32.mrb[0].mxu0
      %1071 = vmatprep.mubr.bf16.mxu0 0
      %1072 = vmatmul.mubr.bf16.gmra.mrb[0].mxu0 %v919
      %v1073 = vpop.f32.mrb[0].mxu0
      %v1074 = vadd.f32 %v862, %v1073
      %v1075 = vpop.f32.mrb[0].mxu0
      %v1076 = vpop.f32.mrb[0].mxu0
      %v1077 = vadd.f32 %v865, %v1076
      %v1078 = vpop.f32.mrb[0].mxu0
      %1079 = vmatprep.mubr.bf16.mxu0 0
      %1080 = vmatmul.mubr.bf16.gmra.mrb[0].mxu0 %v922
      %v1081 = vpop.f32.mrb[0].mxu0
      %v1082 = vadd.f32 %v870, %v1081
      %v1083 = vpop.f32.mrb[0].mxu0
      %v1084 = vpop.f32.mrb[0].mxu0
      %v1085 = vadd.f32 %v873, %v1084
      %v1086 = vpop.f32.mrb[0].mxu0
      %1087 = vdwg.mxu0
      %vm1088 = vcmask 1045504
      %v1089 = vrot.slane %v407, 2
      %v1090 = vrot.slane %v408, 2
      %v1091 = vsel %vm1088, %v1089, %v1090
      %v1092 = vrot.slane %v409, 2
      %v1093 = vsel %vm1088, %v1090, %v1092
      %v1094 = vrot.slane %v410, 2
      %v1095 = vrot.slane %v411, 2
      %v1096 = vsel %vm1088, %v1094, %v1095
      %v1097 = vrot.slane %v412, 2
      %v1098 = vsel %vm1088, %v1095, %v1097
      %v1099 = vrot.slane %v413, 2
      %v1100 = vrot.slane %v414, 2
      %v1101 = vsel %vm1088, %v1099, %v1100
      %v1102 = vrot.slane %v415, 2
      %v1103 = vsel %vm1088, %v1100, %v1102
      %v1104 = vrot.slane %v416, 2
      %v1105 = vrot.slane %v417, 2
      %v1106 = vsel %vm1088, %v1104, %v1105
      %v1107 = vrot.slane %v418, 2
      %v1108 = vsel %vm1088, %v1105, %v1107
      %v1109 = vrot.slane %v419, 2
      %v1110 = vrot.slane %v420, 2
      %v1111 = vsel %vm1088, %v1109, %v1110
      %v1112 = vrot.slane %v421, 2
      %v1113 = vsel %vm1088, %v1110, %v1112
      %v1114 = vrot.slane %v422, 2
      %v1115 = vrot.slane %v423, 2
      %v1116 = vsel %vm1088, %v1114, %v1115
      %v1117 = vrot.slane %v424, 2
      %v1118 = vsel %vm1088, %v1115, %v1117
      %v1119 = vrot.slane %v425, 2
      %v1120 = vrot.slane %v426, 2
      %v1121 = vsel %vm1088, %v1119, %v1120
      %v1122 = vrot.slane %v427, 2
      %v1123 = vsel %vm1088, %v1120, %v1122
      %v1124 = vrot.slane %v428, 2
      %v1125 = vrot.slane %v429, 2
      %v1126 = vsel %vm1088, %v1124, %v1125
      %v1127 = vrot.slane %v430, 2
      %v1128 = vsel %vm1088, %v1125, %v1127
      %v1129 = vrot.slane %v431, 2
      %v1130 = vrot.slane %v432, 2
      %v1131 = vsel %vm1088, %v1129, %v1130
      %v1132 = vrot.slane %v433, 2
      %v1133 = vsel %vm1088, %v1130, %v1132
      %v1134 = vrot.slane %v434, 2
      %v1135 = vrot.slane %v435, 2
      %v1136 = vsel %vm1088, %v1134, %v1135
      %v1137 = vrot.slane %v436, 2
      %v1138 = vsel %vm1088, %v1135, %v1137
      %v1139 = vrot.slane %v437, 2
      %v1140 = vrot.slane %v438, 2
      %v1141 = vsel %vm1088, %v1139, %v1140
      %v1142 = vrot.slane %v439, 2
      %v1143 = vsel %vm1088, %v1140, %v1142
      %v1144 = vrot.slane %v440, 2
      %v1145 = vrot.slane %v441, 2
      %v1146 = vsel %vm1088, %v1144, %v1145
      %v1147 = vrot.slane %v442, 2
      %v1148 = vsel %vm1088, %v1145, %v1147
      %v1149 = vrot.slane %v443, 2
      %v1150 = vrot.slane %v444, 2
      %v1151 = vsel %vm1088, %v1149, %v1150
      %v1152 = vrot.slane %v445, 2
      %v1153 = vsel %vm1088, %v1150, %v1152
      %v1154 = vrot.slane %v446, 2
      %v1155 = vrot.slane %v447, 2
      %v1156 = vsel %vm1088, %v1154, %v1155
      %v1157 = vrot.slane %v448, 2
      %v1158 = vsel %vm1088, %v1155, %v1157
      %v1159 = vrot.slane %v449, 2
      %v1160 = vrot.slane %v450, 2
      %v1161 = vsel %vm1088, %v1159, %v1160
      %v1162 = vrot.slane %v451, 2
      %v1163 = vsel %vm1088, %v1160, %v1162
      %v1164 = vrot.slane %v452, 2
      %v1165 = vrot.slane %v453, 2
      %v1166 = vsel %vm1088, %v1164, %v1165
      %v1167 = vrot.slane %v454, 2
      %v1168 = vsel %vm1088, %v1165, %v1167
      %v1201 = vpack.c.bf16 %v1093, %v1091
      %v1202 = vpack.c.bf16 %v1098, %v1096
      %v1203 = vpack.c.bf16 %v1103, %v1101
      %v1204 = vpack.c.bf16 %v1108, %v1106
      %v1205 = vpack.c.bf16 %v1113, %v1111
      %v1206 = vpack.c.bf16 %v1118, %v1116
      %v1207 = vpack.c.bf16 %v1123, %v1121
      %v1208 = vpack.c.bf16 %v1128, %v1126
      %v1209 = vpack.c.bf16 %v1133, %v1131
      %v1210 = vpack.c.bf16 %v1138, %v1136
      %v1211 = vpack.c.bf16 %v1143, %v1141
      %v1212 = vpack.c.bf16 %v1148, %v1146
      %v1213 = vpack.c.bf16 %v1153, %v1151
      %v1214 = vpack.c.bf16 %v1158, %v1156
      %v1215 = vpack.c.bf16 %v1163, %v1161
      %v1216 = vpack.c.bf16 %v1168, %v1166
      %s1217 = scalar_lea.vmem %s1, 4
      %v1218 = vld [vmem:[%s1217] sm:$0x3]
      %v1220 = vsel %vm280, %v1201, 0
      %v1223 = vsel %vm280, %v1202, 0
      %v1226 = vsel %vm280, %v1203, 0
      %v1229 = vsel %vm280, %v1204, 0
      %v1232 = vsel %vm280, %v1205, 0
      %v1235 = vsel %vm280, %v1206, 0
      %v1238 = vsel %vm280, %v1207, 0
      %v1241 = vsel %vm280, %v1208, 0
      %v1244 = vsel %vm280, %v1209, 0
      %v1247 = vsel %vm280, %v1210, 0
      %v1250 = vsel %vm280, %v1211, 0
      %v1253 = vsel %vm280, %v1212, 0
      %v1256 = vsel %vm280, %v1213, 0
      %v1259 = vsel %vm280, %v1214, 0
      %v1262 = vsel %vm280, %v1215, 0
      %v1265 = vsel %vm280, %v1216, 0
      %v1268 = vsel %vm711, %v1218, 0
      %1270 = vmatprep.subr.bf16.mxu0 0
      %1271 = vmatpush1.bf16.msra.mxu0 %v1268
      %1272 = vmatprep.subr.bf16.mxu0 0
      %1273 = vmatpush1.bf16.msra.mxu0 0
      %1274 = vmatprep.subr.bf16.mxu0 0
      %1275 = vmatpush1.bf16.msra.mxu0 0
      %1276 = vmatprep.subr.bf16.mxu0 0
      %1277 = vmatpush1.bf16.msra.mxu0 0
      %1278 = vmatprep.subr.bf16.mxu0 0
      %1279 = vmatpush1.bf16.msra.mxu0 0
      %1280 = vmatprep.subr.bf16.mxu0 0
      %1281 = vmatpush1.bf16.msra.mxu0 0
      %1282 = vmatprep.subr.bf16.mxu0 0
      %1283 = vmatpush1.bf16.msra.mxu0 0
      %1284 = vmatprep.subr.bf16.mxu0 0
      %1285 = vmatpush1.bf16.msra.mxu0 0
      %1286 = vmatprep.subr.bf16.mxu0 0
      %1287 = vmatpush1.bf16.msra.mxu0 0
      %1288 = vmatprep.subr.bf16.mxu0 0
      %1289 = vmatpush1.bf16.msra.mxu0 0
      %1290 = vmatprep.subr.bf16.mxu0 0
      %1291 = vmatpush1.bf16.msra.mxu0 0
      %1292 = vmatprep.subr.bf16.mxu0 0
      %1293 = vmatpush1.bf16.msra.mxu0 0
      %1294 = vmatprep.subr.bf16.mxu0 0
      %1295 = vmatpush1.bf16.msra.mxu0 0
      %1296 = vmatprep.subr.bf16.mxu0 0
      %1297 = vmatpush1.bf16.msra.mxu0 0
      %1298 = vmatprep.subr.bf16.mxu0 0
      %1299 = vmatpush1.bf16.msra.mxu0 0
      %1300 = vmatprep.subr.bf16.mxu0 0
      %1301 = vmatpush1.bf16.msra.mxu0 0
      %1302 = vmatprep.mubr.bf16.mxu0 0
      %1303 = vmatmul.mubr.bf16.gmra.mrb[0].mxu0 %v1220
      %v1304 = vpop.f32.mrb[0].mxu0
      %v1305 = vadd.f32 0.0, %v1304
      %v1306 = vpop.f32.mrb[0].mxu0
      %v1307 = vpop.f32.mrb[0].mxu0
      %v1308 = vadd.f32 0.0, %v1307
      %v1309 = vpop.f32.mrb[0].mxu0
      %1310 = vmatprep.mubr.bf16.mxu0 0
      %1311 = vmatmul.mubr.bf16.gmra.mrb[0].mxu0 %v1223
      %v1312 = vpop.f32.mrb[0].mxu0
      %v1313 = vadd.f32 0.0, %v1312
      %v1314 = vpop.f32.mrb[0].mxu0
      %v1315 = vpop.f32.mrb[0].mxu0
      %v1316 = vadd.f32 0.0, %v1315
      %v1317 = vpop.f32.mrb[0].mxu0
      %1318 = vmatprep.mubr.bf16.mxu0 0
      %1319 = vmatmul.mubr.bf16.gmra.mrb[0].mxu0 %v1226
      %v1320 = vpop.f32.mrb[0].mxu0
      %v1321 = vadd.f32 0.0, %v1320
      %v1322 = vpop.f32.mrb[0].mxu0
      %v1323 = vpop.f32.mrb[0].mxu0
      %v1324 = vadd.f32 0.0, %v1323
      %v1325 = vpop.f32.mrb[0].mxu0
      %1326 = vmatprep.mubr.bf16.mxu0 0
      %1327 = vmatmul.mubr.bf16.gmra.mrb[0].mxu0 %v1229
      %v1328 = vpop.f32.mrb[0].mxu0
      %v1329 = vadd.f32 0.0, %v1328
      %v1330 = vpop.f32.mrb[0].mxu0
      %v1331 = vpop.f32.mrb[0].mxu0
      %v1332 = vadd.f32 0.0, %v1331
      %v1333 = vpop.f32.mrb[0].mxu0
      %1334 = vmatprep.mubr.bf16.mxu0 0
      %1335 = vmatmul.mubr.bf16.gmra.mrb[0].mxu0 %v1232
      %v1336 = vpop.f32.mrb[0].mxu0
      %v1337 = vadd.f32 0.0, %v1336
      %v1338 = vpop.f32.mrb[0].mxu0
      %v1339 = vpop.f32.mrb[0].mxu0
      %v1340 = vadd.f32 0.0, %v1339
      %v1341 = vpop.f32.mrb[0].mxu0
      %1342 = vmatprep.mubr.bf16.mxu0 0
      %1343 = vmatmul.mubr.bf16.gmra.mrb[0].mxu0 %v1235
      %v1344 = vpop.f32.mrb[0].mxu0
      %v1345 = vadd.f32 0.0, %v1344
      %v1346 = vpop.f32.mrb[0].mxu0
      %v1347 = vpop.f32.mrb[0].mxu0
      %v1348 = vadd.f32 0.0, %v1347
      %v1349 = vpop.f32.mrb[0].mxu0
      %1350 = vmatprep.mubr.bf16.mxu0 0
      %1351 = vmatmul.mubr.bf16.gmra.mrb[0].mxu0 %v1238
      %v1352 = vpop.f32.mrb[0].mxu0
      %v1353 = vadd.f32 0.0, %v1352
      %v1354 = vpop.f32.mrb[0].mxu0
      %v1355 = vpop.f32.mrb[0].mxu0
      %v1356 = vadd.f32 0.0, %v1355
      %v1357 = vpop.f32.mrb[0].mxu0
      %1358 = vmatprep.mubr.bf16.mxu0 0
      %1359 = vmatmul.mubr.bf16.gmra.mrb[0].mxu0 %v1241
      %v1360 = vpop.f32.mrb[0].mxu0
      %v1361 = vadd.f32 0.0, %v1360
      %v1362 = vpop.f32.mrb[0].mxu0
      %v1363 = vpop.f32.mrb[0].mxu0
      %v1364 = vadd.f32 0.0, %v1363
      %v1365 = vpop.f32.mrb[0].mxu0
      %1366 = vmatprep.mubr.bf16.mxu0 0
      %1367 = vmatmul.mubr.bf16.gmra.mrb[0].mxu0 %v1244
      %v1368 = vpop.f32.mrb[0].mxu0
      %v1369 = vadd.f32 0.0, %v1368
      %v1370 = vpop.f32.mrb[0].mxu0
      %v1371 = vpop.f32.mrb[0].mxu0
      %v1372 = vadd.f32 0.0, %v1371
      %v1373 = vpop.f32.mrb[0].mxu0
      %1374 = vmatprep.mubr.bf16.mxu0 0
      %1375 = vmatmul.mubr.bf16.gmra.mrb[0].mxu0 %v1247
      %v1376 = vpop.f32.mrb[0].mxu0
      %v1377 = vadd.f32 0.0, %v1376
      %v1378 = vpop.f32.mrb[0].mxu0
      %v1379 = vpop.f32.mrb[0].mxu0
      %v1380 = vadd.f32 0.0, %v1379
      %v1381 = vpop.f32.mrb[0].mxu0
      %1382 = vmatprep.mubr.bf16.mxu0 0
      %1383 = vmatmul.mubr.bf16.gmra.mrb[0].mxu0 %v1250
      %v1384 = vpop.f32.mrb[0].mxu0
      %v1385 = vadd.f32 0.0, %v1384
      %v1386 = vpop.f32.mrb[0].mxu0
      %v1387 = vpop.f32.mrb[0].mxu0
      %v1388 = vadd.f32 0.0, %v1387
      %v1389 = vpop.f32.mrb[0].mxu0
      %1390 = vmatprep.mubr.bf16.mxu0 0
      %1391 = vmatmul.mubr.bf16.gmra.mrb[0].mxu0 %v1253
      %v1392 = vpop.f32.mrb[0].mxu0
      %v1393 = vadd.f32 0.0, %v1392
      %v1394 = vpop.f32.mrb[0].mxu0
      %v1395 = vpop.f32.mrb[0].mxu0
      %v1396 = vadd.f32 0.0, %v1395
      %v1397 = vpop.f32.mrb[0].mxu0
      %1398 = vmatprep.mubr.bf16.mxu0 0
      %1399 = vmatmul.mubr.bf16.gmra.mrb[0].mxu0 %v1256
      %v1400 = vpop.f32.mrb[0].mxu0
      %v1401 = vadd.f32 0.0, %v1400
      %v1402 = vpop.f32.mrb[0].mxu0
      %v1403 = vpop.f32.mrb[0].mxu0
      %v1404 = vadd.f32 0.0, %v1403
      %v1405 = vpop.f32.mrb[0].mxu0
      %1406 = vmatprep.mubr.bf16.mxu0 0
      %1407 = vmatmul.mubr.bf16.gmra.mrb[0].mxu0 %v1259
      %v1408 = vpop.f32.mrb[0].mxu0
      %v1409 = vadd.f32 0.0, %v1408
      %v1410 = vpop.f32.mrb[0].mxu0
      %v1411 = vpop.f32.mrb[0].mxu0
      %v1412 = vadd.f32 0.0, %v1411
      %v1413 = vpop.f32.mrb[0].mxu0
      %1414 = vmatprep.mubr.bf16.mxu0 0
      %1415 = vmatmul.mubr.bf16.gmra.mrb[0].mxu0 %v1262
      %v1416 = vpop.f32.mrb[0].mxu0
      %v1417 = vadd.f32 0.0, %v1416
      %v1418 = vpop.f32.mrb[0].mxu0
      %v1419 = vpop.f32.mrb[0].mxu0
      %v1420 = vadd.f32 0.0, %v1419
      %v1421 = vpop.f32.mrb[0].mxu0
      %1422 = vmatprep.mubr.bf16.mxu0 0
      %1423 = vmatmul.mubr.bf16.gmra.mrb[0].mxu0 %v1265
      %v1424 = vpop.f32.mrb[0].mxu0
      %v1425 = vadd.f32 0.0, %v1424
      %v1426 = vpop.f32.mrb[0].mxu0
      %v1427 = vpop.f32.mrb[0].mxu0
      %v1428 = vadd.f32 0.0, %v1427
      %v1429 = vpop.f32.mrb[0].mxu0
      %1430 = vdwg.mxu0
      %v1431 = vadd.f32 %v962, %v1305
      %v1432 = vadd.f32 %v965, %v1308
      %v1433 = vadd.f32 %v970, %v1313
      %v1434 = vadd.f32 %v973, %v1316
      %v1435 = vadd.f32 %v978, %v1321
      %v1436 = vadd.f32 %v981, %v1324
      %v1437 = vadd.f32 %v986, %v1329
      %v1438 = vadd.f32 %v989, %v1332
      %v1439 = vadd.f32 %v994, %v1337
      %v1440 = vadd.f32 %v997, %v1340
      %v1441 = vadd.f32 %v1002, %v1345
      %v1442 = vadd.f32 %v1005, %v1348
      %v1443 = vadd.f32 %v1010, %v1353
      %v1444 = vadd.f32 %v1013, %v1356
      %v1445 = vadd.f32 %v1018, %v1361
      %v1446 = vadd.f32 %v1021, %v1364
      %v1447 = vadd.f32 %v1026, %v1369
      %v1448 = vadd.f32 %v1029, %v1372
      %v1449 = vadd.f32 %v1034, %v1377
      %v1450 = vadd.f32 %v1037, %v1380
      %v1451 = vadd.f32 %v1042, %v1385
      %v1452 = vadd.f32 %v1045, %v1388
      %v1453 = vadd.f32 %v1050, %v1393
      %v1454 = vadd.f32 %v1053, %v1396
      %v1455 = vadd.f32 %v1058, %v1401
      %v1456 = vadd.f32 %v1061, %v1404
      %v1457 = vadd.f32 %v1066, %v1409
      %v1458 = vadd.f32 %v1069, %v1412
      %v1459 = vadd.f32 %v1074, %v1417
      %v1460 = vadd.f32 %v1077, %v1420
      %v1461 = vadd.f32 %v1082, %v1425
      %v1462 = vadd.f32 %v1085, %v1428
      %vm1463 = vcmask 1044480
      %v1464 = vrot.slane %v407, 3
      %v1465 = vrot.slane %v408, 3
      %v1466 = vsel %vm1463, %v1464, %v1465
      %v1467 = vrot.slane %v409, 3
      %v1468 = vsel %vm1463, %v1465, %v1467
      %v1469 = vrot.slane %v410, 3
      %v1470 = vrot.slane %v411, 3
      %v1471 = vsel %vm1463, %v1469, %v1470
      %v1472 = vrot.slane %v412, 3
      %v1473 = vsel %vm1463, %v1470, %v1472
      %v1474 = vrot.slane %v413, 3
      %v1475 = vrot.slane %v414, 3
      %v1476 = vsel %vm1463, %v1474, %v1475
      %v1477 = vrot.slane %v415, 3
      %v1478 = vsel %vm1463, %v1475, %v1477
      %v1479 = vrot.slane %v416, 3
      %v1480 = vrot.slane %v417, 3
      %v1481 = vsel %vm1463, %v1479, %v1480
      %v1482 = vrot.slane %v418, 3
      %v1483 = vsel %vm1463, %v1480, %v1482
      %v1484 = vrot.slane %v419, 3
      %v1485 = vrot.slane %v420, 3
      %v1486 = vsel %vm1463, %v1484, %v1485
      %v1487 = vrot.slane %v421, 3
      %v1488 = vsel %vm1463, %v1485, %v1487
      %v1489 = vrot.slane %v422, 3
      %v1490 = vrot.slane %v423, 3
      %v1491 = vsel %vm1463, %v1489, %v1490
      %v1492 = vrot.slane %v424, 3
      %v1493 = vsel %vm1463, %v1490, %v1492
      %v1494 = vrot.slane %v425, 3
      %v1495 = vrot.slane %v426, 3
      %v1496 = vsel %vm1463, %v1494, %v1495
      %v1497 = vrot.slane %v427, 3
      %v1498 = vsel %vm1463, %v1495, %v1497
      %v1499 = vrot.slane %v428, 3
      %v1500 = vrot.slane %v429, 3
      %v1501 = vsel %vm1463, %v1499, %v1500
      %v1502 = vrot.slane %v430, 3
      %v1503 = vsel %vm1463, %v1500, %v1502
      %v1504 = vrot.slane %v431, 3
      %v1505 = vrot.slane %v432, 3
      %v1506 = vsel %vm1463, %v1504, %v1505
      %v1507 = vrot.slane %v433, 3
      %v1508 = vsel %vm1463, %v1505, %v1507
      %v1509 = vrot.slane %v434, 3
      %v1510 = vrot.slane %v435, 3
      %v1511 = vsel %vm1463, %v1509, %v1510
      %v1512 = vrot.slane %v436, 3
      %v1513 = vsel %vm1463, %v1510, %v1512
      %v1514 = vrot.slane %v437, 3
      %v1515 = vrot.slane %v438, 3
      %v1516 = vsel %vm1463, %v1514, %v1515
      %v1517 = vrot.slane %v439, 3
      %v1518 = vsel %vm1463, %v1515, %v1517
      %v1519 = vrot.slane %v440, 3
      %v1520 = vrot.slane %v441, 3
      %v1521 = vsel %vm1463, %v1519, %v1520
      %v1522 = vrot.slane %v442, 3
      %v1523 = vsel %vm1463, %v1520, %v1522
      %v1524 = vrot.slane %v443, 3
      %v1525 = vrot.slane %v444, 3
      %v1526 = vsel %vm1463, %v1524, %v1525
      %v1527 = vrot.slane %v445, 3
      %v1528 = vsel %vm1463, %v1525, %v1527
      %v1529 = vrot.slane %v446, 3
      %v1530 = vrot.slane %v447, 3
      %v1531 = vsel %vm1463, %v1529, %v1530
      %v1532 = vrot.slane %v448, 3
      %v1533 = vsel %vm1463, %v1530, %v1532
      %v1534 = vrot.slane %v449, 3
      %v1535 = vrot.slane %v450, 3
      %v1536 = vsel %vm1463, %v1534, %v1535
      %v1537 = vrot.slane %v451, 3
      %v1538 = vsel %vm1463, %v1535, %v1537
      %v1539 = vrot.slane %v452, 3
      %v1540 = vrot.slane %v453, 3
      %v1541 = vsel %vm1463, %v1539, %v1540
      %v1542 = vrot.slane %v454, 3
      %v1543 = vsel %vm1463, %v1540, %v1542
      %v1576 = vpack.c.bf16 %v1468, %v1466
      %v1577 = vpack.c.bf16 %v1473, %v1471
      %v1578 = vpack.c.bf16 %v1478, %v1476
      %v1579 = vpack.c.bf16 %v1483, %v1481
      %v1580 = vpack.c.bf16 %v1488, %v1486
      %v1581 = vpack.c.bf16 %v1493, %v1491
      %v1582 = vpack.c.bf16 %v1498, %v1496
      %v1583 = vpack.c.bf16 %v1503, %v1501
      %v1584 = vpack.c.bf16 %v1508, %v1506
      %v1585 = vpack.c.bf16 %v1513, %v1511
      %v1586 = vpack.c.bf16 %v1518, %v1516
      %v1587 = vpack.c.bf16 %v1523, %v1521
      %v1588 = vpack.c.bf16 %v1528, %v1526
      %v1589 = vpack.c.bf16 %v1533, %v1531
      %v1590 = vpack.c.bf16 %v1538, %v1536
      %v1591 = vpack.c.bf16 %v1543, %v1541
      %s1592 = scalar_lea.vmem %s1, 6
      %v1593 = vld [vmem:[%s1592] sm:$0x3]
      %v1595 = vsel %vm280, %v1576, 0
      %v1598 = vsel %vm280, %v1577, 0
      %v1601 = vsel %vm280, %v1578, 0
      %v1604 = vsel %vm280, %v1579, 0
      %v1607 = vsel %vm280, %v1580, 0
      %v1610 = vsel %vm280, %v1581, 0
      %v1613 = vsel %vm280, %v1582, 0
      %v1616 = vsel %vm280, %v1583, 0
      %v1619 = vsel %vm280, %v1584, 0
      %v1622 = vsel %vm280, %v1585, 0
      %v1625 = vsel %vm280, %v1586, 0
      %v1628 = vsel %vm280, %v1587, 0
      %v1631 = vsel %vm280, %v1588, 0
      %v1634 = vsel %vm280, %v1589, 0
      %v1637 = vsel %vm280, %v1590, 0
      %v1640 = vsel %vm280, %v1591, 0
      %v1643 = vsel %vm711, %v1593, 0
      %1645 = vmatprep.subr.bf16.mxu0 0
      %1646 = vmatpush1.bf16.msra.mxu0 %v1643
      %1647 = vmatprep.subr.bf16.mxu0 0
      %1648 = vmatpush1.bf16.msra.mxu0 0
      %1649 = vmatprep.subr.bf16.mxu0 0
      %1650 = vmatpush1.bf16.msra.mxu0 0
      %1651 = vmatprep.subr.bf16.mxu0 0
      %1652 = vmatpush1.bf16.msra.mxu0 0
      %1653 = vmatprep.subr.bf16.mxu0 0
      %1654 = vmatpush1.bf16.msra.mxu0 0
      %1655 = vmatprep.subr.bf16.mxu0 0
      %1656 = vmatpush1.bf16.msra.mxu0 0
      %1657 = vmatprep.subr.bf16.mxu0 0
      %1658 = vmatpush1.bf16.msra.mxu0 0
      %1659 = vmatprep.subr.bf16.mxu0 0
      %1660 = vmatpush1.bf16.msra.mxu0 0
      %1661 = vmatprep.subr.bf16.mxu0 0
      %1662 = vmatpush1.bf16.msra.mxu0 0
      %1663 = vmatprep.subr.bf16.mxu0 0
      %1664 = vmatpush1.bf16.msra.mxu0 0
      %1665 = vmatprep.subr.bf16.mxu0 0
      %1666 = vmatpush1.bf16.msra.mxu0 0
      %1667 = vmatprep.subr.bf16.mxu0 0
      %1668 = vmatpush1.bf16.msra.mxu0 0
      %1669 = vmatprep.subr.bf16.mxu0 0
      %1670 = vmatpush1.bf16.msra.mxu0 0
      %1671 = vmatprep.subr.bf16.mxu0 0
      %1672 = vmatpush1.bf16.msra.mxu0 0
      %1673 = vmatprep.subr.bf16.mxu0 0
      %1674 = vmatpush1.bf16.msra.mxu0 0
      %1675 = vmatprep.subr.bf16.mxu0 0
      %1676 = vmatpush1.bf16.msra.mxu0 0
      %1677 = vmatprep.mubr.bf16.mxu0 0
      %1678 = vmatmul.mubr.bf16.gmra.mrb[0].mxu0 %v1595
      %v1679 = vpop.f32.mrb[0].mxu0
      %v1680 = vadd.f32 0.0, %v1679
      %v1681 = vpop.f32.mrb[0].mxu0
      %v1682 = vpop.f32.mrb[0].mxu0
      %v1683 = vadd.f32 0.0, %v1682
      %v1684 = vpop.f32.mrb[0].mxu0
      %1685 = vmatprep.mubr.bf16.mxu0 0
      %1686 = vmatmul.mubr.bf16.gmra.mrb[0].mxu0 %v1598
      %v1687 = vpop.f32.mrb[0].mxu0
      %v1688 = vadd.f32 0.0, %v1687
      %v1689 = vpop.f32.mrb[0].mxu0
      %v1690 = vpop.f32.mrb[0].mxu0
      %v1691 = vadd.f32 0.0, %v1690
      %v1692 = vpop.f32.mrb[0].mxu0
      %1693 = vmatprep.mubr.bf16.mxu0 0
      %1694 = vmatmul.mubr.bf16.gmra.mrb[0].mxu0 %v1601
      %v1695 = vpop.f32.mrb[0].mxu0
      %v1696 = vadd.f32 0.0, %v1695
      %v1697 = vpop.f32.mrb[0].mxu0
      %v1698 = vpop.f32.mrb[0].mxu0
      %v1699 = vadd.f32 0.0, %v1698
      %v1700 = vpop.f32.mrb[0].mxu0
      %1701 = vmatprep.mubr.bf16.mxu0 0
      %1702 = vmatmul.mubr.bf16.gmra.mrb[0].mxu0 %v1604
      %v1703 = vpop.f32.mrb[0].mxu0
      %v1704 = vadd.f32 0.0, %v1703
      %v1705 = vpop.f32.mrb[0].mxu0
      %v1706 = vpop.f32.mrb[0].mxu0
      %v1707 = vadd.f32 0.0, %v1706
      %v1708 = vpop.f32.mrb[0].mxu0
      %1709 = vmatprep.mubr.bf16.mxu0 0
      %1710 = vmatmul.mubr.bf16.gmra.mrb[0].mxu0 %v1607
      %v1711 = vpop.f32.mrb[0].mxu0
      %v1712 = vadd.f32 0.0, %v1711
      %v1713 = vpop.f32.mrb[0].mxu0
      %v1714 = vpop.f32.mrb[0].mxu0
      %v1715 = vadd.f32 0.0, %v1714
      %v1716 = vpop.f32.mrb[0].mxu0
      %1717 = vmatprep.mubr.bf16.mxu0 0
      %1718 = vmatmul.mubr.bf16.gmra.mrb[0].mxu0 %v1610
      %v1719 = vpop.f32.mrb[0].mxu0
      %v1720 = vadd.f32 0.0, %v1719
      %v1721 = vpop.f32.mrb[0].mxu0
      %v1722 = vpop.f32.mrb[0].mxu0
      %v1723 = vadd.f32 0.0, %v1722
      %v1724 = vpop.f32.mrb[0].mxu0
      %1725 = vmatprep.mubr.bf16.mxu0 0
      %1726 = vmatmul.mubr.bf16.gmra.mrb[0].mxu0 %v1613
      %v1727 = vpop.f32.mrb[0].mxu0
      %v1728 = vadd.f32 0.0, %v1727
      %v1729 = vpop.f32.mrb[0].mxu0
      %v1730 = vpop.f32.mrb[0].mxu0
      %v1731 = vadd.f32 0.0, %v1730
      %v1732 = vpop.f32.mrb[0].mxu0
      %1733 = vmatprep.mubr.bf16.mxu0 0
      %1734 = vmatmul.mubr.bf16.gmra.mrb[0].mxu0 %v1616
      %v1735 = vpop.f32.mrb[0].mxu0
      %v1736 = vadd.f32 0.0, %v1735
      %v1737 = vpop.f32.mrb[0].mxu0
      %v1738 = vpop.f32.mrb[0].mxu0
      %v1739 = vadd.f32 0.0, %v1738
      %v1740 = vpop.f32.mrb[0].mxu0
      %1741 = vmatprep.mubr.bf16.mxu0 0
      %1742 = vmatmul.mubr.bf16.gmra.mrb[0].mxu0 %v1619
      %v1743 = vpop.f32.mrb[0].mxu0
      %v1744 = vadd.f32 0.0, %v1743
      %v1745 = vpop.f32.mrb[0].mxu0
      %v1746 = vpop.f32.mrb[0].mxu0
      %v1747 = vadd.f32 0.0, %v1746
      %v1748 = vpop.f32.mrb[0].mxu0
      %1749 = vmatprep.mubr.bf16.mxu0 0
      %1750 = vmatmul.mubr.bf16.gmra.mrb[0].mxu0 %v1622
      %v1751 = vpop.f32.mrb[0].mxu0
      %v1752 = vadd.f32 0.0, %v1751
      %v1753 = vpop.f32.mrb[0].mxu0
      %v1754 = vpop.f32.mrb[0].mxu0
      %v1755 = vadd.f32 0.0, %v1754
      %v1756 = vpop.f32.mrb[0].mxu0
      %1757 = vmatprep.mubr.bf16.mxu0 0
      %1758 = vmatmul.mubr.bf16.gmra.mrb[0].mxu0 %v1625
      %v1759 = vpop.f32.mrb[0].mxu0
      %v1760 = vadd.f32 0.0, %v1759
      %v1761 = vpop.f32.mrb[0].mxu0
      %v1762 = vpop.f32.mrb[0].mxu0
      %v1763 = vadd.f32 0.0, %v1762
      %v1764 = vpop.f32.mrb[0].mxu0
      %1765 = vmatprep.mubr.bf16.mxu0 0
      %1766 = vmatmul.mubr.bf16.gmra.mrb[0].mxu0 %v1628
      %v1767 = vpop.f32.mrb[0].mxu0
      %v1768 = vadd.f32 0.0, %v1767
      %v1769 = vpop.f32.mrb[0].mxu0
      %v1770 = vpop.f32.mrb[0].mxu0
      %v1771 = vadd.f32 0.0, %v1770
      %v1772 = vpop.f32.mrb[0].mxu0
      %1773 = vmatprep.mubr.bf16.mxu0 0
      %1774 = vmatmul.mubr.bf16.gmra.mrb[0].mxu0 %v1631
      %v1775 = vpop.f32.mrb[0].mxu0
      %v1776 = vadd.f32 0.0, %v1775
      %v1777 = vpop.f32.mrb[0].mxu0
      %v1778 = vpop.f32.mrb[0].mxu0
      %v1779 = vadd.f32 0.0, %v1778
      %v1780 = vpop.f32.mrb[0].mxu0
      %1781 = vmatprep.mubr.bf16.mxu0 0
      %1782 = vmatmul.mubr.bf16.gmra.mrb[0].mxu0 %v1634
      %v1783 = vpop.f32.mrb[0].mxu0
      %v1784 = vadd.f32 0.0, %v1783
      %v1785 = vpop.f32.mrb[0].mxu0
      %v1786 = vpop.f32.mrb[0].mxu0
      %v1787 = vadd.f32 0.0, %v1786
      %v1788 = vpop.f32.mrb[0].mxu0
      %1789 = vmatprep.mubr.bf16.mxu0 0
      %1790 = vmatmul.mubr.bf16.gmra.mrb[0].mxu0 %v1637
      %v1791 = vpop.f32.mrb[0].mxu0
      %v1792 = vadd.f32 0.0, %v1791
      %v1793 = vpop.f32.mrb[0].mxu0
      %v1794 = vpop.f32.mrb[0].mxu0
      %v1795 = vadd.f32 0.0, %v1794
      %v1796 = vpop.f32.mrb[0].mxu0
      %1797 = vmatprep.mubr.bf16.mxu0 0
      %1798 = vmatmul.mubr.bf16.gmra.mrb[0].mxu0 %v1640
      %v1799 = vpop.f32.mrb[0].mxu0
      %v1800 = vadd.f32 0.0, %v1799
      %v1801 = vpop.f32.mrb[0].mxu0
      %v1802 = vpop.f32.mrb[0].mxu0
      %v1803 = vadd.f32 0.0, %v1802
      %v1804 = vpop.f32.mrb[0].mxu0
      %1805 = vdwg.mxu0
      %v1806 = vadd.f32 %v1431, %v1680
      %v1807 = vadd.f32 %v1432, %v1683
      %v1808 = vadd.f32 %v1433, %v1688
      %v1809 = vadd.f32 %v1434, %v1691
      %v1810 = vadd.f32 %v1435, %v1696
      %v1811 = vadd.f32 %v1436, %v1699
      %v1812 = vadd.f32 %v1437, %v1704
      %v1813 = vadd.f32 %v1438, %v1707
      %v1814 = vadd.f32 %v1439, %v1712
      %v1815 = vadd.f32 %v1440, %v1715
      %v1816 = vadd.f32 %v1441, %v1720
      %v1817 = vadd.f32 %v1442, %v1723
      %v1818 = vadd.f32 %v1443, %v1728
      %v1819 = vadd.f32 %v1444, %v1731
      %v1820 = vadd.f32 %v1445, %v1736
      %v1821 = vadd.f32 %v1446, %v1739
      %v1822 = vadd.f32 %v1447, %v1744
      %v1823 = vadd.f32 %v1448, %v1747
      %v1824 = vadd.f32 %v1449, %v1752
      %v1825 = vadd.f32 %v1450, %v1755
      %v1826 = vadd.f32 %v1451, %v1760
      %v1827 = vadd.f32 %v1452, %v1763
      %v1828 = vadd.f32 %v1453, %v1768
      %v1829 = vadd.f32 %v1454, %v1771
      %v1830 = vadd.f32 %v1455, %v1776
      %v1831 = vadd.f32 %v1456, %v1779
      %v1832 = vadd.f32 %v1457, %v1784
      %v1833 = vadd.f32 %v1458, %v1787
      %v1834 = vadd.f32 %v1459, %v1792
      %v1835 = vadd.f32 %v1460, %v1795
      %v1836 = vadd.f32 %v1461, %v1800
      %v1837 = vadd.f32 %v1462, %v1803
      %vm1838 = vcmask 1043456
      %v1839 = vrot.slane %v407, 4
      %v1840 = vrot.slane %v408, 4
      %v1841 = vsel %vm1838, %v1839, %v1840
      %v1842 = vrot.slane %v409, 4
      %v1843 = vsel %vm1838, %v1840, %v1842
      %v1844 = vrot.slane %v410, 4
      %v1845 = vrot.slane %v411, 4
      %v1846 = vsel %vm1838, %v1844, %v1845
      %v1847 = vrot.slane %v412, 4
      %v1848 = vsel %vm1838, %v1845, %v1847
      %v1849 = vrot.slane %v413, 4
      %v1850 = vrot.slane %v414, 4
      %v1851 = vsel %vm1838, %v1849, %v1850
      %v1852 = vrot.slane %v415, 4
      %v1853 = vsel %vm1838, %v1850, %v1852
      %v1854 = vrot.slane %v416, 4
      %v1855 = vrot.slane %v417, 4
      %v1856 = vsel %vm1838, %v1854, %v1855
      %v1857 = vrot.slane %v418, 4
      %v1858 = vsel %vm1838, %v1855, %v1857
      %v1859 = vrot.slane %v419, 4
      %v1860 = vrot.slane %v420, 4
      %v1861 = vsel %vm1838, %v1859, %v1860
      %v1862 = vrot.slane %v421, 4
      %v1863 = vsel %vm1838, %v1860, %v1862
      %v1864 = vrot.slane %v422, 4
      %v1865 = vrot.slane %v423, 4
      %v1866 = vsel %vm1838, %v1864, %v1865
      %v1867 = vrot.slane %v424, 4
      %v1868 = vsel %vm1838, %v1865, %v1867
      %v1869 = vrot.slane %v425, 4
      %v1870 = vrot.slane %v426, 4
      %v1871 = vsel %vm1838, %v1869, %v1870
      %v1872 = vrot.slane %v427, 4
      %v1873 = vsel %vm1838, %v1870, %v1872
      %v1874 = vrot.slane %v428, 4
      %v1875 = vrot.slane %v429, 4
      %v1876 = vsel %vm1838, %v1874, %v1875
      %v1877 = vrot.slane %v430, 4
      %v1878 = vsel %vm1838, %v1875, %v1877
      %v1879 = vrot.slane %v431, 4
      %v1880 = vrot.slane %v432, 4
      %v1881 = vsel %vm1838, %v1879, %v1880
      %v1882 = vrot.slane %v433, 4
      %v1883 = vsel %vm1838, %v1880, %v1882
      %v1884 = vrot.slane %v434, 4
      %v1885 = vrot.slane %v435, 4
      %v1886 = vsel %vm1838, %v1884, %v1885
      %v1887 = vrot.slane %v436, 4
      %v1888 = vsel %vm1838, %v1885, %v1887
      %v1889 = vrot.slane %v437, 4
      %v1890 = vrot.slane %v438, 4
      %v1891 = vsel %vm1838, %v1889, %v1890
      %v1892 = vrot.slane %v439, 4
      %v1893 = vsel %vm1838, %v1890, %v1892
      %v1894 = vrot.slane %v440, 4
      %v1895 = vrot.slane %v441, 4
      %v1896 = vsel %vm1838, %v1894, %v1895
      %v1897 = vrot.slane %v442, 4
      %v1898 = vsel %vm1838, %v1895, %v1897
      %v1899 = vrot.slane %v443, 4
      %v1900 = vrot.slane %v444, 4
      %v1901 = vsel %vm1838, %v1899, %v1900
      %v1902 = vrot.slane %v445, 4
      %v1903 = vsel %vm1838, %v1900, %v1902
      %v1904 = vrot.slane %v446, 4
      %v1905 = vrot.slane %v447, 4
      %v1906 = vsel %vm1838, %v1904, %v1905
      %v1907 = vrot.slane %v448, 4
      %v1908 = vsel %vm1838, %v1905, %v1907
      %v1909 = vrot.slane %v449, 4
      %v1910 = vrot.slane %v450, 4
      %v1911 = vsel %vm1838, %v1909, %v1910
      %v1912 = vrot.slane %v451, 4
      %v1913 = vsel %vm1838, %v1910, %v1912
      %v1914 = vrot.slane %v452, 4
      %v1915 = vrot.slane %v453, 4
      %v1916 = vsel %vm1838, %v1914, %v1915
      %v1917 = vrot.slane %v454, 4
      %v1918 = vsel %vm1838, %v1915, %v1917
      %v1951 = vpack.c.bf16 %v1843, %v1841
      %v1952 = vpack.c.bf16 %v1848, %v1846
      %v1953 = vpack.c.bf16 %v1853, %v1851
      %v1954 = vpack.c.bf16 %v1858, %v1856
      %v1955 = vpack.c.bf16 %v1863, %v1861
      %v1956 = vpack.c.bf16 %v1868, %v1866
      %v1957 = vpack.c.bf16 %v1873, %v1871
      %v1958 = vpack.c.bf16 %v1878, %v1876
      %v1959 = vpack.c.bf16 %v1883, %v1881
      %v1960 = vpack.c.bf16 %v1888, %v1886
      %v1961 = vpack.c.bf16 %v1893, %v1891
      %v1962 = vpack.c.bf16 %v1898, %v1896
      %v1963 = vpack.c.bf16 %v1903, %v1901
      %v1964 = vpack.c.bf16 %v1908, %v1906
      %v1965 = vpack.c.bf16 %v1913, %v1911
      %v1966 = vpack.c.bf16 %v1918, %v1916
      %s1967 = scalar_lea.vmem %s1, 8
      %v1968 = vld [vmem:[%s1967] sm:$0x3]
      %v1970 = vsel %vm280, %v1951, 0
      %v1973 = vsel %vm280, %v1952, 0
      %v1976 = vsel %vm280, %v1953, 0
      %v1979 = vsel %vm280, %v1954, 0
      %v1982 = vsel %vm280, %v1955, 0
      %v1985 = vsel %vm280, %v1956, 0
      %v1988 = vsel %vm280, %v1957, 0
      %v1991 = vsel %vm280, %v1958, 0
      %v1994 = vsel %vm280, %v1959, 0
      %v1997 = vsel %vm280, %v1960, 0
      %v2000 = vsel %vm280, %v1961, 0
      %v2003 = vsel %vm280, %v1962, 0
      %v2006 = vsel %vm280, %v1963, 0
      %v2009 = vsel %vm280, %v1964, 0
      %v2012 = vsel %vm280, %v1965, 0
      %v2015 = vsel %vm280, %v1966, 0
      %v2018 = vsel %vm711, %v1968, 0
      %2020 = vmatprep.subr.bf16.mxu0 0
      %2021 = vmatpush1.bf16.msra.mxu0 %v2018
      %2022 = vmatprep.subr.bf16.mxu0 0
      %2023 = vmatpush1.bf16.msra.mxu0 0
      %2024 = vmatprep.subr.bf16.mxu0 0
      %2025 = vmatpush1.bf16.msra.mxu0 0
      %2026 = vmatprep.subr.bf16.mxu0 0
      %2027 = vmatpush1.bf16.msra.mxu0 0
      %2028 = vmatprep.subr.bf16.mxu0 0
      %2029 = vmatpush1.bf16.msra.mxu0 0
      %2030 = vmatprep.subr.bf16.mxu0 0
      %2031 = vmatpush1.bf16.msra.mxu0 0
      %2032 = vmatprep.subr.bf16.mxu0 0
      %2033 = vmatpush1.bf16.msra.mxu0 0
      %2034 = vmatprep.subr.bf16.mxu0 0
      %2035 = vmatpush1.bf16.msra.mxu0 0
      %2036 = vmatprep.subr.bf16.mxu0 0
      %2037 = vmatpush1.bf16.msra.mxu0 0
      %2038 = vmatprep.subr.bf16.mxu0 0
      %2039 = vmatpush1.bf16.msra.mxu0 0
      %2040 = vmatprep.subr.bf16.mxu0 0
      %2041 = vmatpush1.bf16.msra.mxu0 0
      %2042 = vmatprep.subr.bf16.mxu0 0
      %2043 = vmatpush1.bf16.msra.mxu0 0
      %2044 = vmatprep.subr.bf16.mxu0 0
      %2045 = vmatpush1.bf16.msra.mxu0 0
      %2046 = vmatprep.subr.bf16.mxu0 0
      %2047 = vmatpush1.bf16.msra.mxu0 0
      %2048 = vmatprep.subr.bf16.mxu0 0
      %2049 = vmatpush1.bf16.msra.mxu0 0
      %2050 = vmatprep.subr.bf16.mxu0 0
      %2051 = vmatpush1.bf16.msra.mxu0 0
      %2052 = vmatprep.mubr.bf16.mxu0 0
      %2053 = vmatmul.mubr.bf16.gmra.mrb[0].mxu0 %v1970
      %v2054 = vpop.f32.mrb[0].mxu0
      %v2055 = vadd.f32 0.0, %v2054
      %v2056 = vpop.f32.mrb[0].mxu0
      %v2057 = vpop.f32.mrb[0].mxu0
      %v2058 = vadd.f32 0.0, %v2057
      %v2059 = vpop.f32.mrb[0].mxu0
      %2060 = vmatprep.mubr.bf16.mxu0 0
      %2061 = vmatmul.mubr.bf16.gmra.mrb[0].mxu0 %v1973
      %v2062 = vpop.f32.mrb[0].mxu0
      %v2063 = vadd.f32 0.0, %v2062
      %v2064 = vpop.f32.mrb[0].mxu0
      %v2065 = vpop.f32.mrb[0].mxu0
      %v2066 = vadd.f32 0.0, %v2065
      %v2067 = vpop.f32.mrb[0].mxu0
      %2068 = vmatprep.mubr.bf16.mxu0 0
      %2069 = vmatmul.mubr.bf16.gmra.mrb[0].mxu0 %v1976
      %v2070 = vpop.f32.mrb[0].mxu0
      %v2071 = vadd.f32 0.0, %v2070
      %v2072 = vpop.f32.mrb[0].mxu0
      %v2073 = vpop.f32.mrb[0].mxu0
      %v2074 = vadd.f32 0.0, %v2073
      %v2075 = vpop.f32.mrb[0].mxu0
      %2076 = vmatprep.mubr.bf16.mxu0 0
      %2077 = vmatmul.mubr.bf16.gmra.mrb[0].mxu0 %v1979
      %v2078 = vpop.f32.mrb[0].mxu0
      %v2079 = vadd.f32 0.0, %v2078
      %v2080 = vpop.f32.mrb[0].mxu0
      %v2081 = vpop.f32.mrb[0].mxu0
      %v2082 = vadd.f32 0.0, %v2081
      %v2083 = vpop.f32.mrb[0].mxu0
      %2084 = vmatprep.mubr.bf16.mxu0 0
      %2085 = vmatmul.mubr.bf16.gmra.mrb[0].mxu0 %v1982
      %v2086 = vpop.f32.mrb[0].mxu0
      %v2087 = vadd.f32 0.0, %v2086
      %v2088 = vpop.f32.mrb[0].mxu0
      %v2089 = vpop.f32.mrb[0].mxu0
      %v2090 = vadd.f32 0.0, %v2089
      %v2091 = vpop.f32.mrb[0].mxu0
      %2092 = vmatprep.mubr.bf16.mxu0 0
      %2093 = vmatmul.mubr.bf16.gmra.mrb[0].mxu0 %v1985
      %v2094 = vpop.f32.mrb[0].mxu0
      %v2095 = vadd.f32 0.0, %v2094
      %v2096 = vpop.f32.mrb[0].mxu0
      %v2097 = vpop.f32.mrb[0].mxu0
      %v2098 = vadd.f32 0.0, %v2097
      %v2099 = vpop.f32.mrb[0].mxu0
      %2100 = vmatprep.mubr.bf16.mxu0 0
      %2101 = vmatmul.mubr.bf16.gmra.mrb[0].mxu0 %v1988
      %v2102 = vpop.f32.mrb[0].mxu0
      %v2103 = vadd.f32 0.0, %v2102
      %v2104 = vpop.f32.mrb[0].mxu0
      %v2105 = vpop.f32.mrb[0].mxu0
      %v2106 = vadd.f32 0.0, %v2105
      %v2107 = vpop.f32.mrb[0].mxu0
      %2108 = vmatprep.mubr.bf16.mxu0 0
      %2109 = vmatmul.mubr.bf16.gmra.mrb[0].mxu0 %v1991
      %v2110 = vpop.f32.mrb[0].mxu0
      %v2111 = vadd.f32 0.0, %v2110
      %v2112 = vpop.f32.mrb[0].mxu0
      %v2113 = vpop.f32.mrb[0].mxu0
      %v2114 = vadd.f32 0.0, %v2113
      %v2115 = vpop.f32.mrb[0].mxu0
      %2116 = vmatprep.mubr.bf16.mxu0 0
      %2117 = vmatmul.mubr.bf16.gmra.mrb[0].mxu0 %v1994
      %v2118 = vpop.f32.mrb[0].mxu0
      %v2119 = vadd.f32 0.0, %v2118
      %v2120 = vpop.f32.mrb[0].mxu0
      %v2121 = vpop.f32.mrb[0].mxu0
      %v2122 = vadd.f32 0.0, %v2121
      %v2123 = vpop.f32.mrb[0].mxu0
      %2124 = vmatprep.mubr.bf16.mxu0 0
      %2125 = vmatmul.mubr.bf16.gmra.mrb[0].mxu0 %v1997
      %v2126 = vpop.f32.mrb[0].mxu0
      %v2127 = vadd.f32 0.0, %v2126
      %v2128 = vpop.f32.mrb[0].mxu0
      %v2129 = vpop.f32.mrb[0].mxu0
      %v2130 = vadd.f32 0.0, %v2129
      %v2131 = vpop.f32.mrb[0].mxu0
      %2132 = vmatprep.mubr.bf16.mxu0 0
      %2133 = vmatmul.mubr.bf16.gmra.mrb[0].mxu0 %v2000
      %v2134 = vpop.f32.mrb[0].mxu0
      %v2135 = vadd.f32 0.0, %v2134
      %v2136 = vpop.f32.mrb[0].mxu0
      %v2137 = vpop.f32.mrb[0].mxu0
      %v2138 = vadd.f32 0.0, %v2137
      %v2139 = vpop.f32.mrb[0].mxu0
      %2140 = vmatprep.mubr.bf16.mxu0 0
      %2141 = vmatmul.mubr.bf16.gmra.mrb[0].mxu0 %v2003
      %v2142 = vpop.f32.mrb[0].mxu0
      %v2143 = vadd.f32 0.0, %v2142
      %v2144 = vpop.f32.mrb[0].mxu0
      %v2145 = vpop.f32.mrb[0].mxu0
      %v2146 = vadd.f32 0.0, %v2145
      %v2147 = vpop.f32.mrb[0].mxu0
      %2148 = vmatprep.mubr.bf16.mxu0 0
      %2149 = vmatmul.mubr.bf16.gmra.mrb[0].mxu0 %v2006
      %v2150 = vpop.f32.mrb[0].mxu0
      %v2151 = vadd.f32 0.0, %v2150
      %v2152 = vpop.f32.mrb[0].mxu0
      %v2153 = vpop.f32.mrb[0].mxu0
      %v2154 = vadd.f32 0.0, %v2153
      %v2155 = vpop.f32.mrb[0].mxu0
      %2156 = vmatprep.mubr.bf16.mxu0 0
      %2157 = vmatmul.mubr.bf16.gmra.mrb[0].mxu0 %v2009
      %v2158 = vpop.f32.mrb[0].mxu0
      %v2159 = vadd.f32 0.0, %v2158
      %v2160 = vpop.f32.mrb[0].mxu0
      %v2161 = vpop.f32.mrb[0].mxu0
      %v2162 = vadd.f32 0.0, %v2161
      %v2163 = vpop.f32.mrb[0].mxu0
      %2164 = vmatprep.mubr.bf16.mxu0 0
      %2165 = vmatmul.mubr.bf16.gmra.mrb[0].mxu0 %v2012
      %v2166 = vpop.f32.mrb[0].mxu0
      %v2167 = vadd.f32 0.0, %v2166
      %v2168 = vpop.f32.mrb[0].mxu0
      %v2169 = vpop.f32.mrb[0].mxu0
      %v2170 = vadd.f32 0.0, %v2169
      %v2171 = vpop.f32.mrb[0].mxu0
      %2172 = vmatprep.mubr.bf16.mxu0 0
      %2173 = vmatmul.mubr.bf16.gmra.mrb[0].mxu0 %v2015
      %v2174 = vpop.f32.mrb[0].mxu0
      %v2175 = vadd.f32 0.0, %v2174
      %v2176 = vpop.f32.mrb[0].mxu0
      %v2177 = vpop.f32.mrb[0].mxu0
      %v2178 = vadd.f32 0.0, %v2177
      %v2179 = vpop.f32.mrb[0].mxu0
      %2180 = vdwg.mxu0
      %v2181 = vadd.f32 %v1806, %v2055
      %v2182 = vadd.f32 %v1807, %v2058
      %v2183 = vadd.f32 %v1808, %v2063
      %v2184 = vadd.f32 %v1809, %v2066
      %v2185 = vadd.f32 %v1810, %v2071
      %v2186 = vadd.f32 %v1811, %v2074
      %v2187 = vadd.f32 %v1812, %v2079
      %v2188 = vadd.f32 %v1813, %v2082
      %v2189 = vadd.f32 %v1814, %v2087
      %v2190 = vadd.f32 %v1815, %v2090
      %v2191 = vadd.f32 %v1816, %v2095
      %v2192 = vadd.f32 %v1817, %v2098
      %v2193 = vadd.f32 %v1818, %v2103
      %v2194 = vadd.f32 %v1819, %v2106
      %v2195 = vadd.f32 %v1820, %v2111
      %v2196 = vadd.f32 %v1821, %v2114
      %v2197 = vadd.f32 %v1822, %v2119
      %v2198 = vadd.f32 %v1823, %v2122
      %v2199 = vadd.f32 %v1824, %v2127
      %v2200 = vadd.f32 %v1825, %v2130
      %v2201 = vadd.f32 %v1826, %v2135
      %v2202 = vadd.f32 %v1827, %v2138
      %v2203 = vadd.f32 %v1828, %v2143
      %v2204 = vadd.f32 %v1829, %v2146
      %v2205 = vadd.f32 %v1830, %v2151
      %v2206 = vadd.f32 %v1831, %v2154
      %v2207 = vadd.f32 %v1832, %v2159
      %v2208 = vadd.f32 %v1833, %v2162
      %v2209 = vadd.f32 %v1834, %v2167
      %v2210 = vadd.f32 %v1835, %v2170
      %v2211 = vadd.f32 %v1836, %v2175
      %v2212 = vadd.f32 %v1837, %v2178
      %v2213 = vpack.c.bf16 %v456, %v455
      %s2214 = scalar_lea.vmem %s1, 10
      %v2215 = vld [vmem:[%s2214] sm:$0x3]
      %v2217 = vsel %vm280, %v2213, 0
      %v2220 = vsel %vm711, %v2215, 0
      %2222 = vmatprep.subr.bf16.mxu0 0
      %2223 = vmatpush1.bf16.msra.mxu0 %v2220
      %2224 = vmatprep.subr.bf16.mxu0 0
      %2225 = vmatpush1.bf16.msra.mxu0 0
      %2226 = vmatprep.subr.bf16.mxu0 0
      %2227 = vmatpush1.bf16.msra.mxu0 0
      %2228 = vmatprep.subr.bf16.mxu0 0
      %2229 = vmatpush1.bf16.msra.mxu0 0
      %2230 = vmatprep.subr.bf16.mxu0 0
      %2231 = vmatpush1.bf16.msra.mxu0 0
      %2232 = vmatprep.subr.bf16.mxu0 0
      %2233 = vmatpush1.bf16.msra.mxu0 0
      %2234 = vmatprep.subr.bf16.mxu0 0
      %2235 = vmatpush1.bf16.msra.mxu0 0
      %2236 = vmatprep.subr.bf16.mxu0 0
      %2237 = vmatpush1.bf16.msra.mxu0 0
      %2238 = vmatprep.subr.bf16.mxu0 0
      %2239 = vmatpush1.bf16.msra.mxu0 0
      %2240 = vmatprep.subr.bf16.mxu0 0
      %2241 = vmatpush1.bf16.msra.mxu0 0
      %2242 = vmatprep.subr.bf16.mxu0 0
      %2243 = vmatpush1.bf16.msra.mxu0 0
      %2244 = vmatprep.subr.bf16.mxu0 0
      %2245 = vmatpush1.bf16.msra.mxu0 0
      %2246 = vmatprep.subr.bf16.mxu0 0
      %2247 = vmatpush1.bf16.msra.mxu0 0
      %2248 = vmatprep.subr.bf16.mxu0 0
      %2249 = vmatpush1.bf16.msra.mxu0 0
      %2250 = vmatprep.subr.bf16.mxu0 0
      %2251 = vmatpush1.bf16.msra.mxu0 0
      %2252 = vmatprep.subr.bf16.mxu0 0
      %2253 = vmatpush1.bf16.msra.mxu0 0
      %2254 = vmatprep.mubr.bf16.mxu0 0
      %2255 = vmatmul.mubr.bf16.gmra.mrb[0].mxu0 %v880
      %v2256 = vpop.f32.mrb[0].mxu0
      %v2257 = vadd.f32 0.0, %v2256
      %v2258 = vpop.f32.mrb[0].mxu0
      %v2259 = vpop.f32.mrb[0].mxu0
      %v2260 = vadd.f32 0.0, %v2259
      %v2261 = vpop.f32.mrb[0].mxu0
      %2262 = vmatprep.mubr.bf16.mxu0 0
      %2263 = vmatmul.mubr.bf16.gmra.mrb[0].mxu0 %v883
      %v2264 = vpop.f32.mrb[0].mxu0
      %v2265 = vadd.f32 0.0, %v2264
      %v2266 = vpop.f32.mrb[0].mxu0
      %v2267 = vpop.f32.mrb[0].mxu0
      %v2268 = vadd.f32 0.0, %v2267
      %v2269 = vpop.f32.mrb[0].mxu0
      %2270 = vmatprep.mubr.bf16.mxu0 0
      %2271 = vmatmul.mubr.bf16.gmra.mrb[0].mxu0 %v886
      %v2272 = vpop.f32.mrb[0].mxu0
      %v2273 = vadd.f32 0.0, %v2272
      %v2274 = vpop.f32.mrb[0].mxu0
      %v2275 = vpop.f32.mrb[0].mxu0
      %v2276 = vadd.f32 0.0, %v2275
      %v2277 = vpop.f32.mrb[0].mxu0
      %2278 = vmatprep.mubr.bf16.mxu0 0
      %2279 = vmatmul.mubr.bf16.gmra.mrb[0].mxu0 %v889
      %v2280 = vpop.f32.mrb[0].mxu0
      %v2281 = vadd.f32 0.0, %v2280
      %v2282 = vpop.f32.mrb[0].mxu0
      %v2283 = vpop.f32.mrb[0].mxu0
      %v2284 = vadd.f32 0.0, %v2283
      %v2285 = vpop.f32.mrb[0].mxu0
      %2286 = vmatprep.mubr.bf16.mxu0 0
      %2287 = vmatmul.mubr.bf16.gmra.mrb[0].mxu0 %v892
      %v2288 = vpop.f32.mrb[0].mxu0
      %v2289 = vadd.f32 0.0, %v2288
      %v2290 = vpop.f32.mrb[0].mxu0
      %v2291 = vpop.f32.mrb[0].mxu0
      %v2292 = vadd.f32 0.0, %v2291
      %v2293 = vpop.f32.mrb[0].mxu0
      %2294 = vmatprep.mubr.bf16.mxu0 0
      %2295 = vmatmul.mubr.bf16.gmra.mrb[0].mxu0 %v895
      %v2296 = vpop.f32.mrb[0].mxu0
      %v2297 = vadd.f32 0.0, %v2296
      %v2298 = vpop.f32.mrb[0].mxu0
      %v2299 = vpop.f32.mrb[0].mxu0
      %v2300 = vadd.f32 0.0, %v2299
      %v2301 = vpop.f32.mrb[0].mxu0
      %2302 = vmatprep.mubr.bf16.mxu0 0
      %2303 = vmatmul.mubr.bf16.gmra.mrb[0].mxu0 %v898
      %v2304 = vpop.f32.mrb[0].mxu0
      %v2305 = vadd.f32 0.0, %v2304
      %v2306 = vpop.f32.mrb[0].mxu0
      %v2307 = vpop.f32.mrb[0].mxu0
      %v2308 = vadd.f32 0.0, %v2307
      %v2309 = vpop.f32.mrb[0].mxu0
      %2310 = vmatprep.mubr.bf16.mxu0 0
      %2311 = vmatmul.mubr.bf16.gmra.mrb[0].mxu0 %v901
      %v2312 = vpop.f32.mrb[0].mxu0
      %v2313 = vadd.f32 0.0, %v2312
      %v2314 = vpop.f32.mrb[0].mxu0
      %v2315 = vpop.f32.mrb[0].mxu0
      %v2316 = vadd.f32 0.0, %v2315
      %v2317 = vpop.f32.mrb[0].mxu0
      %2318 = vmatprep.mubr.bf16.mxu0 0
      %2319 = vmatmul.mubr.bf16.gmra.mrb[0].mxu0 %v904
      %v2320 = vpop.f32.mrb[0].mxu0
      %v2321 = vadd.f32 0.0, %v2320
      %v2322 = vpop.f32.mrb[0].mxu0
      %v2323 = vpop.f32.mrb[0].mxu0
      %v2324 = vadd.f32 0.0, %v2323
      %v2325 = vpop.f32.mrb[0].mxu0
      %2326 = vmatprep.mubr.bf16.mxu0 0
      %2327 = vmatmul.mubr.bf16.gmra.mrb[0].mxu0 %v907
      %v2328 = vpop.f32.mrb[0].mxu0
      %v2329 = vadd.f32 0.0, %v2328
      %v2330 = vpop.f32.mrb[0].mxu0
      %v2331 = vpop.f32.mrb[0].mxu0
      %v2332 = vadd.f32 0.0, %v2331
      %v2333 = vpop.f32.mrb[0].mxu0
      %2334 = vmatprep.mubr.bf16.mxu0 0
      %2335 = vmatmul.mubr.bf16.gmra.mrb[0].mxu0 %v910
      %v2336 = vpop.f32.mrb[0].mxu0
      %v2337 = vadd.f32 0.0, %v2336
      %v2338 = vpop.f32.mrb[0].mxu0
      %v2339 = vpop.f32.mrb[0].mxu0
      %v2340 = vadd.f32 0.0, %v2339
      %v2341 = vpop.f32.mrb[0].mxu0
      %2342 = vmatprep.mubr.bf16.mxu0 0
      %2343 = vmatmul.mubr.bf16.gmra.mrb[0].mxu0 %v913
      %v2344 = vpop.f32.mrb[0].mxu0
      %v2345 = vadd.f32 0.0, %v2344
      %v2346 = vpop.f32.mrb[0].mxu0
      %v2347 = vpop.f32.mrb[0].mxu0
      %v2348 = vadd.f32 0.0, %v2347
      %v2349 = vpop.f32.mrb[0].mxu0
      %2350 = vmatprep.mubr.bf16.mxu0 0
      %2351 = vmatmul.mubr.bf16.gmra.mrb[0].mxu0 %v916
      %v2352 = vpop.f32.mrb[0].mxu0
      %v2353 = vadd.f32 0.0, %v2352
      %v2354 = vpop.f32.mrb[0].mxu0
      %v2355 = vpop.f32.mrb[0].mxu0
      %v2356 = vadd.f32 0.0, %v2355
      %v2357 = vpop.f32.mrb[0].mxu0
      %2358 = vmatprep.mubr.bf16.mxu0 0
      %2359 = vmatmul.mubr.bf16.gmra.mrb[0].mxu0 %v919
      %v2360 = vpop.f32.mrb[0].mxu0
      %v2361 = vadd.f32 0.0, %v2360
      %v2362 = vpop.f32.mrb[0].mxu0
      %v2363 = vpop.f32.mrb[0].mxu0
      %v2364 = vadd.f32 0.0, %v2363
      %v2365 = vpop.f32.mrb[0].mxu0
      %2366 = vmatprep.mubr.bf16.mxu0 0
      %2367 = vmatmul.mubr.bf16.gmra.mrb[0].mxu0 %v922
      %v2368 = vpop.f32.mrb[0].mxu0
      %v2369 = vadd.f32 0.0, %v2368
      %v2370 = vpop.f32.mrb[0].mxu0
      %v2371 = vpop.f32.mrb[0].mxu0
      %v2372 = vadd.f32 0.0, %v2371
      %v2373 = vpop.f32.mrb[0].mxu0
      %2374 = vmatprep.mubr.bf16.mxu0 0
      %2375 = vmatmul.mubr.bf16.gmra.mrb[0].mxu0 %v2217
      %v2376 = vpop.f32.mrb[0].mxu0
      %v2377 = vadd.f32 0.0, %v2376
      %v2378 = vpop.f32.mrb[0].mxu0
      %v2379 = vpop.f32.mrb[0].mxu0
      %v2380 = vadd.f32 0.0, %v2379
      %v2381 = vpop.f32.mrb[0].mxu0
      %2382 = vdwg.mxu0
      %v2383 = vadd.f32 %v2181, %v2257
      %v2384 = vadd.f32 %v2182, %v2260
      %v2385 = vadd.f32 %v2183, %v2265
      %v2386 = vadd.f32 %v2184, %v2268
      %v2387 = vadd.f32 %v2185, %v2273
      %v2388 = vadd.f32 %v2186, %v2276
      %v2389 = vadd.f32 %v2187, %v2281
      %v2390 = vadd.f32 %v2188, %v2284
      %v2391 = vadd.f32 %v2189, %v2289
      %v2392 = vadd.f32 %v2190, %v2292
      %v2393 = vadd.f32 %v2191, %v2297
      %v2394 = vadd.f32 %v2192, %v2300
      %v2395 = vadd.f32 %v2193, %v2305
      %v2396 = vadd.f32 %v2194, %v2308
      %v2397 = vadd.f32 %v2195, %v2313
      %v2398 = vadd.f32 %v2196, %v2316
      %v2399 = vadd.f32 %v2197, %v2321
      %v2400 = vadd.f32 %v2198, %v2324
      %v2401 = vadd.f32 %v2199, %v2329
      %v2402 = vadd.f32 %v2200, %v2332
      %v2403 = vadd.f32 %v2201, %v2337
      %v2404 = vadd.f32 %v2202, %v2340
      %v2405 = vadd.f32 %v2203, %v2345
      %v2406 = vadd.f32 %v2204, %v2348
      %v2407 = vadd.f32 %v2205, %v2353
      %v2408 = vadd.f32 %v2206, %v2356
      %v2409 = vadd.f32 %v2207, %v2361
      %v2410 = vadd.f32 %v2208, %v2364
      %v2411 = vadd.f32 %v2209, %v2369
      %v2412 = vadd.f32 %v2210, %v2372
      %v2413 = vadd.f32 %v2211, %v2377
      %v2414 = vadd.f32 %v2212, %v2380
      %v2418 = vrot.slane %v455, 1
      %v2419 = vrot.slane %v456, 1
      %v2420 = vsel %vm532, %v2418, %v2419
      %v2421 = vrot.slane %v457, 1
      %v2422 = vsel %vm532, %v2419, %v2421
      %v2425 = vpack.c.bf16 %v2422, %v2420
      %s2426 = scalar_lea.vmem %s1, 12
      %v2427 = vld [vmem:[%s2426] sm:$0x3]
      %v2429 = vsel %vm280, %v2425, 0
      %v2432 = vsel %vm711, %v2427, 0
      %2434 = vmatprep.subr.bf16.mxu0 0
      %2435 = vmatpush1.bf16.msra.mxu0 %v2432
      %2436 = vmatprep.subr.bf16.mxu0 0
      %2437 = vmatpush1.bf16.msra.mxu0 0
      %2438 = vmatprep.subr.bf16.mxu0 0
      %2439 = vmatpush1.bf16.msra.mxu0 0
      %2440 = vmatprep.subr.bf16.mxu0 0
      %2441 = vmatpush1.bf16.msra.mxu0 0
      %2442 = vmatprep.subr.bf16.mxu0 0
      %2443 = vmatpush1.bf16.msra.mxu0 0
      %2444 = vmatprep.subr.bf16.mxu0 0
      %2445 = vmatpush1.bf16.msra.mxu0 0
      %2446 = vmatprep.subr.bf16.mxu0 0
      %2447 = vmatpush1.bf16.msra.mxu0 0
      %2448 = vmatprep.subr.bf16.mxu0 0
      %2449 = vmatpush1.bf16.msra.mxu0 0
      %2450 = vmatprep.subr.bf16.mxu0 0
      %2451 = vmatpush1.bf16.msra.mxu0 0
      %2452 = vmatprep.subr.bf16.mxu0 0
      %2453 = vmatpush1.bf16.msra.mxu0 0
      %2454 = vmatprep.subr.bf16.mxu0 0
      %2455 = vmatpush1.bf16.msra.mxu0 0
      %2456 = vmatprep.subr.bf16.mxu0 0
      %2457 = vmatpush1.bf16.msra.mxu0 0
      %2458 = vmatprep.subr.bf16.mxu0 0
      %2459 = vmatpush1.bf16.msra.mxu0 0
      %2460 = vmatprep.subr.bf16.mxu0 0
      %2461 = vmatpush1.bf16.msra.mxu0 0
      %2462 = vmatprep.subr.bf16.mxu0 0
      %2463 = vmatpush1.bf16.msra.mxu0 0
      %2464 = vmatprep.subr.bf16.mxu0 0
      %2465 = vmatpush1.bf16.msra.mxu0 0
      %2466 = vmatprep.mubr.bf16.mxu0 0
      %2467 = vmatmul.mubr.bf16.gmra.mrb[0].mxu0 %v667
      %v2468 = vpop.f32.mrb[0].mxu0
      %v2469 = vadd.f32 0.0, %v2468
      %v2470 = vpop.f32.mrb[0].mxu0
      %v2471 = vpop.f32.mrb[0].mxu0
      %v2472 = vadd.f32 0.0, %v2471
      %v2473 = vpop.f32.mrb[0].mxu0
      %2474 = vmatprep.mubr.bf16.mxu0 0
      %2475 = vmatmul.mubr.bf16.gmra.mrb[0].mxu0 %v670
      %v2476 = vpop.f32.mrb[0].mxu0
      %v2477 = vadd.f32 0.0, %v2476
      %v2478 = vpop.f32.mrb[0].mxu0
      %v2479 = vpop.f32.mrb[0].mxu0
      %v2480 = vadd.f32 0.0, %v2479
      %v2481 = vpop.f32.mrb[0].mxu0
      %2482 = vmatprep.mubr.bf16.mxu0 0
      %2483 = vmatmul.mubr.bf16.gmra.mrb[0].mxu0 %v673
      %v2484 = vpop.f32.mrb[0].mxu0
      %v2485 = vadd.f32 0.0, %v2484
      %v2486 = vpop.f32.mrb[0].mxu0
      %v2487 = vpop.f32.mrb[0].mxu0
      %v2488 = vadd.f32 0.0, %v2487
      %v2489 = vpop.f32.mrb[0].mxu0
      %2490 = vmatprep.mubr.bf16.mxu0 0
      %2491 = vmatmul.mubr.bf16.gmra.mrb[0].mxu0 %v676
      %v2492 = vpop.f32.mrb[0].mxu0
      %v2493 = vadd.f32 0.0, %v2492
      %v2494 = vpop.f32.mrb[0].mxu0
      %v2495 = vpop.f32.mrb[0].mxu0
      %v2496 = vadd.f32 0.0, %v2495
      %v2497 = vpop.f32.mrb[0].mxu0
      %2498 = vmatprep.mubr.bf16.mxu0 0
      %2499 = vmatmul.mubr.bf16.gmra.mrb[0].mxu0 %v679
      %v2500 = vpop.f32.mrb[0].mxu0
      %v2501 = vadd.f32 0.0, %v2500
      %v2502 = vpop.f32.mrb[0].mxu0
      %v2503 = vpop.f32.mrb[0].mxu0
      %v2504 = vadd.f32 0.0, %v2503
      %v2505 = vpop.f32.mrb[0].mxu0
      %2506 = vmatprep.mubr.bf16.mxu0 0
      %2507 = vmatmul.mubr.bf16.gmra.mrb[0].mxu0 %v682
      %v2508 = vpop.f32.mrb[0].mxu0
      %v2509 = vadd.f32 0.0, %v2508
      %v2510 = vpop.f32.mrb[0].mxu0
      %v2511 = vpop.f32.mrb[0].mxu0
      %v2512 = vadd.f32 0.0, %v2511
      %v2513 = vpop.f32.mrb[0].mxu0
      %2514 = vmatprep.mubr.bf16.mxu0 0
      %2515 = vmatmul.mubr.bf16.gmra.mrb[0].mxu0 %v685
      %v2516 = vpop.f32.mrb[0].mxu0
      %v2517 = vadd.f32 0.0, %v2516
      %v2518 = vpop.f32.mrb[0].mxu0
      %v2519 = vpop.f32.mrb[0].mxu0
      %v2520 = vadd.f32 0.0, %v2519
      %v2521 = vpop.f32.mrb[0].mxu0
      %2522 = vmatprep.mubr.bf16.mxu0 0
      %2523 = vmatmul.mubr.bf16.gmra.mrb[0].mxu0 %v688
      %v2524 = vpop.f32.mrb[0].mxu0
      %v2525 = vadd.f32 0.0, %v2524
      %v2526 = vpop.f32.mrb[0].mxu0
      %v2527 = vpop.f32.mrb[0].mxu0
      %v2528 = vadd.f32 0.0, %v2527
      %v2529 = vpop.f32.mrb[0].mxu0
      %2530 = vmatprep.mubr.bf16.mxu0 0
      %2531 = vmatmul.mubr.bf16.gmra.mrb[0].mxu0 %v691
      %v2532 = vpop.f32.mrb[0].mxu0
      %v2533 = vadd.f32 0.0, %v2532
      %v2534 = vpop.f32.mrb[0].mxu0
      %v2535 = vpop.f32.mrb[0].mxu0
      %v2536 = vadd.f32 0.0, %v2535
      %v2537 = vpop.f32.mrb[0].mxu0
      %2538 = vmatprep.mubr.bf16.mxu0 0
      %2539 = vmatmul.mubr.bf16.gmra.mrb[0].mxu0 %v694
      %v2540 = vpop.f32.mrb[0].mxu0
      %v2541 = vadd.f32 0.0, %v2540
      %v2542 = vpop.f32.mrb[0].mxu0
      %v2543 = vpop.f32.mrb[0].mxu0
      %v2544 = vadd.f32 0.0, %v2543
      %v2545 = vpop.f32.mrb[0].mxu0
      %2546 = vmatprep.mubr.bf16.mxu0 0
      %2547 = vmatmul.mubr.bf16.gmra.mrb[0].mxu0 %v697
      %v2548 = vpop.f32.mrb[0].mxu0
      %v2549 = vadd.f32 0.0, %v2548
      %v2550 = vpop.f32.mrb[0].mxu0
      %v2551 = vpop.f32.mrb[0].mxu0
      %v2552 = vadd.f32 0.0, %v2551
      %v2553 = vpop.f32.mrb[0].mxu0
      %2554 = vmatprep.mubr.bf16.mxu0 0
      %2555 = vmatmul.mubr.bf16.gmra.mrb[0].mxu0 %v700
      %v2556 = vpop.f32.mrb[0].mxu0
      %v2557 = vadd.f32 0.0, %v2556
      %v2558 = vpop.f32.mrb[0].mxu0
      %v2559 = vpop.f32.mrb[0].mxu0
      %v2560 = vadd.f32 0.0, %v2559
      %v2561 = vpop.f32.mrb[0].mxu0
      %2562 = vmatprep.mubr.bf16.mxu0 0
      %2563 = vmatmul.mubr.bf16.gmra.mrb[0].mxu0 %v703
      %v2564 = vpop.f32.mrb[0].mxu0
      %v2565 = vadd.f32 0.0, %v2564
      %v2566 = vpop.f32.mrb[0].mxu0
      %v2567 = vpop.f32.mrb[0].mxu0
      %v2568 = vadd.f32 0.0, %v2567
      %v2569 = vpop.f32.mrb[0].mxu0
      %2570 = vmatprep.mubr.bf16.mxu0 0
      %2571 = vmatmul.mubr.bf16.gmra.mrb[0].mxu0 %v706
      %v2572 = vpop.f32.mrb[0].mxu0
      %v2573 = vadd.f32 0.0, %v2572
      %v2574 = vpop.f32.mrb[0].mxu0
      %v2575 = vpop.f32.mrb[0].mxu0
      %v2576 = vadd.f32 0.0, %v2575
      %v2577 = vpop.f32.mrb[0].mxu0
      %2578 = vmatprep.mubr.bf16.mxu0 0
      %2579 = vmatmul.mubr.bf16.gmra.mrb[0].mxu0 %v709
      %v2580 = vpop.f32.mrb[0].mxu0
      %v2581 = vadd.f32 0.0, %v2580
      %v2582 = vpop.f32.mrb[0].mxu0
      %v2583 = vpop.f32.mrb[0].mxu0
      %v2584 = vadd.f32 0.0, %v2583
      %v2585 = vpop.f32.mrb[0].mxu0
      %2586 = vmatprep.mubr.bf16.mxu0 0
      %2587 = vmatmul.mubr.bf16.gmra.mrb[0].mxu0 %v2429
      %v2588 = vpop.f32.mrb[0].mxu0
      %v2589 = vadd.f32 0.0, %v2588
      %v2590 = vpop.f32.mrb[0].mxu0
      %v2591 = vpop.f32.mrb[0].mxu0
      %v2592 = vadd.f32 0.0, %v2591
      %v2593 = vpop.f32.mrb[0].mxu0
      %2594 = vdwg.mxu0
      %v2595 = vadd.f32 %v2383, %v2469
      %v2596 = vadd.f32 %v2384, %v2472
      %v2597 = vadd.f32 %v2385, %v2477
      %v2598 = vadd.f32 %v2386, %v2480
      %v2599 = vadd.f32 %v2387, %v2485
      %v2600 = vadd.f32 %v2388, %v2488
      %v2601 = vadd.f32 %v2389, %v2493
      %v2602 = vadd.f32 %v2390, %v2496
      %v2603 = vadd.f32 %v2391, %v2501
      %v2604 = vadd.f32 %v2392, %v2504
      %v2605 = vadd.f32 %v2393, %v2509
      %v2606 = vadd.f32 %v2394, %v2512
      %v2607 = vadd.f32 %v2395, %v2517
      %v2608 = vadd.f32 %v2396, %v2520
      %v2609 = vadd.f32 %v2397, %v2525
      %v2610 = vadd.f32 %v2398, %v2528
      %v2611 = vadd.f32 %v2399, %v2533
      %v2612 = vadd.f32 %v2400, %v2536
      %v2613 = vadd.f32 %v2401, %v2541
      %v2614 = vadd.f32 %v2402, %v2544
      %v2615 = vadd.f32 %v2403, %v2549
      %v2616 = vadd.f32 %v2404, %v2552
      %v2617 = vadd.f32 %v2405, %v2557
      %v2618 = vadd.f32 %v2406, %v2560
      %v2619 = vadd.f32 %v2407, %v2565
      %v2620 = vadd.f32 %v2408, %v2568
      %v2621 = vadd.f32 %v2409, %v2573
      %v2622 = vadd.f32 %v2410, %v2576
      %v2623 = vadd.f32 %v2411, %v2581
      %v2624 = vadd.f32 %v2412, %v2584
      %v2625 = vadd.f32 %v2413, %v2589
      %v2626 = vadd.f32 %v2414, %v2592
      %v2627 = vrot.slane %v455, 2
      %v2628 = vrot.slane %v456, 2
      %v2629 = vsel %vm1088, %v2627, %v2628
      %v2630 = vrot.slane %v457, 2
      %v2631 = vsel %vm1088, %v2628, %v2630
      %v2634 = vpack.c.bf16 %v2631, %v2629
      %s2635 = scalar_lea.vmem %s1, 14
      %v2636 = vld [vmem:[%s2635] sm:$0x3]
      %v2638 = vsel %vm280, %v2634, 0
      %v2641 = vsel %vm711, %v2636, 0
      %2643 = vmatprep.subr.bf16.mxu0 0
      %2644 = vmatpush1.bf16.msra.mxu0 %v2641
      %2645 = vmatprep.subr.bf16.mxu0 0
      %2646 = vmatpush1.bf16.msra.mxu0 0
      %2647 = vmatprep.subr.bf16.mxu0 0
      %2648 = vmatpush1.bf16.msra.mxu0 0
      %2649 = vmatprep.subr.bf16.mxu0 0
      %2650 = vmatpush1.bf16.msra.mxu0 0
      %2651 = vmatprep.subr.bf16.mxu0 0
      %2652 = vmatpush1.bf16.msra.mxu0 0
      %2653 = vmatprep.subr.bf16.mxu0 0
      %2654 = vmatpush1.bf16.msra.mxu0 0
      %2655 = vmatprep.subr.bf16.mxu0 0
      %2656 = vmatpush1.bf16.msra.mxu0 0
      %2657 = vmatprep.subr.bf16.mxu0 0
      %2658 = vmatpush1.bf16.msra.mxu0 0
      %2659 = vmatprep.subr.bf16.mxu0 0
      %2660 = vmatpush1.bf16.msra.mxu0 0
      %2661 = vmatprep.subr.bf16.mxu0 0
      %2662 = vmatpush1.bf16.msra.mxu0 0
      %2663 = vmatprep.subr.bf16.mxu0 0
      %2664 = vmatpush1.bf16.msra.mxu0 0
      %2665 = vmatprep.subr.bf16.mxu0 0
      %2666 = vmatpush1.bf16.msra.mxu0 0
      %2667 = vmatprep.subr.bf16.mxu0 0
      %2668 = vmatpush1.bf16.msra.mxu0 0
      %2669 = vmatprep.subr.bf16.mxu0 0
      %2670 = vmatpush1.bf16.msra.mxu0 0
      %2671 = vmatprep.subr.bf16.mxu0 0
      %2672 = vmatpush1.bf16.msra.mxu0 0
      %2673 = vmatprep.subr.bf16.mxu0 0
      %2674 = vmatpush1.bf16.msra.mxu0 0
      %2675 = vmatprep.mubr.bf16.mxu0 0
      %2676 = vmatmul.mubr.bf16.gmra.mrb[0].mxu0 %v1223
      %v2677 = vpop.f32.mrb[0].mxu0
      %v2678 = vadd.f32 0.0, %v2677
      %v2679 = vpop.f32.mrb[0].mxu0
      %v2680 = vpop.f32.mrb[0].mxu0
      %v2681 = vadd.f32 0.0, %v2680
      %v2682 = vpop.f32.mrb[0].mxu0
      %2683 = vmatprep.mubr.bf16.mxu0 0
      %2684 = vmatmul.mubr.bf16.gmra.mrb[0].mxu0 %v1226
      %v2685 = vpop.f32.mrb[0].mxu0
      %v2686 = vadd.f32 0.0, %v2685
      %v2687 = vpop.f32.mrb[0].mxu0
      %v2688 = vpop.f32.mrb[0].mxu0
      %v2689 = vadd.f32 0.0, %v2688
      %v2690 = vpop.f32.mrb[0].mxu0
      %2691 = vmatprep.mubr.bf16.mxu0 0
      %2692 = vmatmul.mubr.bf16.gmra.mrb[0].mxu0 %v1229
      %v2693 = vpop.f32.mrb[0].mxu0
      %v2694 = vadd.f32 0.0, %v2693
      %v2695 = vpop.f32.mrb[0].mxu0
      %v2696 = vpop.f32.mrb[0].mxu0
      %v2697 = vadd.f32 0.0, %v2696
      %v2698 = vpop.f32.mrb[0].mxu0
      %2699 = vmatprep.mubr.bf16.mxu0 0
      %2700 = vmatmul.mubr.bf16.gmra.mrb[0].mxu0 %v1232
      %v2701 = vpop.f32.mrb[0].mxu0
      %v2702 = vadd.f32 0.0, %v2701
      %v2703 = vpop.f32.mrb[0].mxu0
      %v2704 = vpop.f32.mrb[0].mxu0
      %v2705 = vadd.f32 0.0, %v2704
      %v2706 = vpop.f32.mrb[0].mxu0
      %2707 = vmatprep.mubr.bf16.mxu0 0
      %2708 = vmatmul.mubr.bf16.gmra.mrb[0].mxu0 %v1235
      %v2709 = vpop.f32.mrb[0].mxu0
      %v2710 = vadd.f32 0.0, %v2709
      %v2711 = vpop.f32.mrb[0].mxu0
      %v2712 = vpop.f32.mrb[0].mxu0
      %v2713 = vadd.f32 0.0, %v2712
      %v2714 = vpop.f32.mrb[0].mxu0
      %2715 = vmatprep.mubr.bf16.mxu0 0
      %2716 = vmatmul.mubr.bf16.gmra.mrb[0].mxu0 %v1238
      %v2717 = vpop.f32.mrb[0].mxu0
      %v2718 = vadd.f32 0.0, %v2717
      %v2719 = vpop.f32.mrb[0].mxu0
      %v2720 = vpop.f32.mrb[0].mxu0
      %v2721 = vadd.f32 0.0, %v2720
      %v2722 = vpop.f32.mrb[0].mxu0
      %2723 = vmatprep.mubr.bf16.mxu0 0
      %2724 = vmatmul.mubr.bf16.gmra.mrb[0].mxu0 %v1241
      %v2725 = vpop.f32.mrb[0].mxu0
      %v2726 = vadd.f32 0.0, %v2725
      %v2727 = vpop.f32.mrb[0].mxu0
      %v2728 = vpop.f32.mrb[0].mxu0
      %v2729 = vadd.f32 0.0, %v2728
      %v2730 = vpop.f32.mrb[0].mxu0
      %2731 = vmatprep.mubr.bf16.mxu0 0
      %2732 = vmatmul.mubr.bf16.gmra.mrb[0].mxu0 %v1244
      %v2733 = vpop.f32.mrb[0].mxu0
      %v2734 = vadd.f32 0.0, %v2733
      %v2735 = vpop.f32.mrb[0].mxu0
      %v2736 = vpop.f32.mrb[0].mxu0
      %v2737 = vadd.f32 0.0, %v2736
      %v2738 = vpop.f32.mrb[0].mxu0
      %2739 = vmatprep.mubr.bf16.mxu0 0
      %2740 = vmatmul.mubr.bf16.gmra.mrb[0].mxu0 %v1247
      %v2741 = vpop.f32.mrb[0].mxu0
      %v2742 = vadd.f32 0.0, %v2741
      %v2743 = vpop.f32.mrb[0].mxu0
      %v2744 = vpop.f32.mrb[0].mxu0
      %v2745 = vadd.f32 0.0, %v2744
      %v2746 = vpop.f32.mrb[0].mxu0
      %2747 = vmatprep.mubr.bf16.mxu0 0
      %2748 = vmatmul.mubr.bf16.gmra.mrb[0].mxu0 %v1250
      %v2749 = vpop.f32.mrb[0].mxu0
      %v2750 = vadd.f32 0.0, %v2749
      %v2751 = vpop.f32.mrb[0].mxu0
      %v2752 = vpop.f32.mrb[0].mxu0
      %v2753 = vadd.f32 0.0, %v2752
      %v2754 = vpop.f32.mrb[0].mxu0
      %2755 = vmatprep.mubr.bf16.mxu0 0
      %2756 = vmatmul.mubr.bf16.gmra.mrb[0].mxu0 %v1253
      %v2757 = vpop.f32.mrb[0].mxu0
      %v2758 = vadd.f32 0.0, %v2757
      %v2759 = vpop.f32.mrb[0].mxu0
      %v2760 = vpop.f32.mrb[0].mxu0
      %v2761 = vadd.f32 0.0, %v2760
      %v2762 = vpop.f32.mrb[0].mxu0
      %2763 = vmatprep.mubr.bf16.mxu0 0
      %2764 = vmatmul.mubr.bf16.gmra.mrb[0].mxu0 %v1256
      %v2765 = vpop.f32.mrb[0].mxu0
      %v2766 = vadd.f32 0.0, %v2765
      %v2767 = vpop.f32.mrb[0].mxu0
      %v2768 = vpop.f32.mrb[0].mxu0
      %v2769 = vadd.f32 0.0, %v2768
      %v2770 = vpop.f32.mrb[0].mxu0
      %2771 = vmatprep.mubr.bf16.mxu0 0
      %2772 = vmatmul.mubr.bf16.gmra.mrb[0].mxu0 %v1259
      %v2773 = vpop.f32.mrb[0].mxu0
      %v2774 = vadd.f32 0.0, %v2773
      %v2775 = vpop.f32.mrb[0].mxu0
      %v2776 = vpop.f32.mrb[0].mxu0
      %v2777 = vadd.f32 0.0, %v2776
      %v2778 = vpop.f32.mrb[0].mxu0
      %2779 = vmatprep.mubr.bf16.mxu0 0
      %2780 = vmatmul.mubr.bf16.gmra.mrb[0].mxu0 %v1262
      %v2781 = vpop.f32.mrb[0].mxu0
      %v2782 = vadd.f32 0.0, %v2781
      %v2783 = vpop.f32.mrb[0].mxu0
      %v2784 = vpop.f32.mrb[0].mxu0
      %v2785 = vadd.f32 0.0, %v2784
      %v2786 = vpop.f32.mrb[0].mxu0
      %2787 = vmatprep.mubr.bf16.mxu0 0
      %2788 = vmatmul.mubr.bf16.gmra.mrb[0].mxu0 %v1265
      %v2789 = vpop.f32.mrb[0].mxu0
      %v2790 = vadd.f32 0.0, %v2789
      %v2791 = vpop.f32.mrb[0].mxu0
      %v2792 = vpop.f32.mrb[0].mxu0
      %v2793 = vadd.f32 0.0, %v2792
      %v2794 = vpop.f32.mrb[0].mxu0
      %2795 = vmatprep.mubr.bf16.mxu0 0
      %2796 = vmatmul.mubr.bf16.gmra.mrb[0].mxu0 %v2638
      %v2797 = vpop.f32.mrb[0].mxu0
      %v2798 = vadd.f32 0.0, %v2797
      %v2799 = vpop.f32.mrb[0].mxu0
      %v2800 = vpop.f32.mrb[0].mxu0
      %v2801 = vadd.f32 0.0, %v2800
      %v2802 = vpop.f32.mrb[0].mxu0
      %2803 = vdwg.mxu0
      %v2804 = vadd.f32 %v2595, %v2678
      %v2805 = vadd.f32 %v2596, %v2681
      %v2806 = vadd.f32 %v2597, %v2686
      %v2807 = vadd.f32 %v2598, %v2689
      %v2808 = vadd.f32 %v2599, %v2694
      %v2809 = vadd.f32 %v2600, %v2697
      %v2810 = vadd.f32 %v2601, %v2702
      %v2811 = vadd.f32 %v2602, %v2705
      %v2812 = vadd.f32 %v2603, %v2710
      %v2813 = vadd.f32 %v2604, %v2713
      %v2814 = vadd.f32 %v2605, %v2718
      %v2815 = vadd.f32 %v2606, %v2721
      %v2816 = vadd.f32 %v2607, %v2726
      %v2817 = vadd.f32 %v2608, %v2729
      %v2818 = vadd.f32 %v2609, %v2734
      %v2819 = vadd.f32 %v2610, %v2737
      %v2820 = vadd.f32 %v2611, %v2742
      %v2821 = vadd.f32 %v2612, %v2745
      %v2822 = vadd.f32 %v2613, %v2750
      %v2823 = vadd.f32 %v2614, %v2753
      %v2824 = vadd.f32 %v2615, %v2758
      %v2825 = vadd.f32 %v2616, %v2761
      %v2826 = vadd.f32 %v2617, %v2766
      %v2827 = vadd.f32 %v2618, %v2769
      %v2828 = vadd.f32 %v2619, %v2774
      %v2829 = vadd.f32 %v2620, %v2777
      %v2830 = vadd.f32 %v2621, %v2782
      %v2831 = vadd.f32 %v2622, %v2785
      %v2832 = vadd.f32 %v2623, %v2790
      %v2833 = vadd.f32 %v2624, %v2793
      %v2834 = vadd.f32 %v2625, %v2798
      %v2835 = vadd.f32 %v2626, %v2801
      %v2836 = vrot.slane %v455, 3
      %v2837 = vrot.slane %v456, 3
      %v2838 = vsel %vm1463, %v2836, %v2837
      %v2839 = vrot.slane %v457, 3
      %v2840 = vsel %vm1463, %v2837, %v2839
      %v2843 = vpack.c.bf16 %v2840, %v2838
      %s2844 = scalar_lea.vmem %s1, 16
      %v2845 = vld [vmem:[%s2844] sm:$0x3]
      %v2847 = vsel %vm280, %v2843, 0
      %v2850 = vsel %vm711, %v2845, 0
      %2852 = vmatprep.subr.bf16.mxu0 0
      %2853 = vmatpush1.bf16.msra.mxu0 %v2850
      %2854 = vmatprep.subr.bf16.mxu0 0
      %2855 = vmatpush1.bf16.msra.mxu0 0
      %2856 = vmatprep.subr.bf16.mxu0 0
      %2857 = vmatpush1.bf16.msra.mxu0 0
      %2858 = vmatprep.subr.bf16.mxu0 0
      %2859 = vmatpush1.bf16.msra.mxu0 0
      %2860 = vmatprep.subr.bf16.mxu0 0
      %2861 = vmatpush1.bf16.msra.mxu0 0
      %2862 = vmatprep.subr.bf16.mxu0 0
      %2863 = vmatpush1.bf16.msra.mxu0 0
      %2864 = vmatprep.subr.bf16.mxu0 0
      %2865 = vmatpush1.bf16.msra.mxu0 0
      %2866 = vmatprep.subr.bf16.mxu0 0
      %2867 = vmatpush1.bf16.msra.mxu0 0
      %2868 = vmatprep.subr.bf16.mxu0 0
      %2869 = vmatpush1.bf16.msra.mxu0 0
      %2870 = vmatprep.subr.bf16.mxu0 0
      %2871 = vmatpush1.bf16.msra.mxu0 0
      %2872 = vmatprep.subr.bf16.mxu0 0
      %2873 = vmatpush1.bf16.msra.mxu0 0
      %2874 = vmatprep.subr.bf16.mxu0 0
      %2875 = vmatpush1.bf16.msra.mxu0 0
      %2876 = vmatprep.subr.bf16.mxu0 0
      %2877 = vmatpush1.bf16.msra.mxu0 0
      %2878 = vmatprep.subr.bf16.mxu0 0
      %2879 = vmatpush1.bf16.msra.mxu0 0
      %2880 = vmatprep.subr.bf16.mxu0 0
      %2881 = vmatpush1.bf16.msra.mxu0 0
      %2882 = vmatprep.subr.bf16.mxu0 0
      %2883 = vmatpush1.bf16.msra.mxu0 0
      %2884 = vmatprep.mubr.bf16.mxu0 0
      %2885 = vmatmul.mubr.bf16.gmra.mrb[0].mxu0 %v1598
      %v2886 = vpop.f32.mrb[0].mxu0
      %v2887 = vadd.f32 0.0, %v2886
      %v2888 = vpop.f32.mrb[0].mxu0
      %v2889 = vpop.f32.mrb[0].mxu0
      %v2890 = vadd.f32 0.0, %v2889
      %v2891 = vpop.f32.mrb[0].mxu0
      %2892 = vmatprep.mubr.bf16.mxu0 0
      %2893 = vmatmul.mubr.bf16.gmra.mrb[0].mxu0 %v1601
      %v2894 = vpop.f32.mrb[0].mxu0
      %v2895 = vadd.f32 0.0, %v2894
      %v2896 = vpop.f32.mrb[0].mxu0
      %v2897 = vpop.f32.mrb[0].mxu0
      %v2898 = vadd.f32 0.0, %v2897
      %v2899 = vpop.f32.mrb[0].mxu0
      %2900 = vmatprep.mubr.bf16.mxu0 0
      %2901 = vmatmul.mubr.bf16.gmra.mrb[0].mxu0 %v1604
      %v2902 = vpop.f32.mrb[0].mxu0
      %v2903 = vadd.f32 0.0, %v2902
      %v2904 = vpop.f32.mrb[0].mxu0
      %v2905 = vpop.f32.mrb[0].mxu0
      %v2906 = vadd.f32 0.0, %v2905
      %v2907 = vpop.f32.mrb[0].mxu0
      %2908 = vmatprep.mubr.bf16.mxu0 0
      %2909 = vmatmul.mubr.bf16.gmra.mrb[0].mxu0 %v1607
      %v2910 = vpop.f32.mrb[0].mxu0
      %v2911 = vadd.f32 0.0, %v2910
      %v2912 = vpop.f32.mrb[0].mxu0
      %v2913 = vpop.f32.mrb[0].mxu0
      %v2914 = vadd.f32 0.0, %v2913
      %v2915 = vpop.f32.mrb[0].mxu0
      %2916 = vmatprep.mubr.bf16.mxu0 0
      %2917 = vmatmul.mubr.bf16.gmra.mrb[0].mxu0 %v1610
      %v2918 = vpop.f32.mrb[0].mxu0
      %v2919 = vadd.f32 0.0, %v2918
      %v2920 = vpop.f32.mrb[0].mxu0
      %v2921 = vpop.f32.mrb[0].mxu0
      %v2922 = vadd.f32 0.0, %v2921
      %v2923 = vpop.f32.mrb[0].mxu0
      %2924 = vmatprep.mubr.bf16.mxu0 0
      %2925 = vmatmul.mubr.bf16.gmra.mrb[0].mxu0 %v1613
      %v2926 = vpop.f32.mrb[0].mxu0
      %v2927 = vadd.f32 0.0, %v2926
      %v2928 = vpop.f32.mrb[0].mxu0
      %v2929 = vpop.f32.mrb[0].mxu0
      %v2930 = vadd.f32 0.0, %v2929
      %v2931 = vpop.f32.mrb[0].mxu0
      %2932 = vmatprep.mubr.bf16.mxu0 0
      %2933 = vmatmul.mubr.bf16.gmra.mrb[0].mxu0 %v1616
      %v2934 = vpop.f32.mrb[0].mxu0
      %v2935 = vadd.f32 0.0, %v2934
      %v2936 = vpop.f32.mrb[0].mxu0
      %v2937 = vpop.f32.mrb[0].mxu0
      %v2938 = vadd.f32 0.0, %v2937
      %v2939 = vpop.f32.mrb[0].mxu0
      %2940 = vmatprep.mubr.bf16.mxu0 0
      %2941 = vmatmul.mubr.bf16.gmra.mrb[0].mxu0 %v1619
      %v2942 = vpop.f32.mrb[0].mxu0
      %v2943 = vadd.f32 0.0, %v2942
      %v2944 = vpop.f32.mrb[0].mxu0
      %v2945 = vpop.f32.mrb[0].mxu0
      %v2946 = vadd.f32 0.0, %v2945
      %v2947 = vpop.f32.mrb[0].mxu0
      %2948 = vmatprep.mubr.bf16.mxu0 0
      %2949 = vmatmul.mubr.bf16.gmra.mrb[0].mxu0 %v1622
      %v2950 = vpop.f32.mrb[0].mxu0
      %v2951 = vadd.f32 0.0, %v2950
      %v2952 = vpop.f32.mrb[0].mxu0
      %v2953 = vpop.f32.mrb[0].mxu0
      %v2954 = vadd.f32 0.0, %v2953
      %v2955 = vpop.f32.mrb[0].mxu0
      %2956 = vmatprep.mubr.bf16.mxu0 0
      %2957 = vmatmul.mubr.bf16.gmra.mrb[0].mxu0 %v1625
      %v2958 = vpop.f32.mrb[0].mxu0
      %v2959 = vadd.f32 0.0, %v2958
      %v2960 = vpop.f32.mrb[0].mxu0
      %v2961 = vpop.f32.mrb[0].mxu0
      %v2962 = vadd.f32 0.0, %v2961
      %v2963 = vpop.f32.mrb[0].mxu0
      %2964 = vmatprep.mubr.bf16.mxu0 0
      %2965 = vmatmul.mubr.bf16.gmra.mrb[0].mxu0 %v1628
      %v2966 = vpop.f32.mrb[0].mxu0
      %v2967 = vadd.f32 0.0, %v2966
      %v2968 = vpop.f32.mrb[0].mxu0
      %v2969 = vpop.f32.mrb[0].mxu0
      %v2970 = vadd.f32 0.0, %v2969
      %v2971 = vpop.f32.mrb[0].mxu0
      %2972 = vmatprep.mubr.bf16.mxu0 0
      %2973 = vmatmul.mubr.bf16.gmra.mrb[0].mxu0 %v1631
      %v2974 = vpop.f32.mrb[0].mxu0
      %v2975 = vadd.f32 0.0, %v2974
      %v2976 = vpop.f32.mrb[0].mxu0
      %v2977 = vpop.f32.mrb[0].mxu0
      %v2978 = vadd.f32 0.0, %v2977
      %v2979 = vpop.f32.mrb[0].mxu0
      %2980 = vmatprep.mubr.bf16.mxu0 0
      %2981 = vmatmul.mubr.bf16.gmra.mrb[0].mxu0 %v1634
      %v2982 = vpop.f32.mrb[0].mxu0
      %v2983 = vadd.f32 0.0, %v2982
      %v2984 = vpop.f32.mrb[0].mxu0
      %v2985 = vpop.f32.mrb[0].mxu0
      %v2986 = vadd.f32 0.0, %v2985
      %v2987 = vpop.f32.mrb[0].mxu0
      %2988 = vmatprep.mubr.bf16.mxu0 0
      %2989 = vmatmul.mubr.bf16.gmra.mrb[0].mxu0 %v1637
      %v2990 = vpop.f32.mrb[0].mxu0
      %v2991 = vadd.f32 0.0, %v2990
      %v2992 = vpop.f32.mrb[0].mxu0
      %v2993 = vpop.f32.mrb[0].mxu0
      %v2994 = vadd.f32 0.0, %v2993
      %v2995 = vpop.f32.mrb[0].mxu0
      %2996 = vmatprep.mubr.bf16.mxu0 0
      %2997 = vmatmul.mubr.bf16.gmra.mrb[0].mxu0 %v1640
      %v2998 = vpop.f32.mrb[0].mxu0
      %v2999 = vadd.f32 0.0, %v2998
      %v3000 = vpop.f32.mrb[0].mxu0
      %v3001 = vpop.f32.mrb[0].mxu0
      %v3002 = vadd.f32 0.0, %v3001
      %v3003 = vpop.f32.mrb[0].mxu0
      %3004 = vmatprep.mubr.bf16.mxu0 0
      %3005 = vmatmul.mubr.bf16.gmra.mrb[0].mxu0 %v2847
      %v3006 = vpop.f32.mrb[0].mxu0
      %v3007 = vadd.f32 0.0, %v3006
      %v3008 = vpop.f32.mrb[0].mxu0
      %v3009 = vpop.f32.mrb[0].mxu0
      %v3010 = vadd.f32 0.0, %v3009
      %v3011 = vpop.f32.mrb[0].mxu0
      %3012 = vdwg.mxu0
      %v3013 = vadd.f32 %v2804, %v2887
      %v3014 = vadd.f32 %v2805, %v2890
      %v3015 = vadd.f32 %v2806, %v2895
      %v3016 = vadd.f32 %v2807, %v2898
      %v3017 = vadd.f32 %v2808, %v2903
      %v3018 = vadd.f32 %v2809, %v2906
      %v3019 = vadd.f32 %v2810, %v2911
      %v3020 = vadd.f32 %v2811, %v2914
      %v3021 = vadd.f32 %v2812, %v2919
      %v3022 = vadd.f32 %v2813, %v2922
      %v3023 = vadd.f32 %v2814, %v2927
      %v3024 = vadd.f32 %v2815, %v2930
      %v3025 = vadd.f32 %v2816, %v2935
      %v3026 = vadd.f32 %v2817, %v2938
      %v3027 = vadd.f32 %v2818, %v2943
      %v3028 = vadd.f32 %v2819, %v2946
      %v3029 = vadd.f32 %v2820, %v2951
      %v3030 = vadd.f32 %v2821, %v2954
      %v3031 = vadd.f32 %v2822, %v2959
      %v3032 = vadd.f32 %v2823, %v2962
      %v3033 = vadd.f32 %v2824, %v2967
      %v3034 = vadd.f32 %v2825, %v2970
      %v3035 = vadd.f32 %v2826, %v2975
      %v3036 = vadd.f32 %v2827, %v2978
      %v3037 = vadd.f32 %v2828, %v2983
      %v3038 = vadd.f32 %v2829, %v2986
      %v3039 = vadd.f32 %v2830, %v2991
      %v3040 = vadd.f32 %v2831, %v2994
      %v3041 = vadd.f32 %v2832, %v2999
      %v3042 = vadd.f32 %v2833, %v3002
      %v3043 = vadd.f32 %v2834, %v3007
      %v3044 = vadd.f32 %v2835, %v3010
      %v3045 = vrot.slane %v455, 4
      %v3046 = vrot.slane %v456, 4
      %v3047 = vsel %vm1838, %v3045, %v3046
      %v3048 = vrot.slane %v457, 4
      %v3049 = vsel %vm1838, %v3046, %v3048
      %v3052 = vpack.c.bf16 %v3049, %v3047
      %s3053 = scalar_lea.vmem %s1, 18
      %v3054 = vld [vmem:[%s3053] sm:$0x3]
      %v3056 = vsel %vm280, %v3052, 0
      %v3059 = vsel %vm711, %v3054, 0
      %3061 = vmatprep.subr.bf16.mxu0 0
      %3062 = vmatpush1.bf16.msra.mxu0 %v3059
      %3063 = vmatprep.subr.bf16.mxu0 0
      %3064 = vmatpush1.bf16.msra.mxu0 0
      %3065 = vmatprep.subr.bf16.mxu0 0
      %3066 = vmatpush1.bf16.msra.mxu0 0
      %3067 = vmatprep.subr.bf16.mxu0 0
      %3068 = vmatpush1.bf16.msra.mxu0 0
      %3069 = vmatprep.subr.bf16.mxu0 0
      %3070 = vmatpush1.bf16.msra.mxu0 0
      %3071 = vmatprep.subr.bf16.mxu0 0
      %3072 = vmatpush1.bf16.msra.mxu0 0
      %3073 = vmatprep.subr.bf16.mxu0 0
      %3074 = vmatpush1.bf16.msra.mxu0 0
      %3075 = vmatprep.subr.bf16.mxu0 0
      %3076 = vmatpush1.bf16.msra.mxu0 0
      %3077 = vmatprep.subr.bf16.mxu0 0
      %3078 = vmatpush1.bf16.msra.mxu0 0
      %3079 = vmatprep.subr.bf16.mxu0 0
      %3080 = vmatpush1.bf16.msra.mxu0 0
      %3081 = vmatprep.subr.bf16.mxu0 0
      %3082 = vmatpush1.bf16.msra.mxu0 0
      %3083 = vmatprep.subr.bf16.mxu0 0
      %3084 = vmatpush1.bf16.msra.mxu0 0
      %3085 = vmatprep.subr.bf16.mxu0 0
      %3086 = vmatpush1.bf16.msra.mxu0 0
      %3087 = vmatprep.subr.bf16.mxu0 0
      %3088 = vmatpush1.bf16.msra.mxu0 0
      %3089 = vmatprep.subr.bf16.mxu0 0
      %3090 = vmatpush1.bf16.msra.mxu0 0
      %3091 = vmatprep.subr.bf16.mxu0 0
      %3092 = vmatpush1.bf16.msra.mxu0 0
      %3093 = vmatprep.mubr.bf16.mxu0 0
      %3094 = vmatmul.mubr.bf16.gmra.mrb[0].mxu0 %v1973
      %v3095 = vpop.f32.mrb[0].mxu0
      %v3096 = vadd.f32 0.0, %v3095
      %v3097 = vpop.f32.mrb[0].mxu0
      %v3098 = vpop.f32.mrb[0].mxu0
      %v3099 = vadd.f32 0.0, %v3098
      %v3100 = vpop.f32.mrb[0].mxu0
      %3101 = vmatprep.mubr.bf16.mxu0 0
      %3102 = vmatmul.mubr.bf16.gmra.mrb[0].mxu0 %v1976
      %v3103 = vpop.f32.mrb[0].mxu0
      %v3104 = vadd.f32 0.0, %v3103
      %v3105 = vpop.f32.mrb[0].mxu0
      %v3106 = vpop.f32.mrb[0].mxu0
      %v3107 = vadd.f32 0.0, %v3106
      %v3108 = vpop.f32.mrb[0].mxu0
      %3109 = vmatprep.mubr.bf16.mxu0 0
      %3110 = vmatmul.mubr.bf16.gmra.mrb[0].mxu0 %v1979
      %v3111 = vpop.f32.mrb[0].mxu0
      %v3112 = vadd.f32 0.0, %v3111
      %v3113 = vpop.f32.mrb[0].mxu0
      %v3114 = vpop.f32.mrb[0].mxu0
      %v3115 = vadd.f32 0.0, %v3114
      %v3116 = vpop.f32.mrb[0].mxu0
      %3117 = vmatprep.mubr.bf16.mxu0 0
      %3118 = vmatmul.mubr.bf16.gmra.mrb[0].mxu0 %v1982
      %v3119 = vpop.f32.mrb[0].mxu0
      %v3120 = vadd.f32 0.0, %v3119
      %v3121 = vpop.f32.mrb[0].mxu0
      %v3122 = vpop.f32.mrb[0].mxu0
      %v3123 = vadd.f32 0.0, %v3122
      %v3124 = vpop.f32.mrb[0].mxu0
      %3125 = vmatprep.mubr.bf16.mxu0 0
      %3126 = vmatmul.mubr.bf16.gmra.mrb[0].mxu0 %v1985
      %v3127 = vpop.f32.mrb[0].mxu0
      %v3128 = vadd.f32 0.0, %v3127
      %v3129 = vpop.f32.mrb[0].mxu0
      %v3130 = vpop.f32.mrb[0].mxu0
      %v3131 = vadd.f32 0.0, %v3130
      %v3132 = vpop.f32.mrb[0].mxu0
      %3133 = vmatprep.mubr.bf16.mxu0 0
      %3134 = vmatmul.mubr.bf16.gmra.mrb[0].mxu0 %v1988
      %v3135 = vpop.f32.mrb[0].mxu0
      %v3136 = vadd.f32 0.0, %v3135
      %v3137 = vpop.f32.mrb[0].mxu0
      %v3138 = vpop.f32.mrb[0].mxu0
      %v3139 = vadd.f32 0.0, %v3138
      %v3140 = vpop.f32.mrb[0].mxu0
      %3141 = vmatprep.mubr.bf16.mxu0 0
      %3142 = vmatmul.mubr.bf16.gmra.mrb[0].mxu0 %v1991
      %v3143 = vpop.f32.mrb[0].mxu0
      %v3144 = vadd.f32 0.0, %v3143
      %v3145 = vpop.f32.mrb[0].mxu0
      %v3146 = vpop.f32.mrb[0].mxu0
      %v3147 = vadd.f32 0.0, %v3146
      %v3148 = vpop.f32.mrb[0].mxu0
      %3149 = vmatprep.mubr.bf16.mxu0 0
      %3150 = vmatmul.mubr.bf16.gmra.mrb[0].mxu0 %v1994
      %v3151 = vpop.f32.mrb[0].mxu0
      %v3152 = vadd.f32 0.0, %v3151
      %v3153 = vpop.f32.mrb[0].mxu0
      %v3154 = vpop.f32.mrb[0].mxu0
      %v3155 = vadd.f32 0.0, %v3154
      %v3156 = vpop.f32.mrb[0].mxu0
      %3157 = vmatprep.mubr.bf16.mxu0 0
      %3158 = vmatmul.mubr.bf16.gmra.mrb[0].mxu0 %v1997
      %v3159 = vpop.f32.mrb[0].mxu0
      %v3160 = vadd.f32 0.0, %v3159
      %v3161 = vpop.f32.mrb[0].mxu0
      %v3162 = vpop.f32.mrb[0].mxu0
      %v3163 = vadd.f32 0.0, %v3162
      %v3164 = vpop.f32.mrb[0].mxu0
      %3165 = vmatprep.mubr.bf16.mxu0 0
      %3166 = vmatmul.mubr.bf16.gmra.mrb[0].mxu0 %v2000
      %v3167 = vpop.f32.mrb[0].mxu0
      %v3168 = vadd.f32 0.0, %v3167
      %v3169 = vpop.f32.mrb[0].mxu0
      %v3170 = vpop.f32.mrb[0].mxu0
      %v3171 = vadd.f32 0.0, %v3170
      %v3172 = vpop.f32.mrb[0].mxu0
      %3173 = vmatprep.mubr.bf16.mxu0 0
      %3174 = vmatmul.mubr.bf16.gmra.mrb[0].mxu0 %v2003
      %v3175 = vpop.f32.mrb[0].mxu0
      %v3176 = vadd.f32 0.0, %v3175
      %v3177 = vpop.f32.mrb[0].mxu0
      %v3178 = vpop.f32.mrb[0].mxu0
      %v3179 = vadd.f32 0.0, %v3178
      %v3180 = vpop.f32.mrb[0].mxu0
      %3181 = vmatprep.mubr.bf16.mxu0 0
      %3182 = vmatmul.mubr.bf16.gmra.mrb[0].mxu0 %v2006
      %v3183 = vpop.f32.mrb[0].mxu0
      %v3184 = vadd.f32 0.0, %v3183
      %v3185 = vpop.f32.mrb[0].mxu0
      %v3186 = vpop.f32.mrb[0].mxu0
      %v3187 = vadd.f32 0.0, %v3186
      %v3188 = vpop.f32.mrb[0].mxu0
      %3189 = vmatprep.mubr.bf16.mxu0 0
      %3190 = vmatmul.mubr.bf16.gmra.mrb[0].mxu0 %v2009
      %v3191 = vpop.f32.mrb[0].mxu0
      %v3192 = vadd.f32 0.0, %v3191
      %v3193 = vpop.f32.mrb[0].mxu0
      %v3194 = vpop.f32.mrb[0].mxu0
      %v3195 = vadd.f32 0.0, %v3194
      %v3196 = vpop.f32.mrb[0].mxu0
      %3197 = vmatprep.mubr.bf16.mxu0 0
      %3198 = vmatmul.mubr.bf16.gmra.mrb[0].mxu0 %v2012
      %v3199 = vpop.f32.mrb[0].mxu0
      %v3200 = vadd.f32 0.0, %v3199
      %v3201 = vpop.f32.mrb[0].mxu0
      %v3202 = vpop.f32.mrb[0].mxu0
      %v3203 = vadd.f32 0.0, %v3202
      %v3204 = vpop.f32.mrb[0].mxu0
      %3205 = vmatprep.mubr.bf16.mxu0 0
      %3206 = vmatmul.mubr.bf16.gmra.mrb[0].mxu0 %v2015
      %v3207 = vpop.f32.mrb[0].mxu0
      %v3208 = vadd.f32 0.0, %v3207
      %v3209 = vpop.f32.mrb[0].mxu0
      %v3210 = vpop.f32.mrb[0].mxu0
      %v3211 = vadd.f32 0.0, %v3210
      %v3212 = vpop.f32.mrb[0].mxu0
      %3213 = vmatprep.mubr.bf16.mxu0 0
      %3214 = vmatmul.mubr.bf16.gmra.mrb[0].mxu0 %v3056
      %v3215 = vpop.f32.mrb[0].mxu0
      %v3216 = vadd.f32 0.0, %v3215
      %v3217 = vpop.f32.mrb[0].mxu0
      %v3218 = vpop.f32.mrb[0].mxu0
      %v3219 = vadd.f32 0.0, %v3218
      %v3220 = vpop.f32.mrb[0].mxu0
      %3221 = vdwg.mxu0
      %v3222 = vadd.f32 %v3013, %v3096
      %v3223 = vadd.f32 %v3014, %v3099
      %v3224 = vadd.f32 %v3015, %v3104
      %v3225 = vadd.f32 %v3016, %v3107
      %v3226 = vadd.f32 %v3017, %v3112
      %v3227 = vadd.f32 %v3018, %v3115
      %v3228 = vadd.f32 %v3019, %v3120
      %v3229 = vadd.f32 %v3020, %v3123
      %v3230 = vadd.f32 %v3021, %v3128
      %v3231 = vadd.f32 %v3022, %v3131
      %v3232 = vadd.f32 %v3023, %v3136
      %v3233 = vadd.f32 %v3024, %v3139
      %v3234 = vadd.f32 %v3025, %v3144
      %v3235 = vadd.f32 %v3026, %v3147
      %v3236 = vadd.f32 %v3027, %v3152
      %v3237 = vadd.f32 %v3028, %v3155
      %v3238 = vadd.f32 %v3029, %v3160
      %v3239 = vadd.f32 %v3030, %v3163
      %v3240 = vadd.f32 %v3031, %v3168
      %v3241 = vadd.f32 %v3032, %v3171
      %v3242 = vadd.f32 %v3033, %v3176
      %v3243 = vadd.f32 %v3034, %v3179
      %v3244 = vadd.f32 %v3035, %v3184
      %v3245 = vadd.f32 %v3036, %v3187
      %v3246 = vadd.f32 %v3037, %v3192
      %v3247 = vadd.f32 %v3038, %v3195
      %v3248 = vadd.f32 %v3039, %v3200
      %v3249 = vadd.f32 %v3040, %v3203
      %v3250 = vadd.f32 %v3041, %v3208
      %v3251 = vadd.f32 %v3042, %v3211
      %v3252 = vadd.f32 %v3043, %v3216
      %v3253 = vadd.f32 %v3044, %v3219
      %v3254 = vpack.c.bf16 %v459, %v458
      %s3255 = scalar_lea.vmem %s1, 20
      %v3256 = vld [vmem:[%s3255] sm:$0x3]
      %v3258 = vsel %vm280, %v3254, 0
      %v3261 = vsel %vm711, %v3256, 0
      %3263 = vmatprep.subr.bf16.mxu0 0
      %3264 = vmatpush1.bf16.msra.mxu0 %v3261
      %3265 = vmatprep.subr.bf16.mxu0 0
      %3266 = vmatpush1.bf16.msra.mxu0 0
      %3267 = vmatprep.subr.bf16.mxu0 0
      %3268 = vmatpush1.bf16.msra.mxu0 0
      %3269 = vmatprep.subr.bf16.mxu0 0
      %3270 = vmatpush1.bf16.msra.mxu0 0
      %3271 = vmatprep.subr.bf16.mxu0 0
      %3272 = vmatpush1.bf16.msra.mxu0 0
      %3273 = vmatprep.subr.bf16.mxu0 0
      %3274 = vmatpush1.bf16.msra.mxu0 0
      %3275 = vmatprep.subr.bf16.mxu0 0
      %3276 = vmatpush1.bf16.msra.mxu0 0
      %3277 = vmatprep.subr.bf16.mxu0 0
      %3278 = vmatpush1.bf16.msra.mxu0 0
      %3279 = vmatprep.subr.bf16.mxu0 0
      %3280 = vmatpush1.bf16.msra.mxu0 0
      %3281 = vmatprep.subr.bf16.mxu0 0
      %3282 = vmatpush1.bf16.msra.mxu0 0
      %3283 = vmatprep.subr.bf16.mxu0 0
      %3284 = vmatpush1.bf16.msra.mxu0 0
      %3285 = vmatprep.subr.bf16.mxu0 0
      %3286 = vmatpush1.bf16.msra.mxu0 0
      %3287 = vmatprep.subr.bf16.mxu0 0
      %3288 = vmatpush1.bf16.msra.mxu0 0
      %3289 = vmatprep.subr.bf16.mxu0 0
      %3290 = vmatpush1.bf16.msra.mxu0 0
      %3291 = vmatprep.subr.bf16.mxu0 0
      %3292 = vmatpush1.bf16.msra.mxu0 0
      %3293 = vmatprep.subr.bf16.mxu0 0
      %3294 = vmatpush1.bf16.msra.mxu0 0
      %3295 = vmatprep.mubr.bf16.mxu0 0
      %3296 = vmatmul.mubr.bf16.gmra.mrb[0].mxu0 %v883
      %v3297 = vpop.f32.mrb[0].mxu0
      %v3298 = vadd.f32 0.0, %v3297
      %v3299 = vpop.f32.mrb[0].mxu0
      %v3300 = vpop.f32.mrb[0].mxu0
      %v3301 = vadd.f32 0.0, %v3300
      %v3302 = vpop.f32.mrb[0].mxu0
      %3303 = vmatprep.mubr.bf16.mxu0 0
      %3304 = vmatmul.mubr.bf16.gmra.mrb[0].mxu0 %v886
      %v3305 = vpop.f32.mrb[0].mxu0
      %v3306 = vadd.f32 0.0, %v3305
      %v3307 = vpop.f32.mrb[0].mxu0
      %v3308 = vpop.f32.mrb[0].mxu0
      %v3309 = vadd.f32 0.0, %v3308
      %v3310 = vpop.f32.mrb[0].mxu0
      %3311 = vmatprep.mubr.bf16.mxu0 0
      %3312 = vmatmul.mubr.bf16.gmra.mrb[0].mxu0 %v889
      %v3313 = vpop.f32.mrb[0].mxu0
      %v3314 = vadd.f32 0.0, %v3313
      %v3315 = vpop.f32.mrb[0].mxu0
      %v3316 = vpop.f32.mrb[0].mxu0
      %v3317 = vadd.f32 0.0, %v3316
      %v3318 = vpop.f32.mrb[0].mxu0
      %3319 = vmatprep.mubr.bf16.mxu0 0
      %3320 = vmatmul.mubr.bf16.gmra.mrb[0].mxu0 %v892
      %v3321 = vpop.f32.mrb[0].mxu0
      %v3322 = vadd.f32 0.0, %v3321
      %v3323 = vpop.f32.mrb[0].mxu0
      %v3324 = vpop.f32.mrb[0].mxu0
      %v3325 = vadd.f32 0.0, %v3324
      %v3326 = vpop.f32.mrb[0].mxu0
      %3327 = vmatprep.mubr.bf16.mxu0 0
      %3328 = vmatmul.mubr.bf16.gmra.mrb[0].mxu0 %v895
      %v3329 = vpop.f32.mrb[0].mxu0
      %v3330 = vadd.f32 0.0, %v3329
      %v3331 = vpop.f32.mrb[0].mxu0
      %v3332 = vpop.f32.mrb[0].mxu0
      %v3333 = vadd.f32 0.0, %v3332
      %v3334 = vpop.f32.mrb[0].mxu0
      %3335 = vmatprep.mubr.bf16.mxu0 0
      %3336 = vmatmul.mubr.bf16.gmra.mrb[0].mxu0 %v898
      %v3337 = vpop.f32.mrb[0].mxu0
      %v3338 = vadd.f32 0.0, %v3337
      %v3339 = vpop.f32.mrb[0].mxu0
      %v3340 = vpop.f32.mrb[0].mxu0
      %v3341 = vadd.f32 0.0, %v3340
      %v3342 = vpop.f32.mrb[0].mxu0
      %3343 = vmatprep.mubr.bf16.mxu0 0
      %3344 = vmatmul.mubr.bf16.gmra.mrb[0].mxu0 %v901
      %v3345 = vpop.f32.mrb[0].mxu0
      %v3346 = vadd.f32 0.0, %v3345
      %v3347 = vpop.f32.mrb[0].mxu0
      %v3348 = vpop.f32.mrb[0].mxu0
      %v3349 = vadd.f32 0.0, %v3348
      %v3350 = vpop.f32.mrb[0].mxu0
      %3351 = vmatprep.mubr.bf16.mxu0 0
      %3352 = vmatmul.mubr.bf16.gmra.mrb[0].mxu0 %v904
      %v3353 = vpop.f32.mrb[0].mxu0
      %v3354 = vadd.f32 0.0, %v3353
      %v3355 = vpop.f32.mrb[0].mxu0
      %v3356 = vpop.f32.mrb[0].mxu0
      %v3357 = vadd.f32 0.0, %v3356
      %v3358 = vpop.f32.mrb[0].mxu0
      %3359 = vmatprep.mubr.bf16.mxu0 0
      %3360 = vmatmul.mubr.bf16.gmra.mrb[0].mxu0 %v907
      %v3361 = vpop.f32.mrb[0].mxu0
      %v3362 = vadd.f32 0.0, %v3361
      %v3363 = vpop.f32.mrb[0].mxu0
      %v3364 = vpop.f32.mrb[0].mxu0
      %v3365 = vadd.f32 0.0, %v3364
      %v3366 = vpop.f32.mrb[0].mxu0
      %3367 = vmatprep.mubr.bf16.mxu0 0
      %3368 = vmatmul.mubr.bf16.gmra.mrb[0].mxu0 %v910
      %v3369 = vpop.f32.mrb[0].mxu0
      %v3370 = vadd.f32 0.0, %v3369
      %v3371 = vpop.f32.mrb[0].mxu0
      %v3372 = vpop.f32.mrb[0].mxu0
      %v3373 = vadd.f32 0.0, %v3372
      %v3374 = vpop.f32.mrb[0].mxu0
      %3375 = vmatprep.mubr.bf16.mxu0 0
      %3376 = vmatmul.mubr.bf16.gmra.mrb[0].mxu0 %v913
      %v3377 = vpop.f32.mrb[0].mxu0
      %v3378 = vadd.f32 0.0, %v3377
      %v3379 = vpop.f32.mrb[0].mxu0
      %v3380 = vpop.f32.mrb[0].mxu0
      %v3381 = vadd.f32 0.0, %v3380
      %v3382 = vpop.f32.mrb[0].mxu0
      %3383 = vmatprep.mubr.bf16.mxu0 0
      %3384 = vmatmul.mubr.bf16.gmra.mrb[0].mxu0 %v916
      %v3385 = vpop.f32.mrb[0].mxu0
      %v3386 = vadd.f32 0.0, %v3385
      %v3387 = vpop.f32.mrb[0].mxu0
      %v3388 = vpop.f32.mrb[0].mxu0
      %v3389 = vadd.f32 0.0, %v3388
      %v3390 = vpop.f32.mrb[0].mxu0
      %3391 = vmatprep.mubr.bf16.mxu0 0
      %3392 = vmatmul.mubr.bf16.gmra.mrb[0].mxu0 %v919
      %v3393 = vpop.f32.mrb[0].mxu0
      %v3394 = vadd.f32 0.0, %v3393
      %v3395 = vpop.f32.mrb[0].mxu0
      %v3396 = vpop.f32.mrb[0].mxu0
      %v3397 = vadd.f32 0.0, %v3396
      %v3398 = vpop.f32.mrb[0].mxu0
      %3399 = vmatprep.mubr.bf16.mxu0 0
      %3400 = vmatmul.mubr.bf16.gmra.mrb[0].mxu0 %v922
      %v3401 = vpop.f32.mrb[0].mxu0
      %v3402 = vadd.f32 0.0, %v3401
      %v3403 = vpop.f32.mrb[0].mxu0
      %v3404 = vpop.f32.mrb[0].mxu0
      %v3405 = vadd.f32 0.0, %v3404
      %v3406 = vpop.f32.mrb[0].mxu0
      %3407 = vmatprep.mubr.bf16.mxu0 0
      %3408 = vmatmul.mubr.bf16.gmra.mrb[0].mxu0 %v2217
      %v3409 = vpop.f32.mrb[0].mxu0
      %v3410 = vadd.f32 0.0, %v3409
      %v3411 = vpop.f32.mrb[0].mxu0
      %v3412 = vpop.f32.mrb[0].mxu0
      %v3413 = vadd.f32 0.0, %v3412
      %v3414 = vpop.f32.mrb[0].mxu0
      %3415 = vmatprep.mubr.bf16.mxu0 0
      %3416 = vmatmul.mubr.bf16.gmra.mrb[0].mxu0 %v3258
      %v3417 = vpop.f32.mrb[0].mxu0
      %v3418 = vadd.f32 0.0, %v3417
      %v3419 = vpop.f32.mrb[0].mxu0
      %v3420 = vpop.f32.mrb[0].mxu0
      %v3421 = vadd.f32 0.0, %v3420
      %v3422 = vpop.f32.mrb[0].mxu0
      %3423 = vdwg.mxu0
      %v3424 = vadd.f32 %v3222, %v3298
      %v3425 = vadd.f32 %v3223, %v3301
      %v3426 = vadd.f32 %v3224, %v3306
      %v3427 = vadd.f32 %v3225, %v3309
      %v3428 = vadd.f32 %v3226, %v3314
      %v3429 = vadd.f32 %v3227, %v3317
      %v3430 = vadd.f32 %v3228, %v3322
      %v3431 = vadd.f32 %v3229, %v3325
      %v3432 = vadd.f32 %v3230, %v3330
      %v3433 = vadd.f32 %v3231, %v3333
      %v3434 = vadd.f32 %v3232, %v3338
      %v3435 = vadd.f32 %v3233, %v3341
      %v3436 = vadd.f32 %v3234, %v3346
      %v3437 = vadd.f32 %v3235, %v3349
      %v3438 = vadd.f32 %v3236, %v3354
      %v3439 = vadd.f32 %v3237, %v3357
      %v3440 = vadd.f32 %v3238, %v3362
      %v3441 = vadd.f32 %v3239, %v3365
      %v3442 = vadd.f32 %v3240, %v3370
      %v3443 = vadd.f32 %v3241, %v3373
      %v3444 = vadd.f32 %v3242, %v3378
      %v3445 = vadd.f32 %v3243, %v3381
      %v3446 = vadd.f32 %v3244, %v3386
      %v3447 = vadd.f32 %v3245, %v3389
      %v3448 = vadd.f32 %v3246, %v3394
      %v3449 = vadd.f32 %v3247, %v3397
      %v3450 = vadd.f32 %v3248, %v3402
      %v3451 = vadd.f32 %v3249, %v3405
      %v3452 = vadd.f32 %v3250, %v3410
      %v3453 = vadd.f32 %v3251, %v3413
      %v3454 = vadd.f32 %v3252, %v3418
      %v3455 = vadd.f32 %v3253, %v3421
      %v3459 = vrot.slane %v458, 1
      %v3460 = vrot.slane %v459, 1
      %v3461 = vsel %vm532, %v3459, %v3460
      %v3462 = vrot.slane %v460, 1
      %v3463 = vsel %vm532, %v3460, %v3462
      %v3466 = vpack.c.bf16 %v3463, %v3461
      %s3467 = scalar_lea.vmem %s1, 22
      %v3468 = vld [vmem:[%s3467] sm:$0x3]
      %v3470 = vsel %vm280, %v3466, 0
      %v3473 = vsel %vm711, %v3468, 0
      %3475 = vmatprep.subr.bf16.mxu0 0
      %3476 = vmatpush1.bf16.msra.mxu0 %v3473
      %3477 = vmatprep.subr.bf16.mxu0 0
      %3478 = vmatpush1.bf16.msra.mxu0 0
      %3479 = vmatprep.subr.bf16.mxu0 0
      %3480 = vmatpush1.bf16.msra.mxu0 0
      %3481 = vmatprep.subr.bf16.mxu0 0
      %3482 = vmatpush1.bf16.msra.mxu0 0
      %3483 = vmatprep.subr.bf16.mxu0 0
      %3484 = vmatpush1.bf16.msra.mxu0 0
      %3485 = vmatprep.subr.bf16.mxu0 0
      %3486 = vmatpush1.bf16.msra.mxu0 0
      %3487 = vmatprep.subr.bf16.mxu0 0
      %3488 = vmatpush1.bf16.msra.mxu0 0
      %3489 = vmatprep.subr.bf16.mxu0 0
      %3490 = vmatpush1.bf16.msra.mxu0 0
      %3491 = vmatprep.subr.bf16.mxu0 0
      %3492 = vmatpush1.bf16.msra.mxu0 0
      %3493 = vmatprep.subr.bf16.mxu0 0
      %3494 = vmatpush1.bf16.msra.mxu0 0
      %3495 = vmatprep.subr.bf16.mxu0 0
      %3496 = vmatpush1.bf16.msra.mxu0 0
      %3497 = vmatprep.subr.bf16.mxu0 0
      %3498 = vmatpush1.bf16.msra.mxu0 0
      %3499 = vmatprep.subr.bf16.mxu0 0
      %3500 = vmatpush1.bf16.msra.mxu0 0
      %3501 = vmatprep.subr.bf16.mxu0 0
      %3502 = vmatpush1.bf16.msra.mxu0 0
      %3503 = vmatprep.subr.bf16.mxu0 0
      %3504 = vmatpush1.bf16.msra.mxu0 0
      %3505 = vmatprep.subr.bf16.mxu0 0
      %3506 = vmatpush1.bf16.msra.mxu0 0
      %3507 = vmatprep.mubr.bf16.mxu0 0
      %3508 = vmatmul.mubr.bf16.gmra.mrb[0].mxu0 %v670
      %v3509 = vpop.f32.mrb[0].mxu0
      %v3510 = vadd.f32 0.0, %v3509
      %v3511 = vpop.f32.mrb[0].mxu0
      %v3512 = vpop.f32.mrb[0].mxu0
      %v3513 = vadd.f32 0.0, %v3512
      %v3514 = vpop.f32.mrb[0].mxu0
      %3515 = vmatprep.mubr.bf16.mxu0 0
      %3516 = vmatmul.mubr.bf16.gmra.mrb[0].mxu0 %v673
      %v3517 = vpop.f32.mrb[0].mxu0
      %v3518 = vadd.f32 0.0, %v3517
      %v3519 = vpop.f32.mrb[0].mxu0
      %v3520 = vpop.f32.mrb[0].mxu0
      %v3521 = vadd.f32 0.0, %v3520
      %v3522 = vpop.f32.mrb[0].mxu0
      %3523 = vmatprep.mubr.bf16.mxu0 0
      %3524 = vmatmul.mubr.bf16.gmra.mrb[0].mxu0 %v676
      %v3525 = vpop.f32.mrb[0].mxu0
      %v3526 = vadd.f32 0.0, %v3525
      %v3527 = vpop.f32.mrb[0].mxu0
      %v3528 = vpop.f32.mrb[0].mxu0
      %v3529 = vadd.f32 0.0, %v3528
      %v3530 = vpop.f32.mrb[0].mxu0
      %3531 = vmatprep.mubr.bf16.mxu0 0
      %3532 = vmatmul.mubr.bf16.gmra.mrb[0].mxu0 %v679
      %v3533 = vpop.f32.mrb[0].mxu0
      %v3534 = vadd.f32 0.0, %v3533
      %v3535 = vpop.f32.mrb[0].mxu0
      %v3536 = vpop.f32.mrb[0].mxu0
      %v3537 = vadd.f32 0.0, %v3536
      %v3538 = vpop.f32.mrb[0].mxu0
      %3539 = vmatprep.mubr.bf16.mxu0 0
      %3540 = vmatmul.mubr.bf16.gmra.mrb[0].mxu0 %v682
      %v3541 = vpop.f32.mrb[0].mxu0
      %v3542 = vadd.f32 0.0, %v3541
      %v3543 = vpop.f32.mrb[0].mxu0
      %v3544 = vpop.f32.mrb[0].mxu0
      %v3545 = vadd.f32 0.0, %v3544
      %v3546 = vpop.f32.mrb[0].mxu0
      %3547 = vmatprep.mubr.bf16.mxu0 0
      %3548 = vmatmul.mubr.bf16.gmra.mrb[0].mxu0 %v685
      %v3549 = vpop.f32.mrb[0].mxu0
      %v3550 = vadd.f32 0.0, %v3549
      %v3551 = vpop.f32.mrb[0].mxu0
      %v3552 = vpop.f32.mrb[0].mxu0
      %v3553 = vadd.f32 0.0, %v3552
      %v3554 = vpop.f32.mrb[0].mxu0
      %3555 = vmatprep.mubr.bf16.mxu0 0
      %3556 = vmatmul.mubr.bf16.gmra.mrb[0].mxu0 %v688
      %v3557 = vpop.f32.mrb[0].mxu0
      %v3558 = vadd.f32 0.0, %v3557
      %v3559 = vpop.f32.mrb[0].mxu0
      %v3560 = vpop.f32.mrb[0].mxu0
      %v3561 = vadd.f32 0.0, %v3560
      %v3562 = vpop.f32.mrb[0].mxu0
      %3563 = vmatprep.mubr.bf16.mxu0 0
      %3564 = vmatmul.mubr.bf16.gmra.mrb[0].mxu0 %v691
      %v3565 = vpop.f32.mrb[0].mxu0
      %v3566 = vadd.f32 0.0, %v3565
      %v3567 = vpop.f32.mrb[0].mxu0
      %v3568 = vpop.f32.mrb[0].mxu0
      %v3569 = vadd.f32 0.0, %v3568
      %v3570 = vpop.f32.mrb[0].mxu0
      %3571 = vmatprep.mubr.bf16.mxu0 0
      %3572 = vmatmul.mubr.bf16.gmra.mrb[0].mxu0 %v694
      %v3573 = vpop.f32.mrb[0].mxu0
      %v3574 = vadd.f32 0.0, %v3573
      %v3575 = vpop.f32.mrb[0].mxu0
      %v3576 = vpop.f32.mrb[0].mxu0
      %v3577 = vadd.f32 0.0, %v3576
      %v3578 = vpop.f32.mrb[0].mxu0
      %3579 = vmatprep.mubr.bf16.mxu0 0
      %3580 = vmatmul.mubr.bf16.gmra.mrb[0].mxu0 %v697
      %v3581 = vpop.f32.mrb[0].mxu0
      %v3582 = vadd.f32 0.0, %v3581
      %v3583 = vpop.f32.mrb[0].mxu0
      %v3584 = vpop.f32.mrb[0].mxu0
      %v3585 = vadd.f32 0.0, %v3584
      %v3586 = vpop.f32.mrb[0].mxu0
      %3587 = vmatprep.mubr.bf16.mxu0 0
      %3588 = vmatmul.mubr.bf16.gmra.mrb[0].mxu0 %v700
      %v3589 = vpop.f32.mrb[0].mxu0
      %v3590 = vadd.f32 0.0, %v3589
      %v3591 = vpop.f32.mrb[0].mxu0
      %v3592 = vpop.f32.mrb[0].mxu0
      %v3593 = vadd.f32 0.0, %v3592
      %v3594 = vpop.f32.mrb[0].mxu0
      %3595 = vmatprep.mubr.bf16.mxu0 0
      %3596 = vmatmul.mubr.bf16.gmra.mrb[0].mxu0 %v703
      %v3597 = vpop.f32.mrb[0].mxu0
      %v3598 = vadd.f32 0.0, %v3597
      %v3599 = vpop.f32.mrb[0].mxu0
      %v3600 = vpop.f32.mrb[0].mxu0
      %v3601 = vadd.f32 0.0, %v3600
      %v3602 = vpop.f32.mrb[0].mxu0
      %3603 = vmatprep.mubr.bf16.mxu0 0
      %3604 = vmatmul.mubr.bf16.gmra.mrb[0].mxu0 %v706
      %v3605 = vpop.f32.mrb[0].mxu0
      %v3606 = vadd.f32 0.0, %v3605
      %v3607 = vpop.f32.mrb[0].mxu0
      %v3608 = vpop.f32.mrb[0].mxu0
      %v3609 = vadd.f32 0.0, %v3608
      %v3610 = vpop.f32.mrb[0].mxu0
      %3611 = vmatprep.mubr.bf16.mxu0 0
      %3612 = vmatmul.mubr.bf16.gmra.mrb[0].mxu0 %v709
      %v3613 = vpop.f32.mrb[0].mxu0
      %v3614 = vadd.f32 0.0, %v3613
      %v3615 = vpop.f32.mrb[0].mxu0
      %v3616 = vpop.f32.mrb[0].mxu0
      %v3617 = vadd.f32 0.0, %v3616
      %v3618 = vpop.f32.mrb[0].mxu0
      %3619 = vmatprep.mubr.bf16.mxu0 0
      %3620 = vmatmul.mubr.bf16.gmra.mrb[0].mxu0 %v2429
      %v3621 = vpop.f32.mrb[0].mxu0
      %v3622 = vadd.f32 0.0, %v3621
      %v3623 = vpop.f32.mrb[0].mxu0
      %v3624 = vpop.f32.mrb[0].mxu0
      %v3625 = vadd.f32 0.0, %v3624
      %v3626 = vpop.f32.mrb[0].mxu0
      %3627 = vmatprep.mubr.bf16.mxu0 0
      %3628 = vmatmul.mubr.bf16.gmra.mrb[0].mxu0 %v3470
      %v3629 = vpop.f32.mrb[0].mxu0
      %v3630 = vadd.f32 0.0, %v3629
      %v3631 = vpop.f32.mrb[0].mxu0
      %v3632 = vpop.f32.mrb[0].mxu0
      %v3633 = vadd.f32 0.0, %v3632
      %v3634 = vpop.f32.mrb[0].mxu0
      %3635 = vdwg.mxu0
      %v3636 = vadd.f32 %v3424, %v3510
      %v3637 = vadd.f32 %v3425, %v3513
      %v3638 = vadd.f32 %v3426, %v3518
      %v3639 = vadd.f32 %v3427, %v3521
      %v3640 = vadd.f32 %v3428, %v3526
      %v3641 = vadd.f32 %v3429, %v3529
      %v3642 = vadd.f32 %v3430, %v3534
      %v3643 = vadd.f32 %v3431, %v3537
      %v3644 = vadd.f32 %v3432, %v3542
      %v3645 = vadd.f32 %v3433, %v3545
      %v3646 = vadd.f32 %v3434, %v3550
      %v3647 = vadd.f32 %v3435, %v3553
      %v3648 = vadd.f32 %v3436, %v3558
      %v3649 = vadd.f32 %v3437, %v3561
      %v3650 = vadd.f32 %v3438, %v3566
      %v3651 = vadd.f32 %v3439, %v3569
      %v3652 = vadd.f32 %v3440, %v3574
      %v3653 = vadd.f32 %v3441, %v3577
      %v3654 = vadd.f32 %v3442, %v3582
      %v3655 = vadd.f32 %v3443, %v3585
      %v3656 = vadd.f32 %v3444, %v3590
      %v3657 = vadd.f32 %v3445, %v3593
      %v3658 = vadd.f32 %v3446, %v3598
      %v3659 = vadd.f32 %v3447, %v3601
      %v3660 = vadd.f32 %v3448, %v3606
      %v3661 = vadd.f32 %v3449, %v3609
      %v3662 = vadd.f32 %v3450, %v3614
      %v3663 = vadd.f32 %v3451, %v3617
      %v3664 = vadd.f32 %v3452, %v3622
      %v3665 = vadd.f32 %v3453, %v3625
      %v3666 = vadd.f32 %v3454, %v3630
      %v3667 = vadd.f32 %v3455, %v3633
      %v3668 = vrot.slane %v458, 2
      %v3669 = vrot.slane %v459, 2
      %v3670 = vsel %vm1088, %v3668, %v3669
      %v3671 = vrot.slane %v460, 2
      %v3672 = vsel %vm1088, %v3669, %v3671
      %v3675 = vpack.c.bf16 %v3672, %v3670
      %s3676 = scalar_lea.vmem %s1, 24
      %v3677 = vld [vmem:[%s3676] sm:$0x3]
      %v3679 = vsel %vm280, %v3675, 0
      %v3682 = vsel %vm711, %v3677, 0
      %3684 = vmatprep.subr.bf16.mxu0 0
      %3685 = vmatpush1.bf16.msra.mxu0 %v3682
      %3686 = vmatprep.subr.bf16.mxu0 0
      %3687 = vmatpush1.bf16.msra.mxu0 0
      %3688 = vmatprep.subr.bf16.mxu0 0
      %3689 = vmatpush1.bf16.msra.mxu0 0
      %3690 = vmatprep.subr.bf16.mxu0 0
      %3691 = vmatpush1.bf16.msra.mxu0 0
      %3692 = vmatprep.subr.bf16.mxu0 0
      %3693 = vmatpush1.bf16.msra.mxu0 0
      %3694 = vmatprep.subr.bf16.mxu0 0
      %3695 = vmatpush1.bf16.msra.mxu0 0
      %3696 = vmatprep.subr.bf16.mxu0 0
      %3697 = vmatpush1.bf16.msra.mxu0 0
      %3698 = vmatprep.subr.bf16.mxu0 0
      %3699 = vmatpush1.bf16.msra.mxu0 0
      %3700 = vmatprep.subr.bf16.mxu0 0
      %3701 = vmatpush1.bf16.msra.mxu0 0
      %3702 = vmatprep.subr.bf16.mxu0 0
      %3703 = vmatpush1.bf16.msra.mxu0 0
      %3704 = vmatprep.subr.bf16.mxu0 0
      %3705 = vmatpush1.bf16.msra.mxu0 0
      %3706 = vmatprep.subr.bf16.mxu0 0
      %3707 = vmatpush1.bf16.msra.mxu0 0
      %3708 = vmatprep.subr.bf16.mxu0 0
      %3709 = vmatpush1.bf16.msra.mxu0 0
      %3710 = vmatprep.subr.bf16.mxu0 0
      %3711 = vmatpush1.bf16.msra.mxu0 0
      %3712 = vmatprep.subr.bf16.mxu0 0
      %3713 = vmatpush1.bf16.msra.mxu0 0
      %3714 = vmatprep.subr.bf16.mxu0 0
      %3715 = vmatpush1.bf16.msra.mxu0 0
      %3716 = vmatprep.mubr.bf16.mxu0 0
      %3717 = vmatmul.mubr.bf16.gmra.mrb[0].mxu0 %v1226
      %v3718 = vpop.f32.mrb[0].mxu0
      %v3719 = vadd.f32 0.0, %v3718
      %v3720 = vpop.f32.mrb[0].mxu0
      %v3721 = vpop.f32.mrb[0].mxu0
      %v3722 = vadd.f32 0.0, %v3721
      %v3723 = vpop.f32.mrb[0].mxu0
      %3724 = vmatprep.mubr.bf16.mxu0 0
      %3725 = vmatmul.mubr.bf16.gmra.mrb[0].mxu0 %v1229
      %v3726 = vpop.f32.mrb[0].mxu0
      %v3727 = vadd.f32 0.0, %v3726
      %v3728 = vpop.f32.mrb[0].mxu0
      %v3729 = vpop.f32.mrb[0].mxu0
      %v3730 = vadd.f32 0.0, %v3729
      %v3731 = vpop.f32.mrb[0].mxu0
      %3732 = vmatprep.mubr.bf16.mxu0 0
      %3733 = vmatmul.mubr.bf16.gmra.mrb[0].mxu0 %v1232
      %v3734 = vpop.f32.mrb[0].mxu0
      %v3735 = vadd.f32 0.0, %v3734
      %v3736 = vpop.f32.mrb[0].mxu0
      %v3737 = vpop.f32.mrb[0].mxu0
      %v3738 = vadd.f32 0.0, %v3737
      %v3739 = vpop.f32.mrb[0].mxu0
      %3740 = vmatprep.mubr.bf16.mxu0 0
      %3741 = vmatmul.mubr.bf16.gmra.mrb[0].mxu0 %v1235
      %v3742 = vpop.f32.mrb[0].mxu0
      %v3743 = vadd.f32 0.0, %v3742
      %v3744 = vpop.f32.mrb[0].mxu0
      %v3745 = vpop.f32.mrb[0].mxu0
      %v3746 = vadd.f32 0.0, %v3745
      %v3747 = vpop.f32.mrb[0].mxu0
      %3748 = vmatprep.mubr.bf16.mxu0 0
      %3749 = vmatmul.mubr.bf16.gmra.mrb[0].mxu0 %v1238
      %v3750 = vpop.f32.mrb[0].mxu0
      %v3751 = vadd.f32 0.0, %v3750
      %v3752 = vpop.f32.mrb[0].mxu0
      %v3753 = vpop.f32.mrb[0].mxu0
      %v3754 = vadd.f32 0.0, %v3753
      %v3755 = vpop.f32.mrb[0].mxu0
      %3756 = vmatprep.mubr.bf16.mxu0 0
      %3757 = vmatmul.mubr.bf16.gmra.mrb[0].mxu0 %v1241
      %v3758 = vpop.f32.mrb[0].mxu0
      %v3759 = vadd.f32 0.0, %v3758
      %v3760 = vpop.f32.mrb[0].mxu0
      %v3761 = vpop.f32.mrb[0].mxu0
      %v3762 = vadd.f32 0.0, %v3761
      %v3763 = vpop.f32.mrb[0].mxu0
      %3764 = vmatprep.mubr.bf16.mxu0 0
      %3765 = vmatmul.mubr.bf16.gmra.mrb[0].mxu0 %v1244
      %v3766 = vpop.f32.mrb[0].mxu0
      %v3767 = vadd.f32 0.0, %v3766
      %v3768 = vpop.f32.mrb[0].mxu0
      %v3769 = vpop.f32.mrb[0].mxu0
      %v3770 = vadd.f32 0.0, %v3769
      %v3771 = vpop.f32.mrb[0].mxu0
      %3772 = vmatprep.mubr.bf16.mxu0 0
      %3773 = vmatmul.mubr.bf16.gmra.mrb[0].mxu0 %v1247
      %v3774 = vpop.f32.mrb[0].mxu0
      %v3775 = vadd.f32 0.0, %v3774
      %v3776 = vpop.f32.mrb[0].mxu0
      %v3777 = vpop.f32.mrb[0].mxu0
      %v3778 = vadd.f32 0.0, %v3777
      %v3779 = vpop.f32.mrb[0].mxu0
      %3780 = vmatprep.mubr.bf16.mxu0 0
      %3781 = vmatmul.mubr.bf16.gmra.mrb[0].mxu0 %v1250
      %v3782 = vpop.f32.mrb[0].mxu0
      %v3783 = vadd.f32 0.0, %v3782
      %v3784 = vpop.f32.mrb[0].mxu0
      %v3785 = vpop.f32.mrb[0].mxu0
      %v3786 = vadd.f32 0.0, %v3785
      %v3787 = vpop.f32.mrb[0].mxu0
      %3788 = vmatprep.mubr.bf16.mxu0 0
      %3789 = vmatmul.mubr.bf16.gmra.mrb[0].mxu0 %v1253
      %v3790 = vpop.f32.mrb[0].mxu0
      %v3791 = vadd.f32 0.0, %v3790
      %v3792 = vpop.f32.mrb[0].mxu0
      %v3793 = vpop.f32.mrb[0].mxu0
      %v3794 = vadd.f32 0.0, %v3793
      %v3795 = vpop.f32.mrb[0].mxu0
      %3796 = vmatprep.mubr.bf16.mxu0 0
      %3797 = vmatmul.mubr.bf16.gmra.mrb[0].mxu0 %v1256
      %v3798 = vpop.f32.mrb[0].mxu0
      %v3799 = vadd.f32 0.0, %v3798
      %v3800 = vpop.f32.mrb[0].mxu0
      %v3801 = vpop.f32.mrb[0].mxu0
      %v3802 = vadd.f32 0.0, %v3801
      %v3803 = vpop.f32.mrb[0].mxu0
      %3804 = vmatprep.mubr.bf16.mxu0 0
      %3805 = vmatmul.mubr.bf16.gmra.mrb[0].mxu0 %v1259
      %v3806 = vpop.f32.mrb[0].mxu0
      %v3807 = vadd.f32 0.0, %v3806
      %v3808 = vpop.f32.mrb[0].mxu0
      %v3809 = vpop.f32.mrb[0].mxu0
      %v3810 = vadd.f32 0.0, %v3809
      %v3811 = vpop.f32.mrb[0].mxu0
      %3812 = vmatprep.mubr.bf16.mxu0 0
      %3813 = vmatmul.mubr.bf16.gmra.mrb[0].mxu0 %v1262
      %v3814 = vpop.f32.mrb[0].mxu0
      %v3815 = vadd.f32 0.0, %v3814
      %v3816 = vpop.f32.mrb[0].mxu0
      %v3817 = vpop.f32.mrb[0].mxu0
      %v3818 = vadd.f32 0.0, %v3817
      %v3819 = vpop.f32.mrb[0].mxu0
      %3820 = vmatprep.mubr.bf16.mxu0 0
      %3821 = vmatmul.mubr.bf16.gmra.mrb[0].mxu0 %v1265
      %v3822 = vpop.f32.mrb[0].mxu0
      %v3823 = vadd.f32 0.0, %v3822
      %v3824 = vpop.f32.mrb[0].mxu0
      %v3825 = vpop.f32.mrb[0].mxu0
      %v3826 = vadd.f32 0.0, %v3825
      %v3827 = vpop.f32.mrb[0].mxu0
      %3828 = vmatprep.mubr.bf16.mxu0 0
      %3829 = vmatmul.mubr.bf16.gmra.mrb[0].mxu0 %v2638
      %v3830 = vpop.f32.mrb[0].mxu0
      %v3831 = vadd.f32 0.0, %v3830
      %v3832 = vpop.f32.mrb[0].mxu0
      %v3833 = vpop.f32.mrb[0].mxu0
      %v3834 = vadd.f32 0.0, %v3833
      %v3835 = vpop.f32.mrb[0].mxu0
      %3836 = vmatprep.mubr.bf16.mxu0 0
      %3837 = vmatmul.mubr.bf16.gmra.mrb[0].mxu0 %v3679
      %v3838 = vpop.f32.mrb[0].mxu0
      %v3839 = vadd.f32 0.0, %v3838
      %v3840 = vpop.f32.mrb[0].mxu0
      %v3841 = vpop.f32.mrb[0].mxu0
      %v3842 = vadd.f32 0.0, %v3841
      %v3843 = vpop.f32.mrb[0].mxu0
      %3844 = vdwg.mxu0
      %v3845 = vadd.f32 %v3636, %v3719
      %v3846 = vadd.f32 %v3637, %v3722
      %v3847 = vadd.f32 %v3638, %v3727
      %v3848 = vadd.f32 %v3639, %v3730
      %v3849 = vadd.f32 %v3640, %v3735
      %v3850 = vadd.f32 %v3641, %v3738
      %v3851 = vadd.f32 %v3642, %v3743
      %v3852 = vadd.f32 %v3643, %v3746
      %v3853 = vadd.f32 %v3644, %v3751
      %v3854 = vadd.f32 %v3645, %v3754
      %v3855 = vadd.f32 %v3646, %v3759
      %v3856 = vadd.f32 %v3647, %v3762
      %v3857 = vadd.f32 %v3648, %v3767
      %v3858 = vadd.f32 %v3649, %v3770
      %v3859 = vadd.f32 %v3650, %v3775
      %v3860 = vadd.f32 %v3651, %v3778
      %v3861 = vadd.f32 %v3652, %v3783
      %v3862 = vadd.f32 %v3653, %v3786
      %v3863 = vadd.f32 %v3654, %v3791
      %v3864 = vadd.f32 %v3655, %v3794
      %v3865 = vadd.f32 %v3656, %v3799
      %v3866 = vadd.f32 %v3657, %v3802
      %v3867 = vadd.f32 %v3658, %v3807
      %v3868 = vadd.f32 %v3659, %v3810
      %v3869 = vadd.f32 %v3660, %v3815
      %v3870 = vadd.f32 %v3661, %v3818
      %v3871 = vadd.f32 %v3662, %v3823
      %v3872 = vadd.f32 %v3663, %v3826
      %v3873 = vadd.f32 %v3664, %v3831
      %v3874 = vadd.f32 %v3665, %v3834
      %v3875 = vadd.f32 %v3666, %v3839
      %v3876 = vadd.f32 %v3667, %v3842
      %v3877 = vrot.slane %v458, 3
      %v3878 = vrot.slane %v459, 3
      %v3879 = vsel %vm1463, %v3877, %v3878
      %v3880 = vrot.slane %v460, 3
      %v3881 = vsel %vm1463, %v3878, %v3880
      %v3884 = vpack.c.bf16 %v3881, %v3879
      %s3885 = scalar_lea.vmem %s1, 26
      %v3886 = vld [vmem:[%s3885] sm:$0x3]
      %v3888 = vsel %vm280, %v3884, 0
      %v3891 = vsel %vm711, %v3886, 0
      %3893 = vmatprep.subr.bf16.mxu0 0
      %3894 = vmatpush1.bf16.msra.mxu0 %v3891
      %3895 = vmatprep.subr.bf16.mxu0 0
      %3896 = vmatpush1.bf16.msra.mxu0 0
      %3897 = vmatprep.subr.bf16.mxu0 0
      %3898 = vmatpush1.bf16.msra.mxu0 0
      %3899 = vmatprep.subr.bf16.mxu0 0
      %3900 = vmatpush1.bf16.msra.mxu0 0
      %3901 = vmatprep.subr.bf16.mxu0 0
      %3902 = vmatpush1.bf16.msra.mxu0 0
      %3903 = vmatprep.subr.bf16.mxu0 0
      %3904 = vmatpush1.bf16.msra.mxu0 0
      %3905 = vmatprep.subr.bf16.mxu0 0
      %3906 = vmatpush1.bf16.msra.mxu0 0
      %3907 = vmatprep.subr.bf16.mxu0 0
      %3908 = vmatpush1.bf16.msra.mxu0 0
      %3909 = vmatprep.subr.bf16.mxu0 0
      %3910 = vmatpush1.bf16.msra.mxu0 0
      %3911 = vmatprep.subr.bf16.mxu0 0
      %3912 = vmatpush1.bf16.msra.mxu0 0
      %3913 = vmatprep.subr.bf16.mxu0 0
      %3914 = vmatpush1.bf16.msra.mxu0 0
      %3915 = vmatprep.subr.bf16.mxu0 0
      %3916 = vmatpush1.bf16.msra.mxu0 0
      %3917 = vmatprep.subr.bf16.mxu0 0
      %3918 = vmatpush1.bf16.msra.mxu0 0
      %3919 = vmatprep.subr.bf16.mxu0 0
      %3920 = vmatpush1.bf16.msra.mxu0 0
      %3921 = vmatprep.subr.bf16.mxu0 0
      %3922 = vmatpush1.bf16.msra.mxu0 0
      %3923 = vmatprep.subr.bf16.mxu0 0
      %3924 = vmatpush1.bf16.msra.mxu0 0
      %3925 = vmatprep.mubr.bf16.mxu0 0
      %3926 = vmatmul.mubr.bf16.gmra.mrb[0].mxu0 %v1601
      %v3927 = vpop.f32.mrb[0].mxu0
      %v3928 = vadd.f32 0.0, %v3927
      %v3929 = vpop.f32.mrb[0].mxu0
      %v3930 = vpop.f32.mrb[0].mxu0
      %v3931 = vadd.f32 0.0, %v3930
      %v3932 = vpop.f32.mrb[0].mxu0
      %3933 = vmatprep.mubr.bf16.mxu0 0
      %3934 = vmatmul.mubr.bf16.gmra.mrb[0].mxu0 %v1604
      %v3935 = vpop.f32.mrb[0].mxu0
      %v3936 = vadd.f32 0.0, %v3935
      %v3937 = vpop.f32.mrb[0].mxu0
      %v3938 = vpop.f32.mrb[0].mxu0
      %v3939 = vadd.f32 0.0, %v3938
      %v3940 = vpop.f32.mrb[0].mxu0
      %3941 = vmatprep.mubr.bf16.mxu0 0
      %3942 = vmatmul.mubr.bf16.gmra.mrb[0].mxu0 %v1607
      %v3943 = vpop.f32.mrb[0].mxu0
      %v3944 = vadd.f32 0.0, %v3943
      %v3945 = vpop.f32.mrb[0].mxu0
      %v3946 = vpop.f32.mrb[0].mxu0
      %v3947 = vadd.f32 0.0, %v3946
      %v3948 = vpop.f32.mrb[0].mxu0
      %3949 = vmatprep.mubr.bf16.mxu0 0
      %3950 = vmatmul.mubr.bf16.gmra.mrb[0].mxu0 %v1610
      %v3951 = vpop.f32.mrb[0].mxu0
      %v3952 = vadd.f32 0.0, %v3951
      %v3953 = vpop.f32.mrb[0].mxu0
      %v3954 = vpop.f32.mrb[0].mxu0
      %v3955 = vadd.f32 0.0, %v3954
      %v3956 = vpop.f32.mrb[0].mxu0
      %3957 = vmatprep.mubr.bf16.mxu0 0
      %3958 = vmatmul.mubr.bf16.gmra.mrb[0].mxu0 %v1613
      %v3959 = vpop.f32.mrb[0].mxu0
      %v3960 = vadd.f32 0.0, %v3959
      %v3961 = vpop.f32.mrb[0].mxu0
      %v3962 = vpop.f32.mrb[0].mxu0
      %v3963 = vadd.f32 0.0, %v3962
      %v3964 = vpop.f32.mrb[0].mxu0
      %3965 = vmatprep.mubr.bf16.mxu0 0
      %3966 = vmatmul.mubr.bf16.gmra.mrb[0].mxu0 %v1616
      %v3967 = vpop.f32.mrb[0].mxu0
      %v3968 = vadd.f32 0.0, %v3967
      %v3969 = vpop.f32.mrb[0].mxu0
      %v3970 = vpop.f32.mrb[0].mxu0
      %v3971 = vadd.f32 0.0, %v3970
      %v3972 = vpop.f32.mrb[0].mxu0
      %3973 = vmatprep.mubr.bf16.mxu0 0
      %3974 = vmatmul.mubr.bf16.gmra.mrb[0].mxu0 %v1619
      %v3975 = vpop.f32.mrb[0].mxu0
      %v3976 = vadd.f32 0.0, %v3975
      %v3977 = vpop.f32.mrb[0].mxu0
      %v3978 = vpop.f32.mrb[0].mxu0
      %v3979 = vadd.f32 0.0, %v3978
      %v3980 = vpop.f32.mrb[0].mxu0
      %3981 = vmatprep.mubr.bf16.mxu0 0
      %3982 = vmatmul.mubr.bf16.gmra.mrb[0].mxu0 %v1622
      %v3983 = vpop.f32.mrb[0].mxu0
      %v3984 = vadd.f32 0.0, %v3983
      %v3985 = vpop.f32.mrb[0].mxu0
      %v3986 = vpop.f32.mrb[0].mxu0
      %v3987 = vadd.f32 0.0, %v3986
      %v3988 = vpop.f32.mrb[0].mxu0
      %3989 = vmatprep.mubr.bf16.mxu0 0
      %3990 = vmatmul.mubr.bf16.gmra.mrb[0].mxu0 %v1625
      %v3991 = vpop.f32.mrb[0].mxu0
      %v3992 = vadd.f32 0.0, %v3991
      %v3993 = vpop.f32.mrb[0].mxu0
      %v3994 = vpop.f32.mrb[0].mxu0
      %v3995 = vadd.f32 0.0, %v3994
      %v3996 = vpop.f32.mrb[0].mxu0
      %3997 = vmatprep.mubr.bf16.mxu0 0
      %3998 = vmatmul.mubr.bf16.gmra.mrb[0].mxu0 %v1628
      %v3999 = vpop.f32.mrb[0].mxu0
      %v4000 = vadd.f32 0.0, %v3999
      %v4001 = vpop.f32.mrb[0].mxu0
      %v4002 = vpop.f32.mrb[0].mxu0
      %v4003 = vadd.f32 0.0, %v4002
      %v4004 = vpop.f32.mrb[0].mxu0
      %4005 = vmatprep.mubr.bf16.mxu0 0
      %4006 = vmatmul.mubr.bf16.gmra.mrb[0].mxu0 %v1631
      %v4007 = vpop.f32.mrb[0].mxu0
      %v4008 = vadd.f32 0.0, %v4007
      %v4009 = vpop.f32.mrb[0].mxu0
      %v4010 = vpop.f32.mrb[0].mxu0
      %v4011 = vadd.f32 0.0, %v4010
      %v4012 = vpop.f32.mrb[0].mxu0
      %4013 = vmatprep.mubr.bf16.mxu0 0
      %4014 = vmatmul.mubr.bf16.gmra.mrb[0].mxu0 %v1634
      %v4015 = vpop.f32.mrb[0].mxu0
      %v4016 = vadd.f32 0.0, %v4015
      %v4017 = vpop.f32.mrb[0].mxu0
      %v4018 = vpop.f32.mrb[0].mxu0
      %v4019 = vadd.f32 0.0, %v4018
      %v4020 = vpop.f32.mrb[0].mxu0
      %4021 = vmatprep.mubr.bf16.mxu0 0
      %4022 = vmatmul.mubr.bf16.gmra.mrb[0].mxu0 %v1637
      %v4023 = vpop.f32.mrb[0].mxu0
      %v4024 = vadd.f32 0.0, %v4023
      %v4025 = vpop.f32.mrb[0].mxu0
      %v4026 = vpop.f32.mrb[0].mxu0
      %v4027 = vadd.f32 0.0, %v4026
      %v4028 = vpop.f32.mrb[0].mxu0
      %4029 = vmatprep.mubr.bf16.mxu0 0
      %4030 = vmatmul.mubr.bf16.gmra.mrb[0].mxu0 %v1640
      %v4031 = vpop.f32.mrb[0].mxu0
      %v4032 = vadd.f32 0.0, %v4031
      %v4033 = vpop.f32.mrb[0].mxu0
      %v4034 = vpop.f32.mrb[0].mxu0
      %v4035 = vadd.f32 0.0, %v4034
      %v4036 = vpop.f32.mrb[0].mxu0
      %4037 = vmatprep.mubr.bf16.mxu0 0
      %4038 = vmatmul.mubr.bf16.gmra.mrb[0].mxu0 %v2847
      %v4039 = vpop.f32.mrb[0].mxu0
      %v4040 = vadd.f32 0.0, %v4039
      %v4041 = vpop.f32.mrb[0].mxu0
      %v4042 = vpop.f32.mrb[0].mxu0
      %v4043 = vadd.f32 0.0, %v4042
      %v4044 = vpop.f32.mrb[0].mxu0
      %4045 = vmatprep.mubr.bf16.mxu0 0
      %4046 = vmatmul.mubr.bf16.gmra.mrb[0].mxu0 %v3888
      %v4047 = vpop.f32.mrb[0].mxu0
      %v4048 = vadd.f32 0.0, %v4047
      %v4049 = vpop.f32.mrb[0].mxu0
      %v4050 = vpop.f32.mrb[0].mxu0
      %v4051 = vadd.f32 0.0, %v4050
      %v4052 = vpop.f32.mrb[0].mxu0
      %4053 = vdwg.mxu0
      %v4054 = vadd.f32 %v3845, %v3928
      %v4055 = vadd.f32 %v3846, %v3931
      %v4056 = vadd.f32 %v3847, %v3936
      %v4057 = vadd.f32 %v3848, %v3939
      %v4058 = vadd.f32 %v3849, %v3944
      %v4059 = vadd.f32 %v3850, %v3947
      %v4060 = vadd.f32 %v3851, %v3952
      %v4061 = vadd.f32 %v3852, %v3955
      %v4062 = vadd.f32 %v3853, %v3960
      %v4063 = vadd.f32 %v3854, %v3963
      %v4064 = vadd.f32 %v3855, %v3968
      %v4065 = vadd.f32 %v3856, %v3971
      %v4066 = vadd.f32 %v3857, %v3976
      %v4067 = vadd.f32 %v3858, %v3979
      %v4068 = vadd.f32 %v3859, %v3984
      %v4069 = vadd.f32 %v3860, %v3987
      %v4070 = vadd.f32 %v3861, %v3992
      %v4071 = vadd.f32 %v3862, %v3995
      %v4072 = vadd.f32 %v3863, %v4000
      %v4073 = vadd.f32 %v3864, %v4003
      %v4074 = vadd.f32 %v3865, %v4008
      %v4075 = vadd.f32 %v3866, %v4011
      %v4076 = vadd.f32 %v3867, %v4016
      %v4077 = vadd.f32 %v3868, %v4019
      %v4078 = vadd.f32 %v3869, %v4024
      %v4079 = vadd.f32 %v3870, %v4027
      %v4080 = vadd.f32 %v3871, %v4032
      %v4081 = vadd.f32 %v3872, %v4035
      %v4082 = vadd.f32 %v3873, %v4040
      %v4083 = vadd.f32 %v3874, %v4043
      %v4084 = vadd.f32 %v3875, %v4048
      %v4085 = vadd.f32 %v3876, %v4051
      %v4086 = vrot.slane %v458, 4
      %v4087 = vrot.slane %v459, 4
      %v4088 = vsel %vm1838, %v4086, %v4087
      %v4089 = vrot.slane %v460, 4
      %v4090 = vsel %vm1838, %v4087, %v4089
      %v4093 = vpack.c.bf16 %v4090, %v4088
      %s4094 = scalar_lea.vmem %s1, 28
      %v4095 = vld [vmem:[%s4094] sm:$0x3]
      %v4097 = vsel %vm280, %v4093, 0
      %v4100 = vsel %vm711, %v4095, 0
      %4102 = vmatprep.subr.bf16.mxu0 0
      %4103 = vmatpush1.bf16.msra.mxu0 %v4100
      %4104 = vmatprep.subr.bf16.mxu0 0
      %4105 = vmatpush1.bf16.msra.mxu0 0
      %4106 = vmatprep.subr.bf16.mxu0 0
      %4107 = vmatpush1.bf16.msra.mxu0 0
      %4108 = vmatprep.subr.bf16.mxu0 0
      %4109 = vmatpush1.bf16.msra.mxu0 0
      %4110 = vmatprep.subr.bf16.mxu0 0
      %4111 = vmatpush1.bf16.msra.mxu0 0
      %4112 = vmatprep.subr.bf16.mxu0 0
      %4113 = vmatpush1.bf16.msra.mxu0 0
      %4114 = vmatprep.subr.bf16.mxu0 0
      %4115 = vmatpush1.bf16.msra.mxu0 0
      %4116 = vmatprep.subr.bf16.mxu0 0
      %4117 = vmatpush1.bf16.msra.mxu0 0
      %4118 = vmatprep.subr.bf16.mxu0 0
      %4119 = vmatpush1.bf16.msra.mxu0 0
      %4120 = vmatprep.subr.bf16.mxu0 0
      %4121 = vmatpush1.bf16.msra.mxu0 0
      %4122 = vmatprep.subr.bf16.mxu0 0
      %4123 = vmatpush1.bf16.msra.mxu0 0
      %4124 = vmatprep.subr.bf16.mxu0 0
      %4125 = vmatpush1.bf16.msra.mxu0 0
      %4126 = vmatprep.subr.bf16.mxu0 0
      %4127 = vmatpush1.bf16.msra.mxu0 0
      %4128 = vmatprep.subr.bf16.mxu0 0
      %4129 = vmatpush1.bf16.msra.mxu0 0
      %4130 = vmatprep.subr.bf16.mxu0 0
      %4131 = vmatpush1.bf16.msra.mxu0 0
      %4132 = vmatprep.subr.bf16.mxu0 0
      %4133 = vmatpush1.bf16.msra.mxu0 0
      %4134 = vmatprep.mubr.bf16.mxu0 0
      %4135 = vmatmul.mubr.bf16.gmra.mrb[0].mxu0 %v1976
      %v4136 = vpop.f32.mrb[0].mxu0
      %v4137 = vadd.f32 0.0, %v4136
      %v4138 = vpop.f32.mrb[0].mxu0
      %v4139 = vpop.f32.mrb[0].mxu0
      %v4140 = vadd.f32 0.0, %v4139
      %v4141 = vpop.f32.mrb[0].mxu0
      %4142 = vmatprep.mubr.bf16.mxu0 0
      %4143 = vmatmul.mubr.bf16.gmra.mrb[0].mxu0 %v1979
      %v4144 = vpop.f32.mrb[0].mxu0
      %v4145 = vadd.f32 0.0, %v4144
      %v4146 = vpop.f32.mrb[0].mxu0
      %v4147 = vpop.f32.mrb[0].mxu0
      %v4148 = vadd.f32 0.0, %v4147
      %v4149 = vpop.f32.mrb[0].mxu0
      %4150 = vmatprep.mubr.bf16.mxu0 0
      %4151 = vmatmul.mubr.bf16.gmra.mrb[0].mxu0 %v1982
      %v4152 = vpop.f32.mrb[0].mxu0
      %v4153 = vadd.f32 0.0, %v4152
      %v4154 = vpop.f32.mrb[0].mxu0
      %v4155 = vpop.f32.mrb[0].mxu0
      %v4156 = vadd.f32 0.0, %v4155
      %v4157 = vpop.f32.mrb[0].mxu0
      %4158 = vmatprep.mubr.bf16.mxu0 0
      %4159 = vmatmul.mubr.bf16.gmra.mrb[0].mxu0 %v1985
      %v4160 = vpop.f32.mrb[0].mxu0
      %v4161 = vadd.f32 0.0, %v4160
      %v4162 = vpop.f32.mrb[0].mxu0
      %v4163 = vpop.f32.mrb[0].mxu0
      %v4164 = vadd.f32 0.0, %v4163
      %v4165 = vpop.f32.mrb[0].mxu0
      %4166 = vmatprep.mubr.bf16.mxu0 0
      %4167 = vmatmul.mubr.bf16.gmra.mrb[0].mxu0 %v1988
      %v4168 = vpop.f32.mrb[0].mxu0
      %v4169 = vadd.f32 0.0, %v4168
      %v4170 = vpop.f32.mrb[0].mxu0
      %v4171 = vpop.f32.mrb[0].mxu0
      %v4172 = vadd.f32 0.0, %v4171
      %v4173 = vpop.f32.mrb[0].mxu0
      %4174 = vmatprep.mubr.bf16.mxu0 0
      %4175 = vmatmul.mubr.bf16.gmra.mrb[0].mxu0 %v1991
      %v4176 = vpop.f32.mrb[0].mxu0
      %v4177 = vadd.f32 0.0, %v4176
      %v4178 = vpop.f32.mrb[0].mxu0
      %v4179 = vpop.f32.mrb[0].mxu0
      %v4180 = vadd.f32 0.0, %v4179
      %v4181 = vpop.f32.mrb[0].mxu0
      %4182 = vmatprep.mubr.bf16.mxu0 0
      %4183 = vmatmul.mubr.bf16.gmra.mrb[0].mxu0 %v1994
      %v4184 = vpop.f32.mrb[0].mxu0
      %v4185 = vadd.f32 0.0, %v4184
      %v4186 = vpop.f32.mrb[0].mxu0
      %v4187 = vpop.f32.mrb[0].mxu0
      %v4188 = vadd.f32 0.0, %v4187
      %v4189 = vpop.f32.mrb[0].mxu0
      %4190 = vmatprep.mubr.bf16.mxu0 0
      %4191 = vmatmul.mubr.bf16.gmra.mrb[0].mxu0 %v1997
      %v4192 = vpop.f32.mrb[0].mxu0
      %v4193 = vadd.f32 0.0, %v4192
      %v4194 = vpop.f32.mrb[0].mxu0
      %v4195 = vpop.f32.mrb[0].mxu0
      %v4196 = vadd.f32 0.0, %v4195
      %v4197 = vpop.f32.mrb[0].mxu0
      %4198 = vmatprep.mubr.bf16.mxu0 0
      %4199 = vmatmul.mubr.bf16.gmra.mrb[0].mxu0 %v2000
      %v4200 = vpop.f32.mrb[0].mxu0
      %v4201 = vadd.f32 0.0, %v4200
      %v4202 = vpop.f32.mrb[0].mxu0
      %v4203 = vpop.f32.mrb[0].mxu0
      %v4204 = vadd.f32 0.0, %v4203
      %v4205 = vpop.f32.mrb[0].mxu0
      %4206 = vmatprep.mubr.bf16.mxu0 0
      %4207 = vmatmul.mubr.bf16.gmra.mrb[0].mxu0 %v2003
      %v4208 = vpop.f32.mrb[0].mxu0
      %v4209 = vadd.f32 0.0, %v4208
      %v4210 = vpop.f32.mrb[0].mxu0
      %v4211 = vpop.f32.mrb[0].mxu0
      %v4212 = vadd.f32 0.0, %v4211
      %v4213 = vpop.f32.mrb[0].mxu0
      %4214 = vmatprep.mubr.bf16.mxu0 0
      %4215 = vmatmul.mubr.bf16.gmra.mrb[0].mxu0 %v2006
      %v4216 = vpop.f32.mrb[0].mxu0
      %v4217 = vadd.f32 0.0, %v4216
      %v4218 = vpop.f32.mrb[0].mxu0
      %v4219 = vpop.f32.mrb[0].mxu0
      %v4220 = vadd.f32 0.0, %v4219
      %v4221 = vpop.f32.mrb[0].mxu0
      %4222 = vmatprep.mubr.bf16.mxu0 0
      %4223 = vmatmul.mubr.bf16.gmra.mrb[0].mxu0 %v2009
      %v4224 = vpop.f32.mrb[0].mxu0
      %v4225 = vadd.f32 0.0, %v4224
      %v4226 = vpop.f32.mrb[0].mxu0
      %v4227 = vpop.f32.mrb[0].mxu0
      %v4228 = vadd.f32 0.0, %v4227
      %v4229 = vpop.f32.mrb[0].mxu0
      %4230 = vmatprep.mubr.bf16.mxu0 0
      %4231 = vmatmul.mubr.bf16.gmra.mrb[0].mxu0 %v2012
      %v4232 = vpop.f32.mrb[0].mxu0
      %v4233 = vadd.f32 0.0, %v4232
      %v4234 = vpop.f32.mrb[0].mxu0
      %v4235 = vpop.f32.mrb[0].mxu0
      %v4236 = vadd.f32 0.0, %v4235
      %v4237 = vpop.f32.mrb[0].mxu0
      %4238 = vmatprep.mubr.bf16.mxu0 0
      %4239 = vmatmul.mubr.bf16.gmra.mrb[0].mxu0 %v2015
      %v4240 = vpop.f32.mrb[0].mxu0
      %v4241 = vadd.f32 0.0, %v4240
      %v4242 = vpop.f32.mrb[0].mxu0
      %v4243 = vpop.f32.mrb[0].mxu0
      %v4244 = vadd.f32 0.0, %v4243
      %v4245 = vpop.f32.mrb[0].mxu0
      %4246 = vmatprep.mubr.bf16.mxu0 0
      %4247 = vmatmul.mubr.bf16.gmra.mrb[0].mxu0 %v3056
      %v4248 = vpop.f32.mrb[0].mxu0
      %v4249 = vadd.f32 0.0, %v4248
      %v4250 = vpop.f32.mrb[0].mxu0
      %v4251 = vpop.f32.mrb[0].mxu0
      %v4252 = vadd.f32 0.0, %v4251
      %v4253 = vpop.f32.mrb[0].mxu0
      %4254 = vmatprep.mubr.bf16.mxu0 0
      %4255 = vmatmul.mubr.bf16.gmra.mrb[0].mxu0 %v4097
      %v4256 = vpop.f32.mrb[0].mxu0
      %v4257 = vadd.f32 0.0, %v4256
      %v4258 = vpop.f32.mrb[0].mxu0
      %v4259 = vpop.f32.mrb[0].mxu0
      %v4260 = vadd.f32 0.0, %v4259
      %v4261 = vpop.f32.mrb[0].mxu0
      %4262 = vdwg.mxu0
      %v4263 = vadd.f32 %v4054, %v4137
      %v4264 = vadd.f32 %v4055, %v4140
      %v4265 = vadd.f32 %v4056, %v4145
      %v4266 = vadd.f32 %v4057, %v4148
      %v4267 = vadd.f32 %v4058, %v4153
      %v4268 = vadd.f32 %v4059, %v4156
      %v4269 = vadd.f32 %v4060, %v4161
      %v4270 = vadd.f32 %v4061, %v4164
      %v4271 = vadd.f32 %v4062, %v4169
      %v4272 = vadd.f32 %v4063, %v4172
      %v4273 = vadd.f32 %v4064, %v4177
      %v4274 = vadd.f32 %v4065, %v4180
      %v4275 = vadd.f32 %v4066, %v4185
      %v4276 = vadd.f32 %v4067, %v4188
      %v4277 = vadd.f32 %v4068, %v4193
      %v4278 = vadd.f32 %v4069, %v4196
      %v4279 = vadd.f32 %v4070, %v4201
      %v4280 = vadd.f32 %v4071, %v4204
      %v4281 = vadd.f32 %v4072, %v4209
      %v4282 = vadd.f32 %v4073, %v4212
      %v4283 = vadd.f32 %v4074, %v4217
      %v4284 = vadd.f32 %v4075, %v4220
      %v4285 = vadd.f32 %v4076, %v4225
      %v4286 = vadd.f32 %v4077, %v4228
      %v4287 = vadd.f32 %v4078, %v4233
      %v4288 = vadd.f32 %v4079, %v4236
      %v4289 = vadd.f32 %v4080, %v4241
      %v4290 = vadd.f32 %v4081, %v4244
      %v4291 = vadd.f32 %v4082, %v4249
      %v4292 = vadd.f32 %v4083, %v4252
      %v4293 = vadd.f32 %v4084, %v4257
      %v4294 = vadd.f32 %v4085, %v4260
      %v4295 = vpack.c.bf16 %v462, %v461
      %s4296 = scalar_lea.vmem %s1, 30
      %v4297 = vld [vmem:[%s4296] sm:$0x3]
      %v4299 = vsel %vm280, %v4295, 0
      %v4302 = vsel %vm711, %v4297, 0
      %4304 = vmatprep.subr.bf16.mxu0 0
      %4305 = vmatpush1.bf16.msra.mxu0 %v4302
      %4306 = vmatprep.subr.bf16.mxu0 0
      %4307 = vmatpush1.bf16.msra.mxu0 0
      %4308 = vmatprep.subr.bf16.mxu0 0
      %4309 = vmatpush1.bf16.msra.mxu0 0
      %4310 = vmatprep.subr.bf16.mxu0 0
      %4311 = vmatpush1.bf16.msra.mxu0 0
      %4312 = vmatprep.subr.bf16.mxu0 0
      %4313 = vmatpush1.bf16.msra.mxu0 0
      %4314 = vmatprep.subr.bf16.mxu0 0
      %4315 = vmatpush1.bf16.msra.mxu0 0
      %4316 = vmatprep.subr.bf16.mxu0 0
      %4317 = vmatpush1.bf16.msra.mxu0 0
      %4318 = vmatprep.subr.bf16.mxu0 0
      %4319 = vmatpush1.bf16.msra.mxu0 0
      %4320 = vmatprep.subr.bf16.mxu0 0
      %4321 = vmatpush1.bf16.msra.mxu0 0
      %4322 = vmatprep.subr.bf16.mxu0 0
      %4323 = vmatpush1.bf16.msra.mxu0 0
      %4324 = vmatprep.subr.bf16.mxu0 0
      %4325 = vmatpush1.bf16.msra.mxu0 0
      %4326 = vmatprep.subr.bf16.mxu0 0
      %4327 = vmatpush1.bf16.msra.mxu0 0
      %4328 = vmatprep.subr.bf16.mxu0 0
      %4329 = vmatpush1.bf16.msra.mxu0 0
      %4330 = vmatprep.subr.bf16.mxu0 0
      %4331 = vmatpush1.bf16.msra.mxu0 0
      %4332 = vmatprep.subr.bf16.mxu0 0
      %4333 = vmatpush1.bf16.msra.mxu0 0
      %4334 = vmatprep.subr.bf16.mxu0 0
      %4335 = vmatpush1.bf16.msra.mxu0 0
      %4336 = vmatprep.mubr.bf16.mxu0 0
      %4337 = vmatmul.mubr.bf16.gmra.mrb[0].mxu0 %v886
      %v4338 = vpop.f32.mrb[0].mxu0
      %v4339 = vadd.f32 0.0, %v4338
      %v4340 = vpop.f32.mrb[0].mxu0
      %v4341 = vpop.f32.mrb[0].mxu0
      %v4342 = vadd.f32 0.0, %v4341
      %v4343 = vpop.f32.mrb[0].mxu0
      %4344 = vmatprep.mubr.bf16.mxu0 0
      %4345 = vmatmul.mubr.bf16.gmra.mrb[0].mxu0 %v889
      %v4346 = vpop.f32.mrb[0].mxu0
      %v4347 = vadd.f32 0.0, %v4346
      %v4348 = vpop.f32.mrb[0].mxu0
      %v4349 = vpop.f32.mrb[0].mxu0
      %v4350 = vadd.f32 0.0, %v4349
      %v4351 = vpop.f32.mrb[0].mxu0
      %4352 = vmatprep.mubr.bf16.mxu0 0
      %4353 = vmatmul.mubr.bf16.gmra.mrb[0].mxu0 %v892
      %v4354 = vpop.f32.mrb[0].mxu0
      %v4355 = vadd.f32 0.0, %v4354
      %v4356 = vpop.f32.mrb[0].mxu0
      %v4357 = vpop.f32.mrb[0].mxu0
      %v4358 = vadd.f32 0.0, %v4357
      %v4359 = vpop.f32.mrb[0].mxu0
      %4360 = vmatprep.mubr.bf16.mxu0 0
      %4361 = vmatmul.mubr.bf16.gmra.mrb[0].mxu0 %v895
      %v4362 = vpop.f32.mrb[0].mxu0
      %v4363 = vadd.f32 0.0, %v4362
      %v4364 = vpop.f32.mrb[0].mxu0
      %v4365 = vpop.f32.mrb[0].mxu0
      %v4366 = vadd.f32 0.0, %v4365
      %v4367 = vpop.f32.mrb[0].mxu0
      %4368 = vmatprep.mubr.bf16.mxu0 0
      %4369 = vmatmul.mubr.bf16.gmra.mrb[0].mxu0 %v898
      %v4370 = vpop.f32.mrb[0].mxu0
      %v4371 = vadd.f32 0.0, %v4370
      %v4372 = vpop.f32.mrb[0].mxu0
      %v4373 = vpop.f32.mrb[0].mxu0
      %v4374 = vadd.f32 0.0, %v4373
      %v4375 = vpop.f32.mrb[0].mxu0
      %4376 = vmatprep.mubr.bf16.mxu0 0
      %4377 = vmatmul.mubr.bf16.gmra.mrb[0].mxu0 %v901
      %v4378 = vpop.f32.mrb[0].mxu0
      %v4379 = vadd.f32 0.0, %v4378
      %v4380 = vpop.f32.mrb[0].mxu0
      %v4381 = vpop.f32.mrb[0].mxu0
      %v4382 = vadd.f32 0.0, %v4381
      %v4383 = vpop.f32.mrb[0].mxu0
      %4384 = vmatprep.mubr.bf16.mxu0 0
      %4385 = vmatmul.mubr.bf16.gmra.mrb[0].mxu0 %v904
      %v4386 = vpop.f32.mrb[0].mxu0
      %v4387 = vadd.f32 0.0, %v4386
      %v4388 = vpop.f32.mrb[0].mxu0
      %v4389 = vpop.f32.mrb[0].mxu0
      %v4390 = vadd.f32 0.0, %v4389
      %v4391 = vpop.f32.mrb[0].mxu0
      %4392 = vmatprep.mubr.bf16.mxu0 0
      %4393 = vmatmul.mubr.bf16.gmra.mrb[0].mxu0 %v907
      %v4394 = vpop.f32.mrb[0].mxu0
      %v4395 = vadd.f32 0.0, %v4394
      %v4396 = vpop.f32.mrb[0].mxu0
      %v4397 = vpop.f32.mrb[0].mxu0
      %v4398 = vadd.f32 0.0, %v4397
      %v4399 = vpop.f32.mrb[0].mxu0
      %4400 = vmatprep.mubr.bf16.mxu0 0
      %4401 = vmatmul.mubr.bf16.gmra.mrb[0].mxu0 %v910
      %v4402 = vpop.f32.mrb[0].mxu0
      %v4403 = vadd.f32 0.0, %v4402
      %v4404 = vpop.f32.mrb[0].mxu0
      %v4405 = vpop.f32.mrb[0].mxu0
      %v4406 = vadd.f32 0.0, %v4405
      %v4407 = vpop.f32.mrb[0].mxu0
      %4408 = vmatprep.mubr.bf16.mxu0 0
      %4409 = vmatmul.mubr.bf16.gmra.mrb[0].mxu0 %v913
      %v4410 = vpop.f32.mrb[0].mxu0
      %v4411 = vadd.f32 0.0, %v4410
      %v4412 = vpop.f32.mrb[0].mxu0
      %v4413 = vpop.f32.mrb[0].mxu0
      %v4414 = vadd.f32 0.0, %v4413
      %v4415 = vpop.f32.mrb[0].mxu0
      %4416 = vmatprep.mubr.bf16.mxu0 0
      %4417 = vmatmul.mubr.bf16.gmra.mrb[0].mxu0 %v916
      %v4418 = vpop.f32.mrb[0].mxu0
      %v4419 = vadd.f32 0.0, %v4418
      %v4420 = vpop.f32.mrb[0].mxu0
      %v4421 = vpop.f32.mrb[0].mxu0
      %v4422 = vadd.f32 0.0, %v4421
      %v4423 = vpop.f32.mrb[0].mxu0
      %4424 = vmatprep.mubr.bf16.mxu0 0
      %4425 = vmatmul.mubr.bf16.gmra.mrb[0].mxu0 %v919
      %v4426 = vpop.f32.mrb[0].mxu0
      %v4427 = vadd.f32 0.0, %v4426
      %v4428 = vpop.f32.mrb[0].mxu0
      %v4429 = vpop.f32.mrb[0].mxu0
      %v4430 = vadd.f32 0.0, %v4429
      %v4431 = vpop.f32.mrb[0].mxu0
      %4432 = vmatprep.mubr.bf16.mxu0 0
      %4433 = vmatmul.mubr.bf16.gmra.mrb[0].mxu0 %v922
      %v4434 = vpop.f32.mrb[0].mxu0
      %v4435 = vadd.f32 0.0, %v4434
      %v4436 = vpop.f32.mrb[0].mxu0
      %v4437 = vpop.f32.mrb[0].mxu0
      %v4438 = vadd.f32 0.0, %v4437
      %v4439 = vpop.f32.mrb[0].mxu0
      %4440 = vmatprep.mubr.bf16.mxu0 0
      %4441 = vmatmul.mubr.bf16.gmra.mrb[0].mxu0 %v2217
      %v4442 = vpop.f32.mrb[0].mxu0
      %v4443 = vadd.f32 0.0, %v4442
      %v4444 = vpop.f32.mrb[0].mxu0
      %v4445 = vpop.f32.mrb[0].mxu0
      %v4446 = vadd.f32 0.0, %v4445
      %v4447 = vpop.f32.mrb[0].mxu0
      %4448 = vmatprep.mubr.bf16.mxu0 0
      %4449 = vmatmul.mubr.bf16.gmra.mrb[0].mxu0 %v3258
      %v4450 = vpop.f32.mrb[0].mxu0
      %v4451 = vadd.f32 0.0, %v4450
      %v4452 = vpop.f32.mrb[0].mxu0
      %v4453 = vpop.f32.mrb[0].mxu0
      %v4454 = vadd.f32 0.0, %v4453
      %v4455 = vpop.f32.mrb[0].mxu0
      %4456 = vmatprep.mubr.bf16.mxu0 0
      %4457 = vmatmul.mubr.bf16.gmra.mrb[0].mxu0 %v4299
      %v4458 = vpop.f32.mrb[0].mxu0
      %v4459 = vadd.f32 0.0, %v4458
      %v4460 = vpop.f32.mrb[0].mxu0
      %v4461 = vpop.f32.mrb[0].mxu0
      %v4462 = vadd.f32 0.0, %v4461
      %v4463 = vpop.f32.mrb[0].mxu0
      %4464 = vdwg.mxu0
      %v4465 = vadd.f32 %v4263, %v4339
      %v4466 = vadd.f32 %v4264, %v4342
      %v4467 = vadd.f32 %v4265, %v4347
      %v4468 = vadd.f32 %v4266, %v4350
      %v4469 = vadd.f32 %v4267, %v4355
      %v4470 = vadd.f32 %v4268, %v4358
      %v4471 = vadd.f32 %v4269, %v4363
      %v4472 = vadd.f32 %v4270, %v4366
      %v4473 = vadd.f32 %v4271, %v4371
      %v4474 = vadd.f32 %v4272, %v4374
      %v4475 = vadd.f32 %v4273, %v4379
      %v4476 = vadd.f32 %v4274, %v4382
      %v4477 = vadd.f32 %v4275, %v4387
      %v4478 = vadd.f32 %v4276, %v4390
      %v4479 = vadd.f32 %v4277, %v4395
      %v4480 = vadd.f32 %v4278, %v4398
      %v4481 = vadd.f32 %v4279, %v4403
      %v4482 = vadd.f32 %v4280, %v4406
      %v4483 = vadd.f32 %v4281, %v4411
      %v4484 = vadd.f32 %v4282, %v4414
      %v4485 = vadd.f32 %v4283, %v4419
      %v4486 = vadd.f32 %v4284, %v4422
      %v4487 = vadd.f32 %v4285, %v4427
      %v4488 = vadd.f32 %v4286, %v4430
      %v4489 = vadd.f32 %v4287, %v4435
      %v4490 = vadd.f32 %v4288, %v4438
      %v4491 = vadd.f32 %v4289, %v4443
      %v4492 = vadd.f32 %v4290, %v4446
      %v4493 = vadd.f32 %v4291, %v4451
      %v4494 = vadd.f32 %v4292, %v4454
      %v4495 = vadd.f32 %v4293, %v4459
      %v4496 = vadd.f32 %v4294, %v4462
      %v4500 = vrot.slane %v461, 1
      %v4501 = vrot.slane %v462, 1
      %v4502 = vsel %vm532, %v4500, %v4501
      %v4503 = vrot.slane %v463, 1
      %v4504 = vsel %vm532, %v4501, %v4503
      %v4507 = vpack.c.bf16 %v4504, %v4502
      %s4508 = scalar_lea.vmem %s1, 32
      %v4509 = vld [vmem:[%s4508] sm:$0x3]
      %v4511 = vsel %vm280, %v4507, 0
      %v4514 = vsel %vm711, %v4509, 0
      %4516 = vmatprep.subr.bf16.mxu0 0
      %4517 = vmatpush1.bf16.msra.mxu0 %v4514
      %4518 = vmatprep.subr.bf16.mxu0 0
      %4519 = vmatpush1.bf16.msra.mxu0 0
      %4520 = vmatprep.subr.bf16.mxu0 0
      %4521 = vmatpush1.bf16.msra.mxu0 0
      %4522 = vmatprep.subr.bf16.mxu0 0
      %4523 = vmatpush1.bf16.msra.mxu0 0
      %4524 = vmatprep.subr.bf16.mxu0 0
      %4525 = vmatpush1.bf16.msra.mxu0 0
      %4526 = vmatprep.subr.bf16.mxu0 0
      %4527 = vmatpush1.bf16.msra.mxu0 0
      %4528 = vmatprep.subr.bf16.mxu0 0
      %4529 = vmatpush1.bf16.msra.mxu0 0
      %4530 = vmatprep.subr.bf16.mxu0 0
      %4531 = vmatpush1.bf16.msra.mxu0 0
      %4532 = vmatprep.subr.bf16.mxu0 0
      %4533 = vmatpush1.bf16.msra.mxu0 0
      %4534 = vmatprep.subr.bf16.mxu0 0
      %4535 = vmatpush1.bf16.msra.mxu0 0
      %4536 = vmatprep.subr.bf16.mxu0 0
      %4537 = vmatpush1.bf16.msra.mxu0 0
      %4538 = vmatprep.subr.bf16.mxu0 0
      %4539 = vmatpush1.bf16.msra.mxu0 0
      %4540 = vmatprep.subr.bf16.mxu0 0
      %4541 = vmatpush1.bf16.msra.mxu0 0
      %4542 = vmatprep.subr.bf16.mxu0 0
      %4543 = vmatpush1.bf16.msra.mxu0 0
      %4544 = vmatprep.subr.bf16.mxu0 0
      %4545 = vmatpush1.bf16.msra.mxu0 0
      %4546 = vmatprep.subr.bf16.mxu0 0
      %4547 = vmatpush1.bf16.msra.mxu0 0
      %4548 = vmatprep.mubr.bf16.mxu0 0
      %4549 = vmatmul.mubr.bf16.gmra.mrb[0].mxu0 %v673
      %v4550 = vpop.f32.mrb[0].mxu0
      %v4551 = vadd.f32 0.0, %v4550
      %v4552 = vpop.f32.mrb[0].mxu0
      %v4553 = vpop.f32.mrb[0].mxu0
      %v4554 = vadd.f32 0.0, %v4553
      %v4555 = vpop.f32.mrb[0].mxu0
      %4556 = vmatprep.mubr.bf16.mxu0 0
      %4557 = vmatmul.mubr.bf16.gmra.mrb[0].mxu0 %v676
      %v4558 = vpop.f32.mrb[0].mxu0
      %v4559 = vadd.f32 0.0, %v4558
      %v4560 = vpop.f32.mrb[0].mxu0
      %v4561 = vpop.f32.mrb[0].mxu0
      %v4562 = vadd.f32 0.0, %v4561
      %v4563 = vpop.f32.mrb[0].mxu0
      %4564 = vmatprep.mubr.bf16.mxu0 0
      %4565 = vmatmul.mubr.bf16.gmra.mrb[0].mxu0 %v679
      %v4566 = vpop.f32.mrb[0].mxu0
      %v4567 = vadd.f32 0.0, %v4566
      %v4568 = vpop.f32.mrb[0].mxu0
      %v4569 = vpop.f32.mrb[0].mxu0
      %v4570 = vadd.f32 0.0, %v4569
      %v4571 = vpop.f32.mrb[0].mxu0
      %4572 = vmatprep.mubr.bf16.mxu0 0
      %4573 = vmatmul.mubr.bf16.gmra.mrb[0].mxu0 %v682
      %v4574 = vpop.f32.mrb[0].mxu0
      %v4575 = vadd.f32 0.0, %v4574
      %v4576 = vpop.f32.mrb[0].mxu0
      %v4577 = vpop.f32.mrb[0].mxu0
      %v4578 = vadd.f32 0.0, %v4577
      %v4579 = vpop.f32.mrb[0].mxu0
      %4580 = vmatprep.mubr.bf16.mxu0 0
      %4581 = vmatmul.mubr.bf16.gmra.mrb[0].mxu0 %v685
      %v4582 = vpop.f32.mrb[0].mxu0
      %v4583 = vadd.f32 0.0, %v4582
      %v4584 = vpop.f32.mrb[0].mxu0
      %v4585 = vpop.f32.mrb[0].mxu0
      %v4586 = vadd.f32 0.0, %v4585
      %v4587 = vpop.f32.mrb[0].mxu0
      %4588 = vmatprep.mubr.bf16.mxu0 0
      %4589 = vmatmul.mubr.bf16.gmra.mrb[0].mxu0 %v688
      %v4590 = vpop.f32.mrb[0].mxu0
      %v4591 = vadd.f32 0.0, %v4590
      %v4592 = vpop.f32.mrb[0].mxu0
      %v4593 = vpop.f32.mrb[0].mxu0
      %v4594 = vadd.f32 0.0, %v4593
      %v4595 = vpop.f32.mrb[0].mxu0
      %4596 = vmatprep.mubr.bf16.mxu0 0
      %4597 = vmatmul.mubr.bf16.gmra.mrb[0].mxu0 %v691
      %v4598 = vpop.f32.mrb[0].mxu0
      %v4599 = vadd.f32 0.0, %v4598
      %v4600 = vpop.f32.mrb[0].mxu0
      %v4601 = vpop.f32.mrb[0].mxu0
      %v4602 = vadd.f32 0.0, %v4601
      %v4603 = vpop.f32.mrb[0].mxu0
      %4604 = vmatprep.mubr.bf16.mxu0 0
      %4605 = vmatmul.mubr.bf16.gmra.mrb[0].mxu0 %v694
      %v4606 = vpop.f32.mrb[0].mxu0
      %v4607 = vadd.f32 0.0, %v4606
      %v4608 = vpop.f32.mrb[0].mxu0
      %v4609 = vpop.f32.mrb[0].mxu0
      %v4610 = vadd.f32 0.0, %v4609
      %v4611 = vpop.f32.mrb[0].mxu0
      %4612 = vmatprep.mubr.bf16.mxu0 0
      %4613 = vmatmul.mubr.bf16.gmra.mrb[0].mxu0 %v697
      %v4614 = vpop.f32.mrb[0].mxu0
      %v4615 = vadd.f32 0.0, %v4614
      %v4616 = vpop.f32.mrb[0].mxu0
      %v4617 = vpop.f32.mrb[0].mxu0
      %v4618 = vadd.f32 0.0, %v4617
      %v4619 = vpop.f32.mrb[0].mxu0
      %4620 = vmatprep.mubr.bf16.mxu0 0
      %4621 = vmatmul.mubr.bf16.gmra.mrb[0].mxu0 %v700
      %v4622 = vpop.f32.mrb[0].mxu0
      %v4623 = vadd.f32 0.0, %v4622
      %v4624 = vpop.f32.mrb[0].mxu0
      %v4625 = vpop.f32.mrb[0].mxu0
      %v4626 = vadd.f32 0.0, %v4625
      %v4627 = vpop.f32.mrb[0].mxu0
      %4628 = vmatprep.mubr.bf16.mxu0 0
      %4629 = vmatmul.mubr.bf16.gmra.mrb[0].mxu0 %v703
      %v4630 = vpop.f32.mrb[0].mxu0
      %v4631 = vadd.f32 0.0, %v4630
      %v4632 = vpop.f32.mrb[0].mxu0
      %v4633 = vpop.f32.mrb[0].mxu0
      %v4634 = vadd.f32 0.0, %v4633
      %v4635 = vpop.f32.mrb[0].mxu0
      %4636 = vmatprep.mubr.bf16.mxu0 0
      %4637 = vmatmul.mubr.bf16.gmra.mrb[0].mxu0 %v706
      %v4638 = vpop.f32.mrb[0].mxu0
      %v4639 = vadd.f32 0.0, %v4638
      %v4640 = vpop.f32.mrb[0].mxu0
      %v4641 = vpop.f32.mrb[0].mxu0
      %v4642 = vadd.f32 0.0, %v4641
      %v4643 = vpop.f32.mrb[0].mxu0
      %4644 = vmatprep.mubr.bf16.mxu0 0
      %4645 = vmatmul.mubr.bf16.gmra.mrb[0].mxu0 %v709
      %v4646 = vpop.f32.mrb[0].mxu0
      %v4647 = vadd.f32 0.0, %v4646
      %v4648 = vpop.f32.mrb[0].mxu0
      %v4649 = vpop.f32.mrb[0].mxu0
      %v4650 = vadd.f32 0.0, %v4649
      %v4651 = vpop.f32.mrb[0].mxu0
      %4652 = vmatprep.mubr.bf16.mxu0 0
      %4653 = vmatmul.mubr.bf16.gmra.mrb[0].mxu0 %v2429
      %v4654 = vpop.f32.mrb[0].mxu0
      %v4655 = vadd.f32 0.0, %v4654
      %v4656 = vpop.f32.mrb[0].mxu0
      %v4657 = vpop.f32.mrb[0].mxu0
      %v4658 = vadd.f32 0.0, %v4657
      %v4659 = vpop.f32.mrb[0].mxu0
      %4660 = vmatprep.mubr.bf16.mxu0 0
      %4661 = vmatmul.mubr.bf16.gmra.mrb[0].mxu0 %v3470
      %v4662 = vpop.f32.mrb[0].mxu0
      %v4663 = vadd.f32 0.0, %v4662
      %v4664 = vpop.f32.mrb[0].mxu0
      %v4665 = vpop.f32.mrb[0].mxu0
      %v4666 = vadd.f32 0.0, %v4665
      %v4667 = vpop.f32.mrb[0].mxu0
      %4668 = vmatprep.mubr.bf16.mxu0 0
      %4669 = vmatmul.mubr.bf16.gmra.mrb[0].mxu0 %v4511
      %v4670 = vpop.f32.mrb[0].mxu0
      %v4671 = vadd.f32 0.0, %v4670
      %v4672 = vpop.f32.mrb[0].mxu0
      %v4673 = vpop.f32.mrb[0].mxu0
      %v4674 = vadd.f32 0.0, %v4673
      %v4675 = vpop.f32.mrb[0].mxu0
      %4676 = vdwg.mxu0
      %v4677 = vadd.f32 %v4465, %v4551
      %v4678 = vadd.f32 %v4466, %v4554
      %v4679 = vadd.f32 %v4467, %v4559
      %v4680 = vadd.f32 %v4468, %v4562
      %v4681 = vadd.f32 %v4469, %v4567
      %v4682 = vadd.f32 %v4470, %v4570
      %v4683 = vadd.f32 %v4471, %v4575
      %v4684 = vadd.f32 %v4472, %v4578
      %v4685 = vadd.f32 %v4473, %v4583
      %v4686 = vadd.f32 %v4474, %v4586
      %v4687 = vadd.f32 %v4475, %v4591
      %v4688 = vadd.f32 %v4476, %v4594
      %v4689 = vadd.f32 %v4477, %v4599
      %v4690 = vadd.f32 %v4478, %v4602
      %v4691 = vadd.f32 %v4479, %v4607
      %v4692 = vadd.f32 %v4480, %v4610
      %v4693 = vadd.f32 %v4481, %v4615
      %v4694 = vadd.f32 %v4482, %v4618
      %v4695 = vadd.f32 %v4483, %v4623
      %v4696 = vadd.f32 %v4484, %v4626
      %v4697 = vadd.f32 %v4485, %v4631
      %v4698 = vadd.f32 %v4486, %v4634
      %v4699 = vadd.f32 %v4487, %v4639
      %v4700 = vadd.f32 %v4488, %v4642
      %v4701 = vadd.f32 %v4489, %v4647
      %v4702 = vadd.f32 %v4490, %v4650
      %v4703 = vadd.f32 %v4491, %v4655
      %v4704 = vadd.f32 %v4492, %v4658
      %v4705 = vadd.f32 %v4493, %v4663
      %v4706 = vadd.f32 %v4494, %v4666
      %v4707 = vadd.f32 %v4495, %v4671
      %v4708 = vadd.f32 %v4496, %v4674
      %v4709 = vrot.slane %v461, 2
      %v4710 = vrot.slane %v462, 2
      %v4711 = vsel %vm1088, %v4709, %v4710
      %v4712 = vrot.slane %v463, 2
      %v4713 = vsel %vm1088, %v4710, %v4712
      %v4716 = vpack.c.bf16 %v4713, %v4711
      %s4717 = scalar_lea.vmem %s1, 34
      %v4718 = vld [vmem:[%s4717] sm:$0x3]
      %v4720 = vsel %vm280, %v4716, 0
      %v4723 = vsel %vm711, %v4718, 0
      %4725 = vmatprep.subr.bf16.mxu0 0
      %4726 = vmatpush1.bf16.msra.mxu0 %v4723
      %4727 = vmatprep.subr.bf16.mxu0 0
      %4728 = vmatpush1.bf16.msra.mxu0 0
      %4729 = vmatprep.subr.bf16.mxu0 0
      %4730 = vmatpush1.bf16.msra.mxu0 0
      %4731 = vmatprep.subr.bf16.mxu0 0
      %4732 = vmatpush1.bf16.msra.mxu0 0
      %4733 = vmatprep.subr.bf16.mxu0 0
      %4734 = vmatpush1.bf16.msra.mxu0 0
      %4735 = vmatprep.subr.bf16.mxu0 0
      %4736 = vmatpush1.bf16.msra.mxu0 0
      %4737 = vmatprep.subr.bf16.mxu0 0
      %4738 = vmatpush1.bf16.msra.mxu0 0
      %4739 = vmatprep.subr.bf16.mxu0 0
      %4740 = vmatpush1.bf16.msra.mxu0 0
      %4741 = vmatprep.subr.bf16.mxu0 0
      %4742 = vmatpush1.bf16.msra.mxu0 0
      %4743 = vmatprep.subr.bf16.mxu0 0
      %4744 = vmatpush1.bf16.msra.mxu0 0
      %4745 = vmatprep.subr.bf16.mxu0 0
      %4746 = vmatpush1.bf16.msra.mxu0 0
      %4747 = vmatprep.subr.bf16.mxu0 0
      %4748 = vmatpush1.bf16.msra.mxu0 0
      %4749 = vmatprep.subr.bf16.mxu0 0
      %4750 = vmatpush1.bf16.msra.mxu0 0
      %4751 = vmatprep.subr.bf16.mxu0 0
      %4752 = vmatpush1.bf16.msra.mxu0 0
      %4753 = vmatprep.subr.bf16.mxu0 0
      %4754 = vmatpush1.bf16.msra.mxu0 0
      %4755 = vmatprep.subr.bf16.mxu0 0
      %4756 = vmatpush1.bf16.msra.mxu0 0
      %4757 = vmatprep.mubr.bf16.mxu0 0
      %4758 = vmatmul.mubr.bf16.gmra.mrb[0].mxu0 %v1229
      %v4759 = vpop.f32.mrb[0].mxu0
      %v4760 = vadd.f32 0.0, %v4759
      %v4761 = vpop.f32.mrb[0].mxu0
      %v4762 = vpop.f32.mrb[0].mxu0
      %v4763 = vadd.f32 0.0, %v4762
      %v4764 = vpop.f32.mrb[0].mxu0
      %4765 = vmatprep.mubr.bf16.mxu0 0
      %4766 = vmatmul.mubr.bf16.gmra.mrb[0].mxu0 %v1232
      %v4767 = vpop.f32.mrb[0].mxu0
      %v4768 = vadd.f32 0.0, %v4767
      %v4769 = vpop.f32.mrb[0].mxu0
      %v4770 = vpop.f32.mrb[0].mxu0
      %v4771 = vadd.f32 0.0, %v4770
      %v4772 = vpop.f32.mrb[0].mxu0
      %4773 = vmatprep.mubr.bf16.mxu0 0
      %4774 = vmatmul.mubr.bf16.gmra.mrb[0].mxu0 %v1235
      %v4775 = vpop.f32.mrb[0].mxu0
      %v4776 = vadd.f32 0.0, %v4775
      %v4777 = vpop.f32.mrb[0].mxu0
      %v4778 = vpop.f32.mrb[0].mxu0
      %v4779 = vadd.f32 0.0, %v4778
      %v4780 = vpop.f32.mrb[0].mxu0
      %4781 = vmatprep.mubr.bf16.mxu0 0
      %4782 = vmatmul.mubr.bf16.gmra.mrb[0].mxu0 %v1238
      %v4783 = vpop.f32.mrb[0].mxu0
      %v4784 = vadd.f32 0.0, %v4783
      %v4785 = vpop.f32.mrb[0].mxu0
      %v4786 = vpop.f32.mrb[0].mxu0
      %v4787 = vadd.f32 0.0, %v4786
      %v4788 = vpop.f32.mrb[0].mxu0
      %4789 = vmatprep.mubr.bf16.mxu0 0
      %4790 = vmatmul.mubr.bf16.gmra.mrb[0].mxu0 %v1241
      %v4791 = vpop.f32.mrb[0].mxu0
      %v4792 = vadd.f32 0.0, %v4791
      %v4793 = vpop.f32.mrb[0].mxu0
      %v4794 = vpop.f32.mrb[0].mxu0
      %v4795 = vadd.f32 0.0, %v4794
      %v4796 = vpop.f32.mrb[0].mxu0
      %4797 = vmatprep.mubr.bf16.mxu0 0
      %4798 = vmatmul.mubr.bf16.gmra.mrb[0].mxu0 %v1244
      %v4799 = vpop.f32.mrb[0].mxu0
      %v4800 = vadd.f32 0.0, %v4799
      %v4801 = vpop.f32.mrb[0].mxu0
      %v4802 = vpop.f32.mrb[0].mxu0
      %v4803 = vadd.f32 0.0, %v4802
      %v4804 = vpop.f32.mrb[0].mxu0
      %4805 = vmatprep.mubr.bf16.mxu0 0
      %4806 = vmatmul.mubr.bf16.gmra.mrb[0].mxu0 %v1247
      %v4807 = vpop.f32.mrb[0].mxu0
      %v4808 = vadd.f32 0.0, %v4807
      %v4809 = vpop.f32.mrb[0].mxu0
      %v4810 = vpop.f32.mrb[0].mxu0
      %v4811 = vadd.f32 0.0, %v4810
      %v4812 = vpop.f32.mrb[0].mxu0
      %4813 = vmatprep.mubr.bf16.mxu0 0
      %4814 = vmatmul.mubr.bf16.gmra.mrb[0].mxu0 %v1250
      %v4815 = vpop.f32.mrb[0].mxu0
      %v4816 = vadd.f32 0.0, %v4815
      %v4817 = vpop.f32.mrb[0].mxu0
      %v4818 = vpop.f32.mrb[0].mxu0
      %v4819 = vadd.f32 0.0, %v4818
      %v4820 = vpop.f32.mrb[0].mxu0
      %4821 = vmatprep.mubr.bf16.mxu0 0
      %4822 = vmatmul.mubr.bf16.gmra.mrb[0].mxu0 %v1253
      %v4823 = vpop.f32.mrb[0].mxu0
      %v4824 = vadd.f32 0.0, %v4823
      %v4825 = vpop.f32.mrb[0].mxu0
      %v4826 = vpop.f32.mrb[0].mxu0
      %v4827 = vadd.f32 0.0, %v4826
      %v4828 = vpop.f32.mrb[0].mxu0
      %4829 = vmatprep.mubr.bf16.mxu0 0
      %4830 = vmatmul.mubr.bf16.gmra.mrb[0].mxu0 %v1256
      %v4831 = vpop.f32.mrb[0].mxu0
      %v4832 = vadd.f32 0.0, %v4831
      %v4833 = vpop.f32.mrb[0].mxu0
      %v4834 = vpop.f32.mrb[0].mxu0
      %v4835 = vadd.f32 0.0, %v4834
      %v4836 = vpop.f32.mrb[0].mxu0
      %4837 = vmatprep.mubr.bf16.mxu0 0
      %4838 = vmatmul.mubr.bf16.gmra.mrb[0].mxu0 %v1259
      %v4839 = vpop.f32.mrb[0].mxu0
      %v4840 = vadd.f32 0.0, %v4839
      %v4841 = vpop.f32.mrb[0].mxu0
      %v4842 = vpop.f32.mrb[0].mxu0
      %v4843 = vadd.f32 0.0, %v4842
      %v4844 = vpop.f32.mrb[0].mxu0
      %4845 = vmatprep.mubr.bf16.mxu0 0
      %4846 = vmatmul.mubr.bf16.gmra.mrb[0].mxu0 %v1262
      %v4847 = vpop.f32.mrb[0].mxu0
      %v4848 = vadd.f32 0.0, %v4847
      %v4849 = vpop.f32.mrb[0].mxu0
      %v4850 = vpop.f32.mrb[0].mxu0
      %v4851 = vadd.f32 0.0, %v4850
      %v4852 = vpop.f32.mrb[0].mxu0
      %4853 = vmatprep.mubr.bf16.mxu0 0
      %4854 = vmatmul.mubr.bf16.gmra.mrb[0].mxu0 %v1265
      %v4855 = vpop.f32.mrb[0].mxu0
      %v4856 = vadd.f32 0.0, %v4855
      %v4857 = vpop.f32.mrb[0].mxu0
      %v4858 = vpop.f32.mrb[0].mxu0
      %v4859 = vadd.f32 0.0, %v4858
      %v4860 = vpop.f32.mrb[0].mxu0
      %4861 = vmatprep.mubr.bf16.mxu0 0
      %4862 = vmatmul.mubr.bf16.gmra.mrb[0].mxu0 %v2638
      %v4863 = vpop.f32.mrb[0].mxu0
      %v4864 = vadd.f32 0.0, %v4863
      %v4865 = vpop.f32.mrb[0].mxu0
      %v4866 = vpop.f32.mrb[0].mxu0
      %v4867 = vadd.f32 0.0, %v4866
      %v4868 = vpop.f32.mrb[0].mxu0
      %4869 = vmatprep.mubr.bf16.mxu0 0
      %4870 = vmatmul.mubr.bf16.gmra.mrb[0].mxu0 %v3679
      %v4871 = vpop.f32.mrb[0].mxu0
      %v4872 = vadd.f32 0.0, %v4871
      %v4873 = vpop.f32.mrb[0].mxu0
      %v4874 = vpop.f32.mrb[0].mxu0
      %v4875 = vadd.f32 0.0, %v4874
      %v4876 = vpop.f32.mrb[0].mxu0
      %4877 = vmatprep.mubr.bf16.mxu0 0
      %4878 = vmatmul.mubr.bf16.gmra.mrb[0].mxu0 %v4720
      %v4879 = vpop.f32.mrb[0].mxu0
      %v4880 = vadd.f32 0.0, %v4879
      %v4881 = vpop.f32.mrb[0].mxu0
      %v4882 = vpop.f32.mrb[0].mxu0
      %v4883 = vadd.f32 0.0, %v4882
      %v4884 = vpop.f32.mrb[0].mxu0
      %4885 = vdwg.mxu0
      %v4886 = vadd.f32 %v4677, %v4760
      %v4887 = vadd.f32 %v4678, %v4763
      %v4888 = vadd.f32 %v4679, %v4768
      %v4889 = vadd.f32 %v4680, %v4771
      %v4890 = vadd.f32 %v4681, %v4776
      %v4891 = vadd.f32 %v4682, %v4779
      %v4892 = vadd.f32 %v4683, %v4784
      %v4893 = vadd.f32 %v4684, %v4787
      %v4894 = vadd.f32 %v4685, %v4792
      %v4895 = vadd.f32 %v4686, %v4795
      %v4896 = vadd.f32 %v4687, %v4800
      %v4897 = vadd.f32 %v4688, %v4803
      %v4898 = vadd.f32 %v4689, %v4808
      %v4899 = vadd.f32 %v4690, %v4811
      %v4900 = vadd.f32 %v4691, %v4816
      %v4901 = vadd.f32 %v4692, %v4819
      %v4902 = vadd.f32 %v4693, %v4824
      %v4903 = vadd.f32 %v4694, %v4827
      %v4904 = vadd.f32 %v4695, %v4832
      %v4905 = vadd.f32 %v4696, %v4835
      %v4906 = vadd.f32 %v4697, %v4840
      %v4907 = vadd.f32 %v4698, %v4843
      %v4908 = vadd.f32 %v4699, %v4848
      %v4909 = vadd.f32 %v4700, %v4851
      %v4910 = vadd.f32 %v4701, %v4856
      %v4911 = vadd.f32 %v4702, %v4859
      %v4912 = vadd.f32 %v4703, %v4864
      %v4913 = vadd.f32 %v4704, %v4867
      %v4914 = vadd.f32 %v4705, %v4872
      %v4915 = vadd.f32 %v4706, %v4875
      %v4916 = vadd.f32 %v4707, %v4880
      %v4917 = vadd.f32 %v4708, %v4883
      %v4918 = vrot.slane %v461, 3
      %v4919 = vrot.slane %v462, 3
      %v4920 = vsel %vm1463, %v4918, %v4919
      %v4921 = vrot.slane %v463, 3
      %v4922 = vsel %vm1463, %v4919, %v4921
      %v4925 = vpack.c.bf16 %v4922, %v4920
      %s4926 = scalar_lea.vmem %s1, 36
      %v4927 = vld [vmem:[%s4926] sm:$0x3]
      %v4929 = vsel %vm280, %v4925, 0
      %v4932 = vsel %vm711, %v4927, 0
      %4934 = vmatprep.subr.bf16.mxu0 0
      %4935 = vmatpush1.bf16.msra.mxu0 %v4932
      %4936 = vmatprep.subr.bf16.mxu0 0
      %4937 = vmatpush1.bf16.msra.mxu0 0
      %4938 = vmatprep.subr.bf16.mxu0 0
      %4939 = vmatpush1.bf16.msra.mxu0 0
      %4940 = vmatprep.subr.bf16.mxu0 0
      %4941 = vmatpush1.bf16.msra.mxu0 0
      %4942 = vmatprep.subr.bf16.mxu0 0
      %4943 = vmatpush1.bf16.msra.mxu0 0
      %4944 = vmatprep.subr.bf16.mxu0 0
      %4945 = vmatpush1.bf16.msra.mxu0 0
      %4946 = vmatprep.subr.bf16.mxu0 0
      %4947 = vmatpush1.bf16.msra.mxu0 0
      %4948 = vmatprep.subr.bf16.mxu0 0
      %4949 = vmatpush1.bf16.msra.mxu0 0
      %4950 = vmatprep.subr.bf16.mxu0 0
      %4951 = vmatpush1.bf16.msra.mxu0 0
      %4952 = vmatprep.subr.bf16.mxu0 0
      %4953 = vmatpush1.bf16.msra.mxu0 0
      %4954 = vmatprep.subr.bf16.mxu0 0
      %4955 = vmatpush1.bf16.msra.mxu0 0
      %4956 = vmatprep.subr.bf16.mxu0 0
      %4957 = vmatpush1.bf16.msra.mxu0 0
      %4958 = vmatprep.subr.bf16.mxu0 0
      %4959 = vmatpush1.bf16.msra.mxu0 0
      %4960 = vmatprep.subr.bf16.mxu0 0
      %4961 = vmatpush1.bf16.msra.mxu0 0
      %4962 = vmatprep.subr.bf16.mxu0 0
      %4963 = vmatpush1.bf16.msra.mxu0 0
      %4964 = vmatprep.subr.bf16.mxu0 0
      %4965 = vmatpush1.bf16.msra.mxu0 0
      %4966 = vmatprep.mubr.bf16.mxu0 0
      %4967 = vmatmul.mubr.bf16.gmra.mrb[0].mxu0 %v1604
      %v4968 = vpop.f32.mrb[0].mxu0
      %v4969 = vadd.f32 0.0, %v4968
      %v4970 = vpop.f32.mrb[0].mxu0
      %v4971 = vpop.f32.mrb[0].mxu0
      %v4972 = vadd.f32 0.0, %v4971
      %v4973 = vpop.f32.mrb[0].mxu0
      %4974 = vmatprep.mubr.bf16.mxu0 0
      %4975 = vmatmul.mubr.bf16.gmra.mrb[0].mxu0 %v1607
      %v4976 = vpop.f32.mrb[0].mxu0
      %v4977 = vadd.f32 0.0, %v4976
      %v4978 = vpop.f32.mrb[0].mxu0
      %v4979 = vpop.f32.mrb[0].mxu0
      %v4980 = vadd.f32 0.0, %v4979
      %v4981 = vpop.f32.mrb[0].mxu0
      %4982 = vmatprep.mubr.bf16.mxu0 0
      %4983 = vmatmul.mubr.bf16.gmra.mrb[0].mxu0 %v1610
      %v4984 = vpop.f32.mrb[0].mxu0
      %v4985 = vadd.f32 0.0, %v4984
      %v4986 = vpop.f32.mrb[0].mxu0
      %v4987 = vpop.f32.mrb[0].mxu0
      %v4988 = vadd.f32 0.0, %v4987
      %v4989 = vpop.f32.mrb[0].mxu0
      %4990 = vmatprep.mubr.bf16.mxu0 0
      %4991 = vmatmul.mubr.bf16.gmra.mrb[0].mxu0 %v1613
      %v4992 = vpop.f32.mrb[0].mxu0
      %v4993 = vadd.f32 0.0, %v4992
      %v4994 = vpop.f32.mrb[0].mxu0
      %v4995 = vpop.f32.mrb[0].mxu0
      %v4996 = vadd.f32 0.0, %v4995
      %v4997 = vpop.f32.mrb[0].mxu0
      %4998 = vmatprep.mubr.bf16.mxu0 0
      %4999 = vmatmul.mubr.bf16.gmra.mrb[0].mxu0 %v1616
      %v5000 = vpop.f32.mrb[0].mxu0
      %v5001 = vadd.f32 0.0, %v5000
      %v5002 = vpop.f32.mrb[0].mxu0
      %v5003 = vpop.f32.mrb[0].mxu0
      %v5004 = vadd.f32 0.0, %v5003
      %v5005 = vpop.f32.mrb[0].mxu0
      %5006 = vmatprep.mubr.bf16.mxu0 0
      %5007 = vmatmul.mubr.bf16.gmra.mrb[0].mxu0 %v1619
      %v5008 = vpop.f32.mrb[0].mxu0
      %v5009 = vadd.f32 0.0, %v5008
      %v5010 = vpop.f32.mrb[0].mxu0
      %v5011 = vpop.f32.mrb[0].mxu0
      %v5012 = vadd.f32 0.0, %v5011
      %v5013 = vpop.f32.mrb[0].mxu0
      %5014 = vmatprep.mubr.bf16.mxu0 0
      %5015 = vmatmul.mubr.bf16.gmra.mrb[0].mxu0 %v1622
      %v5016 = vpop.f32.mrb[0].mxu0
      %v5017 = vadd.f32 0.0, %v5016
      %v5018 = vpop.f32.mrb[0].mxu0
      %v5019 = vpop.f32.mrb[0].mxu0
      %v5020 = vadd.f32 0.0, %v5019
      %v5021 = vpop.f32.mrb[0].mxu0
      %5022 = vmatprep.mubr.bf16.mxu0 0
      %5023 = vmatmul.mubr.bf16.gmra.mrb[0].mxu0 %v1625
      %v5024 = vpop.f32.mrb[0].mxu0
      %v5025 = vadd.f32 0.0, %v5024
      %v5026 = vpop.f32.mrb[0].mxu0
      %v5027 = vpop.f32.mrb[0].mxu0
      %v5028 = vadd.f32 0.0, %v5027
      %v5029 = vpop.f32.mrb[0].mxu0
      %5030 = vmatprep.mubr.bf16.mxu0 0
      %5031 = vmatmul.mubr.bf16.gmra.mrb[0].mxu0 %v1628
      %v5032 = vpop.f32.mrb[0].mxu0
      %v5033 = vadd.f32 0.0, %v5032
      %v5034 = vpop.f32.mrb[0].mxu0
      %v5035 = vpop.f32.mrb[0].mxu0
      %v5036 = vadd.f32 0.0, %v5035
      %v5037 = vpop.f32.mrb[0].mxu0
      %5038 = vmatprep.mubr.bf16.mxu0 0
      %5039 = vmatmul.mubr.bf16.gmra.mrb[0].mxu0 %v1631
      %v5040 = vpop.f32.mrb[0].mxu0
      %v5041 = vadd.f32 0.0, %v5040
      %v5042 = vpop.f32.mrb[0].mxu0
      %v5043 = vpop.f32.mrb[0].mxu0
      %v5044 = vadd.f32 0.0, %v5043
      %v5045 = vpop.f32.mrb[0].mxu0
      %5046 = vmatprep.mubr.bf16.mxu0 0
      %5047 = vmatmul.mubr.bf16.gmra.mrb[0].mxu0 %v1634
      %v5048 = vpop.f32.mrb[0].mxu0
      %v5049 = vadd.f32 0.0, %v5048
      %v5050 = vpop.f32.mrb[0].mxu0
      %v5051 = vpop.f32.mrb[0].mxu0
      %v5052 = vadd.f32 0.0, %v5051
      %v5053 = vpop.f32.mrb[0].mxu0
      %5054 = vmatprep.mubr.bf16.mxu0 0
      %5055 = vmatmul.mubr.bf16.gmra.mrb[0].mxu0 %v1637
      %v5056 = vpop.f32.mrb[0].mxu0
      %v5057 = vadd.f32 0.0, %v5056
      %v5058 = vpop.f32.mrb[0].mxu0
      %v5059 = vpop.f32.mrb[0].mxu0
      %v5060 = vadd.f32 0.0, %v5059
      %v5061 = vpop.f32.mrb[0].mxu0
      %5062 = vmatprep.mubr.bf16.mxu0 0
      %5063 = vmatmul.mubr.bf16.gmra.mrb[0].mxu0 %v1640
      %v5064 = vpop.f32.mrb[0].mxu0
      %v5065 = vadd.f32 0.0, %v5064
      %v5066 = vpop.f32.mrb[0].mxu0
      %v5067 = vpop.f32.mrb[0].mxu0
      %v5068 = vadd.f32 0.0, %v5067
      %v5069 = vpop.f32.mrb[0].mxu0
      %5070 = vmatprep.mubr.bf16.mxu0 0
      %5071 = vmatmul.mubr.bf16.gmra.mrb[0].mxu0 %v2847
      %v5072 = vpop.f32.mrb[0].mxu0
      %v5073 = vadd.f32 0.0, %v5072
      %v5074 = vpop.f32.mrb[0].mxu0
      %v5075 = vpop.f32.mrb[0].mxu0
      %v5076 = vadd.f32 0.0, %v5075
      %v5077 = vpop.f32.mrb[0].mxu0
      %5078 = vmatprep.mubr.bf16.mxu0 0
      %5079 = vmatmul.mubr.bf16.gmra.mrb[0].mxu0 %v3888
      %v5080 = vpop.f32.mrb[0].mxu0
      %v5081 = vadd.f32 0.0, %v5080
      %v5082 = vpop.f32.mrb[0].mxu0
      %v5083 = vpop.f32.mrb[0].mxu0
      %v5084 = vadd.f32 0.0, %v5083
      %v5085 = vpop.f32.mrb[0].mxu0
      %5086 = vmatprep.mubr.bf16.mxu0 0
      %5087 = vmatmul.mubr.bf16.gmra.mrb[0].mxu0 %v4929
      %v5088 = vpop.f32.mrb[0].mxu0
      %v5089 = vadd.f32 0.0, %v5088
      %v5090 = vpop.f32.mrb[0].mxu0
      %v5091 = vpop.f32.mrb[0].mxu0
      %v5092 = vadd.f32 0.0, %v5091
      %v5093 = vpop.f32.mrb[0].mxu0
      %5094 = vdwg.mxu0
      %v5095 = vadd.f32 %v4886, %v4969
      %v5096 = vadd.f32 %v4887, %v4972
      %v5097 = vadd.f32 %v4888, %v4977
      %v5098 = vadd.f32 %v4889, %v4980
      %v5099 = vadd.f32 %v4890, %v4985
      %v5100 = vadd.f32 %v4891, %v4988
      %v5101 = vadd.f32 %v4892, %v4993
      %v5102 = vadd.f32 %v4893, %v4996
      %v5103 = vadd.f32 %v4894, %v5001
      %v5104 = vadd.f32 %v4895, %v5004
      %v5105 = vadd.f32 %v4896, %v5009
      %v5106 = vadd.f32 %v4897, %v5012
      %v5107 = vadd.f32 %v4898, %v5017
      %v5108 = vadd.f32 %v4899, %v5020
      %v5109 = vadd.f32 %v4900, %v5025
      %v5110 = vadd.f32 %v4901, %v5028
      %v5111 = vadd.f32 %v4902, %v5033
      %v5112 = vadd.f32 %v4903, %v5036
      %v5113 = vadd.f32 %v4904, %v5041
      %v5114 = vadd.f32 %v4905, %v5044
      %v5115 = vadd.f32 %v4906, %v5049
      %v5116 = vadd.f32 %v4907, %v5052
      %v5117 = vadd.f32 %v4908, %v5057
      %v5118 = vadd.f32 %v4909, %v5060
      %v5119 = vadd.f32 %v4910, %v5065
      %v5120 = vadd.f32 %v4911, %v5068
      %v5121 = vadd.f32 %v4912, %v5073
      %v5122 = vadd.f32 %v4913, %v5076
      %v5123 = vadd.f32 %v4914, %v5081
      %v5124 = vadd.f32 %v4915, %v5084
      %v5125 = vadd.f32 %v4916, %v5089
      %v5126 = vadd.f32 %v4917, %v5092
      %v5127 = vrot.slane %v461, 4
      %v5128 = vrot.slane %v462, 4
      %v5129 = vsel %vm1838, %v5127, %v5128
      %v5130 = vrot.slane %v463, 4
      %v5131 = vsel %vm1838, %v5128, %v5130
      %v5134 = vpack.c.bf16 %v5131, %v5129
      %s5135 = scalar_lea.vmem %s1, 38
      %v5136 = vld [vmem:[%s5135] sm:$0x3]
      %v5138 = vsel %vm280, %v5134, 0
      %v5141 = vsel %vm711, %v5136, 0
      %5143 = vmatprep.subr.bf16.mxu0 0
      %5144 = vmatpush1.bf16.msra.mxu0 %v5141
      %5145 = vmatprep.subr.bf16.mxu0 0
      %5146 = vmatpush1.bf16.msra.mxu0 0
      %5147 = vmatprep.subr.bf16.mxu0 0
      %5148 = vmatpush1.bf16.msra.mxu0 0
      %5149 = vmatprep.subr.bf16.mxu0 0
      %5150 = vmatpush1.bf16.msra.mxu0 0
      %5151 = vmatprep.subr.bf16.mxu0 0
      %5152 = vmatpush1.bf16.msra.mxu0 0
      %5153 = vmatprep.subr.bf16.mxu0 0
      %5154 = vmatpush1.bf16.msra.mxu0 0
      %5155 = vmatprep.subr.bf16.mxu0 0
      %5156 = vmatpush1.bf16.msra.mxu0 0
      %5157 = vmatprep.subr.bf16.mxu0 0
      %5158 = vmatpush1.bf16.msra.mxu0 0
      %5159 = vmatprep.subr.bf16.mxu0 0
      %5160 = vmatpush1.bf16.msra.mxu0 0
      %5161 = vmatprep.subr.bf16.mxu0 0
      %5162 = vmatpush1.bf16.msra.mxu0 0
      %5163 = vmatprep.subr.bf16.mxu0 0
      %5164 = vmatpush1.bf16.msra.mxu0 0
      %5165 = vmatprep.subr.bf16.mxu0 0
      %5166 = vmatpush1.bf16.msra.mxu0 0
      %5167 = vmatprep.subr.bf16.mxu0 0
      %5168 = vmatpush1.bf16.msra.mxu0 0
      %5169 = vmatprep.subr.bf16.mxu0 0
      %5170 = vmatpush1.bf16.msra.mxu0 0
      %5171 = vmatprep.subr.bf16.mxu0 0
      %5172 = vmatpush1.bf16.msra.mxu0 0
      %5173 = vmatprep.subr.bf16.mxu0 0
      %5174 = vmatpush1.bf16.msra.mxu0 0
      %5175 = vmatprep.mubr.bf16.mxu0 0
      %5176 = vmatmul.mubr.bf16.gmra.mrb[0].mxu0 %v1979
      %v5177 = vpop.f32.mrb[0].mxu0
      %v5178 = vadd.f32 0.0, %v5177
      %v5179 = vpop.f32.mrb[0].mxu0
      %v5180 = vpop.f32.mrb[0].mxu0
      %v5181 = vadd.f32 0.0, %v5180
      %v5182 = vpop.f32.mrb[0].mxu0
      %5183 = vmatprep.mubr.bf16.mxu0 0
      %5184 = vmatmul.mubr.bf16.gmra.mrb[0].mxu0 %v1982
      %v5185 = vpop.f32.mrb[0].mxu0
      %v5186 = vadd.f32 0.0, %v5185
      %v5187 = vpop.f32.mrb[0].mxu0
      %v5188 = vpop.f32.mrb[0].mxu0
      %v5189 = vadd.f32 0.0, %v5188
      %v5190 = vpop.f32.mrb[0].mxu0
      %5191 = vmatprep.mubr.bf16.mxu0 0
      %5192 = vmatmul.mubr.bf16.gmra.mrb[0].mxu0 %v1985
      %v5193 = vpop.f32.mrb[0].mxu0
      %v5194 = vadd.f32 0.0, %v5193
      %v5195 = vpop.f32.mrb[0].mxu0
      %v5196 = vpop.f32.mrb[0].mxu0
      %v5197 = vadd.f32 0.0, %v5196
      %v5198 = vpop.f32.mrb[0].mxu0
      %5199 = vmatprep.mubr.bf16.mxu0 0
      %5200 = vmatmul.mubr.bf16.gmra.mrb[0].mxu0 %v1988
      %v5201 = vpop.f32.mrb[0].mxu0
      %v5202 = vadd.f32 0.0, %v5201
      %v5203 = vpop.f32.mrb[0].mxu0
      %v5204 = vpop.f32.mrb[0].mxu0
      %v5205 = vadd.f32 0.0, %v5204
      %v5206 = vpop.f32.mrb[0].mxu0
      %5207 = vmatprep.mubr.bf16.mxu0 0
      %5208 = vmatmul.mubr.bf16.gmra.mrb[0].mxu0 %v1991
      %v5209 = vpop.f32.mrb[0].mxu0
      %v5210 = vadd.f32 0.0, %v5209
      %v5211 = vpop.f32.mrb[0].mxu0
      %v5212 = vpop.f32.mrb[0].mxu0
      %v5213 = vadd.f32 0.0, %v5212
      %v5214 = vpop.f32.mrb[0].mxu0
      %5215 = vmatprep.mubr.bf16.mxu0 0
      %5216 = vmatmul.mubr.bf16.gmra.mrb[0].mxu0 %v1994
      %v5217 = vpop.f32.mrb[0].mxu0
      %v5218 = vadd.f32 0.0, %v5217
      %v5219 = vpop.f32.mrb[0].mxu0
      %v5220 = vpop.f32.mrb[0].mxu0
      %v5221 = vadd.f32 0.0, %v5220
      %v5222 = vpop.f32.mrb[0].mxu0
      %5223 = vmatprep.mubr.bf16.mxu0 0
      %5224 = vmatmul.mubr.bf16.gmra.mrb[0].mxu0 %v1997
      %v5225 = vpop.f32.mrb[0].mxu0
      %v5226 = vadd.f32 0.0, %v5225
      %v5227 = vpop.f32.mrb[0].mxu0
      %v5228 = vpop.f32.mrb[0].mxu0
      %v5229 = vadd.f32 0.0, %v5228
      %v5230 = vpop.f32.mrb[0].mxu0
      %5231 = vmatprep.mubr.bf16.mxu0 0
      %5232 = vmatmul.mubr.bf16.gmra.mrb[0].mxu0 %v2000
      %v5233 = vpop.f32.mrb[0].mxu0
      %v5234 = vadd.f32 0.0, %v5233
      %v5235 = vpop.f32.mrb[0].mxu0
      %v5236 = vpop.f32.mrb[0].mxu0
      %v5237 = vadd.f32 0.0, %v5236
      %v5238 = vpop.f32.mrb[0].mxu0
      %5239 = vmatprep.mubr.bf16.mxu0 0
      %5240 = vmatmul.mubr.bf16.gmra.mrb[0].mxu0 %v2003
      %v5241 = vpop.f32.mrb[0].mxu0
      %v5242 = vadd.f32 0.0, %v5241
      %v5243 = vpop.f32.mrb[0].mxu0
      %v5244 = vpop.f32.mrb[0].mxu0
      %v5245 = vadd.f32 0.0, %v5244
      %v5246 = vpop.f32.mrb[0].mxu0
      %5247 = vmatprep.mubr.bf16.mxu0 0
      %5248 = vmatmul.mubr.bf16.gmra.mrb[0].mxu0 %v2006
      %v5249 = vpop.f32.mrb[0].mxu0
      %v5250 = vadd.f32 0.0, %v5249
      %v5251 = vpop.f32.mrb[0].mxu0
      %v5252 = vpop.f32.mrb[0].mxu0
      %v5253 = vadd.f32 0.0, %v5252
      %v5254 = vpop.f32.mrb[0].mxu0
      %5255 = vmatprep.mubr.bf16.mxu0 0
      %5256 = vmatmul.mubr.bf16.gmra.mrb[0].mxu0 %v2009
      %v5257 = vpop.f32.mrb[0].mxu0
      %v5258 = vadd.f32 0.0, %v5257
      %v5259 = vpop.f32.mrb[0].mxu0
      %v5260 = vpop.f32.mrb[0].mxu0
      %v5261 = vadd.f32 0.0, %v5260
      %v5262 = vpop.f32.mrb[0].mxu0
      %5263 = vmatprep.mubr.bf16.mxu0 0
      %5264 = vmatmul.mubr.bf16.gmra.mrb[0].mxu0 %v2012
      %v5265 = vpop.f32.mrb[0].mxu0
      %v5266 = vadd.f32 0.0, %v5265
      %v5267 = vpop.f32.mrb[0].mxu0
      %v5268 = vpop.f32.mrb[0].mxu0
      %v5269 = vadd.f32 0.0, %v5268
      %v5270 = vpop.f32.mrb[0].mxu0
      %5271 = vmatprep.mubr.bf16.mxu0 0
      %5272 = vmatmul.mubr.bf16.gmra.mrb[0].mxu0 %v2015
      %v5273 = vpop.f32.mrb[0].mxu0
      %v5274 = vadd.f32 0.0, %v5273
      %v5275 = vpop.f32.mrb[0].mxu0
      %v5276 = vpop.f32.mrb[0].mxu0
      %v5277 = vadd.f32 0.0, %v5276
      %v5278 = vpop.f32.mrb[0].mxu0
      %5279 = vmatprep.mubr.bf16.mxu0 0
      %5280 = vmatmul.mubr.bf16.gmra.mrb[0].mxu0 %v3056
      %v5281 = vpop.f32.mrb[0].mxu0
      %v5282 = vadd.f32 0.0, %v5281
      %v5283 = vpop.f32.mrb[0].mxu0
      %v5284 = vpop.f32.mrb[0].mxu0
      %v5285 = vadd.f32 0.0, %v5284
      %v5286 = vpop.f32.mrb[0].mxu0
      %5287 = vmatprep.mubr.bf16.mxu0 0
      %5288 = vmatmul.mubr.bf16.gmra.mrb[0].mxu0 %v4097
      %v5289 = vpop.f32.mrb[0].mxu0
      %v5290 = vadd.f32 0.0, %v5289
      %v5291 = vpop.f32.mrb[0].mxu0
      %v5292 = vpop.f32.mrb[0].mxu0
      %v5293 = vadd.f32 0.0, %v5292
      %v5294 = vpop.f32.mrb[0].mxu0
      %5295 = vmatprep.mubr.bf16.mxu0 0
      %5296 = vmatmul.mubr.bf16.gmra.mrb[0].mxu0 %v5138
      %v5297 = vpop.f32.mrb[0].mxu0
      %v5298 = vadd.f32 0.0, %v5297
      %v5299 = vpop.f32.mrb[0].mxu0
      %v5300 = vpop.f32.mrb[0].mxu0
      %v5301 = vadd.f32 0.0, %v5300
      %v5302 = vpop.f32.mrb[0].mxu0
      %5303 = vdwg.mxu0
      %v5304 = vadd.f32 %v5095, %v5178
      %v5305 = vadd.f32 %v5096, %v5181
      %v5306 = vadd.f32 %v5097, %v5186
      %v5307 = vadd.f32 %v5098, %v5189
      %v5308 = vadd.f32 %v5099, %v5194
      %v5309 = vadd.f32 %v5100, %v5197
      %v5310 = vadd.f32 %v5101, %v5202
      %v5311 = vadd.f32 %v5102, %v5205
      %v5312 = vadd.f32 %v5103, %v5210
      %v5313 = vadd.f32 %v5104, %v5213
      %v5314 = vadd.f32 %v5105, %v5218
      %v5315 = vadd.f32 %v5106, %v5221
      %v5316 = vadd.f32 %v5107, %v5226
      %v5317 = vadd.f32 %v5108, %v5229
      %v5318 = vadd.f32 %v5109, %v5234
      %v5319 = vadd.f32 %v5110, %v5237
      %v5320 = vadd.f32 %v5111, %v5242
      %v5321 = vadd.f32 %v5112, %v5245
      %v5322 = vadd.f32 %v5113, %v5250
      %v5323 = vadd.f32 %v5114, %v5253
      %v5324 = vadd.f32 %v5115, %v5258
      %v5325 = vadd.f32 %v5116, %v5261
      %v5326 = vadd.f32 %v5117, %v5266
      %v5327 = vadd.f32 %v5118, %v5269
      %v5328 = vadd.f32 %v5119, %v5274
      %v5329 = vadd.f32 %v5120, %v5277
      %v5330 = vadd.f32 %v5121, %v5282
      %v5331 = vadd.f32 %v5122, %v5285
      %v5332 = vadd.f32 %v5123, %v5290
      %v5333 = vadd.f32 %v5124, %v5293
      %v5334 = vadd.f32 %v5125, %v5298
      %v5335 = vadd.f32 %v5126, %v5301
      %v5336 = vpack.c.bf16 %v465, %v464
      %s5337 = scalar_lea.vmem %s1, 40
      %v5338 = vld [vmem:[%s5337] sm:$0x3]
      %v5340 = vsel %vm280, %v5336, 0
      %v5343 = vsel %vm711, %v5338, 0
      %5345 = vmatprep.subr.bf16.mxu0 0
      %5346 = vmatpush1.bf16.msra.mxu0 %v5343
      %5347 = vmatprep.subr.bf16.mxu0 0
      %5348 = vmatpush1.bf16.msra.mxu0 0
      %5349 = vmatprep.subr.bf16.mxu0 0
      %5350 = vmatpush1.bf16.msra.mxu0 0
      %5351 = vmatprep.subr.bf16.mxu0 0
      %5352 = vmatpush1.bf16.msra.mxu0 0
      %5353 = vmatprep.subr.bf16.mxu0 0
      %5354 = vmatpush1.bf16.msra.mxu0 0
      %5355 = vmatprep.subr.bf16.mxu0 0
      %5356 = vmatpush1.bf16.msra.mxu0 0
      %5357 = vmatprep.subr.bf16.mxu0 0
      %5358 = vmatpush1.bf16.msra.mxu0 0
      %5359 = vmatprep.subr.bf16.mxu0 0
      %5360 = vmatpush1.bf16.msra.mxu0 0
      %5361 = vmatprep.subr.bf16.mxu0 0
      %5362 = vmatpush1.bf16.msra.mxu0 0
      %5363 = vmatprep.subr.bf16.mxu0 0
      %5364 = vmatpush1.bf16.msra.mxu0 0
      %5365 = vmatprep.subr.bf16.mxu0 0
      %5366 = vmatpush1.bf16.msra.mxu0 0
      %5367 = vmatprep.subr.bf16.mxu0 0
      %5368 = vmatpush1.bf16.msra.mxu0 0
      %5369 = vmatprep.subr.bf16.mxu0 0
      %5370 = vmatpush1.bf16.msra.mxu0 0
      %5371 = vmatprep.subr.bf16.mxu0 0
      %5372 = vmatpush1.bf16.msra.mxu0 0
      %5373 = vmatprep.subr.bf16.mxu0 0
      %5374 = vmatpush1.bf16.msra.mxu0 0
      %5375 = vmatprep.subr.bf16.mxu0 0
      %5376 = vmatpush1.bf16.msra.mxu0 0
      %5377 = vmatprep.mubr.bf16.mxu0 0
      %5378 = vmatmul.mubr.bf16.gmra.mrb[0].mxu0 %v889
      %v5379 = vpop.f32.mrb[0].mxu0
      %v5380 = vadd.f32 0.0, %v5379
      %v5381 = vpop.f32.mrb[0].mxu0
      %v5382 = vpop.f32.mrb[0].mxu0
      %v5383 = vadd.f32 0.0, %v5382
      %v5384 = vpop.f32.mrb[0].mxu0
      %5385 = vmatprep.mubr.bf16.mxu0 0
      %5386 = vmatmul.mubr.bf16.gmra.mrb[0].mxu0 %v892
      %v5387 = vpop.f32.mrb[0].mxu0
      %v5388 = vadd.f32 0.0, %v5387
      %v5389 = vpop.f32.mrb[0].mxu0
      %v5390 = vpop.f32.mrb[0].mxu0
      %v5391 = vadd.f32 0.0, %v5390
      %v5392 = vpop.f32.mrb[0].mxu0
      %5393 = vmatprep.mubr.bf16.mxu0 0
      %5394 = vmatmul.mubr.bf16.gmra.mrb[0].mxu0 %v895
      %v5395 = vpop.f32.mrb[0].mxu0
      %v5396 = vadd.f32 0.0, %v5395
      %v5397 = vpop.f32.mrb[0].mxu0
      %v5398 = vpop.f32.mrb[0].mxu0
      %v5399 = vadd.f32 0.0, %v5398
      %v5400 = vpop.f32.mrb[0].mxu0
      %5401 = vmatprep.mubr.bf16.mxu0 0
      %5402 = vmatmul.mubr.bf16.gmra.mrb[0].mxu0 %v898
      %v5403 = vpop.f32.mrb[0].mxu0
      %v5404 = vadd.f32 0.0, %v5403
      %v5405 = vpop.f32.mrb[0].mxu0
      %v5406 = vpop.f32.mrb[0].mxu0
      %v5407 = vadd.f32 0.0, %v5406
      %v5408 = vpop.f32.mrb[0].mxu0
      %5409 = vmatprep.mubr.bf16.mxu0 0
      %5410 = vmatmul.mubr.bf16.gmra.mrb[0].mxu0 %v901
      %v5411 = vpop.f32.mrb[0].mxu0
      %v5412 = vadd.f32 0.0, %v5411
      %v5413 = vpop.f32.mrb[0].mxu0
      %v5414 = vpop.f32.mrb[0].mxu0
      %v5415 = vadd.f32 0.0, %v5414
      %v5416 = vpop.f32.mrb[0].mxu0
      %5417 = vmatprep.mubr.bf16.mxu0 0
      %5418 = vmatmul.mubr.bf16.gmra.mrb[0].mxu0 %v904
      %v5419 = vpop.f32.mrb[0].mxu0
      %v5420 = vadd.f32 0.0, %v5419
      %v5421 = vpop.f32.mrb[0].mxu0
      %v5422 = vpop.f32.mrb[0].mxu0
      %v5423 = vadd.f32 0.0, %v5422
      %v5424 = vpop.f32.mrb[0].mxu0
      %5425 = vmatprep.mubr.bf16.mxu0 0
      %5426 = vmatmul.mubr.bf16.gmra.mrb[0].mxu0 %v907
      %v5427 = vpop.f32.mrb[0].mxu0
      %v5428 = vadd.f32 0.0, %v5427
      %v5429 = vpop.f32.mrb[0].mxu0
      %v5430 = vpop.f32.mrb[0].mxu0
      %v5431 = vadd.f32 0.0, %v5430
      %v5432 = vpop.f32.mrb[0].mxu0
      %5433 = vmatprep.mubr.bf16.mxu0 0
      %5434 = vmatmul.mubr.bf16.gmra.mrb[0].mxu0 %v910
      %v5435 = vpop.f32.mrb[0].mxu0
      %v5436 = vadd.f32 0.0, %v5435
      %v5437 = vpop.f32.mrb[0].mxu0
      %v5438 = vpop.f32.mrb[0].mxu0
      %v5439 = vadd.f32 0.0, %v5438
      %v5440 = vpop.f32.mrb[0].mxu0
      %5441 = vmatprep.mubr.bf16.mxu0 0
      %5442 = vmatmul.mubr.bf16.gmra.mrb[0].mxu0 %v913
      %v5443 = vpop.f32.mrb[0].mxu0
      %v5444 = vadd.f32 0.0, %v5443
      %v5445 = vpop.f32.mrb[0].mxu0
      %v5446 = vpop.f32.mrb[0].mxu0
      %v5447 = vadd.f32 0.0, %v5446
      %v5448 = vpop.f32.mrb[0].mxu0
      %5449 = vmatprep.mubr.bf16.mxu0 0
      %5450 = vmatmul.mubr.bf16.gmra.mrb[0].mxu0 %v916
      %v5451 = vpop.f32.mrb[0].mxu0
      %v5452 = vadd.f32 0.0, %v5451
      %v5453 = vpop.f32.mrb[0].mxu0
      %v5454 = vpop.f32.mrb[0].mxu0
      %v5455 = vadd.f32 0.0, %v5454
      %v5456 = vpop.f32.mrb[0].mxu0
      %5457 = vmatprep.mubr.bf16.mxu0 0
      %5458 = vmatmul.mubr.bf16.gmra.mrb[0].mxu0 %v919
      %v5459 = vpop.f32.mrb[0].mxu0
      %v5460 = vadd.f32 0.0, %v5459
      %v5461 = vpop.f32.mrb[0].mxu0
      %v5462 = vpop.f32.mrb[0].mxu0
      %v5463 = vadd.f32 0.0, %v5462
      %v5464 = vpop.f32.mrb[0].mxu0
      %5465 = vmatprep.mubr.bf16.mxu0 0
      %5466 = vmatmul.mubr.bf16.gmra.mrb[0].mxu0 %v922
      %v5467 = vpop.f32.mrb[0].mxu0
      %v5468 = vadd.f32 0.0, %v5467
      %v5469 = vpop.f32.mrb[0].mxu0
      %v5470 = vpop.f32.mrb[0].mxu0
      %v5471 = vadd.f32 0.0, %v5470
      %v5472 = vpop.f32.mrb[0].mxu0
      %5473 = vmatprep.mubr.bf16.mxu0 0
      %5474 = vmatmul.mubr.bf16.gmra.mrb[0].mxu0 %v2217
      %v5475 = vpop.f32.mrb[0].mxu0
      %v5476 = vadd.f32 0.0, %v5475
      %v5477 = vpop.f32.mrb[0].mxu0
      %v5478 = vpop.f32.mrb[0].mxu0
      %v5479 = vadd.f32 0.0, %v5478
      %v5480 = vpop.f32.mrb[0].mxu0
      %5481 = vmatprep.mubr.bf16.mxu0 0
      %5482 = vmatmul.mubr.bf16.gmra.mrb[0].mxu0 %v3258
      %v5483 = vpop.f32.mrb[0].mxu0
      %v5484 = vadd.f32 0.0, %v5483
      %v5485 = vpop.f32.mrb[0].mxu0
      %v5486 = vpop.f32.mrb[0].mxu0
      %v5487 = vadd.f32 0.0, %v5486
      %v5488 = vpop.f32.mrb[0].mxu0
      %5489 = vmatprep.mubr.bf16.mxu0 0
      %5490 = vmatmul.mubr.bf16.gmra.mrb[0].mxu0 %v4299
      %v5491 = vpop.f32.mrb[0].mxu0
      %v5492 = vadd.f32 0.0, %v5491
      %v5493 = vpop.f32.mrb[0].mxu0
      %v5494 = vpop.f32.mrb[0].mxu0
      %v5495 = vadd.f32 0.0, %v5494
      %v5496 = vpop.f32.mrb[0].mxu0
      %5497 = vmatprep.mubr.bf16.mxu0 0
      %5498 = vmatmul.mubr.bf16.gmra.mrb[0].mxu0 %v5340
      %v5499 = vpop.f32.mrb[0].mxu0
      %v5500 = vadd.f32 0.0, %v5499
      %v5501 = vpop.f32.mrb[0].mxu0
      %v5502 = vpop.f32.mrb[0].mxu0
      %v5503 = vadd.f32 0.0, %v5502
      %v5504 = vpop.f32.mrb[0].mxu0
      %5505 = vdwg.mxu0
      %v5506 = vadd.f32 %v5304, %v5380
      %v5507 = vadd.f32 %v5305, %v5383
      %v5508 = vadd.f32 %v5306, %v5388
      %v5509 = vadd.f32 %v5307, %v5391
      %v5510 = vadd.f32 %v5308, %v5396
      %v5511 = vadd.f32 %v5309, %v5399
      %v5512 = vadd.f32 %v5310, %v5404
      %v5513 = vadd.f32 %v5311, %v5407
      %v5514 = vadd.f32 %v5312, %v5412
      %v5515 = vadd.f32 %v5313, %v5415
      %v5516 = vadd.f32 %v5314, %v5420
      %v5517 = vadd.f32 %v5315, %v5423
      %v5518 = vadd.f32 %v5316, %v5428
      %v5519 = vadd.f32 %v5317, %v5431
      %v5520 = vadd.f32 %v5318, %v5436
      %v5521 = vadd.f32 %v5319, %v5439
      %v5522 = vadd.f32 %v5320, %v5444
      %v5523 = vadd.f32 %v5321, %v5447
      %v5524 = vadd.f32 %v5322, %v5452
      %v5525 = vadd.f32 %v5323, %v5455
      %v5526 = vadd.f32 %v5324, %v5460
      %v5527 = vadd.f32 %v5325, %v5463
      %v5528 = vadd.f32 %v5326, %v5468
      %v5529 = vadd.f32 %v5327, %v5471
      %v5530 = vadd.f32 %v5328, %v5476
      %v5531 = vadd.f32 %v5329, %v5479
      %v5532 = vadd.f32 %v5330, %v5484
      %v5533 = vadd.f32 %v5331, %v5487
      %v5534 = vadd.f32 %v5332, %v5492
      %v5535 = vadd.f32 %v5333, %v5495
      %v5536 = vadd.f32 %v5334, %v5500
      %v5537 = vadd.f32 %v5335, %v5503
      %v5541 = vrot.slane %v464, 1
      %v5542 = vrot.slane %v465, 1
      %v5543 = vsel %vm532, %v5541, %v5542
      %v5544 = vrot.slane %v466, 1
      %v5545 = vsel %vm532, %v5542, %v5544
      %v5548 = vpack.c.bf16 %v5545, %v5543
      %s5549 = scalar_lea.vmem %s1, 42
      %v5550 = vld [vmem:[%s5549] sm:$0x3]
      %v5552 = vsel %vm280, %v5548, 0
      %v5555 = vsel %vm711, %v5550, 0
      %5557 = vmatprep.subr.bf16.mxu0 0
      %5558 = vmatpush1.bf16.msra.mxu0 %v5555
      %5559 = vmatprep.subr.bf16.mxu0 0
      %5560 = vmatpush1.bf16.msra.mxu0 0
      %5561 = vmatprep.subr.bf16.mxu0 0
      %5562 = vmatpush1.bf16.msra.mxu0 0
      %5563 = vmatprep.subr.bf16.mxu0 0
      %5564 = vmatpush1.bf16.msra.mxu0 0
      %5565 = vmatprep.subr.bf16.mxu0 0
      %5566 = vmatpush1.bf16.msra.mxu0 0
      %5567 = vmatprep.subr.bf16.mxu0 0
      %5568 = vmatpush1.bf16.msra.mxu0 0
      %5569 = vmatprep.subr.bf16.mxu0 0
      %5570 = vmatpush1.bf16.msra.mxu0 0
      %5571 = vmatprep.subr.bf16.mxu0 0
      %5572 = vmatpush1.bf16.msra.mxu0 0
      %5573 = vmatprep.subr.bf16.mxu0 0
      %5574 = vmatpush1.bf16.msra.mxu0 0
      %5575 = vmatprep.subr.bf16.mxu0 0
      %5576 = vmatpush1.bf16.msra.mxu0 0
      %5577 = vmatprep.subr.bf16.mxu0 0
      %5578 = vmatpush1.bf16.msra.mxu0 0
      %5579 = vmatprep.subr.bf16.mxu0 0
      %5580 = vmatpush1.bf16.msra.mxu0 0
      %5581 = vmatprep.subr.bf16.mxu0 0
      %5582 = vmatpush1.bf16.msra.mxu0 0
      %5583 = vmatprep.subr.bf16.mxu0 0
      %5584 = vmatpush1.bf16.msra.mxu0 0
      %5585 = vmatprep.subr.bf16.mxu0 0
      %5586 = vmatpush1.bf16.msra.mxu0 0
      %5587 = vmatprep.subr.bf16.mxu0 0
      %5588 = vmatpush1.bf16.msra.mxu0 0
      %5589 = vmatprep.mubr.bf16.mxu0 0
      %5590 = vmatmul.mubr.bf16.gmra.mrb[0].mxu0 %v676
      %v5591 = vpop.f32.mrb[0].mxu0
      %v5592 = vadd.f32 0.0, %v5591
      %v5593 = vpop.f32.mrb[0].mxu0
      %v5594 = vpop.f32.mrb[0].mxu0
      %v5595 = vadd.f32 0.0, %v5594
      %v5596 = vpop.f32.mrb[0].mxu0
      %5597 = vmatprep.mubr.bf16.mxu0 0
      %5598 = vmatmul.mubr.bf16.gmra.mrb[0].mxu0 %v679
      %v5599 = vpop.f32.mrb[0].mxu0
      %v5600 = vadd.f32 0.0, %v5599
      %v5601 = vpop.f32.mrb[0].mxu0
      %v5602 = vpop.f32.mrb[0].mxu0
      %v5603 = vadd.f32 0.0, %v5602
      %v5604 = vpop.f32.mrb[0].mxu0
      %5605 = vmatprep.mubr.bf16.mxu0 0
      %5606 = vmatmul.mubr.bf16.gmra.mrb[0].mxu0 %v682
      %v5607 = vpop.f32.mrb[0].mxu0
      %v5608 = vadd.f32 0.0, %v5607
      %v5609 = vpop.f32.mrb[0].mxu0
      %v5610 = vpop.f32.mrb[0].mxu0
      %v5611 = vadd.f32 0.0, %v5610
      %v5612 = vpop.f32.mrb[0].mxu0
      %5613 = vmatprep.mubr.bf16.mxu0 0
      %5614 = vmatmul.mubr.bf16.gmra.mrb[0].mxu0 %v685
      %v5615 = vpop.f32.mrb[0].mxu0
      %v5616 = vadd.f32 0.0, %v5615
      %v5617 = vpop.f32.mrb[0].mxu0
      %v5618 = vpop.f32.mrb[0].mxu0
      %v5619 = vadd.f32 0.0, %v5618
      %v5620 = vpop.f32.mrb[0].mxu0
      %5621 = vmatprep.mubr.bf16.mxu0 0
      %5622 = vmatmul.mubr.bf16.gmra.mrb[0].mxu0 %v688
      %v5623 = vpop.f32.mrb[0].mxu0
      %v5624 = vadd.f32 0.0, %v5623
      %v5625 = vpop.f32.mrb[0].mxu0
      %v5626 = vpop.f32.mrb[0].mxu0
      %v5627 = vadd.f32 0.0, %v5626
      %v5628 = vpop.f32.mrb[0].mxu0
      %5629 = vmatprep.mubr.bf16.mxu0 0
      %5630 = vmatmul.mubr.bf16.gmra.mrb[0].mxu0 %v691
      %v5631 = vpop.f32.mrb[0].mxu0
      %v5632 = vadd.f32 0.0, %v5631
      %v5633 = vpop.f32.mrb[0].mxu0
      %v5634 = vpop.f32.mrb[0].mxu0
      %v5635 = vadd.f32 0.0, %v5634
      %v5636 = vpop.f32.mrb[0].mxu0
      %5637 = vmatprep.mubr.bf16.mxu0 0
      %5638 = vmatmul.mubr.bf16.gmra.mrb[0].mxu0 %v694
      %v5639 = vpop.f32.mrb[0].mxu0
      %v5640 = vadd.f32 0.0, %v5639
      %v5641 = vpop.f32.mrb[0].mxu0
      %v5642 = vpop.f32.mrb[0].mxu0
      %v5643 = vadd.f32 0.0, %v5642
      %v5644 = vpop.f32.mrb[0].mxu0
      %5645 = vmatprep.mubr.bf16.mxu0 0
      %5646 = vmatmul.mubr.bf16.gmra.mrb[0].mxu0 %v697
      %v5647 = vpop.f32.mrb[0].mxu0
      %v5648 = vadd.f32 0.0, %v5647
      %v5649 = vpop.f32.mrb[0].mxu0
      %v5650 = vpop.f32.mrb[0].mxu0
      %v5651 = vadd.f32 0.0, %v5650
      %v5652 = vpop.f32.mrb[0].mxu0
      %5653 = vmatprep.mubr.bf16.mxu0 0
      %5654 = vmatmul.mubr.bf16.gmra.mrb[0].mxu0 %v700
      %v5655 = vpop.f32.mrb[0].mxu0
      %v5656 = vadd.f32 0.0, %v5655
      %v5657 = vpop.f32.mrb[0].mxu0
      %v5658 = vpop.f32.mrb[0].mxu0
      %v5659 = vadd.f32 0.0, %v5658
      %v5660 = vpop.f32.mrb[0].mxu0
      %5661 = vmatprep.mubr.bf16.mxu0 0
      %5662 = vmatmul.mubr.bf16.gmra.mrb[0].mxu0 %v703
      %v5663 = vpop.f32.mrb[0].mxu0
      %v5664 = vadd.f32 0.0, %v5663
      %v5665 = vpop.f32.mrb[0].mxu0
      %v5666 = vpop.f32.mrb[0].mxu0
      %v5667 = vadd.f32 0.0, %v5666
      %v5668 = vpop.f32.mrb[0].mxu0
      %5669 = vmatprep.mubr.bf16.mxu0 0
      %5670 = vmatmul.mubr.bf16.gmra.mrb[0].mxu0 %v706
      %v5671 = vpop.f32.mrb[0].mxu0
      %v5672 = vadd.f32 0.0, %v5671
      %v5673 = vpop.f32.mrb[0].mxu0
      %v5674 = vpop.f32.mrb[0].mxu0
      %v5675 = vadd.f32 0.0, %v5674
      %v5676 = vpop.f32.mrb[0].mxu0
      %5677 = vmatprep.mubr.bf16.mxu0 0
      %5678 = vmatmul.mubr.bf16.gmra.mrb[0].mxu0 %v709
      %v5679 = vpop.f32.mrb[0].mxu0
      %v5680 = vadd.f32 0.0, %v5679
      %v5681 = vpop.f32.mrb[0].mxu0
      %v5682 = vpop.f32.mrb[0].mxu0
      %v5683 = vadd.f32 0.0, %v5682
      %v5684 = vpop.f32.mrb[0].mxu0
      %5685 = vmatprep.mubr.bf16.mxu0 0
      %5686 = vmatmul.mubr.bf16.gmra.mrb[0].mxu0 %v2429
      %v5687 = vpop.f32.mrb[0].mxu0
      %v5688 = vadd.f32 0.0, %v5687
      %v5689 = vpop.f32.mrb[0].mxu0
      %v5690 = vpop.f32.mrb[0].mxu0
      %v5691 = vadd.f32 0.0, %v5690
      %v5692 = vpop.f32.mrb[0].mxu0
      %5693 = vmatprep.mubr.bf16.mxu0 0
      %5694 = vmatmul.mubr.bf16.gmra.mrb[0].mxu0 %v3470
      %v5695 = vpop.f32.mrb[0].mxu0
      %v5696 = vadd.f32 0.0, %v5695
      %v5697 = vpop.f32.mrb[0].mxu0
      %v5698 = vpop.f32.mrb[0].mxu0
      %v5699 = vadd.f32 0.0, %v5698
      %v5700 = vpop.f32.mrb[0].mxu0
      %5701 = vmatprep.mubr.bf16.mxu0 0
      %5702 = vmatmul.mubr.bf16.gmra.mrb[0].mxu0 %v4511
      %v5703 = vpop.f32.mrb[0].mxu0
      %v5704 = vadd.f32 0.0, %v5703
      %v5705 = vpop.f32.mrb[0].mxu0
      %v5706 = vpop.f32.mrb[0].mxu0
      %v5707 = vadd.f32 0.0, %v5706
      %v5708 = vpop.f32.mrb[0].mxu0
      %5709 = vmatprep.mubr.bf16.mxu0 0
      %5710 = vmatmul.mubr.bf16.gmra.mrb[0].mxu0 %v5552
      %v5711 = vpop.f32.mrb[0].mxu0
      %v5712 = vadd.f32 0.0, %v5711
      %v5713 = vpop.f32.mrb[0].mxu0
      %v5714 = vpop.f32.mrb[0].mxu0
      %v5715 = vadd.f32 0.0, %v5714
      %v5716 = vpop.f32.mrb[0].mxu0
      %5717 = vdwg.mxu0
      %v5718 = vadd.f32 %v5506, %v5592
      %v5719 = vadd.f32 %v5507, %v5595
      %v5720 = vadd.f32 %v5508, %v5600
      %v5721 = vadd.f32 %v5509, %v5603
      %v5722 = vadd.f32 %v5510, %v5608
      %v5723 = vadd.f32 %v5511, %v5611
      %v5724 = vadd.f32 %v5512, %v5616
      %v5725 = vadd.f32 %v5513, %v5619
      %v5726 = vadd.f32 %v5514, %v5624
      %v5727 = vadd.f32 %v5515, %v5627
      %v5728 = vadd.f32 %v5516, %v5632
      %v5729 = vadd.f32 %v5517, %v5635
      %v5730 = vadd.f32 %v5518, %v5640
      %v5731 = vadd.f32 %v5519, %v5643
      %v5732 = vadd.f32 %v5520, %v5648
      %v5733 = vadd.f32 %v5521, %v5651
      %v5734 = vadd.f32 %v5522, %v5656
      %v5735 = vadd.f32 %v5523, %v5659
      %v5736 = vadd.f32 %v5524, %v5664
      %v5737 = vadd.f32 %v5525, %v5667
      %v5738 = vadd.f32 %v5526, %v5672
      %v5739 = vadd.f32 %v5527, %v5675
      %v5740 = vadd.f32 %v5528, %v5680
      %v5741 = vadd.f32 %v5529, %v5683
      %v5742 = vadd.f32 %v5530, %v5688
      %v5743 = vadd.f32 %v5531, %v5691
      %v5744 = vadd.f32 %v5532, %v5696
      %v5745 = vadd.f32 %v5533, %v5699
      %v5746 = vadd.f32 %v5534, %v5704
      %v5747 = vadd.f32 %v5535, %v5707
      %v5748 = vadd.f32 %v5536, %v5712
      %v5749 = vadd.f32 %v5537, %v5715
      %v5750 = vrot.slane %v464, 2
      %v5751 = vrot.slane %v465, 2
      %v5752 = vsel %vm1088, %v5750, %v5751
      %v5753 = vrot.slane %v466, 2
      %v5754 = vsel %vm1088, %v5751, %v5753
      %v5757 = vpack.c.bf16 %v5754, %v5752
      %s5758 = scalar_lea.vmem %s1, 44
      %v5759 = vld [vmem:[%s5758] sm:$0x3]
      %v5761 = vsel %vm280, %v5757, 0
      %v5764 = vsel %vm711, %v5759, 0
      %5766 = vmatprep.subr.bf16.mxu0 0
      %5767 = vmatpush1.bf16.msra.mxu0 %v5764
      %5768 = vmatprep.subr.bf16.mxu0 0
      %5769 = vmatpush1.bf16.msra.mxu0 0
      %5770 = vmatprep.subr.bf16.mxu0 0
      %5771 = vmatpush1.bf16.msra.mxu0 0
      %5772 = vmatprep.subr.bf16.mxu0 0
      %5773 = vmatpush1.bf16.msra.mxu0 0
      %5774 = vmatprep.subr.bf16.mxu0 0
      %5775 = vmatpush1.bf16.msra.mxu0 0
      %5776 = vmatprep.subr.bf16.mxu0 0
      %5777 = vmatpush1.bf16.msra.mxu0 0
      %5778 = vmatprep.subr.bf16.mxu0 0
      %5779 = vmatpush1.bf16.msra.mxu0 0
      %5780 = vmatprep.subr.bf16.mxu0 0
      %5781 = vmatpush1.bf16.msra.mxu0 0
      %5782 = vmatprep.subr.bf16.mxu0 0
      %5783 = vmatpush1.bf16.msra.mxu0 0
      %5784 = vmatprep.subr.bf16.mxu0 0
      %5785 = vmatpush1.bf16.msra.mxu0 0
      %5786 = vmatprep.subr.bf16.mxu0 0
      %5787 = vmatpush1.bf16.msra.mxu0 0
      %5788 = vmatprep.subr.bf16.mxu0 0
      %5789 = vmatpush1.bf16.msra.mxu0 0
      %5790 = vmatprep.subr.bf16.mxu0 0
      %5791 = vmatpush1.bf16.msra.mxu0 0
      %5792 = vmatprep.subr.bf16.mxu0 0
      %5793 = vmatpush1.bf16.msra.mxu0 0
      %5794 = vmatprep.subr.bf16.mxu0 0
      %5795 = vmatpush1.bf16.msra.mxu0 0
      %5796 = vmatprep.subr.bf16.mxu0 0
      %5797 = vmatpush1.bf16.msra.mxu0 0
      %5798 = vmatprep.mubr.bf16.mxu0 0
      %5799 = vmatmul.mubr.bf16.gmra.mrb[0].mxu0 %v1232
      %v5800 = vpop.f32.mrb[0].mxu0
      %v5801 = vadd.f32 0.0, %v5800
      %v5802 = vpop.f32.mrb[0].mxu0
      %v5803 = vpop.f32.mrb[0].mxu0
      %v5804 = vadd.f32 0.0, %v5803
      %v5805 = vpop.f32.mrb[0].mxu0
      %5806 = vmatprep.mubr.bf16.mxu0 0
      %5807 = vmatmul.mubr.bf16.gmra.mrb[0].mxu0 %v1235
      %v5808 = vpop.f32.mrb[0].mxu0
      %v5809 = vadd.f32 0.0, %v5808
      %v5810 = vpop.f32.mrb[0].mxu0
      %v5811 = vpop.f32.mrb[0].mxu0
      %v5812 = vadd.f32 0.0, %v5811
      %v5813 = vpop.f32.mrb[0].mxu0
      %5814 = vmatprep.mubr.bf16.mxu0 0
      %5815 = vmatmul.mubr.bf16.gmra.mrb[0].mxu0 %v1238
      %v5816 = vpop.f32.mrb[0].mxu0
      %v5817 = vadd.f32 0.0, %v5816
      %v5818 = vpop.f32.mrb[0].mxu0
      %v5819 = vpop.f32.mrb[0].mxu0
      %v5820 = vadd.f32 0.0, %v5819
      %v5821 = vpop.f32.mrb[0].mxu0
      %5822 = vmatprep.mubr.bf16.mxu0 0
      %5823 = vmatmul.mubr.bf16.gmra.mrb[0].mxu0 %v1241
      %v5824 = vpop.f32.mrb[0].mxu0
      %v5825 = vadd.f32 0.0, %v5824
      %v5826 = vpop.f32.mrb[0].mxu0
      %v5827 = vpop.f32.mrb[0].mxu0
      %v5828 = vadd.f32 0.0, %v5827
      %v5829 = vpop.f32.mrb[0].mxu0
      %5830 = vmatprep.mubr.bf16.mxu0 0
      %5831 = vmatmul.mubr.bf16.gmra.mrb[0].mxu0 %v1244
      %v5832 = vpop.f32.mrb[0].mxu0
      %v5833 = vadd.f32 0.0, %v5832
      %v5834 = vpop.f32.mrb[0].mxu0
      %v5835 = vpop.f32.mrb[0].mxu0
      %v5836 = vadd.f32 0.0, %v5835
      %v5837 = vpop.f32.mrb[0].mxu0
      %5838 = vmatprep.mubr.bf16.mxu0 0
      %5839 = vmatmul.mubr.bf16.gmra.mrb[0].mxu0 %v1247
      %v5840 = vpop.f32.mrb[0].mxu0
      %v5841 = vadd.f32 0.0, %v5840
      %v5842 = vpop.f32.mrb[0].mxu0
      %v5843 = vpop.f32.mrb[0].mxu0
      %v5844 = vadd.f32 0.0, %v5843
      %v5845 = vpop.f32.mrb[0].mxu0
      %5846 = vmatprep.mubr.bf16.mxu0 0
      %5847 = vmatmul.mubr.bf16.gmra.mrb[0].mxu0 %v1250
      %v5848 = vpop.f32.mrb[0].mxu0
      %v5849 = vadd.f32 0.0, %v5848
      %v5850 = vpop.f32.mrb[0].mxu0
      %v5851 = vpop.f32.mrb[0].mxu0
      %v5852 = vadd.f32 0.0, %v5851
      %v5853 = vpop.f32.mrb[0].mxu0
      %5854 = vmatprep.mubr.bf16.mxu0 0
      %5855 = vmatmul.mubr.bf16.gmra.mrb[0].mxu0 %v1253
      %v5856 = vpop.f32.mrb[0].mxu0
      %v5857 = vadd.f32 0.0, %v5856
      %v5858 = vpop.f32.mrb[0].mxu0
      %v5859 = vpop.f32.mrb[0].mxu0
      %v5860 = vadd.f32 0.0, %v5859
      %v5861 = vpop.f32.mrb[0].mxu0
      %5862 = vmatprep.mubr.bf16.mxu0 0
      %5863 = vmatmul.mubr.bf16.gmra.mrb[0].mxu0 %v1256
      %v5864 = vpop.f32.mrb[0].mxu0
      %v5865 = vadd.f32 0.0, %v5864
      %v5866 = vpop.f32.mrb[0].mxu0
      %v5867 = vpop.f32.mrb[0].mxu0
      %v5868 = vadd.f32 0.0, %v5867
      %v5869 = vpop.f32.mrb[0].mxu0
      %5870 = vmatprep.mubr.bf16.mxu0 0
      %5871 = vmatmul.mubr.bf16.gmra.mrb[0].mxu0 %v1259
      %v5872 = vpop.f32.mrb[0].mxu0
      %v5873 = vadd.f32 0.0, %v5872
      %v5874 = vpop.f32.mrb[0].mxu0
      %v5875 = vpop.f32.mrb[0].mxu0
      %v5876 = vadd.f32 0.0, %v5875
      %v5877 = vpop.f32.mrb[0].mxu0
      %5878 = vmatprep.mubr.bf16.mxu0 0
      %5879 = vmatmul.mubr.bf16.gmra.mrb[0].mxu0 %v1262
      %v5880 = vpop.f32.mrb[0].mxu0
      %v5881 = vadd.f32 0.0, %v5880
      %v5882 = vpop.f32.mrb[0].mxu0
      %v5883 = vpop.f32.mrb[0].mxu0
      %v5884 = vadd.f32 0.0, %v5883
      %v5885 = vpop.f32.mrb[0].mxu0
      %5886 = vmatprep.mubr.bf16.mxu0 0
      %5887 = vmatmul.mubr.bf16.gmra.mrb[0].mxu0 %v1265
      %v5888 = vpop.f32.mrb[0].mxu0
      %v5889 = vadd.f32 0.0, %v5888
      %v5890 = vpop.f32.mrb[0].mxu0
      %v5891 = vpop.f32.mrb[0].mxu0
      %v5892 = vadd.f32 0.0, %v5891
      %v5893 = vpop.f32.mrb[0].mxu0
      %5894 = vmatprep.mubr.bf16.mxu0 0
      %5895 = vmatmul.mubr.bf16.gmra.mrb[0].mxu0 %v2638
      %v5896 = vpop.f32.mrb[0].mxu0
      %v5897 = vadd.f32 0.0, %v5896
      %v5898 = vpop.f32.mrb[0].mxu0
      %v5899 = vpop.f32.mrb[0].mxu0
      %v5900 = vadd.f32 0.0, %v5899
      %v5901 = vpop.f32.mrb[0].mxu0
      %5902 = vmatprep.mubr.bf16.mxu0 0
      %5903 = vmatmul.mubr.bf16.gmra.mrb[0].mxu0 %v3679
      %v5904 = vpop.f32.mrb[0].mxu0
      %v5905 = vadd.f32 0.0, %v5904
      %v5906 = vpop.f32.mrb[0].mxu0
      %v5907 = vpop.f32.mrb[0].mxu0
      %v5908 = vadd.f32 0.0, %v5907
      %v5909 = vpop.f32.mrb[0].mxu0
      %5910 = vmatprep.mubr.bf16.mxu0 0
      %5911 = vmatmul.mubr.bf16.gmra.mrb[0].mxu0 %v4720
      %v5912 = vpop.f32.mrb[0].mxu0
      %v5913 = vadd.f32 0.0, %v5912
      %v5914 = vpop.f32.mrb[0].mxu0
      %v5915 = vpop.f32.mrb[0].mxu0
      %v5916 = vadd.f32 0.0, %v5915
      %v5917 = vpop.f32.mrb[0].mxu0
      %5918 = vmatprep.mubr.bf16.mxu0 0
      %5919 = vmatmul.mubr.bf16.gmra.mrb[0].mxu0 %v5761
      %v5920 = vpop.f32.mrb[0].mxu0
      %v5921 = vadd.f32 0.0, %v5920
      %v5922 = vpop.f32.mrb[0].mxu0
      %v5923 = vpop.f32.mrb[0].mxu0
      %v5924 = vadd.f32 0.0, %v5923
      %v5925 = vpop.f32.mrb[0].mxu0
      %5926 = vdwg.mxu0
      %v5927 = vadd.f32 %v5718, %v5801
      %v5928 = vadd.f32 %v5719, %v5804
      %v5929 = vadd.f32 %v5720, %v5809
      %v5930 = vadd.f32 %v5721, %v5812
      %v5931 = vadd.f32 %v5722, %v5817
      %v5932 = vadd.f32 %v5723, %v5820
      %v5933 = vadd.f32 %v5724, %v5825
      %v5934 = vadd.f32 %v5725, %v5828
      %v5935 = vadd.f32 %v5726, %v5833
      %v5936 = vadd.f32 %v5727, %v5836
      %v5937 = vadd.f32 %v5728, %v5841
      %v5938 = vadd.f32 %v5729, %v5844
      %v5939 = vadd.f32 %v5730, %v5849
      %v5940 = vadd.f32 %v5731, %v5852
      %v5941 = vadd.f32 %v5732, %v5857
      %v5942 = vadd.f32 %v5733, %v5860
      %v5943 = vadd.f32 %v5734, %v5865
      %v5944 = vadd.f32 %v5735, %v5868
      %v5945 = vadd.f32 %v5736, %v5873
      %v5946 = vadd.f32 %v5737, %v5876
      %v5947 = vadd.f32 %v5738, %v5881
      %v5948 = vadd.f32 %v5739, %v5884
      %v5949 = vadd.f32 %v5740, %v5889
      %v5950 = vadd.f32 %v5741, %v5892
      %v5951 = vadd.f32 %v5742, %v5897
      %v5952 = vadd.f32 %v5743, %v5900
      %v5953 = vadd.f32 %v5744, %v5905
      %v5954 = vadd.f32 %v5745, %v5908
      %v5955 = vadd.f32 %v5746, %v5913
      %v5956 = vadd.f32 %v5747, %v5916
      %v5957 = vadd.f32 %v5748, %v5921
      %v5958 = vadd.f32 %v5749, %v5924
      %v5959 = vrot.slane %v464, 3
      %v5960 = vrot.slane %v465, 3
      %v5961 = vsel %vm1463, %v5959, %v5960
      %v5962 = vrot.slane %v466, 3
      %v5963 = vsel %vm1463, %v5960, %v5962
      %v5966 = vpack.c.bf16 %v5963, %v5961
      %s5967 = scalar_lea.vmem %s1, 46
      %v5968 = vld [vmem:[%s5967] sm:$0x3]
      %v5970 = vsel %vm280, %v5966, 0
      %v5973 = vsel %vm711, %v5968, 0
      %5975 = vmatprep.subr.bf16.mxu0 0
      %5976 = vmatpush1.bf16.msra.mxu0 %v5973
      %5977 = vmatprep.subr.bf16.mxu0 0
      %5978 = vmatpush1.bf16.msra.mxu0 0
      %5979 = vmatprep.subr.bf16.mxu0 0
      %5980 = vmatpush1.bf16.msra.mxu0 0
      %5981 = vmatprep.subr.bf16.mxu0 0
      %5982 = vmatpush1.bf16.msra.mxu0 0
      %5983 = vmatprep.subr.bf16.mxu0 0
      %5984 = vmatpush1.bf16.msra.mxu0 0
      %5985 = vmatprep.subr.bf16.mxu0 0
      %5986 = vmatpush1.bf16.msra.mxu0 0
      %5987 = vmatprep.subr.bf16.mxu0 0
      %5988 = vmatpush1.bf16.msra.mxu0 0
      %5989 = vmatprep.subr.bf16.mxu0 0
      %5990 = vmatpush1.bf16.msra.mxu0 0
      %5991 = vmatprep.subr.bf16.mxu0 0
      %5992 = vmatpush1.bf16.msra.mxu0 0
      %5993 = vmatprep.subr.bf16.mxu0 0
      %5994 = vmatpush1.bf16.msra.mxu0 0
      %5995 = vmatprep.subr.bf16.mxu0 0
      %5996 = vmatpush1.bf16.msra.mxu0 0
      %5997 = vmatprep.subr.bf16.mxu0 0
      %5998 = vmatpush1.bf16.msra.mxu0 0
      %5999 = vmatprep.subr.bf16.mxu0 0
      %6000 = vmatpush1.bf16.msra.mxu0 0
      %6001 = vmatprep.subr.bf16.mxu0 0
      %6002 = vmatpush1.bf16.msra.mxu0 0
      %6003 = vmatprep.subr.bf16.mxu0 0
      %6004 = vmatpush1.bf16.msra.mxu0 0
      %6005 = vmatprep.subr.bf16.mxu0 0
      %6006 = vmatpush1.bf16.msra.mxu0 0
      %6007 = vmatprep.mubr.bf16.mxu0 0
      %6008 = vmatmul.mubr.bf16.gmra.mrb[0].mxu0 %v1607
      %v6009 = vpop.f32.mrb[0].mxu0
      %v6010 = vadd.f32 0.0, %v6009
      %v6011 = vpop.f32.mrb[0].mxu0
      %v6012 = vpop.f32.mrb[0].mxu0
      %v6013 = vadd.f32 0.0, %v6012
      %v6014 = vpop.f32.mrb[0].mxu0
      %6015 = vmatprep.mubr.bf16.mxu0 0
      %6016 = vmatmul.mubr.bf16.gmra.mrb[0].mxu0 %v1610
      %v6017 = vpop.f32.mrb[0].mxu0
      %v6018 = vadd.f32 0.0, %v6017
      %v6019 = vpop.f32.mrb[0].mxu0
      %v6020 = vpop.f32.mrb[0].mxu0
      %v6021 = vadd.f32 0.0, %v6020
      %v6022 = vpop.f32.mrb[0].mxu0
      %6023 = vmatprep.mubr.bf16.mxu0 0
      %6024 = vmatmul.mubr.bf16.gmra.mrb[0].mxu0 %v1613
      %v6025 = vpop.f32.mrb[0].mxu0
      %v6026 = vadd.f32 0.0, %v6025
      %v6027 = vpop.f32.mrb[0].mxu0
      %v6028 = vpop.f32.mrb[0].mxu0
      %v6029 = vadd.f32 0.0, %v6028
      %v6030 = vpop.f32.mrb[0].mxu0
      %6031 = vmatprep.mubr.bf16.mxu0 0
      %6032 = vmatmul.mubr.bf16.gmra.mrb[0].mxu0 %v1616
      %v6033 = vpop.f32.mrb[0].mxu0
      %v6034 = vadd.f32 0.0, %v6033
      %v6035 = vpop.f32.mrb[0].mxu0
      %v6036 = vpop.f32.mrb[0].mxu0
      %v6037 = vadd.f32 0.0, %v6036
      %v6038 = vpop.f32.mrb[0].mxu0
      %6039 = vmatprep.mubr.bf16.mxu0 0
      %6040 = vmatmul.mubr.bf16.gmra.mrb[0].mxu0 %v1619
      %v6041 = vpop.f32.mrb[0].mxu0
      %v6042 = vadd.f32 0.0, %v6041
      %v6043 = vpop.f32.mrb[0].mxu0
      %v6044 = vpop.f32.mrb[0].mxu0
      %v6045 = vadd.f32 0.0, %v6044
      %v6046 = vpop.f32.mrb[0].mxu0
      %6047 = vmatprep.mubr.bf16.mxu0 0
      %6048 = vmatmul.mubr.bf16.gmra.mrb[0].mxu0 %v1622
      %v6049 = vpop.f32.mrb[0].mxu0
      %v6050 = vadd.f32 0.0, %v6049
      %v6051 = vpop.f32.mrb[0].mxu0
      %v6052 = vpop.f32.mrb[0].mxu0
      %v6053 = vadd.f32 0.0, %v6052
      %v6054 = vpop.f32.mrb[0].mxu0
      %6055 = vmatprep.mubr.bf16.mxu0 0
      %6056 = vmatmul.mubr.bf16.gmra.mrb[0].mxu0 %v1625
      %v6057 = vpop.f32.mrb[0].mxu0
      %v6058 = vadd.f32 0.0, %v6057
      %v6059 = vpop.f32.mrb[0].mxu0
      %v6060 = vpop.f32.mrb[0].mxu0
      %v6061 = vadd.f32 0.0, %v6060
      %v6062 = vpop.f32.mrb[0].mxu0
      %6063 = vmatprep.mubr.bf16.mxu0 0
      %6064 = vmatmul.mubr.bf16.gmra.mrb[0].mxu0 %v1628
      %v6065 = vpop.f32.mrb[0].mxu0
      %v6066 = vadd.f32 0.0, %v6065
      %v6067 = vpop.f32.mrb[0].mxu0
      %v6068 = vpop.f32.mrb[0].mxu0
      %v6069 = vadd.f32 0.0, %v6068
      %v6070 = vpop.f32.mrb[0].mxu0
      %6071 = vmatprep.mubr.bf16.mxu0 0
      %6072 = vmatmul.mubr.bf16.gmra.mrb[0].mxu0 %v1631
      %v6073 = vpop.f32.mrb[0].mxu0
      %v6074 = vadd.f32 0.0, %v6073
      %v6075 = vpop.f32.mrb[0].mxu0
      %v6076 = vpop.f32.mrb[0].mxu0
      %v6077 = vadd.f32 0.0, %v6076
      %v6078 = vpop.f32.mrb[0].mxu0
      %6079 = vmatprep.mubr.bf16.mxu0 0
      %6080 = vmatmul.mubr.bf16.gmra.mrb[0].mxu0 %v1634
      %v6081 = vpop.f32.mrb[0].mxu0
      %v6082 = vadd.f32 0.0, %v6081
      %v6083 = vpop.f32.mrb[0].mxu0
      %v6084 = vpop.f32.mrb[0].mxu0
      %v6085 = vadd.f32 0.0, %v6084
      %v6086 = vpop.f32.mrb[0].mxu0
      %6087 = vmatprep.mubr.bf16.mxu0 0
      %6088 = vmatmul.mubr.bf16.gmra.mrb[0].mxu0 %v1637
      %v6089 = vpop.f32.mrb[0].mxu0
      %v6090 = vadd.f32 0.0, %v6089
      %v6091 = vpop.f32.mrb[0].mxu0
      %v6092 = vpop.f32.mrb[0].mxu0
      %v6093 = vadd.f32 0.0, %v6092
      %v6094 = vpop.f32.mrb[0].mxu0
      %6095 = vmatprep.mubr.bf16.mxu0 0
      %6096 = vmatmul.mubr.bf16.gmra.mrb[0].mxu0 %v1640
      %v6097 = vpop.f32.mrb[0].mxu0
      %v6098 = vadd.f32 0.0, %v6097
      %v6099 = vpop.f32.mrb[0].mxu0
      %v6100 = vpop.f32.mrb[0].mxu0
      %v6101 = vadd.f32 0.0, %v6100
      %v6102 = vpop.f32.mrb[0].mxu0
      %6103 = vmatprep.mubr.bf16.mxu0 0
      %6104 = vmatmul.mubr.bf16.gmra.mrb[0].mxu0 %v2847
      %v6105 = vpop.f32.mrb[0].mxu0
      %v6106 = vadd.f32 0.0, %v6105
      %v6107 = vpop.f32.mrb[0].mxu0
      %v6108 = vpop.f32.mrb[0].mxu0
      %v6109 = vadd.f32 0.0, %v6108
      %v6110 = vpop.f32.mrb[0].mxu0
      %6111 = vmatprep.mubr.bf16.mxu0 0
      %6112 = vmatmul.mubr.bf16.gmra.mrb[0].mxu0 %v3888
      %v6113 = vpop.f32.mrb[0].mxu0
      %v6114 = vadd.f32 0.0, %v6113
      %v6115 = vpop.f32.mrb[0].mxu0
      %v6116 = vpop.f32.mrb[0].mxu0
      %v6117 = vadd.f32 0.0, %v6116
      %v6118 = vpop.f32.mrb[0].mxu0
      %6119 = vmatprep.mubr.bf16.mxu0 0
      %6120 = vmatmul.mubr.bf16.gmra.mrb[0].mxu0 %v4929
      %v6121 = vpop.f32.mrb[0].mxu0
      %v6122 = vadd.f32 0.0, %v6121
      %v6123 = vpop.f32.mrb[0].mxu0
      %v6124 = vpop.f32.mrb[0].mxu0
      %v6125 = vadd.f32 0.0, %v6124
      %v6126 = vpop.f32.mrb[0].mxu0
      %6127 = vmatprep.mubr.bf16.mxu0 0
      %6128 = vmatmul.mubr.bf16.gmra.mrb[0].mxu0 %v5970
      %v6129 = vpop.f32.mrb[0].mxu0
      %v6130 = vadd.f32 0.0, %v6129
      %v6131 = vpop.f32.mrb[0].mxu0
      %v6132 = vpop.f32.mrb[0].mxu0
      %v6133 = vadd.f32 0.0, %v6132
      %v6134 = vpop.f32.mrb[0].mxu0
      %6135 = vdwg.mxu0
      %v6136 = vadd.f32 %v5927, %v6010
      %v6137 = vadd.f32 %v5928, %v6013
      %v6138 = vadd.f32 %v5929, %v6018
      %v6139 = vadd.f32 %v5930, %v6021
      %v6140 = vadd.f32 %v5931, %v6026
      %v6141 = vadd.f32 %v5932, %v6029
      %v6142 = vadd.f32 %v5933, %v6034
      %v6143 = vadd.f32 %v5934, %v6037
      %v6144 = vadd.f32 %v5935, %v6042
      %v6145 = vadd.f32 %v5936, %v6045
      %v6146 = vadd.f32 %v5937, %v6050
      %v6147 = vadd.f32 %v5938, %v6053
      %v6148 = vadd.f32 %v5939, %v6058
      %v6149 = vadd.f32 %v5940, %v6061
      %v6150 = vadd.f32 %v5941, %v6066
      %v6151 = vadd.f32 %v5942, %v6069
      %v6152 = vadd.f32 %v5943, %v6074
      %v6153 = vadd.f32 %v5944, %v6077
      %v6154 = vadd.f32 %v5945, %v6082
      %v6155 = vadd.f32 %v5946, %v6085
      %v6156 = vadd.f32 %v5947, %v6090
      %v6157 = vadd.f32 %v5948, %v6093
      %v6158 = vadd.f32 %v5949, %v6098
      %v6159 = vadd.f32 %v5950, %v6101
      %v6160 = vadd.f32 %v5951, %v6106
      %v6161 = vadd.f32 %v5952, %v6109
      %v6162 = vadd.f32 %v5953, %v6114
      %v6163 = vadd.f32 %v5954, %v6117
      %v6164 = vadd.f32 %v5955, %v6122
      %v6165 = vadd.f32 %v5956, %v6125
      %v6166 = vadd.f32 %v5957, %v6130
      %v6167 = vadd.f32 %v5958, %v6133
      %v6168 = vrot.slane %v464, 4
      %v6169 = vrot.slane %v465, 4
      %v6170 = vsel %vm1838, %v6168, %v6169
      %v6171 = vrot.slane %v466, 4
      %v6172 = vsel %vm1838, %v6169, %v6171
      %v6175 = vpack.c.bf16 %v6172, %v6170
      %s6176 = scalar_lea.vmem %s1, 48
      %v6177 = vld [vmem:[%s6176] sm:$0x3]
      %v6179 = vsel %vm280, %v6175, 0
      %v6182 = vsel %vm711, %v6177, 0
      %6184 = vmatprep.subr.bf16.mxu0 0
      %6185 = vmatpush1.bf16.msra.mxu0 %v6182
      %6186 = vmatprep.subr.bf16.mxu0 0
      %6187 = vmatpush1.bf16.msra.mxu0 0
      %6188 = vmatprep.subr.bf16.mxu0 0
      %6189 = vmatpush1.bf16.msra.mxu0 0
      %6190 = vmatprep.subr.bf16.mxu0 0
      %6191 = vmatpush1.bf16.msra.mxu0 0
      %6192 = vmatprep.subr.bf16.mxu0 0
      %6193 = vmatpush1.bf16.msra.mxu0 0
      %6194 = vmatprep.subr.bf16.mxu0 0
      %6195 = vmatpush1.bf16.msra.mxu0 0
      %6196 = vmatprep.subr.bf16.mxu0 0
      %6197 = vmatpush1.bf16.msra.mxu0 0
      %6198 = vmatprep.subr.bf16.mxu0 0
      %6199 = vmatpush1.bf16.msra.mxu0 0
      %6200 = vmatprep.subr.bf16.mxu0 0
      %6201 = vmatpush1.bf16.msra.mxu0 0
      %6202 = vmatprep.subr.bf16.mxu0 0
      %6203 = vmatpush1.bf16.msra.mxu0 0
      %6204 = vmatprep.subr.bf16.mxu0 0
      %6205 = vmatpush1.bf16.msra.mxu0 0
      %6206 = vmatprep.subr.bf16.mxu0 0
      %6207 = vmatpush1.bf16.msra.mxu0 0
      %6208 = vmatprep.subr.bf16.mxu0 0
      %6209 = vmatpush1.bf16.msra.mxu0 0
      %6210 = vmatprep.subr.bf16.mxu0 0
      %6211 = vmatpush1.bf16.msra.mxu0 0
      %6212 = vmatprep.subr.bf16.mxu0 0
      %6213 = vmatpush1.bf16.msra.mxu0 0
      %6214 = vmatprep.subr.bf16.mxu0 0
      %6215 = vmatpush1.bf16.msra.mxu0 0
      %6216 = vmatprep.mubr.bf16.mxu0 0
      %6217 = vmatmul.mubr.bf16.gmra.mrb[0].mxu0 %v1982
      %v6218 = vpop.f32.mrb[0].mxu0
      %v6219 = vadd.f32 0.0, %v6218
      %v6220 = vpop.f32.mrb[0].mxu0
      %v6221 = vpop.f32.mrb[0].mxu0
      %v6222 = vadd.f32 0.0, %v6221
      %v6223 = vpop.f32.mrb[0].mxu0
      %6224 = vmatprep.mubr.bf16.mxu0 0
      %6225 = vmatmul.mubr.bf16.gmra.mrb[0].mxu0 %v1985
      %v6226 = vpop.f32.mrb[0].mxu0
      %v6227 = vadd.f32 0.0, %v6226
      %v6228 = vpop.f32.mrb[0].mxu0
      %v6229 = vpop.f32.mrb[0].mxu0
      %v6230 = vadd.f32 0.0, %v6229
      %v6231 = vpop.f32.mrb[0].mxu0
      %6232 = vmatprep.mubr.bf16.mxu0 0
      %6233 = vmatmul.mubr.bf16.gmra.mrb[0].mxu0 %v1988
      %v6234 = vpop.f32.mrb[0].mxu0
      %v6235 = vadd.f32 0.0, %v6234
      %v6236 = vpop.f32.mrb[0].mxu0
      %v6237 = vpop.f32.mrb[0].mxu0
      %v6238 = vadd.f32 0.0, %v6237
      %v6239 = vpop.f32.mrb[0].mxu0
      %6240 = vmatprep.mubr.bf16.mxu0 0
      %6241 = vmatmul.mubr.bf16.gmra.mrb[0].mxu0 %v1991
      %v6242 = vpop.f32.mrb[0].mxu0
      %v6243 = vadd.f32 0.0, %v6242
      %v6244 = vpop.f32.mrb[0].mxu0
      %v6245 = vpop.f32.mrb[0].mxu0
      %v6246 = vadd.f32 0.0, %v6245
      %v6247 = vpop.f32.mrb[0].mxu0
      %6248 = vmatprep.mubr.bf16.mxu0 0
      %6249 = vmatmul.mubr.bf16.gmra.mrb[0].mxu0 %v1994
      %v6250 = vpop.f32.mrb[0].mxu0
      %v6251 = vadd.f32 0.0, %v6250
      %v6252 = vpop.f32.mrb[0].mxu0
      %v6253 = vpop.f32.mrb[0].mxu0
      %v6254 = vadd.f32 0.0, %v6253
      %v6255 = vpop.f32.mrb[0].mxu0
      %6256 = vmatprep.mubr.bf16.mxu0 0
      %6257 = vmatmul.mubr.bf16.gmra.mrb[0].mxu0 %v1997
      %v6258 = vpop.f32.mrb[0].mxu0
      %v6259 = vadd.f32 0.0, %v6258
      %v6260 = vpop.f32.mrb[0].mxu0
      %v6261 = vpop.f32.mrb[0].mxu0
      %v6262 = vadd.f32 0.0, %v6261
      %v6263 = vpop.f32.mrb[0].mxu0
      %6264 = vmatprep.mubr.bf16.mxu0 0
      %6265 = vmatmul.mubr.bf16.gmra.mrb[0].mxu0 %v2000
      %v6266 = vpop.f32.mrb[0].mxu0
      %v6267 = vadd.f32 0.0, %v6266
      %v6268 = vpop.f32.mrb[0].mxu0
      %v6269 = vpop.f32.mrb[0].mxu0
      %v6270 = vadd.f32 0.0, %v6269
      %v6271 = vpop.f32.mrb[0].mxu0
      %6272 = vmatprep.mubr.bf16.mxu0 0
      %6273 = vmatmul.mubr.bf16.gmra.mrb[0].mxu0 %v2003
      %v6274 = vpop.f32.mrb[0].mxu0
      %v6275 = vadd.f32 0.0, %v6274
      %v6276 = vpop.f32.mrb[0].mxu0
      %v6277 = vpop.f32.mrb[0].mxu0
      %v6278 = vadd.f32 0.0, %v6277
      %v6279 = vpop.f32.mrb[0].mxu0
      %6280 = vmatprep.mubr.bf16.mxu0 0
      %6281 = vmatmul.mubr.bf16.gmra.mrb[0].mxu0 %v2006
      %v6282 = vpop.f32.mrb[0].mxu0
      %v6283 = vadd.f32 0.0, %v6282
      %v6284 = vpop.f32.mrb[0].mxu0
      %v6285 = vpop.f32.mrb[0].mxu0
      %v6286 = vadd.f32 0.0, %v6285
      %v6287 = vpop.f32.mrb[0].mxu0
      %6288 = vmatprep.mubr.bf16.mxu0 0
      %6289 = vmatmul.mubr.bf16.gmra.mrb[0].mxu0 %v2009
      %v6290 = vpop.f32.mrb[0].mxu0
      %v6291 = vadd.f32 0.0, %v6290
      %v6292 = vpop.f32.mrb[0].mxu0
      %v6293 = vpop.f32.mrb[0].mxu0
      %v6294 = vadd.f32 0.0, %v6293
      %v6295 = vpop.f32.mrb[0].mxu0
      %6296 = vmatprep.mubr.bf16.mxu0 0
      %6297 = vmatmul.mubr.bf16.gmra.mrb[0].mxu0 %v2012
      %v6298 = vpop.f32.mrb[0].mxu0
      %v6299 = vadd.f32 0.0, %v6298
      %v6300 = vpop.f32.mrb[0].mxu0
      %v6301 = vpop.f32.mrb[0].mxu0
      %v6302 = vadd.f32 0.0, %v6301
      %v6303 = vpop.f32.mrb[0].mxu0
      %6304 = vmatprep.mubr.bf16.mxu0 0
      %6305 = vmatmul.mubr.bf16.gmra.mrb[0].mxu0 %v2015
      %v6306 = vpop.f32.mrb[0].mxu0
      %v6307 = vadd.f32 0.0, %v6306
      %v6308 = vpop.f32.mrb[0].mxu0
      %v6309 = vpop.f32.mrb[0].mxu0
      %v6310 = vadd.f32 0.0, %v6309
      %v6311 = vpop.f32.mrb[0].mxu0
      %6312 = vmatprep.mubr.bf16.mxu0 0
      %6313 = vmatmul.mubr.bf16.gmra.mrb[0].mxu0 %v3056
      %v6314 = vpop.f32.mrb[0].mxu0
      %v6315 = vadd.f32 0.0, %v6314
      %v6316 = vpop.f32.mrb[0].mxu0
      %v6317 = vpop.f32.mrb[0].mxu0
      %v6318 = vadd.f32 0.0, %v6317
      %v6319 = vpop.f32.mrb[0].mxu0
      %6320 = vmatprep.mubr.bf16.mxu0 0
      %6321 = vmatmul.mubr.bf16.gmra.mrb[0].mxu0 %v4097
      %v6322 = vpop.f32.mrb[0].mxu0
      %v6323 = vadd.f32 0.0, %v6322
      %v6324 = vpop.f32.mrb[0].mxu0
      %v6325 = vpop.f32.mrb[0].mxu0
      %v6326 = vadd.f32 0.0, %v6325
      %v6327 = vpop.f32.mrb[0].mxu0
      %6328 = vmatprep.mubr.bf16.mxu0 0
      %6329 = vmatmul.mubr.bf16.gmra.mrb[0].mxu0 %v5138
      %v6330 = vpop.f32.mrb[0].mxu0
      %v6331 = vadd.f32 0.0, %v6330
      %v6332 = vpop.f32.mrb[0].mxu0
      %v6333 = vpop.f32.mrb[0].mxu0
      %v6334 = vadd.f32 0.0, %v6333
      %v6335 = vpop.f32.mrb[0].mxu0
      %6336 = vmatprep.mubr.bf16.mxu0 0
      %6337 = vmatmul.mubr.bf16.gmra.mrb[0].mxu0 %v6179
      %v6338 = vpop.f32.mrb[0].mxu0
      %v6339 = vadd.f32 0.0, %v6338
      %v6340 = vpop.f32.mrb[0].mxu0
      %v6341 = vpop.f32.mrb[0].mxu0
      %v6342 = vadd.f32 0.0, %v6341
      %v6343 = vpop.f32.mrb[0].mxu0
      %6344 = vdwg.mxu0
      %v6345 = vadd.f32 %v6136, %v6219
      %v6346 = vadd.f32 %v6137, %v6222
      %v6347 = vadd.f32 %v6138, %v6227
      %v6348 = vadd.f32 %v6139, %v6230
      %v6349 = vadd.f32 %v6140, %v6235
      %v6350 = vadd.f32 %v6141, %v6238
      %v6351 = vadd.f32 %v6142, %v6243
      %v6352 = vadd.f32 %v6143, %v6246
      %v6353 = vadd.f32 %v6144, %v6251
      %v6354 = vadd.f32 %v6145, %v6254
      %v6355 = vadd.f32 %v6146, %v6259
      %v6356 = vadd.f32 %v6147, %v6262
      %v6357 = vadd.f32 %v6148, %v6267
      %v6358 = vadd.f32 %v6149, %v6270
      %v6359 = vadd.f32 %v6150, %v6275
      %v6360 = vadd.f32 %v6151, %v6278
      %v6361 = vadd.f32 %v6152, %v6283
      %v6362 = vadd.f32 %v6153, %v6286
      %v6363 = vadd.f32 %v6154, %v6291
      %v6364 = vadd.f32 %v6155, %v6294
      %v6365 = vadd.f32 %v6156, %v6299
      %v6366 = vadd.f32 %v6157, %v6302
      %v6367 = vadd.f32 %v6158, %v6307
      %v6368 = vadd.f32 %v6159, %v6310
      %v6369 = vadd.f32 %v6160, %v6315
      %v6370 = vadd.f32 %v6161, %v6318
      %v6371 = vadd.f32 %v6162, %v6323
      %v6372 = vadd.f32 %v6163, %v6326
      %v6373 = vadd.f32 %v6164, %v6331
      %v6374 = vadd.f32 %v6165, %v6334
      %v6375 = vadd.f32 %v6166, %v6339
      %v6376 = vadd.f32 %v6167, %v6342
      %v6377 = vld [vmem:[%s2] sm:$0x1]
      %v6379 = vlaneseq
      %v6380 = vshrl.u32 %v6379, 7
      %v6381 = vsub.s32 0, %v6380
      %v6382 = vrot.slane %v6377, %v6381
      %v6384 = vadd.f32 %v6345, %v6382
      %v6385 = vadd.f32 %v6346, %v6382
      %v6386 = vadd.f32 %v6347, %v6382
      %v6387 = vadd.f32 %v6348, %v6382
      %v6388 = vadd.f32 %v6349, %v6382
      %v6389 = vadd.f32 %v6350, %v6382
      %v6390 = vadd.f32 %v6351, %v6382
      %v6391 = vadd.f32 %v6352, %v6382
      %v6392 = vadd.f32 %v6353, %v6382
      %v6393 = vadd.f32 %v6354, %v6382
      %v6394 = vadd.f32 %v6355, %v6382
      %v6395 = vadd.f32 %v6356, %v6382
      %v6396 = vadd.f32 %v6357, %v6382
      %v6397 = vadd.f32 %v6358, %v6382
      %v6398 = vadd.f32 %v6359, %v6382
      %v6399 = vadd.f32 %v6360, %v6382
      %v6400 = vadd.f32 %v6361, %v6382
      %v6401 = vadd.f32 %v6362, %v6382
      %v6402 = vadd.f32 %v6363, %v6382
      %v6403 = vadd.f32 %v6364, %v6382
      %v6404 = vadd.f32 %v6365, %v6382
      %v6405 = vadd.f32 %v6366, %v6382
      %v6406 = vadd.f32 %v6367, %v6382
      %v6407 = vadd.f32 %v6368, %v6382
      %v6408 = vadd.f32 %v6369, %v6382
      %v6409 = vadd.f32 %v6370, %v6382
      %v6410 = vadd.f32 %v6371, %v6382
      %v6411 = vadd.f32 %v6372, %v6382
      %v6412 = vadd.f32 %v6373, %v6382
      %v6413 = vadd.f32 %v6374, %v6382
      %v6414 = vadd.f32 %v6375, %v6382
      %v6415 = vadd.f32 %v6376, %v6382
      %vm6416 = vcmp.ge.f32.partialorder %v6384, 0.0
      %vm6417 = vcmp.ge.f32.partialorder %v6385, 0.0
      %vm6418 = vcmp.ge.f32.partialorder %v6386, 0.0
      %vm6419 = vcmp.ge.f32.partialorder %v6387, 0.0
      %vm6420 = vcmp.ge.f32.partialorder %v6388, 0.0
      %vm6421 = vcmp.ge.f32.partialorder %v6389, 0.0
      %vm6422 = vcmp.ge.f32.partialorder %v6390, 0.0
      %vm6423 = vcmp.ge.f32.partialorder %v6391, 0.0
      %vm6424 = vcmp.ge.f32.partialorder %v6392, 0.0
      %vm6425 = vcmp.ge.f32.partialorder %v6393, 0.0
      %vm6426 = vcmp.ge.f32.partialorder %v6394, 0.0
      %vm6427 = vcmp.ge.f32.partialorder %v6395, 0.0
      %vm6428 = vcmp.ge.f32.partialorder %v6396, 0.0
      %vm6429 = vcmp.ge.f32.partialorder %v6397, 0.0
      %vm6430 = vcmp.ge.f32.partialorder %v6398, 0.0
      %vm6431 = vcmp.ge.f32.partialorder %v6399, 0.0
      %vm6432 = vcmp.ge.f32.partialorder %v6400, 0.0
      %vm6433 = vcmp.ge.f32.partialorder %v6401, 0.0
      %vm6434 = vcmp.ge.f32.partialorder %v6402, 0.0
      %vm6435 = vcmp.ge.f32.partialorder %v6403, 0.0
      %vm6436 = vcmp.ge.f32.partialorder %v6404, 0.0
      %vm6437 = vcmp.ge.f32.partialorder %v6405, 0.0
      %vm6438 = vcmp.ge.f32.partialorder %v6406, 0.0
      %vm6439 = vcmp.ge.f32.partialorder %v6407, 0.0
      %vm6440 = vcmp.ge.f32.partialorder %v6408, 0.0
      %vm6441 = vcmp.ge.f32.partialorder %v6409, 0.0
      %vm6442 = vcmp.ge.f32.partialorder %v6410, 0.0
      %vm6443 = vcmp.ge.f32.partialorder %v6411, 0.0
      %vm6444 = vcmp.ge.f32.partialorder %v6412, 0.0
      %vm6445 = vcmp.ge.f32.partialorder %v6413, 0.0
      %vm6446 = vcmp.ge.f32.partialorder %v6414, 0.0
      %vm6447 = vcmp.ge.f32.partialorder %v6415, 0.0
      %v6448 = vmul.f32 %v6384, 0.2
      %v6449 = vmul.f32 %v6385, 0.2
      %v6450 = vmul.f32 %v6386, 0.2
      %v6451 = vmul.f32 %v6387, 0.2
      %v6452 = vmul.f32 %v6388, 0.2
      %v6453 = vmul.f32 %v6389, 0.2
      %v6454 = vmul.f32 %v6390, 0.2
      %v6455 = vmul.f32 %v6391, 0.2
      %v6456 = vmul.f32 %v6392, 0.2
      %v6457 = vmul.f32 %v6393, 0.2
      %v6458 = vmul.f32 %v6394, 0.2
      %v6459 = vmul.f32 %v6395, 0.2
      %v6460 = vmul.f32 %v6396, 0.2
      %v6461 = vmul.f32 %v6397, 0.2
      %v6462 = vmul.f32 %v6398, 0.2
      %v6463 = vmul.f32 %v6399, 0.2
      %v6464 = vmul.f32 %v6400, 0.2
      %v6465 = vmul.f32 %v6401, 0.2
      %v6466 = vmul.f32 %v6402, 0.2
      %v6467 = vmul.f32 %v6403, 0.2
      %v6468 = vmul.f32 %v6404, 0.2
      %v6469 = vmul.f32 %v6405, 0.2
      %v6470 = vmul.f32 %v6406, 0.2
      %v6471 = vmul.f32 %v6407, 0.2
      %v6472 = vmul.f32 %v6408, 0.2
      %v6473 = vmul.f32 %v6409, 0.2
      %v6474 = vmul.f32 %v6410, 0.2
      %v6475 = vmul.f32 %v6411, 0.2
      %v6476 = vmul.f32 %v6412, 0.2
      %v6477 = vmul.f32 %v6413, 0.2
      %v6478 = vmul.f32 %v6414, 0.2
      %v6479 = vmul.f32 %v6415, 0.2
      %v6480 = vsel %vm6416, %v6384, %v6448
      %v6481 = vsel %vm6417, %v6385, %v6449
      %v6482 = vsel %vm6418, %v6386, %v6450
      %v6483 = vsel %vm6419, %v6387, %v6451
      %v6484 = vsel %vm6420, %v6388, %v6452
      %v6485 = vsel %vm6421, %v6389, %v6453
      %v6486 = vsel %vm6422, %v6390, %v6454
      %v6487 = vsel %vm6423, %v6391, %v6455
      %v6488 = vsel %vm6424, %v6392, %v6456
      %v6489 = vsel %vm6425, %v6393, %v6457
      %v6490 = vsel %vm6426, %v6394, %v6458
      %v6491 = vsel %vm6427, %v6395, %v6459
      %v6492 = vsel %vm6428, %v6396, %v6460
      %v6493 = vsel %vm6429, %v6397, %v6461
      %v6494 = vsel %vm6430, %v6398, %v6462
      %v6495 = vsel %vm6431, %v6399, %v6463
      %v6496 = vsel %vm6432, %v6400, %v6464
      %v6497 = vsel %vm6433, %v6401, %v6465
      %v6498 = vsel %vm6434, %v6402, %v6466
      %v6499 = vsel %vm6435, %v6403, %v6467
      %v6500 = vsel %vm6436, %v6404, %v6468
      %v6501 = vsel %vm6437, %v6405, %v6469
      %v6502 = vsel %vm6438, %v6406, %v6470
      %v6503 = vsel %vm6439, %v6407, %v6471
      %v6504 = vsel %vm6440, %v6408, %v6472
      %v6505 = vsel %vm6441, %v6409, %v6473
      %v6506 = vsel %vm6442, %v6410, %v6474
      %v6507 = vsel %vm6443, %v6411, %v6475
      %v6508 = vsel %vm6444, %v6412, %v6476
      %v6509 = vsel %vm6445, %v6413, %v6477
      %v6510 = vsel %vm6446, %v6414, %v6478
      %v6511 = vsel %vm6447, %v6415, %v6479
      %6544 = vrot.lane.b32.xlu0 %v6480, 124
      %v6545 = vpop.permute.xlu0 %6544
      %6546 = vrot.lane.b32.xlu0 %v6481, 124
      %v6547 = vpop.permute.xlu0 %6546
      %6548 = vrot.lane.b32.xlu0 %v6482, 124
      %v6549 = vpop.permute.xlu0 %6548
      %6550 = vrot.lane.b32.xlu0 %v6483, 124
      %v6551 = vpop.permute.xlu0 %6550
      %6552 = vrot.lane.b32.xlu0 %v6484, 124
      %v6553 = vpop.permute.xlu0 %6552
      %6554 = vrot.lane.b32.xlu0 %v6485, 124
      %v6555 = vpop.permute.xlu0 %6554
      %6556 = vrot.lane.b32.xlu0 %v6486, 124
      %v6557 = vpop.permute.xlu0 %6556
      %6558 = vrot.lane.b32.xlu0 %v6487, 124
      %v6559 = vpop.permute.xlu0 %6558
      %6560 = vrot.lane.b32.xlu0 %v6488, 124
      %v6561 = vpop.permute.xlu0 %6560
      %6562 = vrot.lane.b32.xlu0 %v6489, 124
      %v6563 = vpop.permute.xlu0 %6562
      %6564 = vrot.lane.b32.xlu0 %v6490, 124
      %v6565 = vpop.permute.xlu0 %6564
      %6566 = vrot.lane.b32.xlu0 %v6491, 124
      %v6567 = vpop.permute.xlu0 %6566
      %6568 = vrot.lane.b32.xlu0 %v6492, 124
      %v6569 = vpop.permute.xlu0 %6568
      %6570 = vrot.lane.b32.xlu0 %v6493, 124
      %v6571 = vpop.permute.xlu0 %6570
      %6572 = vrot.lane.b32.xlu0 %v6494, 124
      %v6573 = vpop.permute.xlu0 %6572
      %6574 = vrot.lane.b32.xlu0 %v6495, 124
      %v6575 = vpop.permute.xlu0 %6574
      %6576 = vrot.lane.b32.xlu0 %v6496, 124
      %v6577 = vpop.permute.xlu0 %6576
      %6578 = vrot.lane.b32.xlu0 %v6497, 124
      %v6579 = vpop.permute.xlu0 %6578
      %6580 = vrot.lane.b32.xlu0 %v6498, 124
      %v6581 = vpop.permute.xlu0 %6580
      %6582 = vrot.lane.b32.xlu0 %v6499, 124
      %v6583 = vpop.permute.xlu0 %6582
      %6584 = vrot.lane.b32.xlu0 %v6500, 124
      %v6585 = vpop.permute.xlu0 %6584
      %6586 = vrot.lane.b32.xlu0 %v6501, 124
      %v6587 = vpop.permute.xlu0 %6586
      %6588 = vrot.lane.b32.xlu0 %v6502, 124
      %v6589 = vpop.permute.xlu0 %6588
      %6590 = vrot.lane.b32.xlu0 %v6503, 124
      %v6591 = vpop.permute.xlu0 %6590
      %6592 = vrot.lane.b32.xlu0 %v6504, 124
      %v6593 = vpop.permute.xlu0 %6592
      %6594 = vrot.lane.b32.xlu0 %v6505, 124
      %v6595 = vpop.permute.xlu0 %6594
      %6596 = vrot.lane.b32.xlu0 %v6506, 124
      %v6597 = vpop.permute.xlu0 %6596
      %6598 = vrot.lane.b32.xlu0 %v6507, 124
      %v6599 = vpop.permute.xlu0 %6598
      %6600 = vrot.lane.b32.xlu0 %v6508, 124
      %v6601 = vpop.permute.xlu0 %6600
      %6602 = vrot.lane.b32.xlu0 %v6509, 124
      %v6603 = vpop.permute.xlu0 %6602
      %6604 = vrot.lane.b32.xlu0 %v6510, 124
      %v6605 = vpop.permute.xlu0 %6604
      %6606 = vrot.lane.b32.xlu0 %v6511, 124
      %v6607 = vpop.permute.xlu0 %6606
      %v6640 = vadd.f32 %v6480, %v6545
      %v6641 = vadd.f32 %v6481, %v6547
      %v6642 = vadd.f32 %v6482, %v6549
      %v6643 = vadd.f32 %v6483, %v6551
      %v6644 = vadd.f32 %v6484, %v6553
      %v6645 = vadd.f32 %v6485, %v6555
      %v6646 = vadd.f32 %v6486, %v6557
      %v6647 = vadd.f32 %v6487, %v6559
      %v6648 = vadd.f32 %v6488, %v6561
      %v6649 = vadd.f32 %v6489, %v6563
      %v6650 = vadd.f32 %v6490, %v6565
      %v6651 = vadd.f32 %v6491, %v6567
      %v6652 = vadd.f32 %v6492, %v6569
      %v6653 = vadd.f32 %v6493, %v6571
      %v6654 = vadd.f32 %v6494, %v6573
      %v6655 = vadd.f32 %v6495, %v6575
      %v6656 = vadd.f32 %v6496, %v6577
      %v6657 = vadd.f32 %v6497, %v6579
      %v6658 = vadd.f32 %v6498, %v6581
      %v6659 = vadd.f32 %v6499, %v6583
      %v6660 = vadd.f32 %v6500, %v6585
      %v6661 = vadd.f32 %v6501, %v6587
      %v6662 = vadd.f32 %v6502, %v6589
      %v6663 = vadd.f32 %v6503, %v6591
      %v6664 = vadd.f32 %v6504, %v6593
      %v6665 = vadd.f32 %v6505, %v6595
      %v6666 = vadd.f32 %v6506, %v6597
      %v6667 = vadd.f32 %v6507, %v6599
      %v6668 = vadd.f32 %v6508, %v6601
      %v6669 = vadd.f32 %v6509, %v6603
      %v6670 = vadd.f32 %v6510, %v6605
      %v6671 = vadd.f32 %v6511, %v6607
      %v6672 = vsel %vm280, %v6640, -inf
      %v6673 = vsel %vm280, %v6641, -inf
      %v6674 = vsel %vm280, %v6642, -inf
      %v6675 = vsel %vm280, %v6643, -inf
      %v6676 = vsel %vm280, %v6644, -inf
      %v6677 = vmax.f32 %v6672, %v6676
      %v6678 = vsel %vm280, %v6645, -inf
      %v6679 = vmax.f32 %v6673, %v6678
      %v6680 = vsel %vm280, %v6646, -inf
      %v6681 = vmax.f32 %v6674, %v6680
      %v6682 = vsel %vm280, %v6647, -inf
      %v6683 = vmax.f32 %v6675, %v6682
      %v6684 = vsel %vm280, %v6648, -inf
      %v6685 = vmax.f32 %v6677, %v6684
      %v6686 = vsel %vm280, %v6649, -inf
      %v6687 = vmax.f32 %v6679, %v6686
      %v6688 = vsel %vm280, %v6650, -inf
      %v6689 = vmax.f32 %v6681, %v6688
      %v6690 = vsel %vm280, %v6651, -inf
      %v6691 = vmax.f32 %v6683, %v6690
      %v6692 = vsel %vm280, %v6652, -inf
      %v6693 = vmax.f32 %v6685, %v6692
      %v6694 = vsel %vm280, %v6653, -inf
      %v6695 = vmax.f32 %v6687, %v6694
      %v6696 = vsel %vm280, %v6654, -inf
      %v6697 = vmax.f32 %v6689, %v6696
      %v6698 = vsel %vm280, %v6655, -inf
      %v6699 = vmax.f32 %v6691, %v6698
      %v6700 = vsel %vm280, %v6656, -inf
      %v6701 = vmax.f32 %v6693, %v6700
      %v6702 = vsel %vm280, %v6657, -inf
      %v6703 = vmax.f32 %v6695, %v6702
      %v6704 = vsel %vm280, %v6658, -inf
      %v6705 = vmax.f32 %v6697, %v6704
      %v6706 = vsel %vm280, %v6659, -inf
      %v6707 = vmax.f32 %v6699, %v6706
      %v6708 = vsel %vm280, %v6660, -inf
      %v6709 = vmax.f32 %v6701, %v6708
      %v6710 = vsel %vm280, %v6661, -inf
      %v6711 = vmax.f32 %v6703, %v6710
      %v6712 = vsel %vm280, %v6662, -inf
      %v6713 = vmax.f32 %v6705, %v6712
      %v6714 = vsel %vm280, %v6663, -inf
      %v6715 = vmax.f32 %v6707, %v6714
      %v6716 = vsel %vm280, %v6664, -inf
      %v6717 = vmax.f32 %v6709, %v6716
      %v6718 = vsel %vm280, %v6665, -inf
      %v6719 = vmax.f32 %v6711, %v6718
      %v6720 = vsel %vm280, %v6666, -inf
      %v6721 = vmax.f32 %v6713, %v6720
      %v6722 = vsel %vm280, %v6667, -inf
      %v6723 = vmax.f32 %v6715, %v6722
      %v6724 = vsel %vm280, %v6668, -inf
      %v6725 = vmax.f32 %v6717, %v6724
      %v6726 = vsel %vm280, %v6669, -inf
      %v6727 = vmax.f32 %v6719, %v6726
      %v6728 = vsel %vm280, %v6670, -inf
      %v6729 = vmax.f32 %v6721, %v6728
      %v6730 = vsel %vm280, %v6671, -inf
      %v6731 = vmax.f32 %v6723, %v6730
      %v6732 = vmax.f32 %v6725, %v6727
      %v6733 = vmax.f32 %v6729, %v6731
      %v6734 = vmax.f32 %v6732, %v6733
      %v6735 = vrot.slane %v6734, 4
      %v6736 = vmax.f32 %v6734, %v6735
      %v6737 = vrot.slane %v6736, 2
      %v6738 = vmax.f32 %v6736, %v6737
      %v6739 = vrot.slane %v6738, 1
      %v6740 = vmax.f32 %v6738, %v6739
      %v6741 = vld [vmem:[%s3] sm:$0xf]
      %v6742 = vld [vmem:[%s4] sm:$0x1]
      %v6744 = vsel %vm280, %v6740, 0
      %v6747 = vsel %vm1838, %v6741, 0
      %6749 = vmatprep.subr.mxu0 0.0
      %6750 = vmatpush1.msra.mxu0 %v6747
      %6751 = vmatprep.subr.mxu0 0.0
      %6752 = vmatpush1.msra.mxu0 0.0
      %6753 = vmatprep.subr.mxu0 0.0
      %6754 = vmatpush1.msra.mxu0 0.0
      %6755 = vmatprep.subr.mxu0 0.0
      %6756 = vmatpush1.msra.mxu0 0.0
      %6757 = vmatprep.subr.mxu0 0.0
      %6758 = vmatpush1.msra.mxu0 0.0
      %6759 = vmatprep.subr.mxu0 0.0
      %6760 = vmatpush1.msra.mxu0 0.0
      %6761 = vmatprep.subr.mxu0 0.0
      %6762 = vmatpush1.msra.mxu0 0.0
      %6763 = vmatprep.subr.mxu0 0.0
      %6764 = vmatpush1.msra.mxu0 0.0
      %6765 = vmatprep.subr.mxu0 0.0
      %6766 = vmatpush1.msra.mxu0 0.0
      %6767 = vmatprep.subr.mxu0 0.0
      %6768 = vmatpush1.msra.mxu0 0.0
      %6769 = vmatprep.subr.mxu0 0.0
      %6770 = vmatpush1.msra.mxu0 0.0
      %6771 = vmatprep.subr.mxu0 0.0
      %6772 = vmatpush1.msra.mxu0 0.0
      %6773 = vmatprep.subr.mxu0 0.0
      %6774 = vmatpush1.msra.mxu0 0.0
      %6775 = vmatprep.subr.mxu0 0.0
      %6776 = vmatpush1.msra.mxu0 0.0
      %6777 = vmatprep.subr.mxu0 0.0
      %6778 = vmatpush1.msra.mxu0 0.0
      %6779 = vmatprep.subr.mxu0 0.0
      %6780 = vmatpush1.msra.mxu0 0.0
      %6781 = vmatprep.subr.mxu0 0.0
      %6782 = vmatpush1.msra.mxu0 0.0
      %6783 = vmatprep.subr.mxu0 0.0
      %6784 = vmatpush1.msra.mxu0 0.0
      %6785 = vmatprep.subr.mxu0 0.0
      %6786 = vmatpush1.msra.mxu0 0.0
      %6787 = vmatprep.subr.mxu0 0.0
      %6788 = vmatpush1.msra.mxu0 0.0
      %6789 = vmatprep.subr.mxu0 0.0
      %6790 = vmatpush1.msra.mxu0 0.0
      %6791 = vmatprep.subr.mxu0 0.0
      %6792 = vmatpush1.msra.mxu0 0.0
      %6793 = vmatprep.subr.mxu0 0.0
      %6794 = vmatpush1.msra.mxu0 0.0
      %6795 = vmatprep.subr.mxu0 0.0
      %6796 = vmatpush1.msra.mxu0 0.0
      %6797 = vmatprep.subr.mxu0 0.0
      %6798 = vmatpush1.msra.mxu0 0.0
      %6799 = vmatprep.subr.mxu0 0.0
      %6800 = vmatpush1.msra.mxu0 0.0
      %6801 = vmatprep.subr.mxu0 0.0
      %6802 = vmatpush1.msra.mxu0 0.0
      %6803 = vmatprep.subr.mxu0 0.0
      %6804 = vmatpush1.msra.mxu0 0.0
      %6805 = vmatprep.subr.mxu0 0.0
      %6806 = vmatpush1.msra.mxu0 0.0
      %6807 = vmatprep.subr.mxu0 0.0
      %6808 = vmatpush1.msra.mxu0 0.0
      %6809 = vmatprep.subr.mxu0 0.0
      %6810 = vmatpush1.msra.mxu0 0.0
      %6811 = vmatprep.subr.mxu0 0.0
      %6812 = vmatpush1.msra.mxu0 0.0
      %6813 = vmatprep.mubr.f32.mxu0 0.0
      %6814 = vmatmul.mubr.f32.gmra.mrb[0].mxu0 %v6744
      %v6815 = vpop.f32.mrb[0].mxu0
      %v6816 = vadd.f32 %v6742, %v6815
      %v6817 = vpop.f32.mrb[0].mxu0
      %6818 = vdwg.mxu0
      %v6819 = vld [vmem:[%s5] sm:$0xff]
      %v6820 = vld [vmem:[%s6] sm:$0x1]
      %vm6821 = vcmask 64512
      %v6823 = vsel %vm6821, %v6816, 0
      %6825 = vmatprep.subr.mxu0 0.0
      %6826 = vmatpush1.msra.mxu0 %v6819
      %6827 = vmatprep.subr.mxu0 0.0
      %6828 = vmatpush1.msra.mxu0 0.0
      %6829 = vmatprep.subr.mxu0 0.0
      %6830 = vmatpush1.msra.mxu0 0.0
      %6831 = vmatprep.subr.mxu0 0.0
      %6832 = vmatpush1.msra.mxu0 0.0
      %6833 = vmatprep.subr.mxu0 0.0
      %6834 = vmatpush1.msra.mxu0 0.0
      %6835 = vmatprep.subr.mxu0 0.0
      %6836 = vmatpush1.msra.mxu0 0.0
      %6837 = vmatprep.subr.mxu0 0.0
      %6838 = vmatpush1.msra.mxu0 0.0
      %6839 = vmatprep.subr.mxu0 0.0
      %6840 = vmatpush1.msra.mxu0 0.0
      %6841 = vmatprep.subr.mxu0 0.0
      %6842 = vmatpush1.msra.mxu0 0.0
      %6843 = vmatprep.subr.mxu0 0.0
      %6844 = vmatpush1.msra.mxu0 0.0
      %6845 = vmatprep.subr.mxu0 0.0
      %6846 = vmatpush1.msra.mxu0 0.0
      %6847 = vmatprep.subr.mxu0 0.0
      %6848 = vmatpush1.msra.mxu0 0.0
      %6849 = vmatprep.subr.mxu0 0.0
      %6850 = vmatpush1.msra.mxu0 0.0
      %6851 = vmatprep.subr.mxu0 0.0
      %6852 = vmatpush1.msra.mxu0 0.0
      %6853 = vmatprep.subr.mxu0 0.0
      %6854 = vmatpush1.msra.mxu0 0.0
      %6855 = vmatprep.subr.mxu0 0.0
      %6856 = vmatpush1.msra.mxu0 0.0
      %6857 = vmatprep.subr.mxu0 0.0
      %6858 = vmatpush1.msra.mxu0 0.0
      %6859 = vmatprep.subr.mxu0 0.0
      %6860 = vmatpush1.msra.mxu0 0.0
      %6861 = vmatprep.subr.mxu0 0.0
      %6862 = vmatpush1.msra.mxu0 0.0
      %6863 = vmatprep.subr.mxu0 0.0
      %6864 = vmatpush1.msra.mxu0 0.0
      %6865 = vmatprep.subr.mxu0 0.0
      %6866 = vmatpush1.msra.mxu0 0.0
      %6867 = vmatprep.subr.mxu0 0.0
      %6868 = vmatpush1.msra.mxu0 0.0
      %6869 = vmatprep.subr.mxu0 0.0
      %6870 = vmatpush1.msra.mxu0 0.0
      %6871 = vmatprep.subr.mxu0 0.0
      %6872 = vmatpush1.msra.mxu0 0.0
      %6873 = vmatprep.subr.mxu0 0.0
      %6874 = vmatpush1.msra.mxu0 0.0
      %6875 = vmatprep.subr.mxu0 0.0
      %6876 = vmatpush1.msra.mxu0 0.0
      %6877 = vmatprep.subr.mxu0 0.0
      %6878 = vmatpush1.msra.mxu0 0.0
      %6879 = vmatprep.subr.mxu0 0.0
      %6880 = vmatpush1.msra.mxu0 0.0
      %6881 = vmatprep.subr.mxu0 0.0
      %6882 = vmatpush1.msra.mxu0 0.0
      %6883 = vmatprep.subr.mxu0 0.0
      %6884 = vmatpush1.msra.mxu0 0.0
      %6885 = vmatprep.subr.mxu0 0.0
      %6886 = vmatpush1.msra.mxu0 0.0
      %6887 = vmatprep.subr.mxu0 0.0
      %6888 = vmatpush1.msra.mxu0 0.0
      %6889 = vmatprep.mubr.f32.mxu0 0.0
      %6890 = vmatmul.mubr.f32.gmra.mrb[0].mxu0 %v6823
      %v6891 = vpop.f32.mrb[0].mxu0
      %v6892 = vadd.f32 %v6820, %v6891
      %v6893 = vpop.f32.mrb[0].mxu0
      %6894 = vdwg.mxu0
      %s6895 = scalar_lea.vmem %s5, 8
      %v6896 = vld [vmem:[%s6895] sm:$0xff]
      %v6897 = vld [vmem:[%s6 + $0x1] sm:$0x1]
      %6898 = vmatprep.subr.mxu0 0.0
      %6899 = vmatpush1.msra.mxu0 %v6896
      %6900 = vmatprep.subr.mxu0 0.0
      %6901 = vmatpush1.msra.mxu0 0.0
      %6902 = vmatprep.subr.mxu0 0.0
      %6903 = vmatpush1.msra.mxu0 0.0
      %6904 = vmatprep.subr.mxu0 0.0
      %6905 = vmatpush1.msra.mxu0 0.0
      %6906 = vmatprep.subr.mxu0 0.0
      %6907 = vmatpush1.msra.mxu0 0.0
      %6908 = vmatprep.subr.mxu0 0.0
      %6909 = vmatpush1.msra.mxu0 0.0
      %6910 = vmatprep.subr.mxu0 0.0
      %6911 = vmatpush1.msra.mxu0 0.0
      %6912 = vmatprep.subr.mxu0 0.0
      %6913 = vmatpush1.msra.mxu0 0.0
      %6914 = vmatprep.subr.mxu0 0.0
      %6915 = vmatpush1.msra.mxu0 0.0
      %6916 = vmatprep.subr.mxu0 0.0
      %6917 = vmatpush1.msra.mxu0 0.0
      %6918 = vmatprep.subr.mxu0 0.0
      %6919 = vmatpush1.msra.mxu0 0.0
      %6920 = vmatprep.subr.mxu0 0.0
      %6921 = vmatpush1.msra.mxu0 0.0
      %6922 = vmatprep.subr.mxu0 0.0
      %6923 = vmatpush1.msra.mxu0 0.0
      %6924 = vmatprep.subr.mxu0 0.0
      %6925 = vmatpush1.msra.mxu0 0.0
      %6926 = vmatprep.subr.mxu0 0.0
      %6927 = vmatpush1.msra.mxu0 0.0
      %6928 = vmatprep.subr.mxu0 0.0
      %6929 = vmatpush1.msra.mxu0 0.0
      %6930 = vmatprep.subr.mxu0 0.0
      %6931 = vmatpush1.msra.mxu0 0.0
      %6932 = vmatprep.subr.mxu0 0.0
      %6933 = vmatpush1.msra.mxu0 0.0
      %6934 = vmatprep.subr.mxu0 0.0
      %6935 = vmatpush1.msra.mxu0 0.0
      %6936 = vmatprep.subr.mxu0 0.0
      %6937 = vmatpush1.msra.mxu0 0.0
      %6938 = vmatprep.subr.mxu0 0.0
      %6939 = vmatpush1.msra.mxu0 0.0
      %6940 = vmatprep.subr.mxu0 0.0
      %6941 = vmatpush1.msra.mxu0 0.0
      %6942 = vmatprep.subr.mxu0 0.0
      %6943 = vmatpush1.msra.mxu0 0.0
      %6944 = vmatprep.subr.mxu0 0.0
      %6945 = vmatpush1.msra.mxu0 0.0
      %6946 = vmatprep.subr.mxu0 0.0
      %6947 = vmatpush1.msra.mxu0 0.0
      %6948 = vmatprep.subr.mxu0 0.0
      %6949 = vmatpush1.msra.mxu0 0.0
      %6950 = vmatprep.subr.mxu0 0.0
      %6951 = vmatpush1.msra.mxu0 0.0
      %6952 = vmatprep.subr.mxu0 0.0
      %6953 = vmatpush1.msra.mxu0 0.0
      %6954 = vmatprep.subr.mxu0 0.0
      %6955 = vmatpush1.msra.mxu0 0.0
      %6956 = vmatprep.subr.mxu0 0.0
      %6957 = vmatpush1.msra.mxu0 0.0
      %6958 = vmatprep.subr.mxu0 0.0
      %6959 = vmatpush1.msra.mxu0 0.0
      %6960 = vmatprep.subr.mxu0 0.0
      %6961 = vmatpush1.msra.mxu0 0.0
      %6962 = vmatprep.mubr.f32.mxu0 0.0
      %6963 = vmatmul.mubr.f32.gmra.mrb[0].mxu0 %v6823
      %v6964 = vpop.f32.mrb[0].mxu0
      %v6965 = vadd.f32 %v6897, %v6964
      %v6966 = vpop.f32.mrb[0].mxu0
      %6967 = vdwg.mxu0
      %v6968 = vmax.f32 %v6892, %v6965
      %v6969 = vsub.f32 %v6892, %v6968
      %v6970 = vmul.f32 %v6969, 1.442695
      %v6971 = vpow.pop %v6970
      %v6972 = vsub.f32 %v6965, %v6968
      %v6973 = vmul.f32 %v6972, 1.442695
      %v6974 = vpow.pop %v6973
      %v6975 = vadd.f32 %v6971, %v6974
      %v6976 = vrcp.pop %v6975
      %v6977 = vmul.f32 %v6971, %v6976
      %v6978 = vmul.f32 %v6974, %v6976
      %v6979 = vlaneseq
      %v6980 = vshrl.u32 %v6979, 7
      %v6981 = vsub.s32 0, %v6980
      %v6982 = vrot.slane %v6977, %v6981
      %v6983 = vmul.f32 %v6480, %v6982
      %v6984 = vmul.f32 %v6481, %v6982
      %v6985 = vmul.f32 %v6482, %v6982
      %v6986 = vmul.f32 %v6483, %v6982
      %v6987 = vmul.f32 %v6484, %v6982
      %v6988 = vmul.f32 %v6485, %v6982
      %v6989 = vmul.f32 %v6486, %v6982
      %v6990 = vmul.f32 %v6487, %v6982
      %v6991 = vmul.f32 %v6488, %v6982
      %v6992 = vmul.f32 %v6489, %v6982
      %v6993 = vmul.f32 %v6490, %v6982
      %v6994 = vmul.f32 %v6491, %v6982
      %v6995 = vmul.f32 %v6492, %v6982
      %v6996 = vmul.f32 %v6493, %v6982
      %v6997 = vmul.f32 %v6494, %v6982
      %v6998 = vmul.f32 %v6495, %v6982
      %v6999 = vmul.f32 %v6496, %v6982
      %v7000 = vmul.f32 %v6497, %v6982
      %v7001 = vmul.f32 %v6498, %v6982
      %v7002 = vmul.f32 %v6499, %v6982
      %v7003 = vmul.f32 %v6500, %v6982
      %v7004 = vmul.f32 %v6501, %v6982
      %v7005 = vmul.f32 %v6502, %v6982
      %v7006 = vmul.f32 %v6503, %v6982
      %v7007 = vmul.f32 %v6504, %v6982
      %v7008 = vmul.f32 %v6505, %v6982
      %v7009 = vmul.f32 %v6506, %v6982
      %v7010 = vmul.f32 %v6507, %v6982
      %v7011 = vmul.f32 %v6508, %v6982
      %v7012 = vmul.f32 %v6509, %v6982
      %v7013 = vmul.f32 %v6510, %v6982
      %v7014 = vmul.f32 %v6511, %v6982
      %v7015 = vlaneseq
      %v7016 = vshrl.u32 %v7015, 7
      %v7017 = vsub.s32 0, %v7016
      %v7018 = vrot.slane %v6978, %v7017
      %7020 = vrot.lane.b32.xlu0 %v7018, 4
      %v7021 = vpop.permute.xlu0 %7020
      %v7023 = vmul.f32 %v6480, %v7021
      %v7024 = vmul.f32 %v6481, %v7021
      %v7025 = vmul.f32 %v6482, %v7021
      %v7026 = vmul.f32 %v6483, %v7021
      %v7027 = vmul.f32 %v6484, %v7021
      %v7028 = vmul.f32 %v6485, %v7021
      %v7029 = vmul.f32 %v6486, %v7021
      %v7030 = vmul.f32 %v6487, %v7021
      %v7031 = vmul.f32 %v6488, %v7021
      %v7032 = vmul.f32 %v6489, %v7021
      %v7033 = vmul.f32 %v6490, %v7021
      %v7034 = vmul.f32 %v6491, %v7021
      %v7035 = vmul.f32 %v6492, %v7021
      %v7036 = vmul.f32 %v6493, %v7021
      %v7037 = vmul.f32 %v6494, %v7021
      %v7038 = vmul.f32 %v6495, %v7021
      %v7039 = vmul.f32 %v6496, %v7021
      %v7040 = vmul.f32 %v6497, %v7021
      %v7041 = vmul.f32 %v6498, %v7021
      %v7042 = vmul.f32 %v6499, %v7021
      %v7043 = vmul.f32 %v6500, %v7021
      %v7044 = vmul.f32 %v6501, %v7021
      %v7045 = vmul.f32 %v6502, %v7021
      %v7046 = vmul.f32 %v6503, %v7021
      %v7047 = vmul.f32 %v6504, %v7021
      %v7048 = vmul.f32 %v6505, %v7021
      %v7049 = vmul.f32 %v6506, %v7021
      %v7050 = vmul.f32 %v6507, %v7021
      %v7051 = vmul.f32 %v6508, %v7021
      %v7052 = vmul.f32 %v6509, %v7021
      %v7053 = vmul.f32 %v6510, %v7021
      %v7054 = vmul.f32 %v6511, %v7021
      %7087 = vrot.lane.b32.xlu0 %v7023, 124
      %v7088 = vpop.permute.xlu0 %7087
      %7089 = vrot.lane.b32.xlu0 %v7024, 124
      %v7090 = vpop.permute.xlu0 %7089
      %7091 = vrot.lane.b32.xlu0 %v7025, 124
      %v7092 = vpop.permute.xlu0 %7091
      %7093 = vrot.lane.b32.xlu0 %v7026, 124
      %v7094 = vpop.permute.xlu0 %7093
      %7095 = vrot.lane.b32.xlu0 %v7027, 124
      %v7096 = vpop.permute.xlu0 %7095
      %7097 = vrot.lane.b32.xlu0 %v7028, 124
      %v7098 = vpop.permute.xlu0 %7097
      %7099 = vrot.lane.b32.xlu0 %v7029, 124
      %v7100 = vpop.permute.xlu0 %7099
      %7101 = vrot.lane.b32.xlu0 %v7030, 124
      %v7102 = vpop.permute.xlu0 %7101
      %7103 = vrot.lane.b32.xlu0 %v7031, 124
      %v7104 = vpop.permute.xlu0 %7103
      %7105 = vrot.lane.b32.xlu0 %v7032, 124
      %v7106 = vpop.permute.xlu0 %7105
      %7107 = vrot.lane.b32.xlu0 %v7033, 124
      %v7108 = vpop.permute.xlu0 %7107
      %7109 = vrot.lane.b32.xlu0 %v7034, 124
      %v7110 = vpop.permute.xlu0 %7109
      %7111 = vrot.lane.b32.xlu0 %v7035, 124
      %v7112 = vpop.permute.xlu0 %7111
      %7113 = vrot.lane.b32.xlu0 %v7036, 124
      %v7114 = vpop.permute.xlu0 %7113
      %7115 = vrot.lane.b32.xlu0 %v7037, 124
      %v7116 = vpop.permute.xlu0 %7115
      %7117 = vrot.lane.b32.xlu0 %v7038, 124
      %v7118 = vpop.permute.xlu0 %7117
      %7119 = vrot.lane.b32.xlu0 %v7039, 124
      %v7120 = vpop.permute.xlu0 %7119
      %7121 = vrot.lane.b32.xlu0 %v7040, 124
      %v7122 = vpop.permute.xlu0 %7121
      %7123 = vrot.lane.b32.xlu0 %v7041, 124
      %v7124 = vpop.permute.xlu0 %7123
      %7125 = vrot.lane.b32.xlu0 %v7042, 124
      %v7126 = vpop.permute.xlu0 %7125
      %7127 = vrot.lane.b32.xlu0 %v7043, 124
      %v7128 = vpop.permute.xlu0 %7127
      %7129 = vrot.lane.b32.xlu0 %v7044, 124
      %v7130 = vpop.permute.xlu0 %7129
      %7131 = vrot.lane.b32.xlu0 %v7045, 124
      %v7132 = vpop.permute.xlu0 %7131
      %7133 = vrot.lane.b32.xlu0 %v7046, 124
      %v7134 = vpop.permute.xlu0 %7133
      %7135 = vrot.lane.b32.xlu0 %v7047, 124
      %v7136 = vpop.permute.xlu0 %7135
      %7137 = vrot.lane.b32.xlu0 %v7048, 124
      %v7138 = vpop.permute.xlu0 %7137
      %7139 = vrot.lane.b32.xlu0 %v7049, 124
      %v7140 = vpop.permute.xlu0 %7139
      %7141 = vrot.lane.b32.xlu0 %v7050, 124
      %v7142 = vpop.permute.xlu0 %7141
      %7143 = vrot.lane.b32.xlu0 %v7051, 124
      %v7144 = vpop.permute.xlu0 %7143
      %7145 = vrot.lane.b32.xlu0 %v7052, 124
      %v7146 = vpop.permute.xlu0 %7145
      %7147 = vrot.lane.b32.xlu0 %v7053, 124
      %v7148 = vpop.permute.xlu0 %7147
      %7149 = vrot.lane.b32.xlu0 %v7054, 124
      %v7150 = vpop.permute.xlu0 %7149
      %v7183 = vadd.f32 %v6983, %v7088
      %v7184 = vadd.f32 %v6984, %v7090
      %v7185 = vadd.f32 %v6985, %v7092
      %v7186 = vadd.f32 %v6986, %v7094
      %v7187 = vadd.f32 %v6987, %v7096
      %v7188 = vadd.f32 %v6988, %v7098
      %v7189 = vadd.f32 %v6989, %v7100
      %v7190 = vadd.f32 %v6990, %v7102
      %v7191 = vadd.f32 %v6991, %v7104
      %v7192 = vadd.f32 %v6992, %v7106
      %v7193 = vadd.f32 %v6993, %v7108
      %v7194 = vadd.f32 %v6994, %v7110
      %v7195 = vadd.f32 %v6995, %v7112
      %v7196 = vadd.f32 %v6996, %v7114
      %v7197 = vadd.f32 %v6997, %v7116
      %v7198 = vadd.f32 %v6998, %v7118
      %v7199 = vadd.f32 %v6999, %v7120
      %v7200 = vadd.f32 %v7000, %v7122
      %v7201 = vadd.f32 %v7001, %v7124
      %v7202 = vadd.f32 %v7002, %v7126
      %v7203 = vadd.f32 %v7003, %v7128
      %v7204 = vadd.f32 %v7004, %v7130
      %v7205 = vadd.f32 %v7005, %v7132
      %v7206 = vadd.f32 %v7006, %v7134
      %v7207 = vadd.f32 %v7007, %v7136
      %v7208 = vadd.f32 %v7008, %v7138
      %v7209 = vadd.f32 %v7009, %v7140
      %v7210 = vadd.f32 %v7010, %v7142
      %v7211 = vadd.f32 %v7011, %v7144
      %v7212 = vadd.f32 %v7012, %v7146
      %v7213 = vadd.f32 %v7013, %v7148
      %v7214 = vadd.f32 %v7014, %v7150
      %7215 = vst.msk [vmem:[%s278] sm:$0xff] %vm280, %v7183
      %7216 = vst.msk [vmem:[%s278 + $0x8] sm:$0xff] %vm280, %v7184
      %7217 = vst.msk [vmem:[%s278 + $0x10] sm:$0xff] %vm280, %v7185
      %7218 = vst.msk [vmem:[%s278 + $0x18] sm:$0xff] %vm280, %v7186
      %7219 = vst.msk [vmem:[%s278 + $0x20] sm:$0xff] %vm280, %v7187
      %7220 = vst.msk [vmem:[%s278 + $0x28] sm:$0xff] %vm280, %v7188
      %7221 = vst.msk [vmem:[%s278 + $0x30] sm:$0xff] %vm280, %v7189
      %7222 = vst.msk [vmem:[%s278 + $0x38] sm:$0xff] %vm280, %v7190
      %7223 = vst.msk [vmem:[%s278 + $0x40] sm:$0xff] %vm280, %v7191
      %7224 = vst.msk [vmem:[%s278 + $0x48] sm:$0xff] %vm280, %v7192
      %7225 = vst.msk [vmem:[%s278 + $0x50] sm:$0xff] %vm280, %v7193
      %7226 = vst.msk [vmem:[%s278 + $0x58] sm:$0xff] %vm280, %v7194
      %7227 = vst.msk [vmem:[%s278 + $0x60] sm:$0xff] %vm280, %v7195
      %7228 = vst.msk [vmem:[%s278 + $0x68] sm:$0xff] %vm280, %v7196
      %7229 = vst.msk [vmem:[%s278 + $0x70] sm:$0xff] %vm280, %v7197
      %7230 = vst.msk [vmem:[%s278 + $0x78] sm:$0xff] %vm280, %v7198
      %7231 = vst.msk [vmem:[%s278 + $0x80] sm:$0xff] %vm280, %v7199
      %7232 = vst.msk [vmem:[%s278 + $0x88] sm:$0xff] %vm280, %v7200
      %7233 = vst.msk [vmem:[%s278 + $0x90] sm:$0xff] %vm280, %v7201
      %7234 = vst.msk [vmem:[%s278 + $0x98] sm:$0xff] %vm280, %v7202
      %7235 = vst.msk [vmem:[%s278 + $0xa0] sm:$0xff] %vm280, %v7203
      %7236 = vst.msk [vmem:[%s278 + $0xa8] sm:$0xff] %vm280, %v7204
      %7237 = vst.msk [vmem:[%s278 + $0xb0] sm:$0xff] %vm280, %v7205
      %7238 = vst.msk [vmem:[%s278 + $0xb8] sm:$0xff] %vm280, %v7206
      %7239 = vst.msk [vmem:[%s278 + $0xc0] sm:$0xff] %vm280, %v7207
      %7240 = vst.msk [vmem:[%s278 + $0xc8] sm:$0xff] %vm280, %v7208
      %7241 = vst.msk [vmem:[%s278 + $0xd0] sm:$0xff] %vm280, %v7209
      %7242 = vst.msk [vmem:[%s278 + $0xd8] sm:$0xff] %vm280, %v7210
      %7243 = vst.msk [vmem:[%s278 + $0xe0] sm:$0xff] %vm280, %v7211
      %7244 = vst.msk [vmem:[%s278 + $0xe8] sm:$0xff] %vm280, %v7212
      %7245 = vst.msk [vmem:[%s278 + $0xf0] sm:$0xff] %vm280, %v7213
      %7246 = vst.msk [vmem:[%s278 + $0xf8] sm:$0xff] %vm280, %v7214
      %p7247 = scmp.lt.s32.totalorder %s18, 1
      %s7248 = scalar_select %p7247, %s18, 1
      %s7249 = smul.addr %s7248, 32
      %s7250 = smul.addr %s7249, 8
      %s7251 = scalar_lea.vmem %s7, %s7250
      // Predicated region
      $region49: #{tpu_custom_call.1} parent=47 // pred_check
        %p7252 = pneg %p188
      $region50: #{tpu_custom_call.1} parent=47 // pred_check_branch
        %7254 = sbr.rel (%p7252) target = $region52
      $region51: #{tpu_custom_call.1} parent=47 // pred_region
        _
      $region52: #{tpu_custom_call.1} parent=47 // pred_fallthru
        _
    $region48: #{tpu_custom_call.1} parent=5 // pred_fallthru
      _
    %p7255 = scmp.le.s32.totalorder 2, %s13
    // Predicated region
    $region53: #{tpu_custom_call.1} parent=5 // pred_check
      %p7256 = pneg %p7255
    $region54: #{tpu_custom_call.1} parent=5 // pred_check_branch
      %7258 = sbr.rel (%p7256) target = $region56
    $region55: #{tpu_custom_call.1} parent=5 // pred_region
      %s7259 = ssub.s32 %s13, 2
      // Predicated region
      $region57: #{tpu_custom_call.1} parent=55 // pred_check
        %p7260 = pneg %p194
      $region58: #{tpu_custom_call.1} parent=55 // pred_check_branch
        %7262 = sbr.rel (%p7260) target = $region60
      $region59: #{tpu_custom_call.1} parent=55 // pred_region
        %p7263 = scmp.lt.s32.totalorder %s19, 1
        %s7264 = scalar_select %p7263, %s19, 1
        %s7265 = smul.addr %s7264, 32
        %s7266 = smul.addr %s7265, 8
        %s7267 = scalar_lea.vmem %s7, %s7266
      $region60: #{tpu_custom_call.1} parent=55 // pred_fallthru
        _
    $region56: #{tpu_custom_call.1} parent=5 // pred_fallthru
      _
  $region6: #{tpu_custom_call.1} parent=0 // loop_footer
    %s17 = sadd.s32 1, %s13
  $region7: #{tpu_custom_call.1} parent=0 // loop_footer_branch
    %12 = sbr.rel target = $region3
  $region8: #{tpu_custom_call.1} parent=0 // loop_exit
    _

</llo_original>
